<compile_context>
chip_gen: v7x
topology: tpu7x:2x2x1
jax: 0.10.0
libtpu: 0.0.40
codegen_flags: <defaults>
</compile_context>

<pallas_src>
import math
from functools import partial

import jax
import jax.numpy as jnp
from jax import lax
from jax.experimental import pallas as pl
from jax.experimental.pallas import tpu as pltpu

H = 128        # GRU hidden size (fixed by the module)
D = 2 * H      # transformer d_model = 256
NH = 8         # attention heads
DH = D // NH   # head dim = 32
FF = 2048      # PyTorch TransformerEncoder/DecoderLayer default dim_feedforward
EPS = 1e-5     # LayerNorm eps (PyTorch default)


def _round_up(v, m):
    return ((v + m - 1) // m) * m


# --------------------- tiled linear (bias + activation fused) ---------------------

def _linear_kernel(a_ref, w_ref, b_ref, o_ref, acc_ref, *, act):
    k = pl.program_id(2)

    @pl.when(k == 0)
    def _():
        acc_ref[...] = jnp.zeros_like(acc_ref)

    acc_ref[...] += jnp.dot(a_ref[...].astype(jnp.bfloat16), w_ref[...],
                            preferred_element_type=jnp.float32)

    @pl.when(k == pl.num_programs(2) - 1)
    def _():
        y = acc_ref[...] + b_ref[...]
        if act == 'relu':
            y = jnp.maximum(y, 0.0)
        elif act == 'tanh':
            y = jnp.tanh(y)
        o_ref[...] = y


def pallas_linear(a, w_t, b, act='none'):
    """y = act(a @ w_t + b). a: (M,K) f32, w_t: (K,N) bf16 (pre-transposed), b: (N,) f32."""
    M, K = a.shape
    Kw, N = w_t.shape
    assert Kw == K
    Mp, Kp, Np = _round_up(M, 8), _round_up(K, 128), _round_up(N, 128)
    tm = min(256, Mp)
    tn = min(256, Np)
    tk = min(512, Kp)
    Mp, Np, Kp = _round_up(Mp, tm), _round_up(Np, tn), _round_up(Kp, tk)

    a_p = a if (M, K) == (Mp, Kp) else jnp.pad(a, ((0, Mp - M), (0, Kp - K)))
    w_p = w_t if (K, N) == (Kp, Np) else jnp.pad(w_t, ((0, Kp - K), (0, Np - N)))
    b_p = b.reshape(1, N).astype(jnp.float32)
    if N != Np:
        b_p = jnp.pad(b_p, ((0, 0), (0, Np - N)))

    grid = (Mp // tm, Np // tn, Kp // tk)
    out = pl.pallas_call(
        partial(_linear_kernel, act=act),
        out_shape=jax.ShapeDtypeStruct((Mp, Np), jnp.float32),
        grid=grid,
        in_specs=[pl.BlockSpec((tm, tk), lambda i, j, k: (i, k)),
                  pl.BlockSpec((tk, tn), lambda i, j, k: (k, j)),
                  pl.BlockSpec((1, tn), lambda i, j, k: (0, j))],
        out_specs=pl.BlockSpec((tm, tn), lambda i, j, k: (i, j)),
        scratch_shapes=[pltpu.VMEM((tm, tn), jnp.float32)],
        compiler_params=pltpu.CompilerParams(
            dimension_semantics=("parallel", "parallel", "arbitrary")),
        cost_estimate=pl.CostEstimate(
            flops=2 * Mp * Np * Kp, transcendentals=0,
            bytes_accessed=4 * Mp * Kp + 2 * Kp * Np + 4 * Mp * Np),
    )(a_p, w_p, b_p)
    if (Mp, Np) != (M, N):
        out = out[:M, :N]
    return out


# --------------------- BiGRU layer (both directions, time loop in-kernel) ---------------------

def _gru_dir_kernel(xg_ref, whh_ref, bhh_ref, out_ref, *, seq_len, batch):
    """One GRU direction (selected by grid index). xg already contains W_ih x + b_ih."""
    rev = pl.program_id(0) == 1          # d=0 forward, d=1 backward
    whh = whh_ref[...]                   # (H, 3H) bf16
    bhh = bhh_ref[...]                   # (1, 3H) f32

    def body(t, h):
        idx = jnp.where(rev, seq_len - 1 - t, t)
        xg = xg_ref[idx]                 # (B, 3H)
        hg = jnp.dot(h.astype(jnp.bfloat16), whh,
                     preferred_element_type=jnp.float32) + bhh
        r = jax.nn.sigmoid(xg[:, :H] + hg[:, :H])
        z = jax.nn.sigmoid(xg[:, H:2 * H] + hg[:, H:2 * H])
        n = jnp.tanh(xg[:, 2 * H:] + r * hg[:, 2 * H:])
        h_new = (1.0 - z) * n + z * h
        out_ref[idx] = h_new             # writes this direction's lane-half
        return h_new

    h0 = jnp.zeros((batch, H), jnp.float32)
    lax.fori_loop(0, seq_len, body, h0, unroll=seq_len <= 32)


def bigru(x, p):
    """x: (B, T, F) -> (B, T, 2H). Time-major internally; reversal handled in-kernel."""
    B_, T_, _ = x.shape
    xt = x.transpose(1, 0, 2)                                      # (T, B, In)
    for l in range(2):
        in_dim = xt.shape[-1]
        # Input projection for both directions at once: columns [0:3H]=fwd, [3H:6H]=bwd.
        xg = pallas_linear(xt.reshape(T_ * B_, in_dim),
                           p[f'gru{l}_wih_T'], p[f'gru{l}_bih'])   # (T*B, 6H)
        xg = xg.reshape(T_, B_, 6 * H)
        # TODO(synk): for very long sequences, chunk xg over T (VMEM resident here).
        xt = pl.pallas_call(
            partial(_gru_dir_kernel, seq_len=T_, batch=B_),
            out_shape=jax.ShapeDtypeStruct((T_, B_, 2 * H), jnp.float32),
            grid=(2,),
            in_specs=[pl.BlockSpec((T_, B_, 3 * H), lambda d: (0, 0, d)),
                      pl.BlockSpec((H, 3 * H), lambda d: (0, d)),
                      pl.BlockSpec((1, 3 * H), lambda d: (0, d))],
            out_specs=pl.BlockSpec((T_, B_, H), lambda d: (0, 0, d)),
            compiler_params=pltpu.CompilerParams(
                dimension_semantics=("parallel",)),
        )(xg, p[f'gru{l}_whh_T'], p[f'gru{l}_bhh'])                # (T, B, 2H)
        # TODO(synk): inter-layer GRU dropout(0.3) is identity at inference.
    return xt.transpose(1, 0, 2)                                   # (B, T, 2H)


# --------------------- multi-head attention (all heads + out-proj fused) ---------------------

def _mha_kernel(q_ref, k_ref, v_ref, wo_ref, bo_ref, o_ref, *, nh, dh, scale):
    q = q_ref[0].astype(jnp.bfloat16)        # (Tq, D) lane-dense
    k = k_ref[0].astype(jnp.bfloat16)        # (Tk, D)
    v = v_ref[0].astype(jnp.bfloat16)        # (Tk, D)
    heads = []
    for h in range(nh):
        lo = h * dh
        qh = q[:, lo:lo + dh]
        kh = k[:, lo:lo + dh]
        vh = v[:, lo:lo + dh]
        s = lax.dot_general(qh, kh, (((1,), (1,)), ((), ())),
                            preferred_element_type=jnp.float32) * scale
        s = s - jnp.max(s, axis=-1, keepdims=True)
        pr = jnp.exp(s)
        pr = pr * pl.reciprocal(jnp.sum(pr, axis=-1, keepdims=True), approx=True)
        heads.append(jnp.dot(pr.astype(jnp.bfloat16), vh,
                             preferred_element_type=jnp.float32))
    att = jnp.concatenate(heads, axis=-1)    # (Tq, D)
    o = jnp.dot(att.astype(jnp.bfloat16), wo_ref[...],
                preferred_element_type=jnp.float32) + bo_ref[...]
    o_ref[...] = o.reshape(o_ref.shape)


def pallas_mha(q, k, v, wo_t, bo):
    """q: (B,Tq,D), k/v: (B,Tk,D) f32; fused softmax attention + output projection."""
    B_, Tq, _ = q.shape
    Tk = k.shape[1]
    return pl.pallas_call(
        partial(_mha_kernel, nh=NH, dh=DH, scale=1.0 / math.sqrt(DH)),
        out_shape=jax.ShapeDtypeStruct((B_, Tq, D), jnp.float32),
        grid=(B_,),
        in_specs=[pl.BlockSpec((1, Tq, D), lambda b: (b, 0, 0)),
                  pl.BlockSpec((1, Tk, D), lambda b: (b, 0, 0)),
                  pl.BlockSpec((1, Tk, D), lambda b: (b, 0, 0)),
                  pl.BlockSpec((D, D), lambda b: (0, 0)),
                  pl.BlockSpec((1, D), lambda b: (0, 0))],
        out_specs=pl.BlockSpec((1, Tq, D), lambda b: (b, 0, 0)),
        compiler_params=pltpu.CompilerParams(dimension_semantics=("parallel",)),
    )(q, k, v, wo_t, bo)


# --------------------- fused residual add + LayerNorm ---------------------

def _add_ln_kernel(x_ref, y_ref, g_ref, b_ref, o_ref):
    v = x_ref[...] + y_ref[...]
    mu = jnp.mean(v, axis=-1, keepdims=True)
    d = v - mu
    var = jnp.mean(d * d, axis=-1, keepdims=True)
    o_ref[...] = d * lax.rsqrt(var + EPS) * g_ref[...] + b_ref[...]


def pallas_add_layernorm(x, y, g, b):
    shp = x.shape
    rows = math.prod(shp[:-1])
    dd = shp[-1]
    x2 = x.reshape(rows, dd)
    y2 = y.reshape(rows, dd)
    Rp = _round_up(rows, 8)
    tr = min(256, Rp)
    Rp = _round_up(Rp, tr)
    if Rp != rows:
        x2 = jnp.pad(x2, ((0, Rp - rows), (0, 0)))
        y2 = jnp.pad(y2, ((0, Rp - rows), (0, 0)))
    out = pl.pallas_call(
        _add_ln_kernel,
        out_shape=jax.ShapeDtypeStruct((Rp, dd), jnp.float32),
        grid=(Rp // tr,),
        in_specs=[pl.BlockSpec((tr, dd), lambda i: (i, 0)),
                  pl.BlockSpec((tr, dd), lambda i: (i, 0)),
                  pl.BlockSpec((1, dd), lambda i: (0, 0)),
                  pl.BlockSpec((1, dd), lambda i: (0, 0))],
        out_specs=pl.BlockSpec((tr, dd), lambda i: (i, 0)),
        compiler_params=pltpu.CompilerParams(dimension_semantics=("parallel",)),
    )(x2, y2, g, b)
    if Rp != rows:
        out = out[:rows]
    return out.reshape(shp)


# --------------------- fused attention pooling ---------------------

def _attnpool_kernel(x_ref, w1_ref, b1_ref, w2_ref, o_ref):
    x = x_ref[0]                                               # (T, D)
    h = jnp.tanh(jnp.dot(x.astype(jnp.bfloat16), w1_ref[...],
                         preferred_element_type=jnp.float32) + b1_ref[...])
    # score bias b2 adds a constant to every position -> softmax-invariant, omitted.
    s = jnp.sum(h * w2_ref[...], axis=-1, keepdims=True)       # (T, 1)
    s = s - jnp.max(s, axis=0, keepdims=True)
    p = jnp.exp(s)
    p = p * pl.reciprocal(jnp.sum(p, axis=0, keepdims=True), approx=True)
    o_ref[...] = jnp.sum(x * p, axis=0, keepdims=True).reshape(o_ref.shape)


def pallas_attn_pool(x, w1_t, b1, w2):
    """x: (B, T, D) -> (B, D). Fused tanh(Linear)->score->softmax(seq)->weighted sum."""
    B_, T_, D_ = x.shape
    out = pl.pallas_call(
        _attnpool_kernel,
        out_shape=jax.ShapeDtypeStruct((B_, 1, D_), jnp.float32),
        grid=(B_,),
        in_specs=[pl.BlockSpec((1, T_, D_), lambda b: (b, 0, 0)),
                  pl.BlockSpec((D_, D_), lambda b: (0, 0)),
                  pl.BlockSpec((1, D_), lambda b: (0, 0)),
                  pl.BlockSpec((1, D_), lambda b: (0, 0))],
        out_specs=pl.BlockSpec((1, 1, D_), lambda b: (b, 0, 0)),
        compiler_params=pltpu.CompilerParams(dimension_semantics=("parallel",)),
    )(x, w1_t, b1, w2)
    return out.reshape(B_, D_)


# --------------------- transformer glue ---------------------

def self_attention_block(x, p, pre):
    B_, T_, _ = x.shape
    qkv = pallas_linear(x.reshape(B_ * T_, D), p[pre + 'win_T'], p[pre + 'bin'])
    qkv = qkv.reshape(B_, T_, 3 * D)
    q, k, v = qkv[..., :D], qkv[..., D:2 * D], qkv[..., 2 * D:]
    return pallas_mha(q, k, v, p[pre + 'wo_T'], p[pre + 'bo'])


def cross_attention_block(q_in, kv_in, p, pre):
    B_, Tq, _ = q_in.shape
    Tk = kv_in.shape[1]
    q = pallas_linear(q_in.reshape(B_ * Tq, D),
                      p[pre + 'win_T'][:, :D], p[pre + 'bin'][:D]).reshape(B_, Tq, D)
    kv = pallas_linear(kv_in.reshape(B_ * Tk, D),
                       p[pre + 'win_T'][:, D:], p[pre + 'bin'][D:]).reshape(B_, Tk, 2 * D)
    k, v = kv[..., :D], kv[..., D:]
    return pallas_mha(q, k, v, p[pre + 'wo_T'], p[pre + 'bo'])


def encoder_layer(x, p, i):
    pre = f'enc{i}_'
    sa = self_attention_block(x, p, pre + 'sa_')
    x = pallas_add_layernorm(x, sa, p[pre + 'norm1_g'], p[pre + 'norm1_b'])
    B_, T_, _ = x.shape
    h = pallas_linear(x.reshape(B_ * T_, D), p[pre + 'lin1_T'], p[pre + 'lin1_b'], act='relu')
    h = pallas_linear(h, p[pre + 'lin2_T'], p[pre + 'lin2_b'])
    x = pallas_add_layernorm(x, h.reshape(B_, T_, D), p[pre + 'norm2_g'], p[pre + 'norm2_b'])
    return x


def decoder_layer(tgt, mem, p, i):
    pre = f'dec{i}_'
    sa = self_attention_block(tgt, p, pre + 'sa_')          # no tgt_mask (matches reference call)
    tgt = pallas_add_layernorm(tgt, sa, p[pre + 'norm1_g'], p[pre + 'norm1_b'])
    ca = cross_attention_block(tgt, mem, p, pre + 'ca_')
    tgt = pallas_add_layernorm(tgt, ca, p[pre + 'norm2_g'], p[pre + 'norm2_b'])
    B_, T_, _ = tgt.shape
    h = pallas_linear(tgt.reshape(B_ * T_, D), p[pre + 'lin1_T'], p[pre + 'lin1_b'], act='relu')
    h = pallas_linear(h, p[pre + 'lin2_T'], p[pre + 'lin2_b'])
    tgt = pallas_add_layernorm(tgt, h.reshape(B_, T_, D), p[pre + 'norm3_g'], p[pre + 'norm3_b'])
    return tgt


def positional_encoding(T, d_model):
    pos = jnp.arange(T, dtype=jnp.float32)[:, None]
    div = jnp.exp(-jnp.arange(0, d_model, 2, dtype=jnp.float32)
                  * (math.log(10000.0) / d_model))
    pe = jnp.zeros((T, d_model), jnp.float32)
    pe = pe.at[:, 0::2].set(jnp.sin(pos * div))
    pe = pe.at[:, 1::2].set(jnp.cos(pos * div))
    return pe


def emodel_bigru_forward(params, x):
    # x: (B, T, F)
    x = x * params['feature_importance'][None, None, :]
    gru_out = bigru(x, params)                               # (B, T, 256)
    T_ = gru_out.shape[1]
    pe = positional_encoding(T_, D)

    mem = gru_out + pe[None]                                 # encoder PE
    for i in range(2):
        mem = encoder_layer(mem, params, i)

    tgt = gru_out + pe[None]                                 # decoder PE (same values)
    for i in range(2):
        tgt = decoder_layer(tgt, mem, params, i)

    pooled = pallas_attn_pool(tgt, params['attn_w1_T'],
                              params['attn_b1'], params['attn_w2'])   # (B, 256)

    h = pallas_linear(pooled, params['fc1_w_T'], params['fc1_b'], act='relu')  # (B, 128)
    out = pallas_linear(h, params['fc2_w_T'], params['fc2_b'])                 # (B, 1)
    return out[:, 0]                                                           # squeeze(-1)


# --------------------- parameter init (pre-transposed / pre-cast layouts) ---------------------

def init_params(feature_dim, key):
    keys = iter(jax.random.split(key, 512))

    def unif(shape, fan_in, dtype=jnp.float32):
        s = 1.0 / math.sqrt(fan_in)
        return jax.random.uniform(next(keys), shape, jnp.float32, -s, s).astype(dtype)

    p = {'feature_importance': jnp.ones((feature_dim,), jnp.float32)}

    for l in range(2):
        in_dim = feature_dim if l == 0 else 2 * H
        # weights stored pre-transposed (in, out); columns [0:3H]=fwd, [3H:6H]=bwd.
        p[f'gru{l}_wih_T'] = unif((in_dim, 6 * H), H, jnp.bfloat16)
        p[f'gru{l}_bih'] = unif((6 * H,), H)
        p[f'gru{l}_whh_T'] = unif((H, 6 * H), H, jnp.bfloat16)
        p[f'gru{l}_bhh'] = unif((1, 6 * H), H)

    def attn_block(pre):
        p[pre + 'win_T'] = unif((D, 3 * D), D, jnp.bfloat16)   # in_proj_weight.T
        p[pre + 'bin'] = jnp.zeros((3 * D,), jnp.float32)
        p[pre + 'wo_T'] = unif((D, D), D, jnp.bfloat16)
        p[pre + 'bo'] = jnp.zeros((1, D), jnp.float32)

    def norm(pre):
        p[pre + '_g'] = jnp.ones((1, D), jnp.float32)
        p[pre + '_b'] = jnp.zeros((1, D), jnp.float32)

    for i in range(2):
        pre = f'enc{i}_'
        attn_block(pre + 'sa_')
        p[pre + 'lin1_T'] = unif((D, FF), D, jnp.bfloat16); p[pre + 'lin1_b'] = unif((FF,), D)
        p[pre + 'lin2_T'] = unif((FF, D), FF, jnp.bfloat16); p[pre + 'lin2_b'] = unif((D,), FF)
        norm(pre + 'norm1'); norm(pre + 'norm2')

    for i in range(2):
        pre = f'dec{i}_'
        attn_block(pre + 'sa_'); attn_block(pre + 'ca_')
        p[pre + 'lin1_T'] = unif((D, FF), D, jnp.bfloat16); p[pre + 'lin1_b'] = unif((FF,), D)
        p[pre + 'lin2_T'] = unif((FF, D), FF, jnp.bfloat16); p[pre + 'lin2_b'] = unif((D,), FF)
        norm(pre + 'norm1'); norm(pre + 'norm2'); norm(pre + 'norm3')

    p['attn_w1_T'] = unif((D, D), D, jnp.bfloat16)
    p['attn_b1'] = unif((1, D), D)
    p['attn_w2'] = unif((1, D), D)   # second attention Linear weight; its bias cancels under softmax
    p['fc1_w_T'] = unif((D, H), D, jnp.bfloat16); p['fc1_b'] = unif((H,), D)
    p['fc2_w_T'] = unif((H, 1), H, jnp.bfloat16); p['fc2_b'] = unif((1,), H)
    return p


if __name__ == "__main__":
    B, T, F_DIM = 2, 8, 8
    key = jax.random.PRNGKey(0)
    kx, kp = jax.random.split(key)
    x = jax.random.normal(kx, (B, T, F_DIM), jnp.float32)
    params = init_params(F_DIM, kp)

    fwd = jax.jit(emodel_bigru_forward)
    out = jax.block_until_ready(fwd(params, x))

    assert out.shape == (B,), out.shape
    assert bool(jnp.all(jnp.isfinite(out)))
    print("KERNEL_OK")
</pallas_src>

<mosaic_0001>
module attributes {stable_mosaic.version = 11 : i64} {
  func.func @_linear_kernel(%arg0: i32, %arg1: i32, %arg2: i32, %arg3: memref<16x128xf32, #tpu.memory_space<vmem>>, %arg4: memref<128x256xbf16, #tpu.memory_space<vmem>>, %arg5: memref<1x256xf32, #tpu.memory_space<vmem>>, %arg6: memref<16x256xf32, #tpu.memory_space<vmem>>, %arg7: memref<16x256xf32, #tpu.memory_space<vmem>>) attributes {dimension_semantics = [#tpu.dimension_semantics<parallel>, #tpu.dimension_semantics<parallel>, #tpu.dimension_semantics<arbitrary>], iteration_bounds = array<i64: 1, 3, 1>, scalar_prefetch = 0 : i64, scratch_operands = 1 : i64, tpu.core_type = #tpu.core_type<tc>, window_params = [{transform_indices = @transform_0, window_bounds = array<i64: 16, 128>}, {transform_indices = @transform_1, window_bounds = array<i64: 128, 256>}, {transform_indices = @transform_2, window_bounds = array<i64: 1, 256>}, {transform_indices = @transform_3, window_bounds = array<i64: 16, 256>}]} {
    %c0_i32 = arith.constant 0 : i32
    %0 = arith.cmpi eq, %arg2, %c0_i32 : i32
    %1 = arith.extui %0 : i1 to i32
    %c0_i32_0 = arith.constant 0 : i32
    %2 = arith.cmpi ne, %1, %c0_i32_0 : i32
    scf.if %2 {
      %cst_10 = arith.constant 0.000000e+00 : f32
      %13 = vector.broadcast %cst_10 : f32 to vector<16x256xf32>
      %c0_11 = arith.constant 0 : index
      %c0_12 = arith.constant 0 : index
      %14 = vector.load %arg7[%c0_11, %c0_12] : memref<16x256xf32, #tpu.memory_space<vmem>>, vector<16x256xf32>
      tpu.vector_store %arg7[%c0_11, %c0_12], %13 {strides = array<i32>} : memref<16x256xf32, #tpu.memory_space<vmem>>, vector<16x256xf32>,
    } else {
    }
    %c0 = arith.constant 0 : index
    %c0_1 = arith.constant 0 : index
    %3 = vector.load %arg7[%c0, %c0_1] : memref<16x256xf32, #tpu.memory_space<vmem>>, vector<16x256xf32>
    %c0_2 = arith.constant 0 : index
    %c0_3 = arith.constant 0 : index
    %4 = vector.load %arg3[%c0_2, %c0_3] : memref<16x128xf32, #tpu.memory_space<vmem>>, vector<16x128xf32>
    %5 = arith.truncf %4 : vector<16x128xf32> to vector<16x128xbf16>
    %c0_4 = arith.constant 0 : index
    %c0_5 = arith.constant 0 : index
    %6 = vector.load %arg4[%c0_4, %c0_5] : memref<128x256xbf16, #tpu.memory_space<vmem>>, vector<128x256xbf16>
    %cst = arith.constant dense<0.000000e+00> : vector<16x256xf32>
    %7 = tpu.matmul %5, %6, %cst {dimension_numbers = #tpu.dot_dimension_numbers<[1], [0], [0], [1], [0, 0, 1, 1], [], []>} : vector<16x128xbf16>, vector<128x256xbf16>, vector<16x256xf32> -> vector<16x256xf32>
    %8 = arith.addf %3, %7 : vector<16x256xf32>
    %c0_6 = arith.constant 0 : index
    %c0_7 = arith.constant 0 : index
    %9 = vector.load %arg7[%c0_6, %c0_7] : memref<16x256xf32, #tpu.memory_space<vmem>>, vector<16x256xf32>
    tpu.vector_store %arg7[%c0_6, %c0_7], %8 {strides = array<i32>} : memref<16x256xf32, #tpu.memory_space<vmem>>, vector<16x256xf32>,
    %c0_i32_8 = arith.constant 0 : i32
    %10 = arith.cmpi eq, %arg2, %c0_i32_8 : i32
    %11 = arith.extui %10 : i1 to i32
    %c0_i32_9 = arith.constant 0 : i32
    %12 = arith.cmpi ne, %11, %c0_i32_9 : i32
    scf.if %12 {
      %c0_10 = arith.constant 0 : index
      %c0_11 = arith.constant 0 : index
      %13 = vector.load %arg7[%c0_10, %c0_11] : memref<16x256xf32, #tpu.memory_space<vmem>>, vector<16x256xf32>
      %c0_12 = arith.constant 0 : index
      %c0_13 = arith.constant 0 : index
      %14 = vector.load %arg5[%c0_12, %c0_13] : memref<1x256xf32, #tpu.memory_space<vmem>>, vector<1x256xf32>
      %15 = vector.broadcast %14 : vector<1x256xf32> to vector<16x256xf32>
      %16 = arith.addf %13, %15 : vector<16x256xf32>
      %c0_14 = arith.constant 0 : index
      %c0_15 = arith.constant 0 : index
      %17 = vector.load %arg6[%c0_14, %c0_15] : memref<16x256xf32, #tpu.memory_space<vmem>>, vector<16x256xf32>
      tpu.vector_store %arg6[%c0_14, %c0_15], %16 {strides = array<i32>} : memref<16x256xf32, #tpu.memory_space<vmem>>, vector<16x256xf32>,
    } else {
    }
    return
  }
  func.func @transform_0(%arg0: i32, %arg1: i32, %arg2: i32) -> (i32, i32) {
    %c0_i32 = arith.constant 0 : i32
    return %arg0, %arg2 : i32, i32
  }
  func.func @transform_1(%arg0: i32, %arg1: i32, %arg2: i32) -> (i32, i32) {
    %c0_i32 = arith.constant 0 : i32
    return %arg2, %arg1 : i32, i32
  }
  func.func @transform_2(%arg0: i32, %arg1: i32, %arg2: i32) -> (i32, i32) {
    %c0_i32 = arith.constant 0 : i32
    %c0_i32_0 = arith.constant 0 : i32
    return %c0_i32, %arg1 : i32, i32
  }
  func.func @transform_3(%arg0: i32, %arg1: i32, %arg2: i32) -> (i32, i32) {
    %c0_i32 = arith.constant 0 : i32
    return %arg0, %arg1 : i32, i32
  }
}

module attributes {stable_mosaic.version = 11 : i64} {
  func.func @_gru_dir_kernel(%arg0: i32, %arg1: memref<8x2x384xf32, #tpu.memory_space<vmem>>, %arg2: memref<128x384xbf16, #tpu.memory_space<vmem>>, %arg3: memref<1x384xf32, #tpu.memory_space<vmem>>, %arg4: memref<8x2x128xf32, #tpu.memory_space<vmem>>) attributes {dimension_semantics = [#tpu.dimension_semantics<parallel>], iteration_bounds = array<i64: 2>, scalar_prefetch = 0 : i64, scratch_operands = 0 : i64, tpu.core_type = #tpu.core_type<tc>, window_params = [{transform_indices = @transform_0, window_bounds = array<i64: 8, 2, 384>}, {transform_indices = @transform_1, window_bounds = array<i64: 128, 384>}, {transform_indices = @transform_2, window_bounds = array<i64: 1, 384>}, {transform_indices = @transform_3, window_bounds = array<i64: 8, 2, 128>}]} {
    %c1_i32 = arith.constant 1 : i32
    %0 = arith.cmpi eq, %arg0, %c1_i32 : i32
    %c0 = arith.constant 0 : index
    %c0_0 = arith.constant 0 : index
    %1 = vector.load %arg2[%c0, %c0_0] : memref<128x384xbf16, #tpu.memory_space<vmem>>, vector<128x384xbf16>
    %c0_1 = arith.constant 0 : index
    %c0_2 = arith.constant 0 : index
    %2 = vector.load %arg3[%c0_1, %c0_2] : memref<1x384xf32, #tpu.memory_space<vmem>>, vector<1x384xf32>
    %cst = arith.constant 0.000000e+00 : f32
    %3 = vector.broadcast %cst : f32 to vector<2x128xf32>
    %c0_i32 = arith.constant 0 : i32
    %c7_i32 = arith.constant 7 : i32
    %4 = arith.subi %c7_i32, %c0_i32 : i32
    %5 = arith.select %0, %4, %c0_i32 : i32
    %6 = arith.index_cast %5 : i32 to index
    %c0_3 = arith.constant 0 : index
    %c0_4 = arith.constant 0 : index
    %7 = vector.load %arg1[%6, %c0_3, %c0_4] : memref<8x2x384xf32, #tpu.memory_space<vmem>>, vector<1x2x384xf32>
    %8 = vector.shape_cast %7 : vector<1x2x384xf32> to vector<2x384xf32>
    %9 = arith.truncf %3 : vector<2x128xf32> to vector<2x128xbf16>
    %cst_5 = arith.constant dense<0.000000e+00> : vector<2x384xf32>
    %10 = tpu.matmul %9, %1, %cst_5 {dimension_numbers = #tpu.dot_dimension_numbers<[1], [0], [0], [1], [0, 0, 1, 1], [], []>} : vector<2x128xbf16>, vector<128x384xbf16>, vector<2x384xf32> -> vector<2x384xf32>
    %11 = vector.broadcast %2 : vector<1x384xf32> to vector<2x384xf32>
    %12 = arith.addf %10, %11 : vector<2x384xf32>
    %13 = vector.extract_strided_slice %8 {offsets = [0, 0], sizes = [2, 128], strides = [1, 1]} : vector<2x384xf32> to vector<2x128xf32>
    %14 = vector.extract_strided_slice %12 {offsets = [0, 0], sizes = [2, 128], strides = [1, 1]} : vector<2x384xf32> to vector<2x128xf32>
    %15 = arith.addf %13, %14 : vector<2x128xf32>
    %16 = arith.negf %15 : vector<2x128xf32>
    %17 = math.exp %16 : vector<2x128xf32>
    %cst_6 = arith.constant 1.000000e+00 : f32
    %18 = vector.broadcast %cst_6 : f32 to vector<2x128xf32>
    %19 = arith.addf %18, %17 : vector<2x128xf32>
    %20 = arith.divf %18, %19 : vector<2x128xf32>
    %21 = vector.extract_strided_slice %8 {offsets = [0, 128], sizes = [2, 128], strides = [1, 1]} : vector<2x384xf32> to vector<2x128xf32>
    %22 = vector.extract_strided_slice %12 {offsets = [0, 128], sizes = [2, 128], strides = [1, 1]} : vector<2x384xf32> to vector<2x128xf32>
    %23 = arith.addf %21, %22 : vector<2x128xf32>
    %24 = arith.negf %23 : vector<2x128xf32>
    %25 = math.exp %24 : vector<2x128xf32>
    %cst_7 = arith.constant 1.000000e+00 : f32
    %26 = vector.broadcast %cst_7 : f32 to vector<2x128xf32>
    %27 = arith.addf %26, %25 : vector<2x128xf32>
    %28 = arith.divf %26, %27 : vector<2x128xf32>
    %29 = vector.extract_strided_slice %8 {offsets = [0, 256], sizes = [2, 128], strides = [1, 1]} : vector<2x384xf32> to vector<2x128xf32>
    %30 = vector.extract_strided_slice %12 {offsets = [0, 256], sizes = [2, 128], strides = [1, 1]} : vector<2x384xf32> to vector<2x128xf32>
    %31 = arith.mulf %20, %30 : vector<2x128xf32>
    %32 = arith.addf %29, %31 : vector<2x128xf32>
    %33 = math.tanh %32 : vector<2x128xf32>
    %cst_8 = arith.constant 1.000000e+00 : f32
    %34 = vector.broadcast %cst_8 : f32 to vector<2x128xf32>
    %35 = arith.subf %34, %28 : vector<2x128xf32>
    %36 = arith.mulf %35, %33 : vector<2x128xf32>
    %37 = arith.mulf %28, %3 : vector<2x128xf32>
    %38 = arith.addf %36, %37 : vector<2x128xf32>
    %39 = arith.index_cast %5 : i32 to index
    %c0_9 = arith.constant 0 : index
    %c0_10 = arith.constant 0 : index
    %40 = vector.load %arg4[%39, %c0_9, %c0_10] : memref<8x2x128xf32, #tpu.memory_space<vmem>>, vector<1x2x128xf32>
    %41 = vector.shape_cast %40 : vector<1x2x128xf32> to vector<2x128xf32>
    %42 = vector.shape_cast %38 : vector<2x128xf32> to vector<1x2x128xf32>
    tpu.vector_store %arg4[%39, %c0_9, %c0_10], %42 {strides = array<i32>} : memref<8x2x128xf32, #tpu.memory_space<vmem>>, vector<1x2x128xf32>,
    %c1_i32_11 = arith.constant 1 : i32
    %c7_i32_12 = arith.constant 7 : i32
    %43 = arith.subi %c7_i32_12, %c1_i32_11 : i32
    %44 = arith.select %0, %43, %c1_i32_11 : i32
    %45 = arith.index_cast %44 : i32 to index
    %c0_13 = arith.constant 0 : index
    %c0_14 = arith.constant 0 : index
    %46 = vector.load %arg1[%45, %c0_13, %c0_14] : memref<8x2x384xf32, #tpu.memory_space<vmem>>, vector<1x2x384xf32>
    %47 = vector.shape_cast %46 : vector<1x2x384xf32> to vector<2x384xf32>
    %48 = arith.truncf %38 : vector<2x128xf32> to vector<2x128xbf16>
    %cst_15 = arith.constant dense<0.000000e+00> : vector<2x384xf32>
    %49 = tpu.matmul %48, %1, %cst_15 {dimension_numbers = #tpu.dot_dimension_numbers<[1], [0], [0], [1], [0, 0, 1, 1], [], []>} : vector<2x128xbf16>, vector<128x384xbf16>, vector<2x384xf32> -> vector<2x384xf32>
    %50 = vector.broadcast %2 : vector<1x384xf32> to vector<2x384xf32>
    %51 = arith.addf %49, %50 : vector<2x384xf32>
    %52 = vector.extract_strided_slice %47 {offsets = [0, 0], sizes = [2, 128], strides = [1, 1]} : vector<2x384xf32> to vector<2x128xf32>
    %53 = vector.extract_strided_slice %51 {offsets = [0, 0], sizes = [2, 128], strides = [1, 1]} : vector<2x384xf32> to vector<2x128xf32>
    %54 = arith.addf %52, %53 : vector<2x128xf32>
    %55 = arith.negf %54 : vector<2x128xf32>
    %56 = math.exp %55 : vector<2x128xf32>
    %cst_16 = arith.constant 1.000000e+00 : f32
    %57 = vector.broadcast %cst_16 : f32 to vector<2x128xf32>
    %58 = arith.addf %57, %56 : vector<2x128xf32>
    %59 = arith.divf %57, %58 : vector<2x128xf32>
    %60 = vector.extract_strided_slice %47 {offsets = [0, 128], sizes = [2, 128], strides = [1, 1]} : vector<2x384xf32> to vector<2x128xf32>
    %61 = vector.extract_strided_slice %51 {offsets = [0, 128], sizes = [2, 128], strides = [1, 1]} : vector<2x384xf32> to vector<2x128xf32>
    %62 = arith.addf %60, %61 : vector<2x128xf32>
    %63 = arith.negf %62 : vector<2x128xf32>
    %64 = math.exp %63 : vector<2x128xf32>
    %cst_17 = arith.constant 1.000000e+00 : f32
    %65 = vector.broadcast %cst_17 : f32 to vector<2x128xf32>
    %66 = arith.addf %65, %64 : vector<2x128xf32>
    %67 = arith.divf %65, %66 : vector<2x128xf32>
    %68 = vector.extract_strided_slice %47 {offsets = [0, 256], sizes = [2, 128], strides = [1, 1]} : vector<2x384xf32> to vector<2x128xf32>
    %69 = vector.extract_strided_slice %51 {offsets = [0, 256], sizes = [2, 128], strides = [1, 1]} : vector<2x384xf32> to vector<2x128xf32>
    %70 = arith.mulf %59, %69 : vector<2x128xf32>
    %71 = arith.addf %68, %70 : vector<2x128xf32>
    %72 = math.tanh %71 : vector<2x128xf32>
    %cst_18 = arith.constant 1.000000e+00 : f32
    %73 = vector.broadcast %cst_18 : f32 to vector<2x128xf32>
    %74 = arith.subf %73, %67 : vector<2x128xf32>
    %75 = arith.mulf %74, %72 : vector<2x128xf32>
    %76 = arith.mulf %67, %38 : vector<2x128xf32>
    %77 = arith.addf %75, %76 : vector<2x128xf32>
    %78 = arith.index_cast %44 : i32 to index
    %c0_19 = arith.constant 0 : index
    %c0_20 = arith.constant 0 : index
    %79 = vector.load %arg4[%78, %c0_19, %c0_20] : memref<8x2x128xf32, #tpu.memory_space<vmem>>, vector<1x2x128xf32>
    %80 = vector.shape_cast %79 : vector<1x2x128xf32> to vector<2x128xf32>
    %81 = vector.shape_cast %77 : vector<2x128xf32> to vector<1x2x128xf32>
    tpu.vector_store %arg4[%78, %c0_19, %c0_20], %81 {strides = array<i32>} : memref<8x2x128xf32, #tpu.memory_space<vmem>>, vector<1x2x128xf32>,
    %c2_i32 = arith.constant 2 : i32
    %c7_i32_21 = arith.constant 7 : i32
    %82 = arith.subi %c7_i32_21, %c2_i32 : i32
    %83 = arith.select %0, %82, %c2_i32 : i32
    %84 = arith.index_cast %83 : i32 to index
    %c0_22 = arith.constant 0 : index
    %c0_23 = arith.constant 0 : index
    %85 = vector.load %arg1[%84, %c0_22, %c0_23] : memref<8x2x384xf32, #tpu.memory_space<vmem>>, vector<1x2x384xf32>
    %86 = vector.shape_cast %85 : vector<1x2x384xf32> to vector<2x384xf32>
    %87 = arith.truncf %77 : vector<2x128xf32> to vector<2x128xbf16>
    %cst_24 = arith.constant dense<0.000000e+00> : vector<2x384xf32>
    %88 = tpu.matmul %87, %1, %cst_24 {dimension_numbers = #tpu.dot_dimension_numbers<[1], [0], [0], [1], [0, 0, 1, 1], [], []>} : vector<2x128xbf16>, vector<128x384xbf16>, vector<2x384xf32> -> vector<2x384xf32>
    %89 = vector.broadcast %2 : vector<1x384xf32> to vector<2x384xf32>
    %90 = arith.addf %88, %89 : vector<2x384xf32>
    %91 = vector.extract_strided_slice %86 {offsets = [0, 0], sizes = [2, 128], strides = [1, 1]} : vector<2x384xf32> to vector<2x128xf32>
    %92 = vector.extract_strided_slice %90 {offsets = [0, 0], sizes = [2, 128], strides = [1, 1]} : vector<2x384xf32> to vector<2x128xf32>
    %93 = arith.addf %91, %92 : vector<2x128xf32>
    %94 = arith.negf %93 : vector<2x128xf32>
    %95 = math.exp %94 : vector<2x128xf32>
    %cst_25 = arith.constant 1.000000e+00 : f32
    %96 = vector.broadcast %cst_25 : f32 to vector<2x128xf32>
    %97 = arith.addf %96, %95 : vector<2x128xf32>
    %98 = arith.divf %96, %97 : vector<2x128xf32>
    %99 = vector.extract_strided_slice %86 {offsets = [0, 128], sizes = [2, 128], strides = [1, 1]} : vector<2x384xf32> to vector<2x128xf32>
    %100 = vector.extract_strided_slice %90 {offsets = [0, 128], sizes = [2, 128], strides = [1, 1]} : vector<2x384xf32> to vector<2x128xf32>
    %101 = arith.addf %99, %100 : vector<2x128xf32>
    %102 = arith.negf %101 : vector<2x128xf32>
    %103 = math.exp %102 : vector<2x128xf32>
    %cst_26 = arith.constant 1.000000e+00 : f32
    %104 = vector.broadcast %cst_26 : f32 to vector<2x128xf32>
    %105 = arith.addf %104, %103 : vector<2x128xf32>
    %106 = arith.divf %104, %105 : vector<2x128xf32>
    %107 = vector.extract_strided_slice %86 {offsets = [0, 256], sizes = [2, 128], strides = [1, 1]} : vector<2x384xf32> to vector<2x128xf32>
    %108 = vector.extract_strided_slice %90 {offsets = [0, 256], sizes = [2, 128], strides = [1, 1]} : vector<2x384xf32> to vector<2x128xf32>
    %109 = arith.mulf %98, %108 : vector<2x128xf32>
    %110 = arith.addf %107, %109 : vector<2x128xf32>
    %111 = math.tanh %110 : vector<2x128xf32>
    %cst_27 = arith.constant 1.000000e+00 : f32
    %112 = vector.broadcast %cst_27 : f32 to vector<2x128xf32>
    %113 = arith.subf %112, %106 : vector<2x128xf32>
    %114 = arith.mulf %113, %111 : vector<2x128xf32>
    %115 = arith.mulf %106, %77 : vector<2x128xf32>
    %116 = arith.addf %114, %115 : vector<2x128xf32>
    %117 = arith.index_cast %83 : i32 to index
    %c0_28 = arith.constant 0 : index
    %c0_29 = arith.constant 0 : index
    %118 = vector.load %arg4[%117, %c0_28, %c0_29] : memref<8x2x128xf32, #tpu.memory_space<vmem>>, vector<1x2x128xf32>
    %119 = vector.shape_cast %118 : vector<1x2x128xf32> to vector<2x128xf32>
    %120 = vector.shape_cast %116 : vector<2x128xf32> to vector<1x2x128xf32>
    tpu.vector_store %arg4[%117, %c0_28, %c0_29], %120 {strides = array<i32>} : memref<8x2x128xf32, #tpu.memory_space<vmem>>, vector<1x2x128xf32>,
    %c3_i32 = arith.constant 3 : i32
    %c7_i32_30 = arith.constant 7 : i32
    %121 = arith.subi %c7_i32_30, %c3_i32 : i32
    %122 = arith.select %0, %121, %c3_i32 : i32
    %123 = arith.index_cast %122 : i32 to index
    %c0_31 = arith.constant 0 : index
    %c0_32 = arith.constant 0 : index
    %124 = vector.load %arg1[%123, %c0_31, %c0_32] : memref<8x2x384xf32, #tpu.memory_space<vmem>>, vector<1x2x384xf32>
    %125 = vector.shape_cast %124 : vector<1x2x384xf32> to vector<2x384xf32>
    %126 = arith.truncf %116 : vector<2x128xf32> to vector<2x128xbf16>
    %cst_33 = arith.constant dense<0.000000e+00> : vector<2x384xf32>
    %127 = tpu.matmul %126, %1, %cst_33 {dimension_numbers = #tpu.dot_dimension_numbers<[1], [0], [0], [1], [0, 0, 1, 1], [], []>} : vector<2x128xbf16>, vector<128x384xbf16>, vector<2x384xf32> -> vector<2x384xf32>
    %128 = vector.broadcast %2 : vector<1x384xf32> to vector<2x384xf32>
    %129 = arith.addf %127, %128 : vector<2x384xf32>
    %130 = vector.extract_strided_slice %125 {offsets = [0, 0], sizes = [2, 128], strides = [1, 1]} : vector<2x384xf32> to vector<2x128xf32>
    %131 = vector.extract_strided_slice %129 {offsets = [0, 0], sizes = [2, 128], strides = [1, 1]} : vector<2x384xf32> to vector<2x128xf32>
    %132 = arith.addf %130, %131 : vector<2x128xf32>
    %133 = arith.negf %132 : vector<2x128xf32>
    %134 = math.exp %133 : vector<2x128xf32>
    %cst_34 = arith.constant 1.000000e+00 : f32
    %135 = vector.broadcast %cst_34 : f32 to vector<2x128xf32>
    %136 = arith.addf %135, %134 : vector<2x128xf32>
    %137 = arith.divf %135, %136 : vector<2x128xf32>
    %138 = vector.extract_strided_slice %125 {offsets = [0, 128], sizes = [2, 128], strides = [1, 1]} : vector<2x384xf32> to vector<2x128xf32>
    %139 = vector.extract_strided_slice %129 {offsets = [0, 128], sizes = [2, 128], strides = [1, 1]} : vector<2x384xf32> to vector<2x128xf32>
    %140 = arith.addf %138, %139 : vector<2x128xf32>
    %141 = arith.negf %140 : vector<2x128xf32>
    %142 = math.exp %141 : vector<2x128xf32>
    %cst_35 = arith.constant 1.000000e+00 : f32
    %143 = vector.broadcast %cst_35 : f32 to vector<2x128xf32>
    %144 = arith.addf %143, %142 : vector<2x128xf32>
    %145 = arith.divf %143, %144 : vector<2x128xf32>
    %146 = vector.extract_strided_slice %125 {offsets = [0, 256], sizes = [2, 128], strides = [1, 1]} : vector<2x384xf32> to vector<2x128xf32>
    %147 = vector.extract_strided_slice %129 {offsets = [0, 256], sizes = [2, 128], strides = [1, 1]} : vector<2x384xf32> to vector<2x128xf32>
    %148 = arith.mulf %137, %147 : vector<2x128xf32>
    %149 = arith.addf %146, %148 : vector<2x128xf32>
    %150 = math.tanh %149 : vector<2x128xf32>
    %cst_36 = arith.constant 1.000000e+00 : f32
    %151 = vector.broadcast %cst_36 : f32 to vector<2x128xf32>
    %152 = arith.subf %151, %145 : vector<2x128xf32>
    %153 = arith.mulf %152, %150 : vector<2x128xf32>
    %154 = arith.mulf %145, %116 : vector<2x128xf32>
    %155 = arith.addf %153, %154 : vector<2x128xf32>
    %156 = arith.index_cast %122 : i32 to index
    %c0_37 = arith.constant 0 : index
    %c0_38 = arith.constant 0 : index
    %157 = vector.load %arg4[%156, %c0_37, %c0_38] : memref<8x2x128xf32, #tpu.memory_space<vmem>>, vector<1x2x128xf32>
    %158 = vector.shape_cast %157 : vector<1x2x128xf32> to vector<2x128xf32>
    %159 = vector.shape_cast %155 : vector<2x128xf32> to vector<1x2x128xf32>
    tpu.vector_store %arg4[%156, %c0_37, %c0_38], %159 {strides = array<i32>} : memref<8x2x128xf32, #tpu.memory_space<vmem>>, vector<1x2x128xf32>,
    %c4_i32 = arith.constant 4 : i32
    %c7_i32_39 = arith.constant 7 : i32
    %160 = arith.subi %c7_i32_39, %c4_i32 : i32
    %161 = arith.select %0, %160, %c4_i32 : i32
    %162 = arith.index_cast %161 : i32 to index
    %c0_40 = arith.constant 0 : index
    %c0_41 = arith.constant 0 : index
    %163 = vector.load %arg1[%162, %c0_40, %c0_41] : memref<8x2x384xf32, #tpu.memory_space<vmem>>, vector<1x2x384xf32>
    %164 = vector.shape_cast %163 : vector<1x2x384xf32> to vector<2x384xf32>
    %165 = arith.truncf %155 : vector<2x128xf32> to vector<2x128xbf16>
    %cst_42 = arith.constant dense<0.000000e+00> : vector<2x384xf32>
    %166 = tpu.matmul %165, %1, %cst_42 {dimension_numbers = #tpu.dot_dimension_numbers<[1], [0], [0], [1], [0, 0, 1, 1], [], []>} : vector<2x128xbf16>, vector<128x384xbf16>, vector<2x384xf32> -> vector<2x384xf32>
    %167 = vector.broadcast %2 : vector<1x384xf32> to vector<2x384xf32>
    %168 = arith.addf %166, %167 : vector<2x384xf32>
    %169 = vector.extract_strided_slice %164 {offsets = [0, 0], sizes = [2, 128], strides = [1, 1]} : vector<2x384xf32> to vector<2x128xf32>
    %170 = vector.extract_strided_slice %168 {offsets = [0, 0], sizes = [2, 128], strides = [1, 1]} : vector<2x384xf32> to vector<2x128xf32>
    %171 = arith.addf %169, %170 : vector<2x128xf32>
    %172 = arith.negf %171 : vector<2x128xf32>
    %173 = math.exp %172 : vector<2x128xf32>
    %cst_43 = arith.constant 1.000000e+00 : f32
    %174 = vector.broadcast %cst_43 : f32 to vector<2x128xf32>
    %175 = arith.addf %174, %173 : vector<2x128xf32>
    %176 = arith.divf %174, %175 : vector<2x128xf32>
    %177 = vector.extract_strided_slice %164 {offsets = [0, 128], sizes = [2, 128], strides = [1, 1]} : vector<2x384xf32> to vector<2x128xf32>
    %178 = vector.extract_strided_slice %168 {offsets = [0, 128], sizes = [2, 128], strides = [1, 1]} : vector<2x384xf32> to vector<2x128xf32>
    %179 = arith.addf %177, %178 : vector<2x128xf32>
    %180 = arith.negf %179 : vector<2x128xf32>
    %181 = math.exp %180 : vector<2x128xf32>
    %cst_44 = arith.constant 1.000000e+00 : f32
    %182 = vector.broadcast %cst_44 : f32 to vector<2x128xf32>
    %183 = arith.addf %182, %181 : vector<2x128xf32>
    %184 = arith.divf %182, %183 : vector<2x128xf32>
    %185 = vector.extract_strided_slice %164 {offsets = [0, 256], sizes = [2, 128], strides = [1, 1]} : vector<2x384xf32> to vector<2x128xf32>
    %186 = vector.extract_strided_slice %168 {offsets = [0, 256], sizes = [2, 128], strides = [1, 1]} : vector<2x384xf32> to vector<2x128xf32>
    %187 = arith.mulf %176, %186 : vector<2x128xf32>
    %188 = arith.addf %185, %187 : vector<2x128xf32>
    %189 = math.tanh %188 : vector<2x128xf32>
    %cst_45 = arith.constant 1.000000e+00 : f32
    %190 = vector.broadcast %cst_45 : f32 to vector<2x128xf32>
    %191 = arith.subf %190, %184 : vector<2x128xf32>
    %192 = arith.mulf %191, %189 : vector<2x128xf32>
    %193 = arith.mulf %184, %155 : vector<2x128xf32>
    %194 = arith.addf %192, %193 : vector<2x128xf32>
    %195 = arith.index_cast %161 : i32 to index
    %c0_46 = arith.constant 0 : index
    %c0_47 = arith.constant 0 : index
    %196 = vector.load %arg4[%195, %c0_46, %c0_47] : memref<8x2x128xf32, #tpu.memory_space<vmem>>, vector<1x2x128xf32>
    %197 = vector.shape_cast %196 : vector<1x2x128xf32> to vector<2x128xf32>
    %198 = vector.shape_cast %194 : vector<2x128xf32> to vector<1x2x128xf32>
    tpu.vector_store %arg4[%195, %c0_46, %c0_47], %198 {strides = array<i32>} : memref<8x2x128xf32, #tpu.memory_space<vmem>>, vector<1x2x128xf32>,
    %c5_i32 = arith.constant 5 : i32
    %c7_i32_48 = arith.constant 7 : i32
    %199 = arith.subi %c7_i32_48, %c5_i32 : i32
    %200 = arith.select %0, %199, %c5_i32 : i32
    %201 = arith.index_cast %200 : i32 to index
    %c0_49 = arith.constant 0 : index
    %c0_50 = arith.constant 0 : index
    %202 = vector.load %arg1[%201, %c0_49, %c0_50] : memref<8x2x384xf32, #tpu.memory_space<vmem>>, vector<1x2x384xf32>
    %203 = vector.shape_cast %202 : vector<1x2x384xf32> to vector<2x384xf32>
    %204 = arith.truncf %194 : vector<2x128xf32> to vector<2x128xbf16>
    %cst_51 = arith.constant dense<0.000000e+00> : vector<2x384xf32>
    %205 = tpu.matmul %204, %1, %cst_51 {dimension_numbers = #tpu.dot_dimension_numbers<[1], [0], [0], [1], [0, 0, 1, 1], [], []>} : vector<2x128xbf16>, vector<128x384xbf16>, vector<2x384xf32> -> vector<2x384xf32>
    %206 = vector.broadcast %2 : vector<1x384xf32> to vector<2x384xf32>
    %207 = arith.addf %205, %206 : vector<2x384xf32>
    %208 = vector.extract_strided_slice %203 {offsets = [0, 0], sizes = [2, 128], strides = [1, 1]} : vector<2x384xf32> to vector<2x128xf32>
    %209 = vector.extract_strided_slice %207 {offsets = [0, 0], sizes = [2, 128], strides = [1, 1]} : vector<2x384xf32> to vector<2x128xf32>
    %210 = arith.addf %208, %209 : vector<2x128xf32>
    %211 = arith.negf %210 : vector<2x128xf32>
    %212 = math.exp %211 : vector<2x128xf32>
    %cst_52 = arith.constant 1.000000e+00 : f32
    %213 = vector.broadcast %cst_52 : f32 to vector<2x128xf32>
    %214 = arith.addf %213, %212 : vector<2x128xf32>
    %215 = arith.divf %213, %214 : vector<2x128xf32>
    %216 = vector.extract_strided_slice %203 {offsets = [0, 128], sizes = [2, 128], strides = [1, 1]} : vector<2x384xf32> to vector<2x128xf32>
    %217 = vector.extract_strided_slice %207 {offsets = [0, 128], sizes = [2, 128], strides = [1, 1]} : vector<2x384xf32> to vector<2x128xf32>
    %218 = arith.addf %216, %217 : vector<2x128xf32>
    %219 = arith.negf %218 : vector<2x128xf32>
    %220 = math.exp %219 : vector<2x128xf32>
    %cst_53 = arith.constant 1.000000e+00 : f32
    %221 = vector.broadcast %cst_53 : f32 to vector<2x128xf32>
    %222 = arith.addf %221, %220 : vector<2x128xf32>
    %223 = arith.divf %221, %222 : vector<2x128xf32>
    %224 = vector.extract_strided_slice %203 {offsets = [0, 256], sizes = [2, 128], strides = [1, 1]} : vector<2x384xf32> to vector<2x128xf32>
    %225 = vector.extract_strided_slice %207 {offsets = [0, 256], sizes = [2, 128], strides = [1, 1]} : vector<2x384xf32> to vector<2x128xf32>
    %226 = arith.mulf %215, %225 : vector<2x128xf32>
    %227 = arith.addf %224, %226 : vector<2x128xf32>
    %228 = math.tanh %227 : vector<2x128xf32>
    %cst_54 = arith.constant 1.000000e+00 : f32
    %229 = vector.broadcast %cst_54 : f32 to vector<2x128xf32>
    %230 = arith.subf %229, %223 : vector<2x128xf32>
    %231 = arith.mulf %230, %228 : vector<2x128xf32>
    %232 = arith.mulf %223, %194 : vector<2x128xf32>
    %233 = arith.addf %231, %232 : vector<2x128xf32>
    %234 = arith.index_cast %200 : i32 to index
    %c0_55 = arith.constant 0 : index
    %c0_56 = arith.constant 0 : index
    %235 = vector.load %arg4[%234, %c0_55, %c0_56] : memref<8x2x128xf32, #tpu.memory_space<vmem>>, vector<1x2x128xf32>
    %236 = vector.shape_cast %235 : vector<1x2x128xf32> to vector<2x128xf32>
    %237 = vector.shape_cast %233 : vector<2x128xf32> to vector<1x2x128xf32>
    tpu.vector_store %arg4[%234, %c0_55, %c0_56], %237 {strides = array<i32>} : memref<8x2x128xf32, #tpu.memory_space<vmem>>, vector<1x2x128xf32>,
    %c6_i32 = arith.constant 6 : i32
    %c7_i32_57 = arith.constant 7 : i32
    %238 = arith.subi %c7_i32_57, %c6_i32 : i32
    %239 = arith.select %0, %238, %c6_i32 : i32
    %240 = arith.index_cast %239 : i32 to index
    %c0_58 = arith.constant 0 : index
    %c0_59 = arith.constant 0 : index
    %241 = vector.load %arg1[%240, %c0_58, %c0_59] : memref<8x2x384xf32, #tpu.memory_space<vmem>>, vector<1x2x384xf32>
    %242 = vector.shape_cast %241 : vector<1x2x384xf32> to vector<2x384xf32>
    %243 = arith.truncf %233 : vector<2x128xf32> to vector<2x128xbf16>
    %cst_60 = arith.constant dense<0.000000e+00> : vector<2x384xf32>
    %244 = tpu.matmul %243, %1, %cst_60 {dimension_numbers = #tpu.dot_dimension_numbers<[1], [0], [0], [1], [0, 0, 1, 1], [], []>} : vector<2x128xbf16>, vector<128x384xbf16>, vector<2x384xf32> -> vector<2x384xf32>
    %245 = vector.broadcast %2 : vector<1x384xf32> to vector<2x384xf32>
    %246 = arith.addf %244, %245 : vector<2x384xf32>
    %247 = vector.extract_strided_slice %242 {offsets = [0, 0], sizes = [2, 128], strides = [1, 1]} : vector<2x384xf32> to vector<2x128xf32>
    %248 = vector.extract_strided_slice %246 {offsets = [0, 0], sizes = [2, 128], strides = [1, 1]} : vector<2x384xf32> to vector<2x128xf32>
    %249 = arith.addf %247, %248 : vector<2x128xf32>
    %250 = arith.negf %249 : vector<2x128xf32>
    %251 = math.exp %250 : vector<2x128xf32>
    %cst_61 = arith.constant 1.000000e+00 : f32
    %252 = vector.broadcast %cst_61 : f32 to vector<2x128xf32>
    %253 = arith.addf %252, %251 : vector<2x128xf32>
    %254 = arith.divf %252, %253 : vector<2x128xf32>
    %255 = vector.extract_strided_slice %242 {offsets = [0, 128], sizes = [2, 128], strides = [1, 1]} : vector<2x384xf32> to vector<2x128xf32>
    %256 = vector.extract_strided_slice %246 {offsets = [0, 128], sizes = [2, 128], strides = [1, 1]} : vector<2x384xf32> to vector<2x128xf32>
    %257 = arith.addf %255, %256 : vector<2x128xf32>
    %258 = arith.negf %257 : vector<2x128xf32>
    %259 = math.exp %258 : vector<2x128xf32>
    %cst_62 = arith.constant 1.000000e+00 : f32
    %260 = vector.broadcast %cst_62 : f32 to vector<2x128xf32>
    %261 = arith.addf %260, %259 : vector<2x128xf32>
    %262 = arith.divf %260, %261 : vector<2x128xf32>
    %263 = vector.extract_strided_slice %242 {offsets = [0, 256], sizes = [2, 128], strides = [1, 1]} : vector<2x384xf32> to vector<2x128xf32>
    %264 = vector.extract_strided_slice %246 {offsets = [0, 256], sizes = [2, 128], strides = [1, 1]} : vector<2x384xf32> to vector<2x128xf32>
    %265 = arith.mulf %254, %264 : vector<2x128xf32>
    %266 = arith.addf %263, %265 : vector<2x128xf32>
    %267 = math.tanh %266 : vector<2x128xf32>
    %cst_63 = arith.constant 1.000000e+00 : f32
    %268 = vector.broadcast %cst_63 : f32 to vector<2x128xf32>
    %269 = arith.subf %268, %262 : vector<2x128xf32>
    %270 = arith.mulf %269, %267 : vector<2x128xf32>
    %271 = arith.mulf %262, %233 : vector<2x128xf32>
    %272 = arith.addf %270, %271 : vector<2x128xf32>
    %273 = arith.index_cast %239 : i32 to index
    %c0_64 = arith.constant 0 : index
    %c0_65 = arith.constant 0 : index
    %274 = vector.load %arg4[%273, %c0_64, %c0_65] : memref<8x2x128xf32, #tpu.memory_space<vmem>>, vector<1x2x128xf32>
    %275 = vector.shape_cast %274 : vector<1x2x128xf32> to vector<2x128xf32>
    %276 = vector.shape_cast %272 : vector<2x128xf32> to vector<1x2x128xf32>
    tpu.vector_store %arg4[%273, %c0_64, %c0_65], %276 {strides = array<i32>} : memref<8x2x128xf32, #tpu.memory_space<vmem>>, vector<1x2x128xf32>,
    %c7_i32_66 = arith.constant 7 : i32
    %c7_i32_67 = arith.constant 7 : i32
    %277 = arith.subi %c7_i32_67, %c7_i32_66 : i32
    %278 = arith.select %0, %277, %c7_i32_66 : i32
    %279 = arith.index_cast %278 : i32 to index
    %c0_68 = arith.constant 0 : index
    %c0_69 = arith.constant 0 : index
    %280 = vector.load %arg1[%279, %c0_68, %c0_69] : memref<8x2x384xf32, #tpu.memory_space<vmem>>, vector<1x2x384xf32>
    %281 = vector.shape_cast %280 : vector<1x2x384xf32> to vector<2x384xf32>
    %282 = arith.truncf %272 : vector<2x128xf32> to vector<2x128xbf16>
    %cst_70 = arith.constant dense<0.000000e+00> : vector<2x384xf32>
    %283 = tpu.matmul %282, %1, %cst_70 {dimension_numbers = #tpu.dot_dimension_numbers<[1], [0], [0], [1], [0, 0, 1, 1], [], []>} : vector<2x128xbf16>, vector<128x384xbf16>, vector<2x384xf32> -> vector<2x384xf32>
    %284 = vector.broadcast %2 : vector<1x384xf32> to vector<2x384xf32>
    %285 = arith.addf %283, %284 : vector<2x384xf32>
    %286 = vector.extract_strided_slice %281 {offsets = [0, 0], sizes = [2, 128], strides = [1, 1]} : vector<2x384xf32> to vector<2x128xf32>
    %287 = vector.extract_strided_slice %285 {offsets = [0, 0], sizes = [2, 128], strides = [1, 1]} : vector<2x384xf32> to vector<2x128xf32>
    %288 = arith.addf %286, %287 : vector<2x128xf32>
    %289 = arith.negf %288 : vector<2x128xf32>
    %290 = math.exp %289 : vector<2x128xf32>
    %cst_71 = arith.constant 1.000000e+00 : f32
    %291 = vector.broadcast %cst_71 : f32 to vector<2x128xf32>
    %292 = arith.addf %291, %290 : vector<2x128xf32>
    %293 = arith.divf %291, %292 : vector<2x128xf32>
    %294 = vector.extract_strided_slice %281 {offsets = [0, 128], sizes = [2, 128], strides = [1, 1]} : vector<2x384xf32> to vector<2x128xf32>
    %295 = vector.extract_strided_slice %285 {offsets = [0, 128], sizes = [2, 128], strides = [1, 1]} : vector<2x384xf32> to vector<2x128xf32>
    %296 = arith.addf %294, %295 : vector<2x128xf32>
    %297 = arith.negf %296 : vector<2x128xf32>
    %298 = math.exp %297 : vector<2x128xf32>
    %cst_72 = arith.constant 1.000000e+00 : f32
    %299 = vector.broadcast %cst_72 : f32 to vector<2x128xf32>
    %300 = arith.addf %299, %298 : vector<2x128xf32>
    %301 = arith.divf %299, %300 : vector<2x128xf32>
    %302 = vector.extract_strided_slice %281 {offsets = [0, 256], sizes = [2, 128], strides = [1, 1]} : vector<2x384xf32> to vector<2x128xf32>
    %303 = vector.extract_strided_slice %285 {offsets = [0, 256], sizes = [2, 128], strides = [1, 1]} : vector<2x384xf32> to vector<2x128xf32>
    %304 = arith.mulf %293, %303 : vector<2x128xf32>
    %305 = arith.addf %302, %304 : vector<2x128xf32>
    %306 = math.tanh %305 : vector<2x128xf32>
    %cst_73 = arith.constant 1.000000e+00 : f32
    %307 = vector.broadcast %cst_73 : f32 to vector<2x128xf32>
    %308 = arith.subf %307, %301 : vector<2x128xf32>
    %309 = arith.mulf %308, %306 : vector<2x128xf32>
    %310 = arith.mulf %301, %272 : vector<2x128xf32>
    %311 = arith.addf %309, %310 : vector<2x128xf32>
    %312 = arith.index_cast %278 : i32 to index
    %c0_74 = arith.constant 0 : index
    %c0_75 = arith.constant 0 : index
    %313 = vector.load %arg4[%312, %c0_74, %c0_75] : memref<8x2x128xf32, #tpu.memory_space<vmem>>, vector<1x2x128xf32>
    %314 = vector.shape_cast %313 : vector<1x2x128xf32> to vector<2x128xf32>
    %315 = vector.shape_cast %311 : vector<2x128xf32> to vector<1x2x128xf32>
    tpu.vector_store %arg4[%312, %c0_74, %c0_75], %315 {strides = array<i32>} : memref<8x2x128xf32, #tpu.memory_space<vmem>>, vector<1x2x128xf32>,
    %c8_i32 = arith.constant 8 : i32
    return
  }
  func.func @transform_0(%arg0: i32) -> (i32, i32, i32) {
    %c0_i32 = arith.constant 0 : i32
    %c0_i32_0 = arith.constant 0 : i32
    %c0_i32_1 = arith.constant 0 : i32
    return %c0_i32, %c0_i32_0, %arg0 : i32, i32, i32
  }
  func.func @transform_1(%arg0: i32) -> (i32, i32) {
    %c0_i32 = arith.constant 0 : i32
    %c0_i32_0 = arith.constant 0 : i32
    return %c0_i32, %arg0 : i32, i32
  }
  func.func @transform_2(%arg0: i32) -> (i32, i32) {
    %c0_i32 = arith.constant 0 : i32
    %c0_i32_0 = arith.constant 0 : i32
    return %c0_i32, %arg0 : i32, i32
  }
  func.func @transform_3(%arg0: i32) -> (i32, i32, i32) {
    %c0_i32 = arith.constant 0 : i32
    %c0_i32_0 = arith.constant 0 : i32
    %c0_i32_1 = arith.constant 0 : i32
    return %c0_i32, %c0_i32_0, %arg0 : i32, i32, i32
  }
}

module attributes {stable_mosaic.version = 11 : i64} {
  func.func @_linear_kernel(%arg0: i32, %arg1: i32, %arg2: i32, %arg3: memref<16x256xf32, #tpu.memory_space<vmem>>, %arg4: memref<256x256xbf16, #tpu.memory_space<vmem>>, %arg5: memref<1x256xf32, #tpu.memory_space<vmem>>, %arg6: memref<16x256xf32, #tpu.memory_space<vmem>>, %arg7: memref<16x256xf32, #tpu.memory_space<vmem>>) attributes {dimension_semantics = [#tpu.dimension_semantics<parallel>, #tpu.dimension_semantics<parallel>, #tpu.dimension_semantics<arbitrary>], iteration_bounds = array<i64: 1, 3, 1>, scalar_prefetch = 0 : i64, scratch_operands = 1 : i64, tpu.core_type = #tpu.core_type<tc>, window_params = [{transform_indices = @transform_0, window_bounds = array<i64: 16, 256>}, {transform_indices = @transform_1, window_bounds = array<i64: 256, 256>}, {transform_indices = @transform_2, window_bounds = array<i64: 1, 256>}, {transform_indices = @transform_3, window_bounds = array<i64: 16, 256>}]} {
    %c0_i32 = arith.constant 0 : i32
    %0 = arith.cmpi eq, %arg2, %c0_i32 : i32
    %1 = arith.extui %0 : i1 to i32
    %c0_i32_0 = arith.constant 0 : i32
    %2 = arith.cmpi ne, %1, %c0_i32_0 : i32
    scf.if %2 {
      %cst_10 = arith.constant 0.000000e+00 : f32
      %13 = vector.broadcast %cst_10 : f32 to vector<16x256xf32>
      %c0_11 = arith.constant 0 : index
      %c0_12 = arith.constant 0 : index
      %14 = vector.load %arg7[%c0_11, %c0_12] : memref<16x256xf32, #tpu.memory_space<vmem>>, vector<16x256xf32>
      tpu.vector_store %arg7[%c0_11, %c0_12], %13 {strides = array<i32>} : memref<16x256xf32, #tpu.memory_space<vmem>>, vector<16x256xf32>,
    } else {
    }
    %c0 = arith.constant 0 : index
    %c0_1 = arith.constant 0 : index
    %3 = vector.load %arg7[%c0, %c0_1] : memref<16x256xf32, #tpu.memory_space<vmem>>, vector<16x256xf32>
    %c0_2 = arith.constant 0 : index
    %c0_3 = arith.constant 0 : index
    %4 = vector.load %arg3[%c0_2, %c0_3] : memref<16x256xf32, #tpu.memory_space<vmem>>, vector<16x256xf32>
    %5 = arith.truncf %4 : vector<16x256xf32> to vector<16x256xbf16>
    %c0_4 = arith.constant 0 : index
    %c0_5 = arith.constant 0 : index
    %6 = vector.load %arg4[%c0_4, %c0_5] : memref<256x256xbf16, #tpu.memory_space<vmem>>, vector<256x256xbf16>
    %cst = arith.constant dense<0.000000e+00> : vector<16x256xf32>
    %7 = tpu.matmul %5, %6, %cst {dimension_numbers = #tpu.dot_dimension_numbers<[1], [0], [0], [1], [0, 0, 1, 1], [], []>} : vector<16x256xbf16>, vector<256x256xbf16>, vector<16x256xf32> -> vector<16x256xf32>
    %8 = arith.addf %3, %7 : vector<16x256xf32>
    %c0_6 = arith.constant 0 : index
    %c0_7 = arith.constant 0 : index
    %9 = vector.load %arg7[%c0_6, %c0_7] : memref<16x256xf32, #tpu.memory_space<vmem>>, vector<16x256xf32>
    tpu.vector_store %arg7[%c0_6, %c0_7], %8 {strides = array<i32>} : memref<16x256xf32, #tpu.memory_space<vmem>>, vector<16x256xf32>,
    %c0_i32_8 = arith.constant 0 : i32
    %10 = arith.cmpi eq, %arg2, %c0_i32_8 : i32
    %11 = arith.extui %10 : i1 to i32
    %c0_i32_9 = arith.constant 0 : i32
    %12 = arith.cmpi ne, %11, %c0_i32_9 : i32
    scf.if %12 {
      %c0_10 = arith.constant 0 : index
      %c0_11 = arith.constant 0 : index
      %13 = vector.load %arg7[%c0_10, %c0_11] : memref<16x256xf32, #tpu.memory_space<vmem>>, vector<16x256xf32>
      %c0_12 = arith.constant 0 : index
      %c0_13 = arith.constant 0 : index
      %14 = vector.load %arg5[%c0_12, %c0_13] : memref<1x256xf32, #tpu.memory_space<vmem>>, vector<1x256xf32>
      %15 = vector.broadcast %14 : vector<1x256xf32> to vector<16x256xf32>
      %16 = arith.addf %13, %15 : vector<16x256xf32>
      %c0_14 = arith.constant 0 : index
      %c0_15 = arith.constant 0 : index
      %17 = vector.load %arg6[%c0_14, %c0_15] : memref<16x256xf32, #tpu.memory_space<vmem>>, vector<16x256xf32>
      tpu.vector_store %arg6[%c0_14, %c0_15], %16 {strides = array<i32>} : memref<16x256xf32, #tpu.memory_space<vmem>>, vector<16x256xf32>,
    } else {
    }
    return
  }
  func.func @transform_0(%arg0: i32, %arg1: i32, %arg2: i32) -> (i32, i32) {
    %c0_i32 = arith.constant 0 : i32
    return %arg0, %arg2 : i32, i32
  }
  func.func @transform_1(%arg0: i32, %arg1: i32, %arg2: i32) -> (i32, i32) {
    %c0_i32 = arith.constant 0 : i32
    return %arg2, %arg1 : i32, i32
  }
  func.func @transform_2(%arg0: i32, %arg1: i32, %arg2: i32) -> (i32, i32) {
    %c0_i32 = arith.constant 0 : i32
    %c0_i32_0 = arith.constant 0 : i32
    return %c0_i32, %arg1 : i32, i32
  }
  func.func @transform_3(%arg0: i32, %arg1: i32, %arg2: i32) -> (i32, i32) {
    %c0_i32 = arith.constant 0 : i32
    return %arg0, %arg1 : i32, i32
  }
}

module attributes {stable_mosaic.version = 11 : i64} {
  func.func @_mha_kernel(%arg0: i32, %arg1: memref<1x8x256xf32, #tpu.memory_space<vmem>>, %arg2: memref<1x8x256xf32, #tpu.memory_space<vmem>>, %arg3: memref<1x8x256xf32, #tpu.memory_space<vmem>>, %arg4: memref<256x256xbf16, #tpu.memory_space<vmem>>, %arg5: memref<1x256xf32, #tpu.memory_space<vmem>>, %arg6: memref<1x8x256xf32, #tpu.memory_space<vmem>>) attributes {dimension_semantics = [#tpu.dimension_semantics<parallel>], iteration_bounds = array<i64: 2>, scalar_prefetch = 0 : i64, scratch_operands = 0 : i64, tpu.core_type = #tpu.core_type<tc>, window_params = [{transform_indices = @transform_0, window_bounds = array<i64: 1, 8, 256>}, {transform_indices = @transform_1, window_bounds = array<i64: 1, 8, 256>}, {transform_indices = @transform_2, window_bounds = array<i64: 1, 8, 256>}, {pipeline_mode = #tpu.pipeline_mode<synchronous>, transform_indices = @transform_3, window_bounds = array<i64: 256, 256>}, {pipeline_mode = #tpu.pipeline_mode<synchronous>, transform_indices = @transform_4, window_bounds = array<i64: 1, 256>}, {transform_indices = @transform_5, window_bounds = array<i64: 1, 8, 256>}]} {
    %c0 = arith.constant 0 : index
    %c0_0 = arith.constant 0 : index
    %c0_1 = arith.constant 0 : index
    %0 = vector.load %arg1[%c0, %c0_0, %c0_1] : memref<1x8x256xf32, #tpu.memory_space<vmem>>, vector<1x8x256xf32>
    %1 = vector.shape_cast %0 : vector<1x8x256xf32> to vector<8x256xf32>
    %2 = arith.truncf %1 : vector<8x256xf32> to vector<8x256xbf16>
    %c0_2 = arith.constant 0 : index
    %c0_3 = arith.constant 0 : index
    %c0_4 = arith.constant 0 : index
    %3 = vector.load %arg2[%c0_2, %c0_3, %c0_4] : memref<1x8x256xf32, #tpu.memory_space<vmem>>, vector<1x8x256xf32>
    %4 = vector.shape_cast %3 : vector<1x8x256xf32> to vector<8x256xf32>
    %5 = arith.truncf %4 : vector<8x256xf32> to vector<8x256xbf16>
    %c0_5 = arith.constant 0 : index
    %c0_6 = arith.constant 0 : index
    %c0_7 = arith.constant 0 : index
    %6 = vector.load %arg3[%c0_5, %c0_6, %c0_7] : memref<1x8x256xf32, #tpu.memory_space<vmem>>, vector<1x8x256xf32>
    %7 = vector.shape_cast %6 : vector<1x8x256xf32> to vector<8x256xf32>
    %8 = arith.truncf %7 : vector<8x256xf32> to vector<8x256xbf16>
    %9 = vector.extract_strided_slice %2 {offsets = [0, 0], sizes = [8, 32], strides = [1, 1]} : vector<8x256xbf16> to vector<8x32xbf16>
    %10 = vector.extract_strided_slice %5 {offsets = [0, 0], sizes = [8, 32], strides = [1, 1]} : vector<8x256xbf16> to vector<8x32xbf16>
    %11 = vector.extract_strided_slice %8 {offsets = [0, 0], sizes = [8, 32], strides = [1, 1]} : vector<8x256xbf16> to vector<8x32xbf16>
    %cst = arith.constant dense<0.000000e+00> : vector<8x8xf32>
    %12 = tpu.matmul %9, %10, %cst {dimension_numbers = #tpu.dot_dimension_numbers<[1], [1], [0], [0], [0, 0, 1, 0], [], []>} : vector<8x32xbf16>, vector<8x32xbf16>, vector<8x8xf32> -> vector<8x8xf32>
    %cst_8 = arith.constant 0.176776692 : f32
    %13 = vector.broadcast %cst_8 : f32 to vector<8x8xf32>
    %14 = arith.mulf %12, %13 : vector<8x8xf32>
    %cst_9 = arith.constant dense<0xFF800000> : vector<8xf32>
    %15 = vector.multi_reduction <maximumf>, %14, %cst_9 [1] : vector<8x8xf32> to vector<8xf32>
    %16 = vector.shape_cast %15 : vector<8xf32> to vector<8x1xf32>
    %17 = vector.broadcast %16 : vector<8x1xf32> to vector<8x8xf32>
    %18 = arith.subf %14, %17 : vector<8x8xf32>
    %19 = math.exp %18 : vector<8x8xf32>
    %cst_10 = arith.constant dense<0.000000e+00> : vector<8xf32>
    %20 = vector.multi_reduction <add>, %19, %cst_10 [1] : vector<8x8xf32> to vector<8xf32>
    %21 = vector.shape_cast %20 : vector<8xf32> to vector<8x1xf32>
    %22 = tpu.reciprocal %21 {approx = true} : vector<8x1xf32> -> vector<8x1xf32>
    %23 = vector.broadcast %22 : vector<8x1xf32> to vector<8x8xf32>
    %24 = arith.mulf %19, %23 : vector<8x8xf32>
    %25 = arith.truncf %24 : vector<8x8xf32> to vector<8x8xbf16>
    %cst_11 = arith.constant dense<0.000000e+00> : vector<8x32xf32>
    %26 = tpu.matmul %25, %11, %cst_11 {dimension_numbers = #tpu.dot_dimension_numbers<[1], [0], [0], [1], [0, 0, 1, 1], [], []>} : vector<8x8xbf16>, vector<8x32xbf16>, vector<8x32xf32> -> vector<8x32xf32>
    %27 = vector.extract_strided_slice %2 {offsets = [0, 32], sizes = [8, 32], strides = [1, 1]} : vector<8x256xbf16> to vector<8x32xbf16>
    %28 = vector.extract_strided_slice %5 {offsets = [0, 32], sizes = [8, 32], strides = [1, 1]} : vector<8x256xbf16> to vector<8x32xbf16>
    %29 = vector.extract_strided_slice %8 {offsets = [0, 32], sizes = [8, 32], strides = [1, 1]} : vector<8x256xbf16> to vector<8x32xbf16>
    %cst_12 = arith.constant dense<0.000000e+00> : vector<8x8xf32>
    %30 = tpu.matmul %27, %28, %cst_12 {dimension_numbers = #tpu.dot_dimension_numbers<[1], [1], [0], [0], [0, 0, 1, 0], [], []>} : vector<8x32xbf16>, vector<8x32xbf16>, vector<8x8xf32> -> vector<8x8xf32>
    %cst_13 = arith.constant 0.176776692 : f32
    %31 = vector.broadcast %cst_13 : f32 to vector<8x8xf32>
    %32 = arith.mulf %30, %31 : vector<8x8xf32>
    %cst_14 = arith.constant dense<0xFF800000> : vector<8xf32>
    %33 = vector.multi_reduction <maximumf>, %32, %cst_14 [1] : vector<8x8xf32> to vector<8xf32>
    %34 = vector.shape_cast %33 : vector<8xf32> to vector<8x1xf32>
    %35 = vector.broadcast %34 : vector<8x1xf32> to vector<8x8xf32>
    %36 = arith.subf %32, %35 : vector<8x8xf32>
    %37 = math.exp %36 : vector<8x8xf32>
    %cst_15 = arith.constant dense<0.000000e+00> : vector<8xf32>
    %38 = vector.multi_reduction <add>, %37, %cst_15 [1] : vector<8x8xf32> to vector<8xf32>
    %39 = vector.shape_cast %38 : vector<8xf32> to vector<8x1xf32>
    %40 = tpu.reciprocal %39 {approx = true} : vector<8x1xf32> -> vector<8x1xf32>
    %41 = vector.broadcast %40 : vector<8x1xf32> to vector<8x8xf32>
    %42 = arith.mulf %37, %41 : vector<8x8xf32>
    %43 = arith.truncf %42 : vector<8x8xf32> to vector<8x8xbf16>
    %cst_16 = arith.constant dense<0.000000e+00> : vector<8x32xf32>
    %44 = tpu.matmul %43, %29, %cst_16 {dimension_numbers = #tpu.dot_dimension_numbers<[1], [0], [0], [1], [0, 0, 1, 1], [], []>} : vector<8x8xbf16>, vector<8x32xbf16>, vector<8x32xf32> -> vector<8x32xf32>
    %45 = vector.extract_strided_slice %2 {offsets = [0, 64], sizes = [8, 32], strides = [1, 1]} : vector<8x256xbf16> to vector<8x32xbf16>
    %46 = vector.extract_strided_slice %5 {offsets = [0, 64], sizes = [8, 32], strides = [1, 1]} : vector<8x256xbf16> to vector<8x32xbf16>
    %47 = vector.extract_strided_slice %8 {offsets = [0, 64], sizes = [8, 32], strides = [1, 1]} : vector<8x256xbf16> to vector<8x32xbf16>
    %cst_17 = arith.constant dense<0.000000e+00> : vector<8x8xf32>
    %48 = tpu.matmul %45, %46, %cst_17 {dimension_numbers = #tpu.dot_dimension_numbers<[1], [1], [0], [0], [0, 0, 1, 0], [], []>} : vector<8x32xbf16>, vector<8x32xbf16>, vector<8x8xf32> -> vector<8x8xf32>
    %cst_18 = arith.constant 0.176776692 : f32
    %49 = vector.broadcast %cst_18 : f32 to vector<8x8xf32>
    %50 = arith.mulf %48, %49 : vector<8x8xf32>
    %cst_19 = arith.constant dense<0xFF800000> : vector<8xf32>
    %51 = vector.multi_reduction <maximumf>, %50, %cst_19 [1] : vector<8x8xf32> to vector<8xf32>
    %52 = vector.shape_cast %51 : vector<8xf32> to vector<8x1xf32>
    %53 = vector.broadcast %52 : vector<8x1xf32> to vector<8x8xf32>
    %54 = arith.subf %50, %53 : vector<8x8xf32>
    %55 = math.exp %54 : vector<8x8xf32>
    %cst_20 = arith.constant dense<0.000000e+00> : vector<8xf32>
    %56 = vector.multi_reduction <add>, %55, %cst_20 [1] : vector<8x8xf32> to vector<8xf32>
    %57 = vector.shape_cast %56 : vector<8xf32> to vector<8x1xf32>
    %58 = tpu.reciprocal %57 {approx = true} : vector<8x1xf32> -> vector<8x1xf32>
    %59 = vector.broadcast %58 : vector<8x1xf32> to vector<8x8xf32>
    %60 = arith.mulf %55, %59 : vector<8x8xf32>
    %61 = arith.truncf %60 : vector<8x8xf32> to vector<8x8xbf16>
    %cst_21 = arith.constant dense<0.000000e+00> : vector<8x32xf32>
    %62 = tpu.matmul %61, %47, %cst_21 {dimension_numbers = #tpu.dot_dimension_numbers<[1], [0], [0], [1], [0, 0, 1, 1], [], []>} : vector<8x8xbf16>, vector<8x32xbf16>, vector<8x32xf32> -> vector<8x32xf32>
    %63 = vector.extract_strided_slice %2 {offsets = [0, 96], sizes = [8, 32], strides = [1, 1]} : vector<8x256xbf16> to vector<8x32xbf16>
    %64 = vector.extract_strided_slice %5 {offsets = [0, 96], sizes = [8, 32], strides = [1, 1]} : vector<8x256xbf16> to vector<8x32xbf16>
    %65 = vector.extract_strided_slice %8 {offsets = [0, 96], sizes = [8, 32], strides = [1, 1]} : vector<8x256xbf16> to vector<8x32xbf16>
    %cst_22 = arith.constant dense<0.000000e+00> : vector<8x8xf32>
    %66 = tpu.matmul %63, %64, %cst_22 {dimension_numbers = #tpu.dot_dimension_numbers<[1], [1], [0], [0], [0, 0, 1, 0], [], []>} : vector<8x32xbf16>, vector<8x32xbf16>, vector<8x8xf32> -> vector<8x8xf32>
    %cst_23 = arith.constant 0.176776692 : f32
    %67 = vector.broadcast %cst_23 : f32 to vector<8x8xf32>
    %68 = arith.mulf %66, %67 : vector<8x8xf32>
    %cst_24 = arith.constant dense<0xFF800000> : vector<8xf32>
    %69 = vector.multi_reduction <maximumf>, %68, %cst_24 [1] : vector<8x8xf32> to vector<8xf32>
    %70 = vector.shape_cast %69 : vector<8xf32> to vector<8x1xf32>
    %71 = vector.broadcast %70 : vector<8x1xf32> to vector<8x8xf32>
    %72 = arith.subf %68, %71 : vector<8x8xf32>
    %73 = math.exp %72 : vector<8x8xf32>
    %cst_25 = arith.constant dense<0.000000e+00> : vector<8xf32>
    %74 = vector.multi_reduction <add>, %73, %cst_25 [1] : vector<8x8xf32> to vector<8xf32>
    %75 = vector.shape_cast %74 : vector<8xf32> to vector<8x1xf32>
    %76 = tpu.reciprocal %75 {approx = true} : vector<8x1xf32> -> vector<8x1xf32>
    %77 = vector.broadcast %76 : vector<8x1xf32> to vector<8x8xf32>
    %78 = arith.mulf %73, %77 : vector<8x8xf32>
    %79 = arith.truncf %78 : vector<8x8xf32> to vector<8x8xbf16>
    %cst_26 = arith.constant dense<0.000000e+00> : vector<8x32xf32>
    %80 = tpu.matmul %79, %65, %cst_26 {dimension_numbers = #tpu.dot_dimension_numbers<[1], [0], [0], [1], [0, 0, 1, 1], [], []>} : vector<8x8xbf16>, vector<8x32xbf16>, vector<8x32xf32> -> vector<8x32xf32>
    %81 = vector.extract_strided_slice %2 {offsets = [0, 128], sizes = [8, 32], strides = [1, 1]} : vector<8x256xbf16> to vector<8x32xbf16>
    %82 = vector.extract_strided_slice %5 {offsets = [0, 128], sizes = [8, 32], strides = [1, 1]} : vector<8x256xbf16> to vector<8x32xbf16>
    %83 = vector.extract_strided_slice %8 {offsets = [0, 128], sizes = [8, 32], strides = [1, 1]} : vector<8x256xbf16> to vector<8x32xbf16>
    %cst_27 = arith.constant dense<0.000000e+00> : vector<8x8xf32>
    %84 = tpu.matmul %81, %82, %cst_27 {dimension_numbers = #tpu.dot_dimension_numbers<[1], [1], [0], [0], [0, 0, 1, 0], [], []>} : vector<8x32xbf16>, vector<8x32xbf16>, vector<8x8xf32> -> vector<8x8xf32>
    %cst_28 = arith.constant 0.176776692 : f32
    %85 = vector.broadcast %cst_28 : f32 to vector<8x8xf32>
    %86 = arith.mulf %84, %85 : vector<8x8xf32>
    %cst_29 = arith.constant dense<0xFF800000> : vector<8xf32>
    %87 = vector.multi_reduction <maximumf>, %86, %cst_29 [1] : vector<8x8xf32> to vector<8xf32>
    %88 = vector.shape_cast %87 : vector<8xf32> to vector<8x1xf32>
    %89 = vector.broadcast %88 : vector<8x1xf32> to vector<8x8xf32>
    %90 = arith.subf %86, %89 : vector<8x8xf32>
    %91 = math.exp %90 : vector<8x8xf32>
    %cst_30 = arith.constant dense<0.000000e+00> : vector<8xf32>
    %92 = vector.multi_reduction <add>, %91, %cst_30 [1] : vector<8x8xf32> to vector<8xf32>
    %93 = vector.shape_cast %92 : vector<8xf32> to vector<8x1xf32>
    %94 = tpu.reciprocal %93 {approx = true} : vector<8x1xf32> -> vector<8x1xf32>
    %95 = vector.broadcast %94 : vector<8x1xf32> to vector<8x8xf32>
    %96 = arith.mulf %91, %95 : vector<8x8xf32>
    %97 = arith.truncf %96 : vector<8x8xf32> to vector<8x8xbf16>
    %cst_31 = arith.constant dense<0.000000e+00> : vector<8x32xf32>
    %98 = tpu.matmul %97, %83, %cst_31 {dimension_numbers = #tpu.dot_dimension_numbers<[1], [0], [0], [1], [0, 0, 1, 1], [], []>} : vector<8x8xbf16>, vector<8x32xbf16>, vector<8x32xf32> -> vector<8x32xf32>
    %99 = vector.extract_strided_slice %2 {offsets = [0, 160], sizes = [8, 32], strides = [1, 1]} : vector<8x256xbf16> to vector<8x32xbf16>
    %100 = vector.extract_strided_slice %5 {offsets = [0, 160], sizes = [8, 32], strides = [1, 1]} : vector<8x256xbf16> to vector<8x32xbf16>
    %101 = vector.extract_strided_slice %8 {offsets = [0, 160], sizes = [8, 32], strides = [1, 1]} : vector<8x256xbf16> to vector<8x32xbf16>
    %cst_32 = arith.constant dense<0.000000e+00> : vector<8x8xf32>
    %102 = tpu.matmul %99, %100, %cst_32 {dimension_numbers = #tpu.dot_dimension_numbers<[1], [1], [0], [0], [0, 0, 1, 0], [], []>} : vector<8x32xbf16>, vector<8x32xbf16>, vector<8x8xf32> -> vector<8x8xf32>
    %cst_33 = arith.constant 0.176776692 : f32
    %103 = vector.broadcast %cst_33 : f32 to vector<8x8xf32>
    %104 = arith.mulf %102, %103 : vector<8x8xf32>
    %cst_34 = arith.constant dense<0xFF800000> : vector<8xf32>
    %105 = vector.multi_reduction <maximumf>, %104, %cst_34 [1] : vector<8x8xf32> to vector<8xf32>
    %106 = vector.shape_cast %105 : vector<8xf32> to vector<8x1xf32>
    %107 = vector.broadcast %106 : vector<8x1xf32> to vector<8x8xf32>
    %108 = arith.subf %104, %107 : vector<8x8xf32>
    %109 = math.exp %108 : vector<8x8xf32>
    %cst_35 = arith.constant dense<0.000000e+00> : vector<8xf32>
    %110 = vector.multi_reduction <add>, %109, %cst_35 [1] : vector<8x8xf32> to vector<8xf32>
    %111 = vector.shape_cast %110 : vector<8xf32> to vector<8x1xf32>
    %112 = tpu.reciprocal %111 {approx = true} : vector<8x1xf32> -> vector<8x1xf32>
    %113 = vector.broadcast %112 : vector<8x1xf32> to vector<8x8xf32>
    %114 = arith.mulf %109, %113 : vector<8x8xf32>
    %115 = arith.truncf %114 : vector<8x8xf32> to vector<8x8xbf16>
    %cst_36 = arith.constant dense<0.000000e+00> : vector<8x32xf32>
    %116 = tpu.matmul %115, %101, %cst_36 {dimension_numbers = #tpu.dot_dimension_numbers<[1], [0], [0], [1], [0, 0, 1, 1], [], []>} : vector<8x8xbf16>, vector<8x32xbf16>, vector<8x32xf32> -> vector<8x32xf32>
    %117 = vector.extract_strided_slice %2 {offsets = [0, 192], sizes = [8, 32], strides = [1, 1]} : vector<8x256xbf16> to vector<8x32xbf16>
    %118 = vector.extract_strided_slice %5 {offsets = [0, 192], sizes = [8, 32], strides = [1, 1]} : vector<8x256xbf16> to vector<8x32xbf16>
    %119 = vector.extract_strided_slice %8 {offsets = [0, 192], sizes = [8, 32], strides = [1, 1]} : vector<8x256xbf16> to vector<8x32xbf16>
    %cst_37 = arith.constant dense<0.000000e+00> : vector<8x8xf32>
    %120 = tpu.matmul %117, %118, %cst_37 {dimension_numbers = #tpu.dot_dimension_numbers<[1], [1], [0], [0], [0, 0, 1, 0], [], []>} : vector<8x32xbf16>, vector<8x32xbf16>, vector<8x8xf32> -> vector<8x8xf32>
    %cst_38 = arith.constant 0.176776692 : f32
    %121 = vector.broadcast %cst_38 : f32 to vector<8x8xf32>
    %122 = arith.mulf %120, %121 : vector<8x8xf32>
    %cst_39 = arith.constant dense<0xFF800000> : vector<8xf32>
    %123 = vector.multi_reduction <maximumf>, %122, %cst_39 [1] : vector<8x8xf32> to vector<8xf32>
    %124 = vector.shape_cast %123 : vector<8xf32> to vector<8x1xf32>
    %125 = vector.broadcast %124 : vector<8x1xf32> to vector<8x8xf32>
    %126 = arith.subf %122, %125 : vector<8x8xf32>
    %127 = math.exp %126 : vector<8x8xf32>
    %cst_40 = arith.constant dense<0.000000e+00> : vector<8xf32>
    %128 = vector.multi_reduction <add>, %127, %cst_40 [1] : vector<8x8xf32> to vector<8xf32>
    %129 = vector.shape_cast %128 : vector<8xf32> to vector<8x1xf32>
    %130 = tpu.reciprocal %129 {approx = true} : vector<8x1xf32> -> vector<8x1xf32>
    %131 = vector.broadcast %130 : vector<8x1xf32> to vector<8x8xf32>
    %132 = arith.mulf %127, %131 : vector<8x8xf32>
    %133 = arith.truncf %132 : vector<8x8xf32> to vector<8x8xbf16>
    %cst_41 = arith.constant dense<0.000000e+00> : vector<8x32xf32>
    %134 = tpu.matmul %133, %119, %cst_41 {dimension_numbers = #tpu.dot_dimension_numbers<[1], [0], [0], [1], [0, 0, 1, 1], [], []>} : vector<8x8xbf16>, vector<8x32xbf16>, vector<8x32xf32> -> vector<8x32xf32>
    %135 = vector.extract_strided_slice %2 {offsets = [0, 224], sizes = [8, 32], strides = [1, 1]} : vector<8x256xbf16> to vector<8x32xbf16>
    %136 = vector.extract_strided_slice %5 {offsets = [0, 224], sizes = [8, 32], strides = [1, 1]} : vector<8x256xbf16> to vector<8x32xbf16>
    %137 = vector.extract_strided_slice %8 {offsets = [0, 224], sizes = [8, 32], strides = [1, 1]} : vector<8x256xbf16> to vector<8x32xbf16>
    %cst_42 = arith.constant dense<0.000000e+00> : vector<8x8xf32>
    %138 = tpu.matmul %135, %136, %cst_42 {dimension_numbers = #tpu.dot_dimension_numbers<[1], [1], [0], [0], [0, 0, 1, 0], [], []>} : vector<8x32xbf16>, vector<8x32xbf16>, vector<8x8xf32> -> vector<8x8xf32>
    %cst_43 = arith.constant 0.176776692 : f32
    %139 = vector.broadcast %cst_43 : f32 to vector<8x8xf32>
    %140 = arith.mulf %138, %139 : vector<8x8xf32>
    %cst_44 = arith.constant dense<0xFF800000> : vector<8xf32>
    %141 = vector.multi_reduction <maximumf>, %140, %cst_44 [1] : vector<8x8xf32> to vector<8xf32>
    %142 = vector.shape_cast %141 : vector<8xf32> to vector<8x1xf32>
    %143 = vector.broadcast %142 : vector<8x1xf32> to vector<8x8xf32>
    %144 = arith.subf %140, %143 : vector<8x8xf32>
    %145 = math.exp %144 : vector<8x8xf32>
    %cst_45 = arith.constant dense<0.000000e+00> : vector<8xf32>
    %146 = vector.multi_reduction <add>, %145, %cst_45 [1] : vector<8x8xf32> to vector<8xf32>
    %147 = vector.shape_cast %146 : vector<8xf32> to vector<8x1xf32>
    %148 = tpu.reciprocal %147 {approx = true} : vector<8x1xf32> -> vector<8x1xf32>
    %149 = vector.broadcast %148 : vector<8x1xf32> to vector<8x8xf32>
    %150 = arith.mulf %145, %149 : vector<8x8xf32>
    %151 = arith.truncf %150 : vector<8x8xf32> to vector<8x8xbf16>
    %cst_46 = arith.constant dense<0.000000e+00> : vector<8x32xf32>
    %152 = tpu.matmul %151, %137, %cst_46 {dimension_numbers = #tpu.dot_dimension_numbers<[1], [0], [0], [1], [0, 0, 1, 1], [], []>} : vector<8x8xbf16>, vector<8x32xbf16>, vector<8x32xf32> -> vector<8x32xf32>
    %153 = tpu.concatenate %26, %44, %62, %80, %98, %116, %134, %152 in 1 : vector<8x32xf32>, vector<8x32xf32>, vector<8x32xf32>, vector<8x32xf32>, vector<8x32xf32>, vector<8x32xf32>, vector<8x32xf32>, vector<8x32xf32> -> vector<8x256xf32>
    %154 = arith.truncf %153 : vector<8x256xf32> to vector<8x256xbf16>
    %c0_47 = arith.constant 0 : index
    %c0_48 = arith.constant 0 : index
    %155 = vector.load %arg4[%c0_47, %c0_48] : memref<256x256xbf16, #tpu.memory_space<vmem>>, vector<256x256xbf16>
    %cst_49 = arith.constant dense<0.000000e+00> : vector<8x256xf32>
    %156 = tpu.matmul %154, %155, %cst_49 {dimension_numbers = #tpu.dot_dimension_numbers<[1], [0], [0], [1], [0, 0, 1, 1], [], []>} : vector<8x256xbf16>, vector<256x256xbf16>, vector<8x256xf32> -> vector<8x256xf32>
    %c0_50 = arith.constant 0 : index
    %c0_51 = arith.constant 0 : index
    %157 = vector.load %arg5[%c0_50, %c0_51] : memref<1x256xf32, #tpu.memory_space<vmem>>, vector<1x256xf32>
    %158 = vector.broadcast %157 : vector<1x256xf32> to vector<8x256xf32>
    %159 = arith.addf %156, %158 : vector<8x256xf32>
    %160 = vector.shape_cast %159 : vector<8x256xf32> to vector<1x8x256xf32>
    %c0_52 = arith.constant 0 : index
    %c0_53 = arith.constant 0 : index
    %c0_54 = arith.constant 0 : index
    %161 = vector.load %arg6[%c0_52, %c0_53, %c0_54] : memref<1x8x256xf32, #tpu.memory_space<vmem>>, vector<1x8x256xf32>
    tpu.vector_store %arg6[%c0_52, %c0_53, %c0_54], %160 {strides = array<i32>} : memref<1x8x256xf32, #tpu.memory_space<vmem>>, vector<1x8x256xf32>,
    return
  }
  func.func @transform_0(%arg0: i32) -> (i32, i32, i32) {
    %c0_i32 = arith.constant 0 : i32
    %c0_i32_0 = arith.constant 0 : i32
    %c0_i32_1 = arith.constant 0 : i32
    return %arg0, %c0_i32, %c0_i32_0 : i32, i32, i32
  }
  func.func @transform_1(%arg0: i32) -> (i32, i32, i32) {
    %c0_i32 = arith.constant 0 : i32
    %c0_i32_0 = arith.constant 0 : i32
    %c0_i32_1 = arith.constant 0 : i32
    return %arg0, %c0_i32, %c0_i32_0 : i32, i32, i32
  }
  func.func @transform_2(%arg0: i32) -> (i32, i32, i32) {
    %c0_i32 = arith.constant 0 : i32
    %c0_i32_0 = arith.constant 0 : i32
    %c0_i32_1 = arith.constant 0 : i32
    return %arg0, %c0_i32, %c0_i32_0 : i32, i32, i32
  }
  func.func @transform_3(%arg0: i32) -> (i32, i32) {
    %c0_i32 = arith.constant 0 : i32
    %c0_i32_0 = arith.constant 0 : i32
    %c0_i32_1 = arith.constant 0 : i32
    return %c0_i32, %c0_i32_0 : i32, i32
  }
  func.func @transform_4(%arg0: i32) -> (i32, i32) {
    %c0_i32 = arith.constant 0 : i32
    %c0_i32_0 = arith.constant 0 : i32
    %c0_i32_1 = arith.constant 0 : i32
    return %c0_i32, %c0_i32_0 : i32, i32
  }
  func.func @transform_5(%arg0: i32) -> (i32, i32, i32) {
    %c0_i32 = arith.constant 0 : i32
    %c0_i32_0 = arith.constant 0 : i32
    %c0_i32_1 = arith.constant 0 : i32
    return %arg0, %c0_i32, %c0_i32_0 : i32, i32, i32
  }
}

module attributes {stable_mosaic.version = 11 : i64} {
  func.func @_add_ln_kernel(%arg0: i32, %arg1: memref<16x256xf32, #tpu.memory_space<vmem>>, %arg2: memref<16x256xf32, #tpu.memory_space<vmem>>, %arg3: memref<1x256xf32, #tpu.memory_space<vmem>>, %arg4: memref<1x256xf32, #tpu.memory_space<vmem>>, %arg5: memref<16x256xf32, #tpu.memory_space<vmem>>) attributes {dimension_semantics = [#tpu.dimension_semantics<parallel>], iteration_bounds = array<i64: 1>, scalar_prefetch = 0 : i64, scratch_operands = 0 : i64, tpu.core_type = #tpu.core_type<tc>, window_params = [{transform_indices = @transform_0, window_bounds = array<i64: 16, 256>}, {transform_indices = @transform_1, window_bounds = array<i64: 16, 256>}, {pipeline_mode = #tpu.pipeline_mode<synchronous>, transform_indices = @transform_2, window_bounds = array<i64: 1, 256>}, {pipeline_mode = #tpu.pipeline_mode<synchronous>, transform_indices = @transform_3, window_bounds = array<i64: 1, 256>}, {transform_indices = @transform_4, window_bounds = array<i64: 16, 256>}]} {
    %c0 = arith.constant 0 : index
    %c0_0 = arith.constant 0 : index
    %0 = vector.load %arg1[%c0, %c0_0] : memref<16x256xf32, #tpu.memory_space<vmem>>, vector<16x256xf32>
    %c0_1 = arith.constant 0 : index
    %c0_2 = arith.constant 0 : index
    %1 = vector.load %arg2[%c0_1, %c0_2] : memref<16x256xf32, #tpu.memory_space<vmem>>, vector<16x256xf32>
    %2 = arith.addf %0, %1 : vector<16x256xf32>
    %cst = arith.constant dense<0.000000e+00> : vector<16xf32>
    %3 = vector.multi_reduction <add>, %2, %cst [1] : vector<16x256xf32> to vector<16xf32>
    %4 = vector.shape_cast %3 : vector<16xf32> to vector<16x1xf32>
    %cst_3 = arith.constant 2.560000e+02 : f32
    %5 = vector.broadcast %cst_3 : f32 to vector<16x1xf32>
    %6 = arith.divf %4, %5 : vector<16x1xf32>
    %7 = vector.broadcast %6 : vector<16x1xf32> to vector<16x256xf32>
    %8 = arith.subf %2, %7 : vector<16x256xf32>
    %9 = arith.mulf %8, %8 : vector<16x256xf32>
    %cst_4 = arith.constant dense<0.000000e+00> : vector<16xf32>
    %10 = vector.multi_reduction <add>, %9, %cst_4 [1] : vector<16x256xf32> to vector<16xf32>
    %11 = vector.shape_cast %10 : vector<16xf32> to vector<16x1xf32>
    %cst_5 = arith.constant 2.560000e+02 : f32
    %12 = vector.broadcast %cst_5 : f32 to vector<16x1xf32>
    %13 = arith.divf %11, %12 : vector<16x1xf32>
    %cst_6 = arith.constant 9.99999974E-6 : f32
    %14 = vector.broadcast %cst_6 : f32 to vector<16x1xf32>
    %15 = arith.addf %13, %14 : vector<16x1xf32>
    %16 = math.rsqrt %15 : vector<16x1xf32>
    %17 = vector.broadcast %16 : vector<16x1xf32> to vector<16x256xf32>
    %18 = arith.mulf %8, %17 : vector<16x256xf32>
    %c0_7 = arith.constant 0 : index
    %c0_8 = arith.constant 0 : index
    %19 = vector.load %arg3[%c0_7, %c0_8] : memref<1x256xf32, #tpu.memory_space<vmem>>, vector<1x256xf32>
    %20 = vector.broadcast %19 : vector<1x256xf32> to vector<16x256xf32>
    %21 = arith.mulf %18, %20 : vector<16x256xf32>
    %c0_9 = arith.constant 0 : index
    %c0_10 = arith.constant 0 : index
    %22 = vector.load %arg4[%c0_9, %c0_10] : memref<1x256xf32, #tpu.memory_space<vmem>>, vector<1x256xf32>
    %23 = vector.broadcast %22 : vector<1x256xf32> to vector<16x256xf32>
    %24 = arith.addf %21, %23 : vector<16x256xf32>
    %c0_11 = arith.constant 0 : index
    %c0_12 = arith.constant 0 : index
    %25 = vector.load %arg5[%c0_11, %c0_12] : memref<16x256xf32, #tpu.memory_space<vmem>>, vector<16x256xf32>
    tpu.vector_store %arg5[%c0_11, %c0_12], %24 {strides = array<i32>} : memref<16x256xf32, #tpu.memory_space<vmem>>, vector<16x256xf32>,
    return
  }
  func.func @transform_0(%arg0: i32) -> (i32, i32) {
    %c0_i32 = arith.constant 0 : i32
    %c0_i32_0 = arith.constant 0 : i32
    return %arg0, %c0_i32 : i32, i32
  }
  func.func @transform_1(%arg0: i32) -> (i32, i32) {
    %c0_i32 = arith.constant 0 : i32
    %c0_i32_0 = arith.constant 0 : i32
    return %arg0, %c0_i32 : i32, i32
  }
  func.func @transform_2(%arg0: i32) -> (i32, i32) {
    %c0_i32 = arith.constant 0 : i32
    %c0_i32_0 = arith.constant 0 : i32
    %c0_i32_1 = arith.constant 0 : i32
    return %c0_i32, %c0_i32_0 : i32, i32
  }
  func.func @transform_3(%arg0: i32) -> (i32, i32) {
    %c0_i32 = arith.constant 0 : i32
    %c0_i32_0 = arith.constant 0 : i32
    %c0_i32_1 = arith.constant 0 : i32
    return %c0_i32, %c0_i32_0 : i32, i32
  }
  func.func @transform_4(%arg0: i32) -> (i32, i32) {
    %c0_i32 = arith.constant 0 : i32
    %c0_i32_0 = arith.constant 0 : i32
    return %arg0, %c0_i32 : i32, i32
  }
}

module attributes {stable_mosaic.version = 11 : i64} {
  func.func @_linear_kernel(%arg0: i32, %arg1: i32, %arg2: i32, %arg3: memref<16x256xf32, #tpu.memory_space<vmem>>, %arg4: memref<256x256xbf16, #tpu.memory_space<vmem>>, %arg5: memref<1x256xf32, #tpu.memory_space<vmem>>, %arg6: memref<16x256xf32, #tpu.memory_space<vmem>>, %arg7: memref<16x256xf32, #tpu.memory_space<vmem>>) attributes {dimension_semantics = [#tpu.dimension_semantics<parallel>, #tpu.dimension_semantics<parallel>, #tpu.dimension_semantics<arbitrary>], iteration_bounds = array<i64: 1, 8, 1>, scalar_prefetch = 0 : i64, scratch_operands = 1 : i64, tpu.core_type = #tpu.core_type<tc>, window_params = [{transform_indices = @transform_0, window_bounds = array<i64: 16, 256>}, {transform_indices = @transform_1, window_bounds = array<i64: 256, 256>}, {transform_indices = @transform_2, window_bounds = array<i64: 1, 256>}, {transform_indices = @transform_3, window_bounds = array<i64: 16, 256>}]} {
    %c0_i32 = arith.constant 0 : i32
    %0 = arith.cmpi eq, %arg2, %c0_i32 : i32
    %1 = arith.extui %0 : i1 to i32
    %c0_i32_0 = arith.constant 0 : i32
    %2 = arith.cmpi ne, %1, %c0_i32_0 : i32
    scf.if %2 {
      %cst_10 = arith.constant 0.000000e+00 : f32
      %13 = vector.broadcast %cst_10 : f32 to vector<16x256xf32>
      %c0_11 = arith.constant 0 : index
      %c0_12 = arith.constant 0 : index
      %14 = vector.load %arg7[%c0_11, %c0_12] : memref<16x256xf32, #tpu.memory_space<vmem>>, vector<16x256xf32>
      tpu.vector_store %arg7[%c0_11, %c0_12], %13 {strides = array<i32>} : memref<16x256xf32, #tpu.memory_space<vmem>>, vector<16x256xf32>,
    } else {
    }
    %c0 = arith.constant 0 : index
    %c0_1 = arith.constant 0 : index
    %3 = vector.load %arg7[%c0, %c0_1] : memref<16x256xf32, #tpu.memory_space<vmem>>, vector<16x256xf32>
    %c0_2 = arith.constant 0 : index
    %c0_3 = arith.constant 0 : index
    %4 = vector.load %arg3[%c0_2, %c0_3] : memref<16x256xf32, #tpu.memory_space<vmem>>, vector<16x256xf32>
    %5 = arith.truncf %4 : vector<16x256xf32> to vector<16x256xbf16>
    %c0_4 = arith.constant 0 : index
    %c0_5 = arith.constant 0 : index
    %6 = vector.load %arg4[%c0_4, %c0_5] : memref<256x256xbf16, #tpu.memory_space<vmem>>, vector<256x256xbf16>
    %cst = arith.constant dense<0.000000e+00> : vector<16x256xf32>
    %7 = tpu.matmul %5, %6, %cst {dimension_numbers = #tpu.dot_dimension_numbers<[1], [0], [0], [1], [0, 0, 1, 1], [], []>} : vector<16x256xbf16>, vector<256x256xbf16>, vector<16x256xf32> -> vector<16x256xf32>
    %8 = arith.addf %3, %7 : vector<16x256xf32>
    %c0_6 = arith.constant 0 : index
    %c0_7 = arith.constant 0 : index
    %9 = vector.load %arg7[%c0_6, %c0_7] : memref<16x256xf32, #tpu.memory_space<vmem>>, vector<16x256xf32>
    tpu.vector_store %arg7[%c0_6, %c0_7], %8 {strides = array<i32>} : memref<16x256xf32, #tpu.memory_space<vmem>>, vector<16x256xf32>,
    %c0_i32_8 = arith.constant 0 : i32
    %10 = arith.cmpi eq, %arg2, %c0_i32_8 : i32
    %11 = arith.extui %10 : i1 to i32
    %c0_i32_9 = arith.constant 0 : i32
    %12 = arith.cmpi ne, %11, %c0_i32_9 : i32
    scf.if %12 {
      %c0_10 = arith.constant 0 : index
      %c0_11 = arith.constant 0 : index
      %13 = vector.load %arg7[%c0_10, %c0_11] : memref<16x256xf32, #tpu.memory_space<vmem>>, vector<16x256xf32>
      %c0_12 = arith.constant 0 : index
      %c0_13 = arith.constant 0 : index
      %14 = vector.load %arg5[%c0_12, %c0_13] : memref<1x256xf32, #tpu.memory_space<vmem>>, vector<1x256xf32>
      %15 = vector.broadcast %14 : vector<1x256xf32> to vector<16x256xf32>
      %16 = arith.addf %13, %15 : vector<16x256xf32>
      %cst_14 = arith.constant 0.000000e+00 : f32
      %17 = vector.broadcast %cst_14 : f32 to vector<16x256xf32>
      %18 = arith.maximumf %16, %17 : vector<16x256xf32>
      %c0_15 = arith.constant 0 : index
      %c0_16 = arith.constant 0 : index
      %19 = vector.load %arg6[%c0_15, %c0_16] : memref<16x256xf32, #tpu.memory_space<vmem>>, vector<16x256xf32>
      tpu.vector_store %arg6[%c0_15, %c0_16], %18 {strides = array<i32>} : memref<16x256xf32, #tpu.memory_space<vmem>>, vector<16x256xf32>,
    } else {
    }
    return
  }
  func.func @transform_0(%arg0: i32, %arg1: i32, %arg2: i32) -> (i32, i32) {
    %c0_i32 = arith.constant 0 : i32
    return %arg0, %arg2 : i32, i32
  }
  func.func @transform_1(%arg0: i32, %arg1: i32, %arg2: i32) -> (i32, i32) {
    %c0_i32 = arith.constant 0 : i32
    return %arg2, %arg1 : i32, i32
  }
  func.func @transform_2(%arg0: i32, %arg1: i32, %arg2: i32) -> (i32, i32) {
    %c0_i32 = arith.constant 0 : i32
    %c0_i32_0 = arith.constant 0 : i32
    return %c0_i32, %arg1 : i32, i32
  }
  func.func @transform_3(%arg0: i32, %arg1: i32, %arg2: i32) -> (i32, i32) {
    %c0_i32 = arith.constant 0 : i32
    return %arg0, %arg1 : i32, i32
  }
}

module attributes {stable_mosaic.version = 11 : i64} {
  func.func @_linear_kernel(%arg0: i32, %arg1: i32, %arg2: i32, %arg3: memref<16x512xf32, #tpu.memory_space<vmem>>, %arg4: memref<512x256xbf16, #tpu.memory_space<vmem>>, %arg5: memref<1x256xf32, #tpu.memory_space<vmem>>, %arg6: memref<16x256xf32, #tpu.memory_space<vmem>>, %arg7: memref<16x256xf32, #tpu.memory_space<vmem>>) attributes {dimension_semantics = [#tpu.dimension_semantics<parallel>, #tpu.dimension_semantics<parallel>, #tpu.dimension_semantics<arbitrary>], iteration_bounds = array<i64: 1, 1, 4>, scalar_prefetch = 0 : i64, scratch_operands = 1 : i64, tpu.core_type = #tpu.core_type<tc>, window_params = [{transform_indices = @transform_0, window_bounds = array<i64: 16, 512>}, {transform_indices = @transform_1, window_bounds = array<i64: 512, 256>}, {transform_indices = @transform_2, window_bounds = array<i64: 1, 256>}, {transform_indices = @transform_3, window_bounds = array<i64: 16, 256>}]} {
    %c0_i32 = arith.constant 0 : i32
    %0 = arith.cmpi eq, %arg2, %c0_i32 : i32
    %1 = arith.extui %0 : i1 to i32
    %c0_i32_0 = arith.constant 0 : i32
    %2 = arith.cmpi ne, %1, %c0_i32_0 : i32
    scf.if %2 {
      %cst_9 = arith.constant 0.000000e+00 : f32
      %13 = vector.broadcast %cst_9 : f32 to vector<16x256xf32>
      %c0_10 = arith.constant 0 : index
      %c0_11 = arith.constant 0 : index
      %14 = vector.load %arg7[%c0_10, %c0_11] : memref<16x256xf32, #tpu.memory_space<vmem>>, vector<16x256xf32>
      tpu.vector_store %arg7[%c0_10, %c0_11], %13 {strides = array<i32>} : memref<16x256xf32, #tpu.memory_space<vmem>>, vector<16x256xf32>,
    } else {
    }
    %c0 = arith.constant 0 : index
    %c0_1 = arith.constant 0 : index
    %3 = vector.load %arg7[%c0, %c0_1] : memref<16x256xf32, #tpu.memory_space<vmem>>, vector<16x256xf32>
    %c0_2 = arith.constant 0 : index
    %c0_3 = arith.constant 0 : index
    %4 = vector.load %arg3[%c0_2, %c0_3] : memref<16x512xf32, #tpu.memory_space<vmem>>, vector<16x512xf32>
    %5 = arith.truncf %4 : vector<16x512xf32> to vector<16x512xbf16>
    %c0_4 = arith.constant 0 : index
    %c0_5 = arith.constant 0 : index
    %6 = vector.load %arg4[%c0_4, %c0_5] : memref<512x256xbf16, #tpu.memory_space<vmem>>, vector<512x256xbf16>
    %cst = arith.constant dense<0.000000e+00> : vector<16x256xf32>
    %7 = tpu.matmul %5, %6, %cst {dimension_numbers = #tpu.dot_dimension_numbers<[1], [0], [0], [1], [0, 0, 1, 1], [], []>} : vector<16x512xbf16>, vector<512x256xbf16>, vector<16x256xf32> -> vector<16x256xf32>
    %8 = arith.addf %3, %7 : vector<16x256xf32>
    %c0_6 = arith.constant 0 : index
    %c0_7 = arith.constant 0 : index
    %9 = vector.load %arg7[%c0_6, %c0_7] : memref<16x256xf32, #tpu.memory_space<vmem>>, vector<16x256xf32>
    tpu.vector_store %arg7[%c0_6, %c0_7], %8 {strides = array<i32>} : memref<16x256xf32, #tpu.memory_space<vmem>>, vector<16x256xf32>,
    %c3_i32 = arith.constant 3 : i32
    %10 = arith.cmpi eq, %arg2, %c3_i32 : i32
    %11 = arith.extui %10 : i1 to i32
    %c0_i32_8 = arith.constant 0 : i32
    %12 = arith.cmpi ne, %11, %c0_i32_8 : i32
    scf.if %12 {
      %c0_9 = arith.constant 0 : index
      %c0_10 = arith.constant 0 : index
      %13 = vector.load %arg7[%c0_9, %c0_10] : memref<16x256xf32, #tpu.memory_space<vmem>>, vector<16x256xf32>
      %c0_11 = arith.constant 0 : index
      %c0_12 = arith.constant 0 : index
      %14 = vector.load %arg5[%c0_11, %c0_12] : memref<1x256xf32, #tpu.memory_space<vmem>>, vector<1x256xf32>
      %15 = vector.broadcast %14 : vector<1x256xf32> to vector<16x256xf32>
      %16 = arith.addf %13, %15 : vector<16x256xf32>
      %c0_13 = arith.constant 0 : index
      %c0_14 = arith.constant 0 : index
      %17 = vector.load %arg6[%c0_13, %c0_14] : memref<16x256xf32, #tpu.memory_space<vmem>>, vector<16x256xf32>
      tpu.vector_store %arg6[%c0_13, %c0_14], %16 {strides = array<i32>} : memref<16x256xf32, #tpu.memory_space<vmem>>, vector<16x256xf32>,
    } else {
    }
    return
  }
  func.func @transform_0(%arg0: i32, %arg1: i32, %arg2: i32) -> (i32, i32) {
    %c0_i32 = arith.constant 0 : i32
    return %arg0, %arg2 : i32, i32
  }
  func.func @transform_1(%arg0: i32, %arg1: i32, %arg2: i32) -> (i32, i32) {
    %c0_i32 = arith.constant 0 : i32
    return %arg2, %arg1 : i32, i32
  }
  func.func @transform_2(%arg0: i32, %arg1: i32, %arg2: i32) -> (i32, i32) {
    %c0_i32 = arith.constant 0 : i32
    %c0_i32_0 = arith.constant 0 : i32
    return %c0_i32, %arg1 : i32, i32
  }
  func.func @transform_3(%arg0: i32, %arg1: i32, %arg2: i32) -> (i32, i32) {
    %c0_i32 = arith.constant 0 : i32
    return %arg0, %arg1 : i32, i32
  }
}

module attributes {stable_mosaic.version = 11 : i64} {
  func.func @_linear_kernel(%arg0: i32, %arg1: i32, %arg2: i32, %arg3: memref<16x256xf32, #tpu.memory_space<vmem>>, %arg4: memref<256x256xbf16, #tpu.memory_space<vmem>>, %arg5: memref<1x256xf32, #tpu.memory_space<vmem>>, %arg6: memref<16x256xf32, #tpu.memory_space<vmem>>, %arg7: memref<16x256xf32, #tpu.memory_space<vmem>>) attributes {dimension_semantics = [#tpu.dimension_semantics<parallel>, #tpu.dimension_semantics<parallel>, #tpu.dimension_semantics<arbitrary>], iteration_bounds = array<i64: 1, 2, 1>, scalar_prefetch = 0 : i64, scratch_operands = 1 : i64, tpu.core_type = #tpu.core_type<tc>, window_params = [{transform_indices = @transform_0, window_bounds = array<i64: 16, 256>}, {transform_indices = @transform_1, window_bounds = array<i64: 256, 256>}, {transform_indices = @transform_2, window_bounds = array<i64: 1, 256>}, {transform_indices = @transform_3, window_bounds = array<i64: 16, 256>}]} {
    %c0_i32 = arith.constant 0 : i32
    %0 = arith.cmpi eq, %arg2, %c0_i32 : i32
    %1 = arith.extui %0 : i1 to i32
    %c0_i32_0 = arith.constant 0 : i32
    %2 = arith.cmpi ne, %1, %c0_i32_0 : i32
    scf.if %2 {
      %cst_10 = arith.constant 0.000000e+00 : f32
      %13 = vector.broadcast %cst_10 : f32 to vector<16x256xf32>
      %c0_11 = arith.constant 0 : index
      %c0_12 = arith.constant 0 : index
      %14 = vector.load %arg7[%c0_11, %c0_12] : memref<16x256xf32, #tpu.memory_space<vmem>>, vector<16x256xf32>
      tpu.vector_store %arg7[%c0_11, %c0_12], %13 {strides = array<i32>} : memref<16x256xf32, #tpu.memory_space<vmem>>, vector<16x256xf32>,
    } else {
    }
    %c0 = arith.constant 0 : index
    %c0_1 = arith.constant 0 : index
    %3 = vector.load %arg7[%c0, %c0_1] : memref<16x256xf32, #tpu.memory_space<vmem>>, vector<16x256xf32>
    %c0_2 = arith.constant 0 : index
    %c0_3 = arith.constant 0 : index
    %4 = vector.load %arg3[%c0_2, %c0_3] : memref<16x256xf32, #tpu.memory_space<vmem>>, vector<16x256xf32>
    %5 = arith.truncf %4 : vector<16x256xf32> to vector<16x256xbf16>
    %c0_4 = arith.constant 0 : index
    %c0_5 = arith.constant 0 : index
    %6 = vector.load %arg4[%c0_4, %c0_5] : memref<256x256xbf16, #tpu.memory_space<vmem>>, vector<256x256xbf16>
    %cst = arith.constant dense<0.000000e+00> : vector<16x256xf32>
    %7 = tpu.matmul %5, %6, %cst {dimension_numbers = #tpu.dot_dimension_numbers<[1], [0], [0], [1], [0, 0, 1, 1], [], []>} : vector<16x256xbf16>, vector<256x256xbf16>, vector<16x256xf32> -> vector<16x256xf32>
    %8 = arith.addf %3, %7 : vector<16x256xf32>
    %c0_6 = arith.constant 0 : index
    %c0_7 = arith.constant 0 : index
    %9 = vector.load %arg7[%c0_6, %c0_7] : memref<16x256xf32, #tpu.memory_space<vmem>>, vector<16x256xf32>
    tpu.vector_store %arg7[%c0_6, %c0_7], %8 {strides = array<i32>} : memref<16x256xf32, #tpu.memory_space<vmem>>, vector<16x256xf32>,
    %c0_i32_8 = arith.constant 0 : i32
    %10 = arith.cmpi eq, %arg2, %c0_i32_8 : i32
    %11 = arith.extui %10 : i1 to i32
    %c0_i32_9 = arith.constant 0 : i32
    %12 = arith.cmpi ne, %11, %c0_i32_9 : i32
    scf.if %12 {
      %c0_10 = arith.constant 0 : index
      %c0_11 = arith.constant 0 : index
      %13 = vector.load %arg7[%c0_10, %c0_11] : memref<16x256xf32, #tpu.memory_space<vmem>>, vector<16x256xf32>
      %c0_12 = arith.constant 0 : index
      %c0_13 = arith.constant 0 : index
      %14 = vector.load %arg5[%c0_12, %c0_13] : memref<1x256xf32, #tpu.memory_space<vmem>>, vector<1x256xf32>
      %15 = vector.broadcast %14 : vector<1x256xf32> to vector<16x256xf32>
      %16 = arith.addf %13, %15 : vector<16x256xf32>
      %c0_14 = arith.constant 0 : index
      %c0_15 = arith.constant 0 : index
      %17 = vector.load %arg6[%c0_14, %c0_15] : memref<16x256xf32, #tpu.memory_space<vmem>>, vector<16x256xf32>
      tpu.vector_store %arg6[%c0_14, %c0_15], %16 {strides = array<i32>} : memref<16x256xf32, #tpu.memory_space<vmem>>, vector<16x256xf32>,
    } else {
    }
    return
  }
  func.func @transform_0(%arg0: i32, %arg1: i32, %arg2: i32) -> (i32, i32) {
    %c0_i32 = arith.constant 0 : i32
    return %arg0, %arg2 : i32, i32
  }
  func.func @transform_1(%arg0: i32, %arg1: i32, %arg2: i32) -> (i32, i32) {
    %c0_i32 = arith.constant 0 : i32
    return %arg2, %arg1 : i32, i32
  }
  func.func @transform_2(%arg0: i32, %arg1: i32, %arg2: i32) -> (i32, i32) {
    %c0_i32 = arith.constant 0 : i32
    %c0_i32_0 = arith.constant 0 : i32
    return %c0_i32, %arg1 : i32, i32
  }
  func.func @transform_3(%arg0: i32, %arg1: i32, %arg2: i32) -> (i32, i32) {
    %c0_i32 = arith.constant 0 : i32
    return %arg0, %arg1 : i32, i32
  }
}

module attributes {stable_mosaic.version = 11 : i64} {
  func.func @_linear_kernel(%arg0: i32, %arg1: i32, %arg2: i32, %arg3: memref<16x256xf32, #tpu.memory_space<vmem>>, %arg4: memref<256x256xbf16, #tpu.memory_space<vmem>>, %arg5: memref<1x256xf32, #tpu.memory_space<vmem>>, %arg6: memref<16x256xf32, #tpu.memory_space<vmem>>, %arg7: memref<16x256xf32, #tpu.memory_space<vmem>>) attributes {dimension_semantics = [#tpu.dimension_semantics<parallel>, #tpu.dimension_semantics<parallel>, #tpu.dimension_semantics<arbitrary>], iteration_bounds = array<i64: 1, 1, 1>, scalar_prefetch = 0 : i64, scratch_operands = 1 : i64, tpu.core_type = #tpu.core_type<tc>, window_params = [{transform_indices = @transform_0, window_bounds = array<i64: 16, 256>}, {transform_indices = @transform_1, window_bounds = array<i64: 256, 256>}, {transform_indices = @transform_2, window_bounds = array<i64: 1, 256>}, {transform_indices = @transform_3, window_bounds = array<i64: 16, 256>}]} {
    %c0_i32 = arith.constant 0 : i32
    %0 = arith.cmpi eq, %arg2, %c0_i32 : i32
    %1 = arith.extui %0 : i1 to i32
    %c0_i32_0 = arith.constant 0 : i32
    %2 = arith.cmpi ne, %1, %c0_i32_0 : i32
    scf.if %2 {
      %cst_10 = arith.constant 0.000000e+00 : f32
      %13 = vector.broadcast %cst_10 : f32 to vector<16x256xf32>
      %c0_11 = arith.constant 0 : index
      %c0_12 = arith.constant 0 : index
      %14 = vector.load %arg7[%c0_11, %c0_12] : memref<16x256xf32, #tpu.memory_space<vmem>>, vector<16x256xf32>
      tpu.vector_store %arg7[%c0_11, %c0_12], %13 {strides = array<i32>} : memref<16x256xf32, #tpu.memory_space<vmem>>, vector<16x256xf32>,
    } else {
    }
    %c0 = arith.constant 0 : index
    %c0_1 = arith.constant 0 : index
    %3 = vector.load %arg7[%c0, %c0_1] : memref<16x256xf32, #tpu.memory_space<vmem>>, vector<16x256xf32>
    %c0_2 = arith.constant 0 : index
    %c0_3 = arith.constant 0 : index
    %4 = vector.load %arg3[%c0_2, %c0_3] : memref<16x256xf32, #tpu.memory_space<vmem>>, vector<16x256xf32>
    %5 = arith.truncf %4 : vector<16x256xf32> to vector<16x256xbf16>
    %c0_4 = arith.constant 0 : index
    %c0_5 = arith.constant 0 : index
    %6 = vector.load %arg4[%c0_4, %c0_5] : memref<256x256xbf16, #tpu.memory_space<vmem>>, vector<256x256xbf16>
    %cst = arith.constant dense<0.000000e+00> : vector<16x256xf32>
    %7 = tpu.matmul %5, %6, %cst {dimension_numbers = #tpu.dot_dimension_numbers<[1], [0], [0], [1], [0, 0, 1, 1], [], []>} : vector<16x256xbf16>, vector<256x256xbf16>, vector<16x256xf32> -> vector<16x256xf32>
    %8 = arith.addf %3, %7 : vector<16x256xf32>
    %c0_6 = arith.constant 0 : index
    %c0_7 = arith.constant 0 : index
    %9 = vector.load %arg7[%c0_6, %c0_7] : memref<16x256xf32, #tpu.memory_space<vmem>>, vector<16x256xf32>
    tpu.vector_store %arg7[%c0_6, %c0_7], %8 {strides = array<i32>} : memref<16x256xf32, #tpu.memory_space<vmem>>, vector<16x256xf32>,
    %c0_i32_8 = arith.constant 0 : i32
    %10 = arith.cmpi eq, %arg2, %c0_i32_8 : i32
    %11 = arith.extui %10 : i1 to i32
    %c0_i32_9 = arith.constant 0 : i32
    %12 = arith.cmpi ne, %11, %c0_i32_9 : i32
    scf.if %12 {
      %c0_10 = arith.constant 0 : index
      %c0_11 = arith.constant 0 : index
      %13 = vector.load %arg7[%c0_10, %c0_11] : memref<16x256xf32, #tpu.memory_space<vmem>>, vector<16x256xf32>
      %c0_12 = arith.constant 0 : index
      %c0_13 = arith.constant 0 : index
      %14 = vector.load %arg5[%c0_12, %c0_13] : memref<1x256xf32, #tpu.memory_space<vmem>>, vector<1x256xf32>
      %15 = vector.broadcast %14 : vector<1x256xf32> to vector<16x256xf32>
      %16 = arith.addf %13, %15 : vector<16x256xf32>
      %c0_14 = arith.constant 0 : index
      %c0_15 = arith.constant 0 : index
      %17 = vector.load %arg6[%c0_14, %c0_15] : memref<16x256xf32, #tpu.memory_space<vmem>>, vector<16x256xf32>
      tpu.vector_store %arg6[%c0_14, %c0_15], %16 {strides = array<i32>} : memref<16x256xf32, #tpu.memory_space<vmem>>, vector<16x256xf32>,
    } else {
    }
    return
  }
  func.func @transform_0(%arg0: i32, %arg1: i32, %arg2: i32) -> (i32, i32) {
    %c0_i32 = arith.constant 0 : i32
    return %arg0, %arg2 : i32, i32
  }
  func.func @transform_1(%arg0: i32, %arg1: i32, %arg2: i32) -> (i32, i32) {
    %c0_i32 = arith.constant 0 : i32
    return %arg2, %arg1 : i32, i32
  }
  func.func @transform_2(%arg0: i32, %arg1: i32, %arg2: i32) -> (i32, i32) {
    %c0_i32 = arith.constant 0 : i32
    %c0_i32_0 = arith.constant 0 : i32
    return %c0_i32, %arg1 : i32, i32
  }
  func.func @transform_3(%arg0: i32, %arg1: i32, %arg2: i32) -> (i32, i32) {
    %c0_i32 = arith.constant 0 : i32
    return %arg0, %arg1 : i32, i32
  }
}

module attributes {stable_mosaic.version = 11 : i64} {
  func.func @_attnpool_kernel(%arg0: i32, %arg1: memref<1x8x256xf32, #tpu.memory_space<vmem>>, %arg2: memref<256x256xbf16, #tpu.memory_space<vmem>>, %arg3: memref<1x256xf32, #tpu.memory_space<vmem>>, %arg4: memref<1x256xf32, #tpu.memory_space<vmem>>, %arg5: memref<1x1x256xf32, #tpu.memory_space<vmem>>) attributes {dimension_semantics = [#tpu.dimension_semantics<parallel>], iteration_bounds = array<i64: 2>, scalar_prefetch = 0 : i64, scratch_operands = 0 : i64, tpu.core_type = #tpu.core_type<tc>, window_params = [{transform_indices = @transform_0, window_bounds = array<i64: 1, 8, 256>}, {pipeline_mode = #tpu.pipeline_mode<synchronous>, transform_indices = @transform_1, window_bounds = array<i64: 256, 256>}, {pipeline_mode = #tpu.pipeline_mode<synchronous>, transform_indices = @transform_2, window_bounds = array<i64: 1, 256>}, {pipeline_mode = #tpu.pipeline_mode<synchronous>, transform_indices = @transform_3, window_bounds = array<i64: 1, 256>}, {transform_indices = @transform_4, window_bounds = array<i64: 1, 1, 256>}]} {
    %c0 = arith.constant 0 : index
    %c0_0 = arith.constant 0 : index
    %c0_1 = arith.constant 0 : index
    %0 = vector.load %arg1[%c0, %c0_0, %c0_1] : memref<1x8x256xf32, #tpu.memory_space<vmem>>, vector<1x8x256xf32>
    %1 = vector.shape_cast %0 : vector<1x8x256xf32> to vector<8x256xf32>
    %2 = arith.truncf %1 : vector<8x256xf32> to vector<8x256xbf16>
    %c0_2 = arith.constant 0 : index
    %c0_3 = arith.constant 0 : index
    %3 = vector.load %arg2[%c0_2, %c0_3] : memref<256x256xbf16, #tpu.memory_space<vmem>>, vector<256x256xbf16>
    %cst = arith.constant dense<0.000000e+00> : vector<8x256xf32>
    %4 = tpu.matmul %2, %3, %cst {dimension_numbers = #tpu.dot_dimension_numbers<[1], [0], [0], [1], [0, 0, 1, 1], [], []>} : vector<8x256xbf16>, vector<256x256xbf16>, vector<8x256xf32> -> vector<8x256xf32>
    %c0_4 = arith.constant 0 : index
    %c0_5 = arith.constant 0 : index
    %5 = vector.load %arg3[%c0_4, %c0_5] : memref<1x256xf32, #tpu.memory_space<vmem>>, vector<1x256xf32>
    %6 = vector.broadcast %5 : vector<1x256xf32> to vector<8x256xf32>
    %7 = arith.addf %4, %6 : vector<8x256xf32>
    %8 = math.tanh %7 : vector<8x256xf32>
    %c0_6 = arith.constant 0 : index
    %c0_7 = arith.constant 0 : index
    %9 = vector.load %arg4[%c0_6, %c0_7] : memref<1x256xf32, #tpu.memory_space<vmem>>, vector<1x256xf32>
    %10 = vector.broadcast %9 : vector<1x256xf32> to vector<8x256xf32>
    %11 = arith.mulf %8, %10 : vector<8x256xf32>
    %cst_8 = arith.constant dense<0.000000e+00> : vector<8xf32>
    %12 = vector.multi_reduction <add>, %11, %cst_8 [1] : vector<8x256xf32> to vector<8xf32>
    %13 = vector.shape_cast %12 : vector<8xf32> to vector<8x1xf32>
    %cst_9 = arith.constant dense<0xFF800000> : vector<1xf32>
    %14 = vector.multi_reduction <maximumf>, %13, %cst_9 [0] : vector<8x1xf32> to vector<1xf32>
    %15 = vector.shape_cast %14 : vector<1xf32> to vector<1x1xf32>
    %16 = vector.broadcast %15 : vector<1x1xf32> to vector<8x1xf32>
    %17 = arith.subf %13, %16 : vector<8x1xf32>
    %18 = math.exp %17 : vector<8x1xf32>
    %cst_10 = arith.constant dense<0.000000e+00> : vector<1xf32>
    %19 = vector.multi_reduction <add>, %18, %cst_10 [0] : vector<8x1xf32> to vector<1xf32>
    %20 = vector.shape_cast %19 : vector<1xf32> to vector<1x1xf32>
    %21 = tpu.reciprocal %20 {approx = true} : vector<1x1xf32> -> vector<1x1xf32>
    %22 = vector.broadcast %21 : vector<1x1xf32> to vector<8x1xf32>
    %23 = arith.mulf %18, %22 : vector<8x1xf32>
    %24 = vector.broadcast %23 : vector<8x1xf32> to vector<8x256xf32>
    %25 = arith.mulf %1, %24 : vector<8x256xf32>
    %cst_11 = arith.constant dense<0.000000e+00> : vector<256xf32>
    %26 = vector.multi_reduction <add>, %25, %cst_11 [0] : vector<8x256xf32> to vector<256xf32>
    %27 = vector.shape_cast %26 : vector<256xf32> to vector<1x256xf32>
    %28 = vector.shape_cast %27 : vector<1x256xf32> to vector<1x1x256xf32>
    %c0_12 = arith.constant 0 : index
    %c0_13 = arith.constant 0 : index
    %c0_14 = arith.constant 0 : index
    %29 = vector.load %arg5[%c0_12, %c0_13, %c0_14] : memref<1x1x256xf32, #tpu.memory_space<vmem>>, vector<1x1x256xf32>
    tpu.vector_store %arg5[%c0_12, %c0_13, %c0_14], %28 {strides = array<i32>} : memref<1x1x256xf32, #tpu.memory_space<vmem>>, vector<1x1x256xf32>,
    return
  }
  func.func @transform_0(%arg0: i32) -> (i32, i32, i32) {
    %c0_i32 = arith.constant 0 : i32
    %c0_i32_0 = arith.constant 0 : i32
    %c0_i32_1 = arith.constant 0 : i32
    return %arg0, %c0_i32, %c0_i32_0 : i32, i32, i32
  }
  func.func @transform_1(%arg0: i32) -> (i32, i32) {
    %c0_i32 = arith.constant 0 : i32
    %c0_i32_0 = arith.constant 0 : i32
    %c0_i32_1 = arith.constant 0 : i32
    return %c0_i32, %c0_i32_0 : i32, i32
  }
  func.func @transform_2(%arg0: i32) -> (i32, i32) {
    %c0_i32 = arith.constant 0 : i32
    %c0_i32_0 = arith.constant 0 : i32
    %c0_i32_1 = arith.constant 0 : i32
    return %c0_i32, %c0_i32_0 : i32, i32
  }
  func.func @transform_3(%arg0: i32) -> (i32, i32) {
    %c0_i32 = arith.constant 0 : i32
    %c0_i32_0 = arith.constant 0 : i32
    %c0_i32_1 = arith.constant 0 : i32
    return %c0_i32, %c0_i32_0 : i32, i32
  }
  func.func @transform_4(%arg0: i32) -> (i32, i32, i32) {
    %c0_i32 = arith.constant 0 : i32
    %c0_i32_0 = arith.constant 0 : i32
    %c0_i32_1 = arith.constant 0 : i32
    return %arg0, %c0_i32, %c0_i32_0 : i32, i32, i32
  }
}

module attributes {stable_mosaic.version = 11 : i64} {
  func.func @_linear_kernel(%arg0: i32, %arg1: i32, %arg2: i32, %arg3: memref<8x256xf32, #tpu.memory_space<vmem>>, %arg4: memref<256x128xbf16, #tpu.memory_space<vmem>>, %arg5: memref<1x128xf32, #tpu.memory_space<vmem>>, %arg6: memref<8x128xf32, #tpu.memory_space<vmem>>, %arg7: memref<8x128xf32, #tpu.memory_space<vmem>>) attributes {dimension_semantics = [#tpu.dimension_semantics<parallel>, #tpu.dimension_semantics<parallel>, #tpu.dimension_semantics<arbitrary>], iteration_bounds = array<i64: 1, 1, 1>, scalar_prefetch = 0 : i64, scratch_operands = 1 : i64, tpu.core_type = #tpu.core_type<tc>, window_params = [{transform_indices = @transform_0, window_bounds = array<i64: 8, 256>}, {transform_indices = @transform_1, window_bounds = array<i64: 256, 128>}, {transform_indices = @transform_2, window_bounds = array<i64: 1, 128>}, {transform_indices = @transform_3, window_bounds = array<i64: 8, 128>}]} {
    %c0_i32 = arith.constant 0 : i32
    %0 = arith.cmpi eq, %arg2, %c0_i32 : i32
    %1 = arith.extui %0 : i1 to i32
    %c0_i32_0 = arith.constant 0 : i32
    %2 = arith.cmpi ne, %1, %c0_i32_0 : i32
    scf.if %2 {
      %cst_10 = arith.constant 0.000000e+00 : f32
      %13 = vector.broadcast %cst_10 : f32 to vector<8x128xf32>
      %c0_11 = arith.constant 0 : index
      %c0_12 = arith.constant 0 : index
      %14 = vector.load %arg7[%c0_11, %c0_12] : memref<8x128xf32, #tpu.memory_space<vmem>>, vector<8x128xf32>
      tpu.vector_store %arg7[%c0_11, %c0_12], %13 {strides = array<i32>} : memref<8x128xf32, #tpu.memory_space<vmem>>, vector<8x128xf32>,
    } else {
    }
    %c0 = arith.constant 0 : index
    %c0_1 = arith.constant 0 : index
    %3 = vector.load %arg7[%c0, %c0_1] : memref<8x128xf32, #tpu.memory_space<vmem>>, vector<8x128xf32>
    %c0_2 = arith.constant 0 : index
    %c0_3 = arith.constant 0 : index
    %4 = vector.load %arg3[%c0_2, %c0_3] : memref<8x256xf32, #tpu.memory_space<vmem>>, vector<8x256xf32>
    %5 = arith.truncf %4 : vector<8x256xf32> to vector<8x256xbf16>
    %c0_4 = arith.constant 0 : index
    %c0_5 = arith.constant 0 : index
    %6 = vector.load %arg4[%c0_4, %c0_5] : memref<256x128xbf16, #tpu.memory_space<vmem>>, vector<256x128xbf16>
    %cst = arith.constant dense<0.000000e+00> : vector<8x128xf32>
    %7 = tpu.matmul %5, %6, %cst {dimension_numbers = #tpu.dot_dimension_numbers<[1], [0], [0], [1], [0, 0, 1, 1], [], []>} : vector<8x256xbf16>, vector<256x128xbf16>, vector<8x128xf32> -> vector<8x128xf32>
    %8 = arith.addf %3, %7 : vector<8x128xf32>
    %c0_6 = arith.constant 0 : index
    %c0_7 = arith.constant 0 : index
    %9 = vector.load %arg7[%c0_6, %c0_7] : memref<8x128xf32, #tpu.memory_space<vmem>>, vector<8x128xf32>
    tpu.vector_store %arg7[%c0_6, %c0_7], %8 {strides = array<i32>} : memref<8x128xf32, #tpu.memory_space<vmem>>, vector<8x128xf32>,
    %c0_i32_8 = arith.constant 0 : i32
    %10 = arith.cmpi eq, %arg2, %c0_i32_8 : i32
    %11 = arith.extui %10 : i1 to i32
    %c0_i32_9 = arith.constant 0 : i32
    %12 = arith.cmpi ne, %11, %c0_i32_9 : i32
    scf.if %12 {
      %c0_10 = arith.constant 0 : index
      %c0_11 = arith.constant 0 : index
      %13 = vector.load %arg7[%c0_10, %c0_11] : memref<8x128xf32, #tpu.memory_space<vmem>>, vector<8x128xf32>
      %c0_12 = arith.constant 0 : index
      %c0_13 = arith.constant 0 : index
      %14 = vector.load %arg5[%c0_12, %c0_13] : memref<1x128xf32, #tpu.memory_space<vmem>>, vector<1x128xf32>
      %15 = vector.broadcast %14 : vector<1x128xf32> to vector<8x128xf32>
      %16 = arith.addf %13, %15 : vector<8x128xf32>
      %cst_14 = arith.constant 0.000000e+00 : f32
      %17 = vector.broadcast %cst_14 : f32 to vector<8x128xf32>
      %18 = arith.maximumf %16, %17 : vector<8x128xf32>
      %c0_15 = arith.constant 0 : index
      %c0_16 = arith.constant 0 : index
      %19 = vector.load %arg6[%c0_15, %c0_16] : memref<8x128xf32, #tpu.memory_space<vmem>>, vector<8x128xf32>
      tpu.vector_store %arg6[%c0_15, %c0_16], %18 {strides = array<i32>} : memref<8x128xf32, #tpu.memory_space<vmem>>, vector<8x128xf32>,
    } else {
    }
    return
  }
  func.func @transform_0(%arg0: i32, %arg1: i32, %arg2: i32) -> (i32, i32) {
    %c0_i32 = arith.constant 0 : i32
    return %arg0, %arg2 : i32, i32
  }
  func.func @transform_1(%arg0: i32, %arg1: i32, %arg2: i32) -> (i32, i32) {
    %c0_i32 = arith.constant 0 : i32
    return %arg2, %arg1 : i32, i32
  }
  func.func @transform_2(%arg0: i32, %arg1: i32, %arg2: i32) -> (i32, i32) {
    %c0_i32 = arith.constant 0 : i32
    %c0_i32_0 = arith.constant 0 : i32
    return %c0_i32, %arg1 : i32, i32
  }
  func.func @transform_3(%arg0: i32, %arg1: i32, %arg2: i32) -> (i32, i32) {
    %c0_i32 = arith.constant 0 : i32
    return %arg0, %arg1 : i32, i32
  }
}

module attributes {stable_mosaic.version = 11 : i64} {
  func.func @_linear_kernel(%arg0: i32, %arg1: i32, %arg2: i32, %arg3: memref<8x128xf32, #tpu.memory_space<vmem>>, %arg4: memref<128x128xbf16, #tpu.memory_space<vmem>>, %arg5: memref<1x128xf32, #tpu.memory_space<vmem>>, %arg6: memref<8x128xf32, #tpu.memory_space<vmem>>, %arg7: memref<8x128xf32, #tpu.memory_space<vmem>>) attributes {dimension_semantics = [#tpu.dimension_semantics<parallel>, #tpu.dimension_semantics<parallel>, #tpu.dimension_semantics<arbitrary>], iteration_bounds = array<i64: 1, 1, 1>, scalar_prefetch = 0 : i64, scratch_operands = 1 : i64, tpu.core_type = #tpu.core_type<tc>, window_params = [{transform_indices = @transform_0, window_bounds = array<i64: 8, 128>}, {transform_indices = @transform_1, window_bounds = array<i64: 128, 128>}, {transform_indices = @transform_2, window_bounds = array<i64: 1, 128>}, {transform_indices = @transform_3, window_bounds = array<i64: 8, 128>}]} {
    %c0_i32 = arith.constant 0 : i32
    %0 = arith.cmpi eq, %arg2, %c0_i32 : i32
    %1 = arith.extui %0 : i1 to i32
    %c0_i32_0 = arith.constant 0 : i32
    %2 = arith.cmpi ne, %1, %c0_i32_0 : i32
    scf.if %2 {
      %cst_10 = arith.constant 0.000000e+00 : f32
      %13 = vector.broadcast %cst_10 : f32 to vector<8x128xf32>
      %c0_11 = arith.constant 0 : index
      %c0_12 = arith.constant 0 : index
      %14 = vector.load %arg7[%c0_11, %c0_12] : memref<8x128xf32, #tpu.memory_space<vmem>>, vector<8x128xf32>
      tpu.vector_store %arg7[%c0_11, %c0_12], %13 {strides = array<i32>} : memref<8x128xf32, #tpu.memory_space<vmem>>, vector<8x128xf32>,
    } else {
    }
    %c0 = arith.constant 0 : index
    %c0_1 = arith.constant 0 : index
    %3 = vector.load %arg7[%c0, %c0_1] : memref<8x128xf32, #tpu.memory_space<vmem>>, vector<8x128xf32>
    %c0_2 = arith.constant 0 : index
    %c0_3 = arith.constant 0 : index
    %4 = vector.load %arg3[%c0_2, %c0_3] : memref<8x128xf32, #tpu.memory_space<vmem>>, vector<8x128xf32>
    %5 = arith.truncf %4 : vector<8x128xf32> to vector<8x128xbf16>
    %c0_4 = arith.constant 0 : index
    %c0_5 = arith.constant 0 : index
    %6 = vector.load %arg4[%c0_4, %c0_5] : memref<128x128xbf16, #tpu.memory_space<vmem>>, vector<128x128xbf16>
    %cst = arith.constant dense<0.000000e+00> : vector<8x128xf32>
    %7 = tpu.matmul %5, %6, %cst {dimension_numbers = #tpu.dot_dimension_numbers<[1], [0], [0], [1], [0, 0, 1, 1], [], []>} : vector<8x128xbf16>, vector<128x128xbf16>, vector<8x128xf32> -> vector<8x128xf32>
    %8 = arith.addf %3, %7 : vector<8x128xf32>
    %c0_6 = arith.constant 0 : index
    %c0_7 = arith.constant 0 : index
    %9 = vector.load %arg7[%c0_6, %c0_7] : memref<8x128xf32, #tpu.memory_space<vmem>>, vector<8x128xf32>
    tpu.vector_store %arg7[%c0_6, %c0_7], %8 {strides = array<i32>} : memref<8x128xf32, #tpu.memory_space<vmem>>, vector<8x128xf32>,
    %c0_i32_8 = arith.constant 0 : i32
    %10 = arith.cmpi eq, %arg2, %c0_i32_8 : i32
    %11 = arith.extui %10 : i1 to i32
    %c0_i32_9 = arith.constant 0 : i32
    %12 = arith.cmpi ne, %11, %c0_i32_9 : i32
    scf.if %12 {
      %c0_10 = arith.constant 0 : index
      %c0_11 = arith.constant 0 : index
      %13 = vector.load %arg7[%c0_10, %c0_11] : memref<8x128xf32, #tpu.memory_space<vmem>>, vector<8x128xf32>
      %c0_12 = arith.constant 0 : index
      %c0_13 = arith.constant 0 : index
      %14 = vector.load %arg5[%c0_12, %c0_13] : memref<1x128xf32, #tpu.memory_space<vmem>>, vector<1x128xf32>
      %15 = vector.broadcast %14 : vector<1x128xf32> to vector<8x128xf32>
      %16 = arith.addf %13, %15 : vector<8x128xf32>
      %c0_14 = arith.constant 0 : index
      %c0_15 = arith.constant 0 : index
      %17 = vector.load %arg6[%c0_14, %c0_15] : memref<8x128xf32, #tpu.memory_space<vmem>>, vector<8x128xf32>
      tpu.vector_store %arg6[%c0_14, %c0_15], %16 {strides = array<i32>} : memref<8x128xf32, #tpu.memory_space<vmem>>, vector<8x128xf32>,
    } else {
    }
    return
  }
  func.func @transform_0(%arg0: i32, %arg1: i32, %arg2: i32) -> (i32, i32) {
    %c0_i32 = arith.constant 0 : i32
    return %arg0, %arg2 : i32, i32
  }
  func.func @transform_1(%arg0: i32, %arg1: i32, %arg2: i32) -> (i32, i32) {
    %c0_i32 = arith.constant 0 : i32
    return %arg2, %arg1 : i32, i32
  }
  func.func @transform_2(%arg0: i32, %arg1: i32, %arg2: i32) -> (i32, i32) {
    %c0_i32 = arith.constant 0 : i32
    %c0_i32_0 = arith.constant 0 : i32
    return %c0_i32, %arg1 : i32, i32
  }
  func.func @transform_3(%arg0: i32, %arg1: i32, %arg2: i32) -> (i32, i32) {
    %c0_i32 = arith.constant 0 : i32
    return %arg0, %arg1 : i32, i32
  }
}

</mosaic_0001>

<llo_original>
// kernel: emodel_bigru_forward.39
$region0: #{emodel_bigru_forward.39}
  #allocation0 [shape = 'u32[]', space=smem, size = 0x4, offset = 0x4, fixed_abs, tag = 'smem constant byte address 0x4 - core index']
  #allocation1 [shape = 'u32[144,128]{1,0:T(1,128)}', space=vmem, size = 0x12000, scoped, tag = 'internal scratch']
  #allocation2 [shape = 'f32[16,256]{1,0:T(8,128)}', space=vmem, size = 0x4000, scoped, tag = 'scratch operand']
  %s0 = inlined_call_operand.vmem [shape: f32[16,128], index: 0, kind: input, shape index: {}]
  %s1 = inlined_call_operand.vmem [shape: bf16[128,768], index: 1, kind: input, shape index: {}]
  %s2 = inlined_call_operand.vmem [shape: f32[1,768], index: 2, kind: input, shape index: {}]
  %s3 = inlined_call_operand.vmem [shape: f32[16,768], index: 3, kind: output, shape index: {}]
  %s4 = sld [smem:[#allocation0]]
  $region110: #{emodel_bigru_forward.39} parent=0
    _
  %s6 = ssub.s32 1, %s4
  %s7 = scalar_select 0, %s6, %s4
  $region1: #{emodel_bigru_forward.39} parent=0
    #allocation3 [shape = 'u8[131072]{0}', space=vmem, size = 0x20000, scoped, tag = 'input window, operand 1']
    #allocation4 [shape = 'u8[32768]{0}', space=vmem, size = 0x8000, scoped, tag = 'output window, operand 0']
    loop: start=0, step=1, limit=5
    $region2: #{emodel_bigru_forward.39} parent=1 // loop_pre_header
      _
    $region3: #{emodel_bigru_forward.39} parent=1 // loop_header
      %s9 = sphi 0, %s13
      %p10 = scmp.ge.s32.totalorder %s9, 5
      %s16 = sphi 0, %s35
      %s17 = sphi 0, %s31
      %s18 = sphi 0, %s27
      %s19 = sphi 0, %s16
      %s20 = sphi 0, %s17
      %s21 = sphi 0, %s18
      %s22 = sphi 0, %s19
      %s23 = sphi 0, %s20
      %s24 = sphi 0, %s21
      %s40 = sphi 0, %s42
      %s43 = sphi 0, %s40
      %s44 = sphi 0, %s43
      %s60 = sphi 0, %s44
      %s68 = sphi 0, %s70
      %s71 = sphi 0, %s68
      %s72 = sphi 0, %s71
      %s88 = sphi 0, %s72
      %s94 = sphi 0, %s96
      %s97 = sphi 0, %s94
      %s98 = sphi 0, %s97
      %s114 = sphi 0, %s98
      %s122 = sphi 0, %s124
      %s125 = sphi 0, %s122
      %s126 = sphi 0, %s125
      %s142 = sphi 0, %s126
    $region4: #{emodel_bigru_forward.39} parent=1 // loop_header_branch
      %12 = sbr.rel (%p10) target = $region8
    $region5: #{emodel_bigru_forward.39} parent=1 // loop_body
      %s14 = ssub.s32 %s9, 1
      %s15 = ssub.s32 %s9, 2
      %s25 = sadd.s32 1, %s18
      %p26 = scmp.ge.s32.totalorder %s25, 1
      %s27 = scalar_select %p26, 0, %s25
      %s28 = sadd.s32 1, %s17
      %s29 = scalar_select %p26, %s28, %s17
      %p30 = scmp.ge.s32.totalorder %s29, 3
      %s31 = scalar_select %p30, 0, %s29
      %s32 = sadd.s32 1, %s16
      %s33 = scalar_select %p30, %s32, %s16
      %p34 = scmp.ge.s32.totalorder %s33, 1
      %s35 = scalar_select %p34, 0, %s33
      %s36 = ssub.s32 %s16, %s35
      %s37 = ssub.s32 %s18, %s27
      %s38 = sor.u32 %s36, %s37
      %p39 = scmp.eq.s32.totalorder %s38, 0
      %s41 = sadd.s32 %s40, 1
      %s42 = scalar_select %p39, %s40, %s41
      %p45 = pneg %p39
      %p46 = scmp.eq.s32.totalorder %s9, 2
      %p47 = por %p45, %p46
      %p48 = scmp.ne.s32.totalorder %s40, %s43
      %p49 = scmp.eq.s32.totalorder %s9, 0
      %p50 = por %p48, %p49
      %p51 = scmp.ne.s32.totalorder %s40, %s43
      %p52 = scmp.eq.s32.totalorder %s14, 2
      %p53 = por %p51, %p52
      %p54 = scmp.ne.s32.totalorder %s43, %s44
      %p55 = scmp.eq.s32.totalorder %s14, 0
      %p56 = por %p54, %p55
      %p57 = scmp.ne.s32.totalorder %s43, %s44
      %p58 = scmp.eq.s32.totalorder %s15, 2
      %p59 = por %p57, %p58
      %p61 = scmp.ne.s32.totalorder %s44, %s60
      %p62 = scmp.eq.s32.totalorder %s15, 0
      %p63 = por %p61, %p62
      %s64 = ssub.s32 %s18, %s27
      %s65 = ssub.s32 %s17, %s31
      %s66 = sor.u32 %s64, %s65
      %p67 = scmp.eq.s32.totalorder %s66, 0
      %s69 = sadd.s32 %s68, 1
      %s70 = scalar_select %p67, %s68, %s69
      %p73 = pneg %p67
      %p74 = scmp.eq.s32.totalorder %s9, 2
      %p75 = por %p73, %p74
      %p76 = scmp.ne.s32.totalorder %s68, %s71
      %p77 = scmp.eq.s32.totalorder %s9, 0
      %p78 = por %p76, %p77
      %p79 = scmp.ne.s32.totalorder %s68, %s71
      %p80 = scmp.eq.s32.totalorder %s14, 2
      %p81 = por %p79, %p80
      %p82 = scmp.ne.s32.totalorder %s71, %s72
      %p83 = scmp.eq.s32.totalorder %s14, 0
      %p84 = por %p82, %p83
      %p85 = scmp.ne.s32.totalorder %s71, %s72
      %p86 = scmp.eq.s32.totalorder %s15, 2
      %p87 = por %p85, %p86
      %p89 = scmp.ne.s32.totalorder %s72, %s88
      %p90 = scmp.eq.s32.totalorder %s15, 0
      %p91 = por %p89, %p90
      %s92 = ssub.s32 %s17, %s31
      %p93 = scmp.eq.s32.totalorder %s92, 0
      %s95 = sadd.s32 %s94, 1
      %s96 = scalar_select %p93, %s94, %s95
      %p99 = pneg %p93
      %p100 = scmp.eq.s32.totalorder %s9, 2
      %p101 = por %p99, %p100
      %p102 = scmp.ne.s32.totalorder %s94, %s97
      %p103 = scmp.eq.s32.totalorder %s9, 0
      %p104 = por %p102, %p103
      %p105 = scmp.ne.s32.totalorder %s94, %s97
      %p106 = scmp.eq.s32.totalorder %s14, 2
      %p107 = por %p105, %p106
      %p108 = scmp.ne.s32.totalorder %s97, %s98
      %p109 = scmp.eq.s32.totalorder %s14, 0
      %p110 = por %p108, %p109
      %p111 = scmp.ne.s32.totalorder %s97, %s98
      %p112 = scmp.eq.s32.totalorder %s15, 2
      %p113 = por %p111, %p112
      %p115 = scmp.ne.s32.totalorder %s98, %s114
      %p116 = scmp.eq.s32.totalorder %s15, 0
      %p117 = por %p115, %p116
      %s118 = ssub.s32 %s16, %s35
      %s119 = ssub.s32 %s17, %s31
      %s120 = sor.u32 %s118, %s119
      %p121 = scmp.eq.s32.totalorder %s120, 0
      %s123 = sadd.s32 %s122, 1
      %s124 = scalar_select %p121, %s122, %s123
      %p127 = pneg %p121
      %p128 = scmp.eq.s32.totalorder %s9, 2
      %p129 = por %p127, %p128
      %p130 = scmp.ne.s32.totalorder %s122, %s125
      %p131 = scmp.eq.s32.totalorder %s9, 0
      %p132 = por %p130, %p131
      %p133 = scmp.ne.s32.totalorder %s122, %s125
      %p134 = scmp.eq.s32.totalorder %s14, 2
      %p135 = por %p133, %p134
      %p136 = scmp.ne.s32.totalorder %s125, %s126
      %p137 = scmp.eq.s32.totalorder %s14, 0
      %p138 = por %p136, %p137
      %p139 = scmp.ne.s32.totalorder %s125, %s126
      %p140 = scmp.eq.s32.totalorder %s15, 2
      %p141 = por %p139, %p140
      %p143 = scmp.ne.s32.totalorder %s126, %s142
      %p144 = scmp.eq.s32.totalorder %s15, 0
      %p145 = por %p143, %p144
      %p146 = scmp.le.s32.totalorder 1, %s9
      %p147 = scmp.lt.s32.totalorder %s9, 4
      %p148 = pnand %p146, %p147
      %p149 = pneg %p148
      // Predicated region
      $region9: #{emodel_bigru_forward.39} parent=5 // pred_check
        _
      $region10: #{emodel_bigru_forward.39} parent=5 // pred_check_branch
        %151 = sbr.rel (%p148) target = $region12
      $region11: #{emodel_bigru_forward.39} parent=5 // pred_region
        %s152 = ssub.s32 %s9, 1
        // Predicated region
        $region13: #{emodel_bigru_forward.39} parent=11 // pred_check
          %p153 = pneg %p56
        $region14: #{emodel_bigru_forward.39} parent=11 // pred_check_branch
          %155 = sbr.rel (%p153) target = $region16
        $region15: #{emodel_bigru_forward.39} parent=11 // pred_region
          %s156 = smul.u32 2, %s19
          %p157 = scmp.lt.s32.totalorder %s156, 1
          %s158 = scalar_select %p157, %s156, 1
          %p159 = scmp.lt.s32.totalorder %s21, 0
          %s160 = scalar_select %p159, %s21, 0
          %s161 = sadd.s32 %s160, %s158
          %s162 = smul.addr %s161, 8
          %s163 = scalar_lea.vmem %s0, %s162
          %s164 = smul.u32 2, %s19
        $region16: #{emodel_bigru_forward.39} parent=11 // pred_fallthru
          _
      $region12: #{emodel_bigru_forward.39} parent=5 // pred_fallthru
        _
      %p165 = scmp.lt.s32.totalorder %s9, 3
      // Predicated region
      $region17: #{emodel_bigru_forward.39} parent=5 // pred_check
        %p166 = pneg %p165
      $region18: #{emodel_bigru_forward.39} parent=5 // pred_check_branch
        %168 = sbr.rel (%p166) target = $region20
      $region19: #{emodel_bigru_forward.39} parent=5 // pred_region
        // Predicated region
        $region21: #{emodel_bigru_forward.39} parent=19 // pred_check
          %p169 = pneg %p78
        $region22: #{emodel_bigru_forward.39} parent=19 // pred_check_branch
          %171 = sbr.rel (%p169) target = $region24
        $region23: #{emodel_bigru_forward.39} parent=19 // pred_region
          %s172 = sand.u32 %s68, 1
          %s173 = sand.u32 %s68, 1
          %s174 = smul.addr %s173, 128
          %s175 = scalar_lea.vmem [#allocation3], %s174
          %s176 = smul.u32 16, %s18
          %s177 = smul.u32 2, %s17
          %s178 = smul.addr %s176, 6
          %s179 = sadd.s32 %s177, %s178
          %s180 = smul.addr %s179, 4
          %s181 = scalar_lea.vmem %s1, %s180
          // Predicated region
          $region25: #{emodel_bigru_forward.39} parent=23 // pred_check
            _
          $region26: #{emodel_bigru_forward.39} parent=23 // pred_check_branch
            %183 = sbr.rel (0) target = $region28
          $region27: #{emodel_bigru_forward.39} parent=23 // pred_region
            // Predicated region
            $region29: #{emodel_bigru_forward.39} parent=27 // pred_check
              _
            $region30: #{emodel_bigru_forward.39} parent=27 // pred_check_branch
              %185 = sbr.rel (0) target = $region32
            $region31: #{emodel_bigru_forward.39} parent=27 // pred_region
              // Predicated region
              $region44: #{emodel_bigru_forward.39} parent=31 // pred_check
                _
              $region45: #{emodel_bigru_forward.39} parent=31 // pred_check_branch
                %230 = sbr.rel (0) target = $region47
              $region46: #{emodel_bigru_forward.39} parent=31 // pred_region
                loop: start=0, step=1, limit=1
                $region48: #{emodel_bigru_forward.39} parent=46 // loop_pre_header
                  _
                $region49: #{emodel_bigru_forward.39} parent=46 // loop_header
                  %s232 = sphi 0, %s236
                  %p233 = scmp.ge.s32.totalorder %s232, 1
                  %s237 = sphi %s181, %s181
                  %s238 = sphi %s175, %s175
                $region50: #{emodel_bigru_forward.39} parent=46 // loop_header_branch
                  %235 = sbr.rel (%p233) target = $region54
                $region51: #{emodel_bigru_forward.39} parent=46 // loop_body
                  %v239 = vld [vmem:[%s237] sm:$0xff]
                  %240 = vst [vmem:[%s238] sm:$0xff] %v239
                  %v241 = vld [vmem:[%s237 + $0x18] sm:$0xff]
                  %242 = vst [vmem:[%s238 + $0x8] sm:$0xff] %v241
                  %v243 = vld [vmem:[%s237 + $0x30] sm:$0xff]
                  %244 = vst [vmem:[%s238 + $0x10] sm:$0xff] %v243
                  %v245 = vld [vmem:[%s237 + $0x48] sm:$0xff]
                  %246 = vst [vmem:[%s238 + $0x18] sm:$0xff] %v245
                  %v247 = vld [vmem:[%s237 + $0x60] sm:$0xff]
                  %248 = vst [vmem:[%s238 + $0x20] sm:$0xff] %v247
                  %v249 = vld [vmem:[%s237 + $0x78] sm:$0xff]
                  %250 = vst [vmem:[%s238 + $0x28] sm:$0xff] %v249
                  %v251 = vld [vmem:[%s237 + $0x90] sm:$0xff]
                  %252 = vst [vmem:[%s238 + $0x30] sm:$0xff] %v251
                  %v253 = vld [vmem:[%s237 + $0xa8] sm:$0xff]
                  %254 = vst [vmem:[%s238 + $0x38] sm:$0xff] %v253
                  %v255 = vld [vmem:[%s237 + $0xc0] sm:$0xff]
                  %256 = vst [vmem:[%s238 + $0x40] sm:$0xff] %v255
                  %v257 = vld [vmem:[%s237 + $0xd8] sm:$0xff]
                  %258 = vst [vmem:[%s238 + $0x48] sm:$0xff] %v257
                  %v259 = vld [vmem:[%s237 + $0xf0] sm:$0xff]
                  %260 = vst [vmem:[%s238 + $0x50] sm:$0xff] %v259
                  %v261 = vld [vmem:[%s237 + $0x108] sm:$0xff]
                  %262 = vst [vmem:[%s238 + $0x58] sm:$0xff] %v261
                  %v263 = vld [vmem:[%s237 + $0x120] sm:$0xff]
                  %264 = vst [vmem:[%s238 + $0x60] sm:$0xff] %v263
                  %v265 = vld [vmem:[%s237 + $0x138] sm:$0xff]
                  %266 = vst [vmem:[%s238 + $0x68] sm:$0xff] %v265
                  %v267 = vld [vmem:[%s237 + $0x150] sm:$0xff]
                  %268 = vst [vmem:[%s238 + $0x70] sm:$0xff] %v267
                  %v269 = vld [vmem:[%s237 + $0x168] sm:$0xff]
                  %270 = vst [vmem:[%s238 + $0x78] sm:$0xff] %v269
                $region52: #{emodel_bigru_forward.39} parent=46 // loop_footer
                  %s236 = sadd.s32 1, %s232
                $region53: #{emodel_bigru_forward.39} parent=46 // loop_footer_branch
                  %231 = sbr.rel target = $region49
                $region54: #{emodel_bigru_forward.39} parent=46 // loop_exit
                  _
              $region47: #{emodel_bigru_forward.39} parent=31 // pred_fallthru
                _
              // Predicated region
              $region55: #{emodel_bigru_forward.39} parent=31 // pred_check
                _
              $region56: #{emodel_bigru_forward.39} parent=31 // pred_check_branch
                %272 = sbr.rel target = $region58
              $region57: #{emodel_bigru_forward.39} parent=31 // pred_region
                _
              $region58: #{emodel_bigru_forward.39} parent=31 // pred_fallthru
                _
            $region32: #{emodel_bigru_forward.39} parent=27 // pred_fallthru
              _
            // Predicated region
            $region33: #{emodel_bigru_forward.39} parent=27 // pred_check
              _
            $region34: #{emodel_bigru_forward.39} parent=27 // pred_check_branch
              %187 = sbr.rel target = $region36
            $region35: #{emodel_bigru_forward.39} parent=27 // pred_region
              loop: start=0, step=1, limit=1
              $region37: #{emodel_bigru_forward.39} parent=35 // loop_pre_header
                _
              $region38: #{emodel_bigru_forward.39} parent=35 // loop_header
                %s190 = sphi 0, %s194
                %p191 = scmp.ge.s32.totalorder %s190, 1
                %s195 = sphi %s181, %s181
                %s196 = sphi %s175, %s175
              $region39: #{emodel_bigru_forward.39} parent=35 // loop_header_branch
                %193 = sbr.rel (%p191) target = $region43
              $region40: #{emodel_bigru_forward.39} parent=35 // loop_body
                %v197 = vld [vmem:[%s195] sm:$0xff]
                %198 = vst [vmem:[%s196] sm:$0xff] %v197
                %v199 = vld [vmem:[%s195 + $0x18] sm:$0xff]
                %200 = vst [vmem:[%s196 + $0x8] sm:$0xff] %v199
                %v201 = vld [vmem:[%s195 + $0x30] sm:$0xff]
                %202 = vst [vmem:[%s196 + $0x10] sm:$0xff] %v201
                %v203 = vld [vmem:[%s195 + $0x48] sm:$0xff]
                %204 = vst [vmem:[%s196 + $0x18] sm:$0xff] %v203
                %v205 = vld [vmem:[%s195 + $0x60] sm:$0xff]
                %206 = vst [vmem:[%s196 + $0x20] sm:$0xff] %v205
                %v207 = vld [vmem:[%s195 + $0x78] sm:$0xff]
                %208 = vst [vmem:[%s196 + $0x28] sm:$0xff] %v207
                %v209 = vld [vmem:[%s195 + $0x90] sm:$0xff]
                %210 = vst [vmem:[%s196 + $0x30] sm:$0xff] %v209
                %v211 = vld [vmem:[%s195 + $0xa8] sm:$0xff]
                %212 = vst [vmem:[%s196 + $0x38] sm:$0xff] %v211
                %v213 = vld [vmem:[%s195 + $0xc0] sm:$0xff]
                %214 = vst [vmem:[%s196 + $0x40] sm:$0xff] %v213
                %v215 = vld [vmem:[%s195 + $0xd8] sm:$0xff]
                %216 = vst [vmem:[%s196 + $0x48] sm:$0xff] %v215
                %v217 = vld [vmem:[%s195 + $0xf0] sm:$0xff]
                %218 = vst [vmem:[%s196 + $0x50] sm:$0xff] %v217
                %v219 = vld [vmem:[%s195 + $0x108] sm:$0xff]
                %220 = vst [vmem:[%s196 + $0x58] sm:$0xff] %v219
                %v221 = vld [vmem:[%s195 + $0x120] sm:$0xff]
                %222 = vst [vmem:[%s196 + $0x60] sm:$0xff] %v221
                %v223 = vld [vmem:[%s195 + $0x138] sm:$0xff]
                %224 = vst [vmem:[%s196 + $0x68] sm:$0xff] %v223
                %v225 = vld [vmem:[%s195 + $0x150] sm:$0xff]
                %226 = vst [vmem:[%s196 + $0x70] sm:$0xff] %v225
                %v227 = vld [vmem:[%s195 + $0x168] sm:$0xff]
                %228 = vst [vmem:[%s196 + $0x78] sm:$0xff] %v227
              $region41: #{emodel_bigru_forward.39} parent=35 // loop_footer
                %s194 = sadd.s32 1, %s190
              $region42: #{emodel_bigru_forward.39} parent=35 // loop_footer_branch
                %189 = sbr.rel target = $region38
              $region43: #{emodel_bigru_forward.39} parent=35 // loop_exit
                _
            $region36: #{emodel_bigru_forward.39} parent=27 // pred_fallthru
              _
          $region28: #{emodel_bigru_forward.39} parent=23 // pred_fallthru
            _
          %273 = vnop
        $region24: #{emodel_bigru_forward.39} parent=19 // pred_fallthru
          _
        // Predicated region
        $region59: #{emodel_bigru_forward.39} parent=19 // pred_check
          %p274 = pneg %p104
        $region60: #{emodel_bigru_forward.39} parent=19 // pred_check_branch
          %276 = sbr.rel (%p274) target = $region62
        $region61: #{emodel_bigru_forward.39} parent=19 // pred_region
          %s277 = smul.u32 2, %s17
          %p278 = scmp.lt.s32.totalorder %s277, 5
          %s279 = scalar_select %p278, %s277, 5
          %s280 = scalar_lea.vmem %s2, %s279
          %s281 = smul.u32 2, %s17
        $region62: #{emodel_bigru_forward.39} parent=19 // pred_fallthru
          _
      $region20: #{emodel_bigru_forward.39} parent=5 // pred_fallthru
        _
      %p282 = scmp.le.s32.totalorder 1, %s9
      %p283 = scmp.lt.s32.totalorder %s9, 4
      %p284 = pnand %p282, %p283
      %p285 = pneg %p284
      // Predicated region
      $region63: #{emodel_bigru_forward.39} parent=5 // pred_check
        _
      $region64: #{emodel_bigru_forward.39} parent=5 // pred_check_branch
        %287 = sbr.rel (%p284) target = $region66
      $region65: #{emodel_bigru_forward.39} parent=5 // pred_region
        %s288 = ssub.s32 %s9, 1
        %s289 = sand.u32 %s71, 1
        %s290 = sand.u32 %s71, 1
        %s291 = smul.addr %s290, 128
        %s292 = scalar_lea.vmem [#allocation3], %s291
        // Predicated region
        $region67: #{emodel_bigru_forward.39} parent=65 // pred_check
          %p293 = pneg %p84
        $region68: #{emodel_bigru_forward.39} parent=65 // pred_check_branch
          %295 = sbr.rel (%p293) target = $region70
        $region69: #{emodel_bigru_forward.39} parent=65 // pred_region
          _
        $region70: #{emodel_bigru_forward.39} parent=65 // pred_fallthru
          _
        %s296 = smul.u32 2, %s19
        %p297 = scmp.lt.s32.totalorder %s296, 1
        %s298 = scalar_select %p297, %s296, 1
        %p299 = scmp.lt.s32.totalorder %s21, 0
        %s300 = scalar_select %p299, %s21, 0
        %s301 = sadd.s32 %s300, %s298
        %s302 = smul.addr %s301, 8
        %s303 = scalar_lea.vmem %s0, %s302
        %p304 = pneg %p56
        %p305 = pneg %p53
        %s306 = sand.u32 %s71, 1
        %s307 = sand.u32 %s71, 1
        %s308 = smul.addr %s307, 128
        %s309 = scalar_lea.vmem [#allocation3], %s308
        %p310 = pneg %p84
        %p311 = pneg %p81
        %s312 = smul.u32 2, %s20
        %p313 = scmp.lt.s32.totalorder %s312, 5
        %s314 = scalar_select %p313, %s312, 5
        %s315 = scalar_lea.vmem %s2, %s314
        %p316 = pneg %p110
        %p317 = pneg %p107
        %p318 = pneg %p138
        %p319 = pneg %p135
        %s320 = sand.u32 %s125, 1
        %s321 = sand.u32 %s125, 1
        %s322 = smul.addr %s321, 32
        %s323 = scalar_lea.vmem [#allocation4], %s322
        %s324 = smul.u32 2, %s19
        %p325 = scmp.lt.s32.totalorder %s324, 1
        %s326 = scalar_select %p325, %s324, 1
        %p327 = scmp.lt.s32.totalorder %s21, 0
        %s328 = scalar_select %p327, %s21, 0
        %s329 = sadd.s32 %s328, %s326
        %s330 = smul.addr %s329, 8
        %s331 = scalar_lea.vmem %s0, %s330
        %s332 = smul.u32 2, %s19
        %s333 = smul.u32 16, %s21
        %s334 = smul.u32 2, %s20
        %s335 = smul.u32 2, %s20
        %p336 = scmp.lt.s32.totalorder %s335, 5
        %s337 = scalar_select %p336, %s335, 5
        %s338 = scalar_lea.vmem %s2, %s337
        %s339 = smul.u32 2, %s20
        %s340 = smul.u32 2, %s19
        %s341 = smul.u32 2, %s20
        %p343 = scmp.eq.s32.totalorder %s21, 0
        // Predicated region
        $region71: #{emodel_bigru_forward.39} parent=65 // pred_check
          %p344 = pneg %p343
        $region72: #{emodel_bigru_forward.39} parent=65 // pred_check_branch
          %346 = sbr.rel (%p344) target = $region74
        $region73: #{emodel_bigru_forward.39} parent=65 // pred_region
          %347 = vst [vmem:[#allocation2] sm:$0xff] 0.0
          %348 = vst [vmem:[#allocation2 + $0x8] sm:$0xff] 0.0
          %349 = vst [vmem:[#allocation2 + $0x10] sm:$0xff] 0.0
          %350 = vst [vmem:[#allocation2 + $0x18] sm:$0xff] 0.0
        $region74: #{emodel_bigru_forward.39} parent=65 // pred_fallthru
          _
        %v351 = vld [vmem:[#allocation2] sm:$0xff]
        %v352 = vld [vmem:[#allocation2 + $0x8] sm:$0xff]
        %v353 = vld [vmem:[#allocation2 + $0x10] sm:$0xff]
        %v354 = vld [vmem:[#allocation2 + $0x18] sm:$0xff]
        %v355 = vld [vmem:[%s331] sm:$0xff]
        %v356 = vld [vmem:[%s331 + $0x8] sm:$0xff]
        %v357 = vpack.c.bf16 %v356, %v355
        %v358 = vld [vmem:[%s292] sm:$0xff]
        %v359 = vld [vmem:[%s292 + $0x8] sm:$0xff]
        %v360 = vld [vmem:[%s292 + $0x10] sm:$0xff]
        %v361 = vld [vmem:[%s292 + $0x18] sm:$0xff]
        %v362 = vld [vmem:[%s292 + $0x20] sm:$0xff]
        %v363 = vld [vmem:[%s292 + $0x28] sm:$0xff]
        %v364 = vld [vmem:[%s292 + $0x30] sm:$0xff]
        %v365 = vld [vmem:[%s292 + $0x38] sm:$0xff]
        %v366 = vld [vmem:[%s292 + $0x40] sm:$0xff]
        %v367 = vld [vmem:[%s292 + $0x48] sm:$0xff]
        %v368 = vld [vmem:[%s292 + $0x50] sm:$0xff]
        %v369 = vld [vmem:[%s292 + $0x58] sm:$0xff]
        %v370 = vld [vmem:[%s292 + $0x60] sm:$0xff]
        %v371 = vld [vmem:[%s292 + $0x68] sm:$0xff]
        %v372 = vld [vmem:[%s292 + $0x70] sm:$0xff]
        %v373 = vld [vmem:[%s292 + $0x78] sm:$0xff]
        %v390 = vunpack.c.l.b16 %v358
        %v391 = vunpack.c.h.b16 %v358
        %v392 = vunpack.c.l.b16 %v359
        %v393 = vunpack.c.h.b16 %v359
        %v394 = vunpack.c.l.b16 %v360
        %v395 = vunpack.c.h.b16 %v360
        %v396 = vunpack.c.l.b16 %v361
        %v397 = vunpack.c.h.b16 %v361
        %v398 = vunpack.c.l.b16 %v362
        %v399 = vunpack.c.h.b16 %v362
        %v400 = vunpack.c.l.b16 %v363
        %v401 = vunpack.c.h.b16 %v363
        %v402 = vunpack.c.l.b16 %v364
        %v403 = vunpack.c.h.b16 %v364
        %v404 = vunpack.c.l.b16 %v365
        %v405 = vunpack.c.h.b16 %v365
        %v406 = vunpack.c.l.b16 %v366
        %v407 = vunpack.c.h.b16 %v366
        %v408 = vunpack.c.l.b16 %v367
        %v409 = vunpack.c.h.b16 %v367
        %v410 = vunpack.c.l.b16 %v368
        %v411 = vunpack.c.h.b16 %v368
        %v412 = vunpack.c.l.b16 %v369
        %v413 = vunpack.c.h.b16 %v369
        %v414 = vunpack.c.l.b16 %v370
        %v415 = vunpack.c.h.b16 %v370
        %v416 = vunpack.c.l.b16 %v371
        %v417 = vunpack.c.h.b16 %v371
        %v418 = vunpack.c.l.b16 %v372
        %v419 = vunpack.c.h.b16 %v372
        %v420 = vunpack.c.l.b16 %v373
        %v421 = vunpack.c.h.b16 %v373
        %v422 = vpack.c.b16 %v392, %v390
        %v423 = vpack.c.b16 %v393, %v391
        %v424 = vpack.c.b16 %v396, %v394
        %v425 = vpack.c.b16 %v397, %v395
        %v426 = vpack.c.b16 %v400, %v398
        %v427 = vpack.c.b16 %v401, %v399
        %v428 = vpack.c.b16 %v404, %v402
        %v429 = vpack.c.b16 %v405, %v403
        %v430 = vpack.c.b16 %v408, %v406
        %v431 = vpack.c.b16 %v409, %v407
        %v432 = vpack.c.b16 %v412, %v410
        %v433 = vpack.c.b16 %v413, %v411
        %v434 = vpack.c.b16 %v416, %v414
        %v435 = vpack.c.b16 %v417, %v415
        %v436 = vpack.c.b16 %v420, %v418
        %v437 = vpack.c.b16 %v421, %v419
        %454 = vmatprep.subr.bf16.mxu0 %v423
        %455 = vmatpush1.bf16.msra.mxu0 %v422
        %456 = vmatprep.subr.bf16.mxu0 %v425
        %457 = vmatpush1.bf16.msra.mxu0 %v424
        %458 = vmatprep.subr.bf16.mxu0 %v427
        %459 = vmatpush1.bf16.msra.mxu0 %v426
        %460 = vmatprep.subr.bf16.mxu0 %v429
        %461 = vmatpush1.bf16.msra.mxu0 %v428
        %462 = vmatprep.subr.bf16.mxu0 %v431
        %463 = vmatpush1.bf16.msra.mxu0 %v430
        %464 = vmatprep.subr.bf16.mxu0 %v433
        %465 = vmatpush1.bf16.msra.mxu0 %v432
        %466 = vmatprep.subr.bf16.mxu0 %v435
        %467 = vmatpush1.bf16.msra.mxu0 %v434
        %468 = vmatprep.subr.bf16.mxu0 %v437
        %469 = vmatpush1.bf16.msra.mxu0 %v436
        %470 = vmatprep.subr.bf16.mxu0 0
        %471 = vmatpush1.bf16.msra.mxu0 0
        %472 = vmatprep.subr.bf16.mxu0 0
        %473 = vmatpush1.bf16.msra.mxu0 0
        %474 = vmatprep.subr.bf16.mxu0 0
        %475 = vmatpush1.bf16.msra.mxu0 0
        %476 = vmatprep.subr.bf16.mxu0 0
        %477 = vmatpush1.bf16.msra.mxu0 0
        %478 = vmatprep.subr.bf16.mxu0 0
        %479 = vmatpush1.bf16.msra.mxu0 0
        %480 = vmatprep.subr.bf16.mxu0 0
        %481 = vmatpush1.bf16.msra.mxu0 0
        %482 = vmatprep.subr.bf16.mxu0 0
        %483 = vmatpush1.bf16.msra.mxu0 0
        %484 = vmatprep.subr.bf16.mxu0 0
        %485 = vmatpush1.bf16.msra.mxu0 0
        %486 = vmatprep.mubr.bf16.mxu0 0
        %487 = vmatmul.mubr.bf16.gmra.mrb[0].mxu0 %v357
        %v488 = vpop.f32.mrb[0].mxu0
        %v489 = vadd.f32 0.0, %v488
        %v490 = vpop.f32.mrb[0].mxu0
        %v491 = vadd.f32 0.0, %v490
        %v492 = vpop.f32.mrb[0].mxu0
        %v493 = vadd.f32 0.0, %v492
        %v494 = vpop.f32.mrb[0].mxu0
        %v495 = vadd.f32 0.0, %v494
        %496 = vdwg.mxu0
        %v497 = vadd.f32 %v351, %v489
        %v498 = vadd.f32 %v352, %v491
        %v499 = vadd.f32 %v353, %v493
        %v500 = vadd.f32 %v354, %v495
        %501 = vst [vmem:[#allocation2] sm:$0xff] %v497
        %502 = vst [vmem:[#allocation2 + $0x8] sm:$0xff] %v498
        %503 = vst [vmem:[#allocation2 + $0x10] sm:$0xff] %v499
        %504 = vst [vmem:[#allocation2 + $0x18] sm:$0xff] %v500
        // Predicated region
        $region75: #{emodel_bigru_forward.39} parent=65 // pred_check
          %p505 = pneg %p343
        $region76: #{emodel_bigru_forward.39} parent=65 // pred_check_branch
          %507 = sbr.rel (%p505) target = $region78
        $region77: #{emodel_bigru_forward.39} parent=65 // pred_region
          %v508 = vld [vmem:[#allocation2] sm:$0xff]
          %v509 = vld [vmem:[#allocation2 + $0x8] sm:$0xff]
          %v510 = vld [vmem:[#allocation2 + $0x10] sm:$0xff]
          %v511 = vld [vmem:[#allocation2 + $0x18] sm:$0xff]
          %v512 = vld [vmem:[%s338] sm:$0x3]
          %v514 = vlaneseq
          %v515 = vshrl.u32 %v514, 7
          %v516 = vsub.s32 0, %v515
          %v517 = vrot.slane %v512, %v516
          %v518 = vlaneseq
          %v519 = vshrl.u32 %v518, 7
          %v520 = vsub.s32 1, %v519
          %v521 = vrot.slane %v512, %v520
          %v524 = vadd.f32 %v508, %v517
          %v525 = vadd.f32 %v509, %v521
          %v526 = vadd.f32 %v510, %v517
          %v527 = vadd.f32 %v511, %v521
          %528 = vst [vmem:[%s323] sm:$0xff] %v524
          %529 = vst [vmem:[%s323 + $0x8] sm:$0xff] %v525
          %530 = vst [vmem:[%s323 + $0x10] sm:$0xff] %v526
          %531 = vst [vmem:[%s323 + $0x18] sm:$0xff] %v527
        $region78: #{emodel_bigru_forward.39} parent=65 // pred_fallthru
          _
        %s532 = sand.u32 %s125, 1
        %s533 = sand.u32 %s125, 1
        %s534 = smul.addr %s533, 32
        %s535 = scalar_lea.vmem [#allocation4], %s534
        // Predicated region
        $region79: #{emodel_bigru_forward.39} parent=65 // pred_check
          %p536 = pneg %p135
        $region80: #{emodel_bigru_forward.39} parent=65 // pred_check_branch
          %538 = sbr.rel (%p536) target = $region82
        $region81: #{emodel_bigru_forward.39} parent=65 // pred_region
          %s539 = smul.u32 2, %s19
          %s540 = smul.u32 2, %s20
          %s541 = smul.addr %s539, 6
          %s542 = sadd.s32 %s540, %s541
          %s543 = smul.addr %s542, 8
          %s544 = scalar_lea.vmem %s3, %s543
          // Predicated region
          $region83: #{emodel_bigru_forward.39} parent=81 // pred_check
            _
          $region84: #{emodel_bigru_forward.39} parent=81 // pred_check_branch
            %546 = sbr.rel (0) target = $region86
          $region85: #{emodel_bigru_forward.39} parent=81 // pred_region
            // Predicated region
            $region87: #{emodel_bigru_forward.39} parent=85 // pred_check
              _
            $region88: #{emodel_bigru_forward.39} parent=85 // pred_check_branch
              %548 = sbr.rel (0) target = $region90
            $region89: #{emodel_bigru_forward.39} parent=85 // pred_region
              loop: start=0, step=1, limit=1
              $region91: #{emodel_bigru_forward.39} parent=89 // loop_pre_header
                _
              $region92: #{emodel_bigru_forward.39} parent=89 // loop_header
                %s550 = sphi 0, %s554
                %p551 = scmp.ge.s32.totalorder %s550, 1
                %s555 = sphi %s535, %s535
                %s556 = sphi %s544, %s544
              $region93: #{emodel_bigru_forward.39} parent=89 // loop_header_branch
                %553 = sbr.rel (%p551) target = $region97
              $region94: #{emodel_bigru_forward.39} parent=89 // loop_body
                %v557 = vld [vmem:[%s555] sm:$0xff]
                %558 = vst [vmem:[%s556] sm:$0xff] %v557
                %v559 = vld [vmem:[%s555 + $0x8] sm:$0xff]
                %560 = vst [vmem:[%s556 + $0x8] sm:$0xff] %v559
                %v561 = vld [vmem:[%s555 + $0x10] sm:$0xff]
                %562 = vst [vmem:[%s556 + $0x30] sm:$0xff] %v561
                %v563 = vld [vmem:[%s555 + $0x18] sm:$0xff]
                %564 = vst [vmem:[%s556 + $0x38] sm:$0xff] %v563
              $region95: #{emodel_bigru_forward.39} parent=89 // loop_footer
                %s554 = sadd.s32 1, %s550
              $region96: #{emodel_bigru_forward.39} parent=89 // loop_footer_branch
                %549 = sbr.rel target = $region92
              $region97: #{emodel_bigru_forward.39} parent=89 // loop_exit
                _
            $region90: #{emodel_bigru_forward.39} parent=85 // pred_fallthru
              _
            // Predicated region
            $region98: #{emodel_bigru_forward.39} parent=85 // pred_check
              _
            $region99: #{emodel_bigru_forward.39} parent=85 // pred_check_branch
              %566 = sbr.rel target = $region101
            $region100: #{emodel_bigru_forward.39} parent=85 // pred_region
              _
            $region101: #{emodel_bigru_forward.39} parent=85 // pred_fallthru
              _
          $region86: #{emodel_bigru_forward.39} parent=81 // pred_fallthru
            _
          %567 = vnop
        $region82: #{emodel_bigru_forward.39} parent=65 // pred_fallthru
          _
      $region66: #{emodel_bigru_forward.39} parent=5 // pred_fallthru
        _
      %p568 = scmp.le.s32.totalorder 2, %s9
      // Predicated region
      $region102: #{emodel_bigru_forward.39} parent=5 // pred_check
        %p569 = pneg %p568
      $region103: #{emodel_bigru_forward.39} parent=5 // pred_check_branch
        %571 = sbr.rel (%p569) target = $region105
      $region104: #{emodel_bigru_forward.39} parent=5 // pred_region
        %s572 = ssub.s32 %s9, 2
        // Predicated region
        $region106: #{emodel_bigru_forward.39} parent=104 // pred_check
          %p573 = pneg %p141
        $region107: #{emodel_bigru_forward.39} parent=104 // pred_check_branch
          %575 = sbr.rel (%p573) target = $region109
        $region108: #{emodel_bigru_forward.39} parent=104 // pred_region
          %s576 = sand.u32 %s126, 1
          %s577 = sand.u32 %s126, 1
          %s578 = smul.addr %s577, 32
          %s579 = scalar_lea.vmem [#allocation4], %s578
        $region109: #{emodel_bigru_forward.39} parent=104 // pred_fallthru
          _
      $region105: #{emodel_bigru_forward.39} parent=5 // pred_fallthru
        _
    $region6: #{emodel_bigru_forward.39} parent=1 // loop_footer
      %s13 = sadd.s32 1, %s9
    $region7: #{emodel_bigru_forward.39} parent=1 // loop_footer_branch
      %8 = sbr.rel target = $region3
    $region8: #{emodel_bigru_forward.39} parent=1 // loop_exit
      _

// kernel: emodel_bigru_forward.40
$region0: #{emodel_bigru_forward.40}
  #allocation0 [shape = 'u32[]', space=smem, size = 0x4, offset = 0x4, fixed_abs, tag = 'smem constant byte address 0x4 - core index']
  #allocation1 [shape = 'u32[144,128]{1,0:T(1,128)}', space=vmem, size = 0x12000, scoped, tag = 'internal scratch']
  %s0 = inlined_call_operand.vmem [shape: f32[8,2,768], index: 0, kind: input, shape index: {}]
  %s1 = inlined_call_operand.vmem [shape: bf16[128,768], index: 1, kind: input, shape index: {}]
  %s2 = inlined_call_operand.vmem [shape: f32[1,768], index: 2, kind: input, shape index: {}]
  %s3 = inlined_call_operand.vmem [shape: f32[8,2,256], index: 3, kind: output, shape index: {}]
  %s4 = sld [smem:[#allocation0]]
  $region149: #{emodel_bigru_forward.40} parent=0
    _
  %s6 = ssub.s32 1, %s4
  %s7 = scalar_select 0, %s6, %s4
  $region1: #{emodel_bigru_forward.40} parent=0
    #allocation2 [shape = 'u8[49152]{0}', space=vmem, size = 0xc000, scoped, tag = 'input window, operand 0']
    #allocation3 [shape = 'u8[196608]{0}', space=vmem, size = 0x30000, scoped, tag = 'input window, operand 1']
    #allocation4 [shape = 'u8[16384]{0}', space=vmem, size = 0x4000, scoped, tag = 'output window, operand 0']
    loop: start=0, step=1, limit=4
    $region2: #{emodel_bigru_forward.40} parent=1 // loop_pre_header
      _
    $region3: #{emodel_bigru_forward.40} parent=1 // loop_header
      %s9 = sphi 0, %s13
      %p10 = scmp.ge.s32.totalorder %s9, 4
      %s19 = sphi 0, %s21
      %s22 = sphi 0, %s19
      %s23 = sphi 0, %s22
      %s39 = sphi 0, %s23
      %s45 = sphi 0, %s47
      %s48 = sphi 0, %s45
      %s49 = sphi 0, %s48
      %s65 = sphi 0, %s49
      %s71 = sphi 0, %s73
      %s74 = sphi 0, %s71
      %s75 = sphi 0, %s74
      %s91 = sphi 0, %s75
      %s97 = sphi 0, %s99
      %s100 = sphi 0, %s97
      %s101 = sphi 0, %s100
      %s117 = sphi 0, %s101
    $region4: #{emodel_bigru_forward.40} parent=1 // loop_header_branch
      %12 = sbr.rel (%p10) target = $region8
    $region5: #{emodel_bigru_forward.40} parent=1 // loop_body
      %s14 = ssub.s32 %s9, 1
      %s15 = ssub.s32 %s9, 2
      %s16 = sadd.s32 %s9, 1
      %s17 = ssub.s32 %s9, %s16
      %p18 = scmp.eq.s32.totalorder %s17, 0
      %s20 = sadd.s32 %s19, 1
      %s21 = scalar_select %p18, %s19, %s20
      %p24 = pneg %p18
      %p25 = scmp.eq.s32.totalorder %s9, 1
      %p26 = por %p24, %p25
      %p27 = scmp.ne.s32.totalorder %s19, %s22
      %p28 = scmp.eq.s32.totalorder %s9, 0
      %p29 = por %p27, %p28
      %p30 = scmp.ne.s32.totalorder %s19, %s22
      %p31 = scmp.eq.s32.totalorder %s14, 1
      %p32 = por %p30, %p31
      %p33 = scmp.ne.s32.totalorder %s22, %s23
      %p34 = scmp.eq.s32.totalorder %s14, 0
      %p35 = por %p33, %p34
      %p36 = scmp.ne.s32.totalorder %s22, %s23
      %p37 = scmp.eq.s32.totalorder %s15, 1
      %p38 = por %p36, %p37
      %p40 = scmp.ne.s32.totalorder %s23, %s39
      %p41 = scmp.eq.s32.totalorder %s15, 0
      %p42 = por %p40, %p41
      %s43 = ssub.s32 %s9, %s16
      %p44 = scmp.eq.s32.totalorder %s43, 0
      %s46 = sadd.s32 %s45, 1
      %s47 = scalar_select %p44, %s45, %s46
      %p50 = pneg %p44
      %p51 = scmp.eq.s32.totalorder %s9, 1
      %p52 = por %p50, %p51
      %p53 = scmp.ne.s32.totalorder %s45, %s48
      %p54 = scmp.eq.s32.totalorder %s9, 0
      %p55 = por %p53, %p54
      %p56 = scmp.ne.s32.totalorder %s45, %s48
      %p57 = scmp.eq.s32.totalorder %s14, 1
      %p58 = por %p56, %p57
      %p59 = scmp.ne.s32.totalorder %s48, %s49
      %p60 = scmp.eq.s32.totalorder %s14, 0
      %p61 = por %p59, %p60
      %p62 = scmp.ne.s32.totalorder %s48, %s49
      %p63 = scmp.eq.s32.totalorder %s15, 1
      %p64 = por %p62, %p63
      %p66 = scmp.ne.s32.totalorder %s49, %s65
      %p67 = scmp.eq.s32.totalorder %s15, 0
      %p68 = por %p66, %p67
      %s69 = ssub.s32 %s9, %s16
      %p70 = scmp.eq.s32.totalorder %s69, 0
      %s72 = sadd.s32 %s71, 1
      %s73 = scalar_select %p70, %s71, %s72
      %p76 = pneg %p70
      %p77 = scmp.eq.s32.totalorder %s9, 1
      %p78 = por %p76, %p77
      %p79 = scmp.ne.s32.totalorder %s71, %s74
      %p80 = scmp.eq.s32.totalorder %s9, 0
      %p81 = por %p79, %p80
      %p82 = scmp.ne.s32.totalorder %s71, %s74
      %p83 = scmp.eq.s32.totalorder %s14, 1
      %p84 = por %p82, %p83
      %p85 = scmp.ne.s32.totalorder %s74, %s75
      %p86 = scmp.eq.s32.totalorder %s14, 0
      %p87 = por %p85, %p86
      %p88 = scmp.ne.s32.totalorder %s74, %s75
      %p89 = scmp.eq.s32.totalorder %s15, 1
      %p90 = por %p88, %p89
      %p92 = scmp.ne.s32.totalorder %s75, %s91
      %p93 = scmp.eq.s32.totalorder %s15, 0
      %p94 = por %p92, %p93
      %s95 = ssub.s32 %s9, %s16
      %p96 = scmp.eq.s32.totalorder %s95, 0
      %s98 = sadd.s32 %s97, 1
      %s99 = scalar_select %p96, %s97, %s98
      %p102 = pneg %p96
      %p103 = scmp.eq.s32.totalorder %s9, 1
      %p104 = por %p102, %p103
      %p105 = scmp.ne.s32.totalorder %s97, %s100
      %p106 = scmp.eq.s32.totalorder %s9, 0
      %p107 = por %p105, %p106
      %p108 = scmp.ne.s32.totalorder %s97, %s100
      %p109 = scmp.eq.s32.totalorder %s14, 1
      %p110 = por %p108, %p109
      %p111 = scmp.ne.s32.totalorder %s100, %s101
      %p112 = scmp.eq.s32.totalorder %s14, 0
      %p113 = por %p111, %p112
      %p114 = scmp.ne.s32.totalorder %s100, %s101
      %p115 = scmp.eq.s32.totalorder %s15, 1
      %p116 = por %p114, %p115
      %p118 = scmp.ne.s32.totalorder %s101, %s117
      %p119 = scmp.eq.s32.totalorder %s15, 0
      %p120 = por %p118, %p119
      %p121 = scmp.le.s32.totalorder 1, %s9
      %p122 = scmp.lt.s32.totalorder %s9, 3
      %p123 = pnand %p121, %p122
      %p124 = pneg %p123
      // Predicated region
      $region9: #{emodel_bigru_forward.40} parent=5 // pred_check
        _
      $region10: #{emodel_bigru_forward.40} parent=5 // pred_check_branch
        %126 = sbr.rel (%p123) target = $region12
      $region11: #{emodel_bigru_forward.40} parent=5 // pred_region
        %s127 = ssub.s32 %s9, 1
      $region12: #{emodel_bigru_forward.40} parent=5 // pred_fallthru
        _
      %p128 = scmp.lt.s32.totalorder %s9, 2
      // Predicated region
      $region13: #{emodel_bigru_forward.40} parent=5 // pred_check
        %p129 = pneg %p128
      $region14: #{emodel_bigru_forward.40} parent=5 // pred_check_branch
        %131 = sbr.rel (%p129) target = $region16
      $region15: #{emodel_bigru_forward.40} parent=5 // pred_region
        // Predicated region
        $region17: #{emodel_bigru_forward.40} parent=15 // pred_check
          %p132 = pneg %p29
        $region18: #{emodel_bigru_forward.40} parent=15 // pred_check_branch
          %134 = sbr.rel (%p132) target = $region20
        $region19: #{emodel_bigru_forward.40} parent=15 // pred_region
          %s135 = sand.u32 %s19, 1
          %s136 = sand.u32 %s19, 1
          %s137 = smul.addr %s136, 48
          %s138 = scalar_lea.vmem [#allocation2], %s137
          %s139 = smul.u32 3, %s9
          %s140 = smul.addr %s139, 2
          %s141 = scalar_lea.vmem %s0, %s140
          // Predicated region
          $region21: #{emodel_bigru_forward.40} parent=19 // pred_check
            _
          $region22: #{emodel_bigru_forward.40} parent=19 // pred_check_branch
            %143 = sbr.rel (0) target = $region24
          $region23: #{emodel_bigru_forward.40} parent=19 // pred_region
            // Predicated region
            $region25: #{emodel_bigru_forward.40} parent=23 // pred_check
              _
            $region26: #{emodel_bigru_forward.40} parent=23 // pred_check_branch
              %145 = sbr.rel target = $region28
            $region27: #{emodel_bigru_forward.40} parent=23 // pred_region
              // Predicated region
              $region40: #{emodel_bigru_forward.40} parent=27 // pred_check
                _
              $region41: #{emodel_bigru_forward.40} parent=27 // pred_check_branch
                %174 = sbr.rel (0) target = $region43
              $region42: #{emodel_bigru_forward.40} parent=27 // pred_region
                loop: start=0, step=1, limit=1
                $region44: #{emodel_bigru_forward.40} parent=42 // loop_pre_header
                  _
                $region45: #{emodel_bigru_forward.40} parent=42 // loop_header
                  %s176 = sphi 0, %s180
                  %p177 = scmp.ge.s32.totalorder %s176, 1
                  %s181 = sphi %s141, %s141
                  %s182 = sphi %s138, %s138
                $region46: #{emodel_bigru_forward.40} parent=42 // loop_header_branch
                  %179 = sbr.rel (%p177) target = $region50
                $region47: #{emodel_bigru_forward.40} parent=42 // loop_body
                  _
                $region48: #{emodel_bigru_forward.40} parent=42 // loop_footer
                  %s180 = sadd.s32 1, %s176
                $region49: #{emodel_bigru_forward.40} parent=42 // loop_footer_branch
                  %175 = sbr.rel target = $region45
                $region50: #{emodel_bigru_forward.40} parent=42 // loop_exit
                  _
                loop: start=0, step=1, limit=1
                $region51: #{emodel_bigru_forward.40} parent=42 // loop_pre_header
                  _
                $region52: #{emodel_bigru_forward.40} parent=42 // loop_header
                  %s185 = sphi 0, %s189
                  %p186 = scmp.ge.s32.totalorder %s185, 1
                  %s190 = sphi %s141, %s141
                  %s191 = sphi %s138, %s138
                $region53: #{emodel_bigru_forward.40} parent=42 // loop_header_branch
                  %188 = sbr.rel (%p186) target = $region57
                $region54: #{emodel_bigru_forward.40} parent=42 // loop_body
                  %v192 = vld [vmem:[%s190] sm:$0x3f]
                  %193 = vst [vmem:[%s191] sm:$0x3f] %v192
                  %v194 = vld [vmem:[%s190 + $0xc] sm:$0x3f]
                  %195 = vst [vmem:[%s191 + $0x6] sm:$0x3f] %v194
                  %v196 = vld [vmem:[%s190 + $0x18] sm:$0x3f]
                  %197 = vst [vmem:[%s191 + $0xc] sm:$0x3f] %v196
                  %v198 = vld [vmem:[%s190 + $0x24] sm:$0x3f]
                  %199 = vst [vmem:[%s191 + $0x12] sm:$0x3f] %v198
                  %v200 = vld [vmem:[%s190 + $0x30] sm:$0x3f]
                  %201 = vst [vmem:[%s191 + $0x18] sm:$0x3f] %v200
                  %v202 = vld [vmem:[%s190 + $0x3c] sm:$0x3f]
                  %203 = vst [vmem:[%s191 + $0x1e] sm:$0x3f] %v202
                  %v204 = vld [vmem:[%s190 + $0x48] sm:$0x3f]
                  %205 = vst [vmem:[%s191 + $0x24] sm:$0x3f] %v204
                  %v206 = vld [vmem:[%s190 + $0x54] sm:$0x3f]
                  %207 = vst [vmem:[%s191 + $0x2a] sm:$0x3f] %v206
                $region55: #{emodel_bigru_forward.40} parent=42 // loop_footer
                  %s189 = sadd.s32 1, %s185
                $region56: #{emodel_bigru_forward.40} parent=42 // loop_footer_branch
                  %184 = sbr.rel target = $region52
                $region57: #{emodel_bigru_forward.40} parent=42 // loop_exit
                  _
              $region43: #{emodel_bigru_forward.40} parent=27 // pred_fallthru
                _
            $region28: #{emodel_bigru_forward.40} parent=23 // pred_fallthru
              _
            // Predicated region
            $region29: #{emodel_bigru_forward.40} parent=23 // pred_check
              _
            $region30: #{emodel_bigru_forward.40} parent=23 // pred_check_branch
              %147 = sbr.rel (0) target = $region32
            $region31: #{emodel_bigru_forward.40} parent=23 // pred_region
              loop: start=0, step=1, limit=1
              $region33: #{emodel_bigru_forward.40} parent=31 // loop_pre_header
                _
              $region34: #{emodel_bigru_forward.40} parent=31 // loop_header
                %s150 = sphi 0, %s154
                %p151 = scmp.ge.s32.totalorder %s150, 1
                %s155 = sphi %s141, %s141
                %s156 = sphi %s138, %s138
              $region35: #{emodel_bigru_forward.40} parent=31 // loop_header_branch
                %153 = sbr.rel (%p151) target = $region39
              $region36: #{emodel_bigru_forward.40} parent=31 // loop_body
                %v157 = vld [vmem:[%s155] sm:$0x3f]
                %158 = vst [vmem:[%s156] sm:$0x3f] %v157
                %v159 = vld [vmem:[%s155 + $0xc] sm:$0x3f]
                %160 = vst [vmem:[%s156 + $0x6] sm:$0x3f] %v159
                %v161 = vld [vmem:[%s155 + $0x18] sm:$0x3f]
                %162 = vst [vmem:[%s156 + $0xc] sm:$0x3f] %v161
                %v163 = vld [vmem:[%s155 + $0x24] sm:$0x3f]
                %164 = vst [vmem:[%s156 + $0x12] sm:$0x3f] %v163
                %v165 = vld [vmem:[%s155 + $0x30] sm:$0x3f]
                %166 = vst [vmem:[%s156 + $0x18] sm:$0x3f] %v165
                %v167 = vld [vmem:[%s155 + $0x3c] sm:$0x3f]
                %168 = vst [vmem:[%s156 + $0x1e] sm:$0x3f] %v167
                %v169 = vld [vmem:[%s155 + $0x48] sm:$0x3f]
                %170 = vst [vmem:[%s156 + $0x24] sm:$0x3f] %v169
                %v171 = vld [vmem:[%s155 + $0x54] sm:$0x3f]
                %172 = vst [vmem:[%s156 + $0x2a] sm:$0x3f] %v171
              $region37: #{emodel_bigru_forward.40} parent=31 // loop_footer
                %s154 = sadd.s32 1, %s150
              $region38: #{emodel_bigru_forward.40} parent=31 // loop_footer_branch
                %149 = sbr.rel target = $region34
              $region39: #{emodel_bigru_forward.40} parent=31 // loop_exit
                _
            $region32: #{emodel_bigru_forward.40} parent=23 // pred_fallthru
              _
          $region24: #{emodel_bigru_forward.40} parent=19 // pred_fallthru
            _
          %208 = vnop
        $region20: #{emodel_bigru_forward.40} parent=15 // pred_fallthru
          _
        // Predicated region
        $region58: #{emodel_bigru_forward.40} parent=15 // pred_check
          %p209 = pneg %p55
        $region59: #{emodel_bigru_forward.40} parent=15 // pred_check_branch
          %211 = sbr.rel (%p209) target = $region61
        $region60: #{emodel_bigru_forward.40} parent=15 // pred_region
          %s212 = sand.u32 %s45, 1
          %s213 = sand.u32 %s45, 1
          %s214 = smul.addr %s213, 192
          %s215 = scalar_lea.vmem [#allocation3], %s214
          %s216 = smul.u32 3, %s9
          %s217 = smul.addr %s216, 4
          %s218 = scalar_lea.vmem %s1, %s217
          // Predicated region
          $region62: #{emodel_bigru_forward.40} parent=60 // pred_check
            _
          $region63: #{emodel_bigru_forward.40} parent=60 // pred_check_branch
            %220 = sbr.rel (0) target = $region65
          $region64: #{emodel_bigru_forward.40} parent=60 // pred_region
            // Predicated region
            $region66: #{emodel_bigru_forward.40} parent=64 // pred_check
              _
            $region67: #{emodel_bigru_forward.40} parent=64 // pred_check_branch
              %222 = sbr.rel (0) target = $region69
            $region68: #{emodel_bigru_forward.40} parent=64 // pred_region
              %s223 = scalar_lea.vmem %s218, 8
              %s224 = scalar_lea.vmem %s215, 8 [#allocation3]
              loop: start=0, step=1, limit=1
              $region70: #{emodel_bigru_forward.40} parent=68 // loop_pre_header
                _
              $region71: #{emodel_bigru_forward.40} parent=68 // loop_header
                %s226 = sphi 0, %s230
                %p227 = scmp.ge.s32.totalorder %s226, 1
                %s231 = sphi %s218, %s218
                %s232 = sphi %s215, %s215
              $region72: #{emodel_bigru_forward.40} parent=68 // loop_header_branch
                %229 = sbr.rel (%p227) target = $region76
              $region73: #{emodel_bigru_forward.40} parent=68 // loop_body
                %v233 = vld [vmem:[%s231] sm:$0xff]
                %234 = vst [vmem:[%s232] sm:$0xff] %v233
                %v235 = vld [vmem:[%s231 + $0x18] sm:$0xff]
                %236 = vst [vmem:[%s232 + $0xc] sm:$0xff] %v235
                %v237 = vld [vmem:[%s231 + $0x30] sm:$0xff]
                %238 = vst [vmem:[%s232 + $0x18] sm:$0xff] %v237
                %v239 = vld [vmem:[%s231 + $0x48] sm:$0xff]
                %240 = vst [vmem:[%s232 + $0x24] sm:$0xff] %v239
                %v241 = vld [vmem:[%s231 + $0x60] sm:$0xff]
                %242 = vst [vmem:[%s232 + $0x30] sm:$0xff] %v241
                %v243 = vld [vmem:[%s231 + $0x78] sm:$0xff]
                %244 = vst [vmem:[%s232 + $0x3c] sm:$0xff] %v243
                %v245 = vld [vmem:[%s231 + $0x90] sm:$0xff]
                %246 = vst [vmem:[%s232 + $0x48] sm:$0xff] %v245
                %v247 = vld [vmem:[%s231 + $0xa8] sm:$0xff]
                %248 = vst [vmem:[%s232 + $0x54] sm:$0xff] %v247
                %v249 = vld [vmem:[%s231 + $0xc0] sm:$0xff]
                %250 = vst [vmem:[%s232 + $0x60] sm:$0xff] %v249
                %v251 = vld [vmem:[%s231 + $0xd8] sm:$0xff]
                %252 = vst [vmem:[%s232 + $0x6c] sm:$0xff] %v251
                %v253 = vld [vmem:[%s231 + $0xf0] sm:$0xff]
                %254 = vst [vmem:[%s232 + $0x78] sm:$0xff] %v253
                %v255 = vld [vmem:[%s231 + $0x108] sm:$0xff]
                %256 = vst [vmem:[%s232 + $0x84] sm:$0xff] %v255
                %v257 = vld [vmem:[%s231 + $0x120] sm:$0xff]
                %258 = vst [vmem:[%s232 + $0x90] sm:$0xff] %v257
                %v259 = vld [vmem:[%s231 + $0x138] sm:$0xff]
                %260 = vst [vmem:[%s232 + $0x9c] sm:$0xff] %v259
                %v261 = vld [vmem:[%s231 + $0x150] sm:$0xff]
                %262 = vst [vmem:[%s232 + $0xa8] sm:$0xff] %v261
                %v263 = vld [vmem:[%s231 + $0x168] sm:$0xff]
                %264 = vst [vmem:[%s232 + $0xb4] sm:$0xff] %v263
              $region74: #{emodel_bigru_forward.40} parent=68 // loop_footer
                %s230 = sadd.s32 1, %s226
              $region75: #{emodel_bigru_forward.40} parent=68 // loop_footer_branch
                %225 = sbr.rel target = $region71
              $region76: #{emodel_bigru_forward.40} parent=68 // loop_exit
                _
              loop: start=0, step=1, limit=1
              $region77: #{emodel_bigru_forward.40} parent=68 // loop_pre_header
                _
              $region78: #{emodel_bigru_forward.40} parent=68 // loop_header
                %s267 = sphi 0, %s271
                %p268 = scmp.ge.s32.totalorder %s267, 1
                %s272 = sphi %s223, %s223
                %s273 = sphi %s224, %s224
              $region79: #{emodel_bigru_forward.40} parent=68 // loop_header_branch
                %270 = sbr.rel (%p268) target = $region83
              $region80: #{emodel_bigru_forward.40} parent=68 // loop_body
                %v274 = vld [vmem:[%s272] sm:$0xf]
                %275 = vst [vmem:[%s273] sm:$0xf] %v274
                %v276 = vld [vmem:[%s272 + $0x18] sm:$0xf]
                %277 = vst [vmem:[%s273 + $0xc] sm:$0xf] %v276
                %v278 = vld [vmem:[%s272 + $0x30] sm:$0xf]
                %279 = vst [vmem:[%s273 + $0x18] sm:$0xf] %v278
                %v280 = vld [vmem:[%s272 + $0x48] sm:$0xf]
                %281 = vst [vmem:[%s273 + $0x24] sm:$0xf] %v280
                %v282 = vld [vmem:[%s272 + $0x60] sm:$0xf]
                %283 = vst [vmem:[%s273 + $0x30] sm:$0xf] %v282
                %v284 = vld [vmem:[%s272 + $0x78] sm:$0xf]
                %285 = vst [vmem:[%s273 + $0x3c] sm:$0xf] %v284
                %v286 = vld [vmem:[%s272 + $0x90] sm:$0xf]
                %287 = vst [vmem:[%s273 + $0x48] sm:$0xf] %v286
                %v288 = vld [vmem:[%s272 + $0xa8] sm:$0xf]
                %289 = vst [vmem:[%s273 + $0x54] sm:$0xf] %v288
                %v290 = vld [vmem:[%s272 + $0xc0] sm:$0xf]
                %291 = vst [vmem:[%s273 + $0x60] sm:$0xf] %v290
                %v292 = vld [vmem:[%s272 + $0xd8] sm:$0xf]
                %293 = vst [vmem:[%s273 + $0x6c] sm:$0xf] %v292
                %v294 = vld [vmem:[%s272 + $0xf0] sm:$0xf]
                %295 = vst [vmem:[%s273 + $0x78] sm:$0xf] %v294
                %v296 = vld [vmem:[%s272 + $0x108] sm:$0xf]
                %297 = vst [vmem:[%s273 + $0x84] sm:$0xf] %v296
                %v298 = vld [vmem:[%s272 + $0x120] sm:$0xf]
                %299 = vst [vmem:[%s273 + $0x90] sm:$0xf] %v298
                %v300 = vld [vmem:[%s272 + $0x138] sm:$0xf]
                %301 = vst [vmem:[%s273 + $0x9c] sm:$0xf] %v300
                %v302 = vld [vmem:[%s272 + $0x150] sm:$0xf]
                %303 = vst [vmem:[%s273 + $0xa8] sm:$0xf] %v302
                %v304 = vld [vmem:[%s272 + $0x168] sm:$0xf]
                %305 = vst [vmem:[%s273 + $0xb4] sm:$0xf] %v304
              $region81: #{emodel_bigru_forward.40} parent=68 // loop_footer
                %s271 = sadd.s32 1, %s267
              $region82: #{emodel_bigru_forward.40} parent=68 // loop_footer_branch
                %266 = sbr.rel target = $region78
              $region83: #{emodel_bigru_forward.40} parent=68 // loop_exit
                _
            $region69: #{emodel_bigru_forward.40} parent=64 // pred_fallthru
              _
          $region65: #{emodel_bigru_forward.40} parent=60 // pred_fallthru
            _
          %306 = vnop
        $region61: #{emodel_bigru_forward.40} parent=15 // pred_fallthru
          _
        // Predicated region
        $region84: #{emodel_bigru_forward.40} parent=15 // pred_check
          %p307 = pneg %p81
        $region85: #{emodel_bigru_forward.40} parent=15 // pred_check_branch
          %309 = sbr.rel (%p307) target = $region87
        $region86: #{emodel_bigru_forward.40} parent=15 // pred_region
          %s310 = smul.u32 3, %s9
          %p311 = scmp.lt.s32.totalorder %s310, 5
          %s312 = scalar_select %p311, %s310, 5
          %s313 = scalar_lea.vmem %s2, %s312
          %s314 = smul.u32 3, %s9
        $region87: #{emodel_bigru_forward.40} parent=15 // pred_fallthru
          _
      $region16: #{emodel_bigru_forward.40} parent=5 // pred_fallthru
        _
      %p315 = scmp.le.s32.totalorder 1, %s9
      %p316 = scmp.lt.s32.totalorder %s9, 3
      %p317 = pnand %p315, %p316
      %p318 = pneg %p317
      // Predicated region
      $region88: #{emodel_bigru_forward.40} parent=5 // pred_check
        _
      $region89: #{emodel_bigru_forward.40} parent=5 // pred_check_branch
        %320 = sbr.rel (%p317) target = $region91
      $region90: #{emodel_bigru_forward.40} parent=5 // pred_region
        %s321 = ssub.s32 %s9, 1
        %s322 = sand.u32 %s22, 1
        %s323 = sand.u32 %s22, 1
        %s324 = smul.addr %s323, 48
        %s325 = scalar_lea.vmem [#allocation2], %s324
        // Predicated region
        $region92: #{emodel_bigru_forward.40} parent=90 // pred_check
          %p326 = pneg %p35
        $region93: #{emodel_bigru_forward.40} parent=90 // pred_check_branch
          %328 = sbr.rel (%p326) target = $region95
        $region94: #{emodel_bigru_forward.40} parent=90 // pred_region
          _
        $region95: #{emodel_bigru_forward.40} parent=90 // pred_fallthru
          _
        %s329 = sand.u32 %s48, 1
        %s330 = sand.u32 %s48, 1
        %s331 = smul.addr %s330, 192
        %s332 = scalar_lea.vmem [#allocation3], %s331
        // Predicated region
        $region96: #{emodel_bigru_forward.40} parent=90 // pred_check
          %p333 = pneg %p61
        $region97: #{emodel_bigru_forward.40} parent=90 // pred_check_branch
          %335 = sbr.rel (%p333) target = $region99
        $region98: #{emodel_bigru_forward.40} parent=90 // pred_region
          _
        $region99: #{emodel_bigru_forward.40} parent=90 // pred_fallthru
          _
        %s336 = sand.u32 %s22, 1
        %s337 = sand.u32 %s22, 1
        %s338 = smul.addr %s337, 48
        %s339 = scalar_lea.vmem [#allocation2], %s338
        %p340 = pneg %p35
        %p341 = pneg %p32
        %s342 = sand.u32 %s48, 1
        %s343 = sand.u32 %s48, 1
        %s344 = smul.addr %s343, 192
        %s345 = scalar_lea.vmem [#allocation3], %s344
        %p346 = pneg %p61
        %p347 = pneg %p58
        %s348 = smul.u32 3, %s14
        %p349 = scmp.lt.s32.totalorder %s348, 5
        %s350 = scalar_select %p349, %s348, 5
        %s351 = scalar_lea.vmem %s2, %s350
        %p352 = pneg %p87
        %p353 = pneg %p84
        %p354 = pneg %p113
        %p355 = pneg %p110
        %s356 = sand.u32 %s100, 1
        %s357 = sand.u32 %s100, 1
        %s358 = smul.addr %s357, 16
        %s359 = scalar_lea.vmem [#allocation4], %s358
        %s360 = smul.u32 3, %s14
        %s361 = smul.u32 3, %s14
        %s362 = smul.u32 3, %s14
        %p363 = scmp.lt.s32.totalorder %s362, 5
        %s364 = scalar_select %p363, %s362, 5
        %s365 = scalar_lea.vmem %s2, %s364
        %s366 = smul.u32 3, %s14
        %p368 = scmp.eq.s32.totalorder %s14, 1
        %v369 = vld [vmem:[%s332] sm:$0xff]
        %v370 = vld [vmem:[%s332 + $0x8] sm:$0xf]
        %v371 = vld [vmem:[%s332 + $0xc] sm:$0xff]
        %v372 = vld [vmem:[%s332 + $0x14] sm:$0xf]
        %v373 = vld [vmem:[%s332 + $0x18] sm:$0xff]
        %v374 = vld [vmem:[%s332 + $0x20] sm:$0xf]
        %v375 = vld [vmem:[%s332 + $0x24] sm:$0xff]
        %v376 = vld [vmem:[%s332 + $0x2c] sm:$0xf]
        %v377 = vld [vmem:[%s332 + $0x30] sm:$0xff]
        %v378 = vld [vmem:[%s332 + $0x38] sm:$0xf]
        %v379 = vld [vmem:[%s332 + $0x3c] sm:$0xff]
        %v380 = vld [vmem:[%s332 + $0x44] sm:$0xf]
        %v381 = vld [vmem:[%s332 + $0x48] sm:$0xff]
        %v382 = vld [vmem:[%s332 + $0x50] sm:$0xf]
        %v383 = vld [vmem:[%s332 + $0x54] sm:$0xff]
        %v384 = vld [vmem:[%s332 + $0x5c] sm:$0xf]
        %v385 = vld [vmem:[%s332 + $0x60] sm:$0xff]
        %v386 = vld [vmem:[%s332 + $0x68] sm:$0xf]
        %v387 = vld [vmem:[%s332 + $0x6c] sm:$0xff]
        %v388 = vld [vmem:[%s332 + $0x74] sm:$0xf]
        %v389 = vld [vmem:[%s332 + $0x78] sm:$0xff]
        %v390 = vld [vmem:[%s332 + $0x80] sm:$0xf]
        %v391 = vld [vmem:[%s332 + $0x84] sm:$0xff]
        %v392 = vld [vmem:[%s332 + $0x8c] sm:$0xf]
        %v393 = vld [vmem:[%s332 + $0x90] sm:$0xff]
        %v394 = vld [vmem:[%s332 + $0x98] sm:$0xf]
        %v395 = vld [vmem:[%s332 + $0x9c] sm:$0xff]
        %v396 = vld [vmem:[%s332 + $0xa4] sm:$0xf]
        %v397 = vld [vmem:[%s332 + $0xa8] sm:$0xff]
        %v398 = vld [vmem:[%s332 + $0xb0] sm:$0xf]
        %v399 = vld [vmem:[%s332 + $0xb4] sm:$0xff]
        %v400 = vld [vmem:[%s332 + $0xbc] sm:$0xf]
        %v401 = vld [vmem:[%s365] sm:$0x7]
        %s402 = scalar_select %p368, 7, 0
        %s403 = smul.u32 %s402, 3
        %s404 = smul.addr %s403, 2
        %s405 = scalar_lea.vmem %s325, %s404 [#allocation2]
        %v406 = vld [vmem:[%s405] sm:$0x3f]
        %v408 = vlaneseq
        %v409 = vshrl.u32 %v408, 7
        %v410 = vsub.s32 0, %v409
        %v411 = vrot.slane %v401, %v410
        %v412 = vlaneseq
        %v413 = vshrl.u32 %v412, 7
        %v414 = vsub.s32 1, %v413
        %v415 = vrot.slane %v401, %v414
        %v416 = vlaneseq
        %v417 = vshrl.u32 %v416, 7
        %v418 = vsub.s32 2, %v417
        %v419 = vrot.slane %v401, %v418
        %v455 = vunpack.c.l.b16 %v369
        %v456 = vunpack.c.h.b16 %v369
        %v457 = vunpack.c.l.b16 %v370
        %v458 = vunpack.c.l.b16 %v371
        %v459 = vunpack.c.h.b16 %v371
        %v460 = vunpack.c.l.b16 %v372
        %v461 = vunpack.c.l.b16 %v373
        %v462 = vunpack.c.h.b16 %v373
        %v463 = vunpack.c.l.b16 %v374
        %v464 = vunpack.c.l.b16 %v375
        %v465 = vunpack.c.h.b16 %v375
        %v466 = vunpack.c.l.b16 %v376
        %v467 = vunpack.c.l.b16 %v377
        %v468 = vunpack.c.h.b16 %v377
        %v469 = vunpack.c.l.b16 %v378
        %v470 = vunpack.c.l.b16 %v379
        %v471 = vunpack.c.h.b16 %v379
        %v472 = vunpack.c.l.b16 %v380
        %v473 = vunpack.c.l.b16 %v381
        %v474 = vunpack.c.h.b16 %v381
        %v475 = vunpack.c.l.b16 %v382
        %v476 = vunpack.c.l.b16 %v383
        %v477 = vunpack.c.h.b16 %v383
        %v478 = vunpack.c.l.b16 %v384
        %v479 = vunpack.c.l.b16 %v385
        %v480 = vunpack.c.h.b16 %v385
        %v481 = vunpack.c.l.b16 %v386
        %v482 = vunpack.c.l.b16 %v387
        %v483 = vunpack.c.h.b16 %v387
        %v484 = vunpack.c.l.b16 %v388
        %v485 = vunpack.c.l.b16 %v389
        %v486 = vunpack.c.h.b16 %v389
        %v487 = vunpack.c.l.b16 %v390
        %v488 = vunpack.c.l.b16 %v391
        %v489 = vunpack.c.h.b16 %v391
        %v490 = vunpack.c.l.b16 %v392
        %v491 = vunpack.c.l.b16 %v393
        %v492 = vunpack.c.h.b16 %v393
        %v493 = vunpack.c.l.b16 %v394
        %v494 = vunpack.c.l.b16 %v395
        %v495 = vunpack.c.h.b16 %v395
        %v496 = vunpack.c.l.b16 %v396
        %v497 = vunpack.c.l.b16 %v397
        %v498 = vunpack.c.h.b16 %v397
        %v499 = vunpack.c.l.b16 %v398
        %v500 = vunpack.c.l.b16 %v399
        %v501 = vunpack.c.h.b16 %v399
        %v502 = vunpack.c.l.b16 %v400
        %v503 = vpack.c.b16 %v458, %v455
        %v504 = vpack.c.b16 %v459, %v456
        %v505 = vpack.c.b16 %v460, %v457
        %v506 = vpack.c.b16 %v464, %v461
        %v507 = vpack.c.b16 %v465, %v462
        %v508 = vpack.c.b16 %v466, %v463
        %v509 = vpack.c.b16 %v470, %v467
        %v510 = vpack.c.b16 %v471, %v468
        %v511 = vpack.c.b16 %v472, %v469
        %v512 = vpack.c.b16 %v476, %v473
        %v513 = vpack.c.b16 %v477, %v474
        %v514 = vpack.c.b16 %v478, %v475
        %v515 = vpack.c.b16 %v482, %v479
        %v516 = vpack.c.b16 %v483, %v480
        %v517 = vpack.c.b16 %v484, %v481
        %v518 = vpack.c.b16 %v488, %v485
        %v519 = vpack.c.b16 %v489, %v486
        %v520 = vpack.c.b16 %v490, %v487
        %v521 = vpack.c.b16 %v494, %v491
        %v522 = vpack.c.b16 %v495, %v492
        %v523 = vpack.c.b16 %v496, %v493
        %v524 = vpack.c.b16 %v500, %v497
        %v525 = vpack.c.b16 %v501, %v498
        %v526 = vpack.c.b16 %v502, %v499
        %551 = vmatprep.subr.bf16.mxu0 %v504
        %552 = vmatpush1.bf16.msra.mxu0 %v503
        %553 = vmatprep.subr.bf16.mxu0 %v507
        %554 = vmatpush1.bf16.msra.mxu0 %v506
        %555 = vmatprep.subr.bf16.mxu0 %v510
        %556 = vmatpush1.bf16.msra.mxu0 %v509
        %557 = vmatprep.subr.bf16.mxu0 %v513
        %558 = vmatpush1.bf16.msra.mxu0 %v512
        %559 = vmatprep.subr.bf16.mxu0 %v516
        %560 = vmatpush1.bf16.msra.mxu0 %v515
        %561 = vmatprep.subr.bf16.mxu0 %v519
        %562 = vmatpush1.bf16.msra.mxu0 %v518
        %563 = vmatprep.subr.bf16.mxu0 %v522
        %564 = vmatpush1.bf16.msra.mxu0 %v521
        %565 = vmatprep.subr.bf16.mxu0 %v525
        %566 = vmatpush1.bf16.msra.mxu0 %v524
        %567 = vmatprep.subr.bf16.mxu0 0
        %568 = vmatpush1.bf16.msra.mxu0 0
        %569 = vmatprep.subr.bf16.mxu0 0
        %570 = vmatpush1.bf16.msra.mxu0 0
        %571 = vmatprep.subr.bf16.mxu0 0
        %572 = vmatpush1.bf16.msra.mxu0 0
        %573 = vmatprep.subr.bf16.mxu0 0
        %574 = vmatpush1.bf16.msra.mxu0 0
        %575 = vmatprep.subr.bf16.mxu0 0
        %576 = vmatpush1.bf16.msra.mxu0 0
        %577 = vmatprep.subr.bf16.mxu0 0
        %578 = vmatpush1.bf16.msra.mxu0 0
        %579 = vmatprep.subr.bf16.mxu0 0
        %580 = vmatpush1.bf16.msra.mxu0 0
        %581 = vmatprep.subr.bf16.mxu0 0
        %582 = vmatpush1.bf16.msra.mxu0 0
        %583 = vmatprep.mubr.bf16.mxu0 0
        %584 = vmatmul.mubr.bf16.gmra.mrb[0].mxu0 0
        %v585 = vpop.f32.mrb[0].mxu0
        %v586 = vadd.f32 %v411, %v585
        %v587 = vpop.f32.mrb[0].mxu0
        %v588 = vadd.f32 %v415, %v587
        %v589 = vpop.f32.mrb[0].mxu0
        %v590 = vpop.f32.mrb[0].mxu0
        %591 = vdwg.mxu0
        %592 = vmatprep.subr.bf16.mxu0 0
        %593 = vmatpush1.bf16.msra.mxu0 %v505
        %594 = vmatprep.subr.bf16.mxu0 0
        %595 = vmatpush1.bf16.msra.mxu0 %v508
        %596 = vmatprep.subr.bf16.mxu0 0
        %597 = vmatpush1.bf16.msra.mxu0 %v511
        %598 = vmatprep.subr.bf16.mxu0 0
        %599 = vmatpush1.bf16.msra.mxu0 %v514
        %600 = vmatprep.subr.bf16.mxu0 0
        %601 = vmatpush1.bf16.msra.mxu0 %v517
        %602 = vmatprep.subr.bf16.mxu0 0
        %603 = vmatpush1.bf16.msra.mxu0 %v520
        %604 = vmatprep.subr.bf16.mxu0 0
        %605 = vmatpush1.bf16.msra.mxu0 %v523
        %606 = vmatprep.subr.bf16.mxu0 0
        %607 = vmatpush1.bf16.msra.mxu0 %v526
        %608 = vmatprep.subr.bf16.mxu0 0
        %609 = vmatpush1.bf16.msra.mxu0 0
        %610 = vmatprep.subr.bf16.mxu0 0
        %611 = vmatpush1.bf16.msra.mxu0 0
        %612 = vmatprep.subr.bf16.mxu0 0
        %613 = vmatpush1.bf16.msra.mxu0 0
        %614 = vmatprep.subr.bf16.mxu0 0
        %615 = vmatpush1.bf16.msra.mxu0 0
        %616 = vmatprep.subr.bf16.mxu0 0
        %617 = vmatpush1.bf16.msra.mxu0 0
        %618 = vmatprep.subr.bf16.mxu0 0
        %619 = vmatpush1.bf16.msra.mxu0 0
        %620 = vmatprep.subr.bf16.mxu0 0
        %621 = vmatpush1.bf16.msra.mxu0 0
        %622 = vmatprep.subr.bf16.mxu0 0
        %623 = vmatpush1.bf16.msra.mxu0 0
        %624 = vmatprep.mubr.bf16.mxu0 0
        %625 = vmatmul.mubr.bf16.gmra.mrb[0].mxu0 0
        %v626 = vpop.f32.mrb[0].mxu0
        %v627 = vadd.f32 %v419, %v626
        %v628 = vpop.f32.mrb[0].mxu0
        %v629 = vpop.f32.mrb[0].mxu0
        %v630 = vpop.f32.mrb[0].mxu0
        %631 = vdwg.mxu0
        %v632 = vadd.f32 %v406, %v586
        %v633 = vxor.u32 %v632, 2147483648
        %v634 = vmul.f32 %v633, 1.442695
        %v635 = vpow.pop %v634
        %v636 = vadd.f32 %v635, 1.0
        %v637 = vrcp.pop %v636
        %v638 = vmul.f32 1.0, %v637
        %v640 = vrot.slane %v406, 2
        %v642 = vadd.f32 %v640, %v588
        %v643 = vxor.u32 %v642, 2147483648
        %v644 = vmul.f32 %v643, 1.442695
        %v645 = vpow.pop %v644
        %v646 = vadd.f32 %v645, 1.0
        %v647 = vrcp.pop %v646
        %v648 = vmul.f32 1.0, %v647
        %v649 = vmul.f32 %v638, %v627
        %v650 = vrot.slane %v406, 4
        %v652 = vadd.f32 %v650, %v649
        %v653 = vtanh.pop %v652
        %v654 = vsub.f32 1.0, %v648
        %v655 = vmul.f32 %v654, %v653
        %v656 = vmul.f32 %v648, 0.0
        %v657 = vadd.f32 %v655, %v656
        %s658 = smul.u32 %s402, 2
        %s659 = scalar_lea.vmem %s359, %s658 [#allocation4]
        %660 = vst [vmem:[%s659] sm:$0x3] %v657
        %s661 = scalar_select %p368, 6, 1
        %s662 = smul.u32 %s661, 3
        %s663 = smul.addr %s662, 2
        %s664 = scalar_lea.vmem %s325, %s663 [#allocation2]
        %v665 = vld [vmem:[%s664] sm:$0x3f]
        %v666 = vpack.c.bf16 %v657, %v657
        %667 = vmatprep.subr.bf16.mxu0 %v504
        %668 = vmatpush1.bf16.msra.mxu0 %v503
        %669 = vmatprep.subr.bf16.mxu0 %v507
        %670 = vmatpush1.bf16.msra.mxu0 %v506
        %671 = vmatprep.subr.bf16.mxu0 %v510
        %672 = vmatpush1.bf16.msra.mxu0 %v509
        %673 = vmatprep.subr.bf16.mxu0 %v513
        %674 = vmatpush1.bf16.msra.mxu0 %v512
        %675 = vmatprep.subr.bf16.mxu0 %v516
        %676 = vmatpush1.bf16.msra.mxu0 %v515
        %677 = vmatprep.subr.bf16.mxu0 %v519
        %678 = vmatpush1.bf16.msra.mxu0 %v518
        %679 = vmatprep.subr.bf16.mxu0 %v522
        %680 = vmatpush1.bf16.msra.mxu0 %v521
        %681 = vmatprep.subr.bf16.mxu0 %v525
        %682 = vmatpush1.bf16.msra.mxu0 %v524
        %683 = vmatprep.subr.bf16.mxu0 0
        %684 = vmatpush1.bf16.msra.mxu0 0
        %685 = vmatprep.subr.bf16.mxu0 0
        %686 = vmatpush1.bf16.msra.mxu0 0
        %687 = vmatprep.subr.bf16.mxu0 0
        %688 = vmatpush1.bf16.msra.mxu0 0
        %689 = vmatprep.subr.bf16.mxu0 0
        %690 = vmatpush1.bf16.msra.mxu0 0
        %691 = vmatprep.subr.bf16.mxu0 0
        %692 = vmatpush1.bf16.msra.mxu0 0
        %693 = vmatprep.subr.bf16.mxu0 0
        %694 = vmatpush1.bf16.msra.mxu0 0
        %695 = vmatprep.subr.bf16.mxu0 0
        %696 = vmatpush1.bf16.msra.mxu0 0
        %697 = vmatprep.subr.bf16.mxu0 0
        %698 = vmatpush1.bf16.msra.mxu0 0
        %699 = vmatprep.mubr.bf16.mxu0 0
        %700 = vmatmul.mubr.bf16.gmra.mrb[0].mxu0 %v666
        %v701 = vpop.f32.mrb[0].mxu0
        %v702 = vadd.f32 %v411, %v701
        %v703 = vpop.f32.mrb[0].mxu0
        %v704 = vadd.f32 %v415, %v703
        %v705 = vpop.f32.mrb[0].mxu0
        %v706 = vpop.f32.mrb[0].mxu0
        %707 = vdwg.mxu0
        %708 = vmatprep.subr.bf16.mxu0 0
        %709 = vmatpush1.bf16.msra.mxu0 %v505
        %710 = vmatprep.subr.bf16.mxu0 0
        %711 = vmatpush1.bf16.msra.mxu0 %v508
        %712 = vmatprep.subr.bf16.mxu0 0
        %713 = vmatpush1.bf16.msra.mxu0 %v511
        %714 = vmatprep.subr.bf16.mxu0 0
        %715 = vmatpush1.bf16.msra.mxu0 %v514
        %716 = vmatprep.subr.bf16.mxu0 0
        %717 = vmatpush1.bf16.msra.mxu0 %v517
        %718 = vmatprep.subr.bf16.mxu0 0
        %719 = vmatpush1.bf16.msra.mxu0 %v520
        %720 = vmatprep.subr.bf16.mxu0 0
        %721 = vmatpush1.bf16.msra.mxu0 %v523
        %722 = vmatprep.subr.bf16.mxu0 0
        %723 = vmatpush1.bf16.msra.mxu0 %v526
        %724 = vmatprep.subr.bf16.mxu0 0
        %725 = vmatpush1.bf16.msra.mxu0 0
        %726 = vmatprep.subr.bf16.mxu0 0
        %727 = vmatpush1.bf16.msra.mxu0 0
        %728 = vmatprep.subr.bf16.mxu0 0
        %729 = vmatpush1.bf16.msra.mxu0 0
        %730 = vmatprep.subr.bf16.mxu0 0
        %731 = vmatpush1.bf16.msra.mxu0 0
        %732 = vmatprep.subr.bf16.mxu0 0
        %733 = vmatpush1.bf16.msra.mxu0 0
        %734 = vmatprep.subr.bf16.mxu0 0
        %735 = vmatpush1.bf16.msra.mxu0 0
        %736 = vmatprep.subr.bf16.mxu0 0
        %737 = vmatpush1.bf16.msra.mxu0 0
        %738 = vmatprep.subr.bf16.mxu0 0
        %739 = vmatpush1.bf16.msra.mxu0 0
        %740 = vmatprep.mubr.bf16.mxu0 0
        %741 = vmatmul.mubr.bf16.gmra.mrb[0].mxu0 %v666
        %v742 = vpop.f32.mrb[0].mxu0
        %v743 = vadd.f32 %v419, %v742
        %v744 = vpop.f32.mrb[0].mxu0
        %v745 = vpop.f32.mrb[0].mxu0
        %v746 = vpop.f32.mrb[0].mxu0
        %747 = vdwg.mxu0
        %v748 = vadd.f32 %v665, %v702
        %v749 = vxor.u32 %v748, 2147483648
        %v750 = vmul.f32 %v749, 1.442695
        %v751 = vpow.pop %v750
        %v752 = vadd.f32 %v751, 1.0
        %v753 = vrcp.pop %v752
        %v754 = vmul.f32 1.0, %v753
        %v756 = vrot.slane %v665, 2
        %v758 = vadd.f32 %v756, %v704
        %v759 = vxor.u32 %v758, 2147483648
        %v760 = vmul.f32 %v759, 1.442695
        %v761 = vpow.pop %v760
        %v762 = vadd.f32 %v761, 1.0
        %v763 = vrcp.pop %v762
        %v764 = vmul.f32 1.0, %v763
        %v765 = vmul.f32 %v754, %v743
        %v766 = vrot.slane %v665, 4
        %v768 = vadd.f32 %v766, %v765
        %v769 = vtanh.pop %v768
        %v770 = vsub.f32 1.0, %v764
        %v771 = vmul.f32 %v770, %v769
        %v772 = vmul.f32 %v764, %v657
        %v773 = vadd.f32 %v771, %v772
        %s774 = smul.u32 %s661, 2
        %s775 = scalar_lea.vmem %s359, %s774 [#allocation4]
        %776 = vst [vmem:[%s775] sm:$0x3] %v773
        %s777 = scalar_select %p368, 5, 2
        %s778 = smul.u32 %s777, 3
        %s779 = smul.addr %s778, 2
        %s780 = scalar_lea.vmem %s325, %s779 [#allocation2]
        %v781 = vld [vmem:[%s780] sm:$0x3f]
        %v782 = vpack.c.bf16 %v773, %v773
        %783 = vmatprep.subr.bf16.mxu0 %v504
        %784 = vmatpush1.bf16.msra.mxu0 %v503
        %785 = vmatprep.subr.bf16.mxu0 %v507
        %786 = vmatpush1.bf16.msra.mxu0 %v506
        %787 = vmatprep.subr.bf16.mxu0 %v510
        %788 = vmatpush1.bf16.msra.mxu0 %v509
        %789 = vmatprep.subr.bf16.mxu0 %v513
        %790 = vmatpush1.bf16.msra.mxu0 %v512
        %791 = vmatprep.subr.bf16.mxu0 %v516
        %792 = vmatpush1.bf16.msra.mxu0 %v515
        %793 = vmatprep.subr.bf16.mxu0 %v519
        %794 = vmatpush1.bf16.msra.mxu0 %v518
        %795 = vmatprep.subr.bf16.mxu0 %v522
        %796 = vmatpush1.bf16.msra.mxu0 %v521
        %797 = vmatprep.subr.bf16.mxu0 %v525
        %798 = vmatpush1.bf16.msra.mxu0 %v524
        %799 = vmatprep.subr.bf16.mxu0 0
        %800 = vmatpush1.bf16.msra.mxu0 0
        %801 = vmatprep.subr.bf16.mxu0 0
        %802 = vmatpush1.bf16.msra.mxu0 0
        %803 = vmatprep.subr.bf16.mxu0 0
        %804 = vmatpush1.bf16.msra.mxu0 0
        %805 = vmatprep.subr.bf16.mxu0 0
        %806 = vmatpush1.bf16.msra.mxu0 0
        %807 = vmatprep.subr.bf16.mxu0 0
        %808 = vmatpush1.bf16.msra.mxu0 0
        %809 = vmatprep.subr.bf16.mxu0 0
        %810 = vmatpush1.bf16.msra.mxu0 0
        %811 = vmatprep.subr.bf16.mxu0 0
        %812 = vmatpush1.bf16.msra.mxu0 0
        %813 = vmatprep.subr.bf16.mxu0 0
        %814 = vmatpush1.bf16.msra.mxu0 0
        %815 = vmatprep.mubr.bf16.mxu0 0
        %816 = vmatmul.mubr.bf16.gmra.mrb[0].mxu0 %v782
        %v817 = vpop.f32.mrb[0].mxu0
        %v818 = vadd.f32 %v411, %v817
        %v819 = vpop.f32.mrb[0].mxu0
        %v820 = vadd.f32 %v415, %v819
        %v821 = vpop.f32.mrb[0].mxu0
        %v822 = vpop.f32.mrb[0].mxu0
        %823 = vdwg.mxu0
        %824 = vmatprep.subr.bf16.mxu0 0
        %825 = vmatpush1.bf16.msra.mxu0 %v505
        %826 = vmatprep.subr.bf16.mxu0 0
        %827 = vmatpush1.bf16.msra.mxu0 %v508
        %828 = vmatprep.subr.bf16.mxu0 0
        %829 = vmatpush1.bf16.msra.mxu0 %v511
        %830 = vmatprep.subr.bf16.mxu0 0
        %831 = vmatpush1.bf16.msra.mxu0 %v514
        %832 = vmatprep.subr.bf16.mxu0 0
        %833 = vmatpush1.bf16.msra.mxu0 %v517
        %834 = vmatprep.subr.bf16.mxu0 0
        %835 = vmatpush1.bf16.msra.mxu0 %v520
        %836 = vmatprep.subr.bf16.mxu0 0
        %837 = vmatpush1.bf16.msra.mxu0 %v523
        %838 = vmatprep.subr.bf16.mxu0 0
        %839 = vmatpush1.bf16.msra.mxu0 %v526
        %840 = vmatprep.subr.bf16.mxu0 0
        %841 = vmatpush1.bf16.msra.mxu0 0
        %842 = vmatprep.subr.bf16.mxu0 0
        %843 = vmatpush1.bf16.msra.mxu0 0
        %844 = vmatprep.subr.bf16.mxu0 0
        %845 = vmatpush1.bf16.msra.mxu0 0
        %846 = vmatprep.subr.bf16.mxu0 0
        %847 = vmatpush1.bf16.msra.mxu0 0
        %848 = vmatprep.subr.bf16.mxu0 0
        %849 = vmatpush1.bf16.msra.mxu0 0
        %850 = vmatprep.subr.bf16.mxu0 0
        %851 = vmatpush1.bf16.msra.mxu0 0
        %852 = vmatprep.subr.bf16.mxu0 0
        %853 = vmatpush1.bf16.msra.mxu0 0
        %854 = vmatprep.subr.bf16.mxu0 0
        %855 = vmatpush1.bf16.msra.mxu0 0
        %856 = vmatprep.mubr.bf16.mxu0 0
        %857 = vmatmul.mubr.bf16.gmra.mrb[0].mxu0 %v782
        %v858 = vpop.f32.mrb[0].mxu0
        %v859 = vadd.f32 %v419, %v858
        %v860 = vpop.f32.mrb[0].mxu0
        %v861 = vpop.f32.mrb[0].mxu0
        %v862 = vpop.f32.mrb[0].mxu0
        %863 = vdwg.mxu0
        %v864 = vadd.f32 %v781, %v818
        %v865 = vxor.u32 %v864, 2147483648
        %v866 = vmul.f32 %v865, 1.442695
        %v867 = vpow.pop %v866
        %v868 = vadd.f32 %v867, 1.0
        %v869 = vrcp.pop %v868
        %v870 = vmul.f32 1.0, %v869
        %v872 = vrot.slane %v781, 2
        %v874 = vadd.f32 %v872, %v820
        %v875 = vxor.u32 %v874, 2147483648
        %v876 = vmul.f32 %v875, 1.442695
        %v877 = vpow.pop %v876
        %v878 = vadd.f32 %v877, 1.0
        %v879 = vrcp.pop %v878
        %v880 = vmul.f32 1.0, %v879
        %v881 = vmul.f32 %v870, %v859
        %v882 = vrot.slane %v781, 4
        %v884 = vadd.f32 %v882, %v881
        %v885 = vtanh.pop %v884
        %v886 = vsub.f32 1.0, %v880
        %v887 = vmul.f32 %v886, %v885
        %v888 = vmul.f32 %v880, %v773
        %v889 = vadd.f32 %v887, %v888
        %s890 = smul.u32 %s777, 2
        %s891 = scalar_lea.vmem %s359, %s890 [#allocation4]
        %892 = vst [vmem:[%s891] sm:$0x3] %v889
        %s893 = scalar_select %p368, 4, 3
        %s894 = smul.u32 %s893, 3
        %s895 = smul.addr %s894, 2
        %s896 = scalar_lea.vmem %s325, %s895 [#allocation2]
        %v897 = vld [vmem:[%s896] sm:$0x3f]
        %v898 = vpack.c.bf16 %v889, %v889
        %899 = vmatprep.subr.bf16.mxu0 %v504
        %900 = vmatpush1.bf16.msra.mxu0 %v503
        %901 = vmatprep.subr.bf16.mxu0 %v507
        %902 = vmatpush1.bf16.msra.mxu0 %v506
        %903 = vmatprep.subr.bf16.mxu0 %v510
        %904 = vmatpush1.bf16.msra.mxu0 %v509
        %905 = vmatprep.subr.bf16.mxu0 %v513
        %906 = vmatpush1.bf16.msra.mxu0 %v512
        %907 = vmatprep.subr.bf16.mxu0 %v516
        %908 = vmatpush1.bf16.msra.mxu0 %v515
        %909 = vmatprep.subr.bf16.mxu0 %v519
        %910 = vmatpush1.bf16.msra.mxu0 %v518
        %911 = vmatprep.subr.bf16.mxu0 %v522
        %912 = vmatpush1.bf16.msra.mxu0 %v521
        %913 = vmatprep.subr.bf16.mxu0 %v525
        %914 = vmatpush1.bf16.msra.mxu0 %v524
        %915 = vmatprep.subr.bf16.mxu0 0
        %916 = vmatpush1.bf16.msra.mxu0 0
        %917 = vmatprep.subr.bf16.mxu0 0
        %918 = vmatpush1.bf16.msra.mxu0 0
        %919 = vmatprep.subr.bf16.mxu0 0
        %920 = vmatpush1.bf16.msra.mxu0 0
        %921 = vmatprep.subr.bf16.mxu0 0
        %922 = vmatpush1.bf16.msra.mxu0 0
        %923 = vmatprep.subr.bf16.mxu0 0
        %924 = vmatpush1.bf16.msra.mxu0 0
        %925 = vmatprep.subr.bf16.mxu0 0
        %926 = vmatpush1.bf16.msra.mxu0 0
        %927 = vmatprep.subr.bf16.mxu0 0
        %928 = vmatpush1.bf16.msra.mxu0 0
        %929 = vmatprep.subr.bf16.mxu0 0
        %930 = vmatpush1.bf16.msra.mxu0 0
        %931 = vmatprep.mubr.bf16.mxu0 0
        %932 = vmatmul.mubr.bf16.gmra.mrb[0].mxu0 %v898
        %v933 = vpop.f32.mrb[0].mxu0
        %v934 = vadd.f32 %v411, %v933
        %v935 = vpop.f32.mrb[0].mxu0
        %v936 = vadd.f32 %v415, %v935
        %v937 = vpop.f32.mrb[0].mxu0
        %v938 = vpop.f32.mrb[0].mxu0
        %939 = vdwg.mxu0
        %940 = vmatprep.subr.bf16.mxu0 0
        %941 = vmatpush1.bf16.msra.mxu0 %v505
        %942 = vmatprep.subr.bf16.mxu0 0
        %943 = vmatpush1.bf16.msra.mxu0 %v508
        %944 = vmatprep.subr.bf16.mxu0 0
        %945 = vmatpush1.bf16.msra.mxu0 %v511
        %946 = vmatprep.subr.bf16.mxu0 0
        %947 = vmatpush1.bf16.msra.mxu0 %v514
        %948 = vmatprep.subr.bf16.mxu0 0
        %949 = vmatpush1.bf16.msra.mxu0 %v517
        %950 = vmatprep.subr.bf16.mxu0 0
        %951 = vmatpush1.bf16.msra.mxu0 %v520
        %952 = vmatprep.subr.bf16.mxu0 0
        %953 = vmatpush1.bf16.msra.mxu0 %v523
        %954 = vmatprep.subr.bf16.mxu0 0
        %955 = vmatpush1.bf16.msra.mxu0 %v526
        %956 = vmatprep.subr.bf16.mxu0 0
        %957 = vmatpush1.bf16.msra.mxu0 0
        %958 = vmatprep.subr.bf16.mxu0 0
        %959 = vmatpush1.bf16.msra.mxu0 0
        %960 = vmatprep.subr.bf16.mxu0 0
        %961 = vmatpush1.bf16.msra.mxu0 0
        %962 = vmatprep.subr.bf16.mxu0 0
        %963 = vmatpush1.bf16.msra.mxu0 0
        %964 = vmatprep.subr.bf16.mxu0 0
        %965 = vmatpush1.bf16.msra.mxu0 0
        %966 = vmatprep.subr.bf16.mxu0 0
        %967 = vmatpush1.bf16.msra.mxu0 0
        %968 = vmatprep.subr.bf16.mxu0 0
        %969 = vmatpush1.bf16.msra.mxu0 0
        %970 = vmatprep.subr.bf16.mxu0 0
        %971 = vmatpush1.bf16.msra.mxu0 0
        %972 = vmatprep.mubr.bf16.mxu0 0
        %973 = vmatmul.mubr.bf16.gmra.mrb[0].mxu0 %v898
        %v974 = vpop.f32.mrb[0].mxu0
        %v975 = vadd.f32 %v419, %v974
        %v976 = vpop.f32.mrb[0].mxu0
        %v977 = vpop.f32.mrb[0].mxu0
        %v978 = vpop.f32.mrb[0].mxu0
        %979 = vdwg.mxu0
        %v980 = vadd.f32 %v897, %v934
        %v981 = vxor.u32 %v980, 2147483648
        %v982 = vmul.f32 %v981, 1.442695
        %v983 = vpow.pop %v982
        %v984 = vadd.f32 %v983, 1.0
        %v985 = vrcp.pop %v984
        %v986 = vmul.f32 1.0, %v985
        %v988 = vrot.slane %v897, 2
        %v990 = vadd.f32 %v988, %v936
        %v991 = vxor.u32 %v990, 2147483648
        %v992 = vmul.f32 %v991, 1.442695
        %v993 = vpow.pop %v992
        %v994 = vadd.f32 %v993, 1.0
        %v995 = vrcp.pop %v994
        %v996 = vmul.f32 1.0, %v995
        %v997 = vmul.f32 %v986, %v975
        %v998 = vrot.slane %v897, 4
        %v1000 = vadd.f32 %v998, %v997
        %v1001 = vtanh.pop %v1000
        %v1002 = vsub.f32 1.0, %v996
        %v1003 = vmul.f32 %v1002, %v1001
        %v1004 = vmul.f32 %v996, %v889
        %v1005 = vadd.f32 %v1003, %v1004
        %s1006 = smul.u32 %s893, 2
        %s1007 = scalar_lea.vmem %s359, %s1006 [#allocation4]
        %1008 = vst [vmem:[%s1007] sm:$0x3] %v1005
        %s1009 = scalar_select %p368, 3, 4
        %s1010 = smul.u32 %s1009, 3
        %s1011 = smul.addr %s1010, 2
        %s1012 = scalar_lea.vmem %s325, %s1011 [#allocation2]
        %v1013 = vld [vmem:[%s1012] sm:$0x3f]
        %v1014 = vpack.c.bf16 %v1005, %v1005
        %1015 = vmatprep.subr.bf16.mxu0 %v504
        %1016 = vmatpush1.bf16.msra.mxu0 %v503
        %1017 = vmatprep.subr.bf16.mxu0 %v507
        %1018 = vmatpush1.bf16.msra.mxu0 %v506
        %1019 = vmatprep.subr.bf16.mxu0 %v510
        %1020 = vmatpush1.bf16.msra.mxu0 %v509
        %1021 = vmatprep.subr.bf16.mxu0 %v513
        %1022 = vmatpush1.bf16.msra.mxu0 %v512
        %1023 = vmatprep.subr.bf16.mxu0 %v516
        %1024 = vmatpush1.bf16.msra.mxu0 %v515
        %1025 = vmatprep.subr.bf16.mxu0 %v519
        %1026 = vmatpush1.bf16.msra.mxu0 %v518
        %1027 = vmatprep.subr.bf16.mxu0 %v522
        %1028 = vmatpush1.bf16.msra.mxu0 %v521
        %1029 = vmatprep.subr.bf16.mxu0 %v525
        %1030 = vmatpush1.bf16.msra.mxu0 %v524
        %1031 = vmatprep.subr.bf16.mxu0 0
        %1032 = vmatpush1.bf16.msra.mxu0 0
        %1033 = vmatprep.subr.bf16.mxu0 0
        %1034 = vmatpush1.bf16.msra.mxu0 0
        %1035 = vmatprep.subr.bf16.mxu0 0
        %1036 = vmatpush1.bf16.msra.mxu0 0
        %1037 = vmatprep.subr.bf16.mxu0 0
        %1038 = vmatpush1.bf16.msra.mxu0 0
        %1039 = vmatprep.subr.bf16.mxu0 0
        %1040 = vmatpush1.bf16.msra.mxu0 0
        %1041 = vmatprep.subr.bf16.mxu0 0
        %1042 = vmatpush1.bf16.msra.mxu0 0
        %1043 = vmatprep.subr.bf16.mxu0 0
        %1044 = vmatpush1.bf16.msra.mxu0 0
        %1045 = vmatprep.subr.bf16.mxu0 0
        %1046 = vmatpush1.bf16.msra.mxu0 0
        %1047 = vmatprep.mubr.bf16.mxu0 0
        %1048 = vmatmul.mubr.bf16.gmra.mrb[0].mxu0 %v1014
        %v1049 = vpop.f32.mrb[0].mxu0
        %v1050 = vadd.f32 %v411, %v1049
        %v1051 = vpop.f32.mrb[0].mxu0
        %v1052 = vadd.f32 %v415, %v1051
        %v1053 = vpop.f32.mrb[0].mxu0
        %v1054 = vpop.f32.mrb[0].mxu0
        %1055 = vdwg.mxu0
        %1056 = vmatprep.subr.bf16.mxu0 0
        %1057 = vmatpush1.bf16.msra.mxu0 %v505
        %1058 = vmatprep.subr.bf16.mxu0 0
        %1059 = vmatpush1.bf16.msra.mxu0 %v508
        %1060 = vmatprep.subr.bf16.mxu0 0
        %1061 = vmatpush1.bf16.msra.mxu0 %v511
        %1062 = vmatprep.subr.bf16.mxu0 0
        %1063 = vmatpush1.bf16.msra.mxu0 %v514
        %1064 = vmatprep.subr.bf16.mxu0 0
        %1065 = vmatpush1.bf16.msra.mxu0 %v517
        %1066 = vmatprep.subr.bf16.mxu0 0
        %1067 = vmatpush1.bf16.msra.mxu0 %v520
        %1068 = vmatprep.subr.bf16.mxu0 0
        %1069 = vmatpush1.bf16.msra.mxu0 %v523
        %1070 = vmatprep.subr.bf16.mxu0 0
        %1071 = vmatpush1.bf16.msra.mxu0 %v526
        %1072 = vmatprep.subr.bf16.mxu0 0
        %1073 = vmatpush1.bf16.msra.mxu0 0
        %1074 = vmatprep.subr.bf16.mxu0 0
        %1075 = vmatpush1.bf16.msra.mxu0 0
        %1076 = vmatprep.subr.bf16.mxu0 0
        %1077 = vmatpush1.bf16.msra.mxu0 0
        %1078 = vmatprep.subr.bf16.mxu0 0
        %1079 = vmatpush1.bf16.msra.mxu0 0
        %1080 = vmatprep.subr.bf16.mxu0 0
        %1081 = vmatpush1.bf16.msra.mxu0 0
        %1082 = vmatprep.subr.bf16.mxu0 0
        %1083 = vmatpush1.bf16.msra.mxu0 0
        %1084 = vmatprep.subr.bf16.mxu0 0
        %1085 = vmatpush1.bf16.msra.mxu0 0
        %1086 = vmatprep.subr.bf16.mxu0 0
        %1087 = vmatpush1.bf16.msra.mxu0 0
        %1088 = vmatprep.mubr.bf16.mxu0 0
        %1089 = vmatmul.mubr.bf16.gmra.mrb[0].mxu0 %v1014
        %v1090 = vpop.f32.mrb[0].mxu0
        %v1091 = vadd.f32 %v419, %v1090
        %v1092 = vpop.f32.mrb[0].mxu0
        %v1093 = vpop.f32.mrb[0].mxu0
        %v1094 = vpop.f32.mrb[0].mxu0
        %1095 = vdwg.mxu0
        %v1096 = vadd.f32 %v1013, %v1050
        %v1097 = vxor.u32 %v1096, 2147483648
        %v1098 = vmul.f32 %v1097, 1.442695
        %v1099 = vpow.pop %v1098
        %v1100 = vadd.f32 %v1099, 1.0
        %v1101 = vrcp.pop %v1100
        %v1102 = vmul.f32 1.0, %v1101
        %v1104 = vrot.slane %v1013, 2
        %v1106 = vadd.f32 %v1104, %v1052
        %v1107 = vxor.u32 %v1106, 2147483648
        %v1108 = vmul.f32 %v1107, 1.442695
        %v1109 = vpow.pop %v1108
        %v1110 = vadd.f32 %v1109, 1.0
        %v1111 = vrcp.pop %v1110
        %v1112 = vmul.f32 1.0, %v1111
        %v1113 = vmul.f32 %v1102, %v1091
        %v1114 = vrot.slane %v1013, 4
        %v1116 = vadd.f32 %v1114, %v1113
        %v1117 = vtanh.pop %v1116
        %v1118 = vsub.f32 1.0, %v1112
        %v1119 = vmul.f32 %v1118, %v1117
        %v1120 = vmul.f32 %v1112, %v1005
        %v1121 = vadd.f32 %v1119, %v1120
        %s1122 = smul.u32 %s1009, 2
        %s1123 = scalar_lea.vmem %s359, %s1122 [#allocation4]
        %1124 = vst [vmem:[%s1123] sm:$0x3] %v1121
        %s1125 = scalar_select %p368, 2, 5
        %s1126 = smul.u32 %s1125, 3
        %s1127 = smul.addr %s1126, 2
        %s1128 = scalar_lea.vmem %s325, %s1127 [#allocation2]
        %v1129 = vld [vmem:[%s1128] sm:$0x3f]
        %v1130 = vpack.c.bf16 %v1121, %v1121
        %1131 = vmatprep.subr.bf16.mxu0 %v504
        %1132 = vmatpush1.bf16.msra.mxu0 %v503
        %1133 = vmatprep.subr.bf16.mxu0 %v507
        %1134 = vmatpush1.bf16.msra.mxu0 %v506
        %1135 = vmatprep.subr.bf16.mxu0 %v510
        %1136 = vmatpush1.bf16.msra.mxu0 %v509
        %1137 = vmatprep.subr.bf16.mxu0 %v513
        %1138 = vmatpush1.bf16.msra.mxu0 %v512
        %1139 = vmatprep.subr.bf16.mxu0 %v516
        %1140 = vmatpush1.bf16.msra.mxu0 %v515
        %1141 = vmatprep.subr.bf16.mxu0 %v519
        %1142 = vmatpush1.bf16.msra.mxu0 %v518
        %1143 = vmatprep.subr.bf16.mxu0 %v522
        %1144 = vmatpush1.bf16.msra.mxu0 %v521
        %1145 = vmatprep.subr.bf16.mxu0 %v525
        %1146 = vmatpush1.bf16.msra.mxu0 %v524
        %1147 = vmatprep.subr.bf16.mxu0 0
        %1148 = vmatpush1.bf16.msra.mxu0 0
        %1149 = vmatprep.subr.bf16.mxu0 0
        %1150 = vmatpush1.bf16.msra.mxu0 0
        %1151 = vmatprep.subr.bf16.mxu0 0
        %1152 = vmatpush1.bf16.msra.mxu0 0
        %1153 = vmatprep.subr.bf16.mxu0 0
        %1154 = vmatpush1.bf16.msra.mxu0 0
        %1155 = vmatprep.subr.bf16.mxu0 0
        %1156 = vmatpush1.bf16.msra.mxu0 0
        %1157 = vmatprep.subr.bf16.mxu0 0
        %1158 = vmatpush1.bf16.msra.mxu0 0
        %1159 = vmatprep.subr.bf16.mxu0 0
        %1160 = vmatpush1.bf16.msra.mxu0 0
        %1161 = vmatprep.subr.bf16.mxu0 0
        %1162 = vmatpush1.bf16.msra.mxu0 0
        %1163 = vmatprep.mubr.bf16.mxu0 0
        %1164 = vmatmul.mubr.bf16.gmra.mrb[0].mxu0 %v1130
        %v1165 = vpop.f32.mrb[0].mxu0
        %v1166 = vadd.f32 %v411, %v1165
        %v1167 = vpop.f32.mrb[0].mxu0
        %v1168 = vadd.f32 %v415, %v1167
        %v1169 = vpop.f32.mrb[0].mxu0
        %v1170 = vpop.f32.mrb[0].mxu0
        %1171 = vdwg.mxu0
        %1172 = vmatprep.subr.bf16.mxu0 0
        %1173 = vmatpush1.bf16.msra.mxu0 %v505
        %1174 = vmatprep.subr.bf16.mxu0 0
        %1175 = vmatpush1.bf16.msra.mxu0 %v508
        %1176 = vmatprep.subr.bf16.mxu0 0
        %1177 = vmatpush1.bf16.msra.mxu0 %v511
        %1178 = vmatprep.subr.bf16.mxu0 0
        %1179 = vmatpush1.bf16.msra.mxu0 %v514
        %1180 = vmatprep.subr.bf16.mxu0 0
        %1181 = vmatpush1.bf16.msra.mxu0 %v517
        %1182 = vmatprep.subr.bf16.mxu0 0
        %1183 = vmatpush1.bf16.msra.mxu0 %v520
        %1184 = vmatprep.subr.bf16.mxu0 0
        %1185 = vmatpush1.bf16.msra.mxu0 %v523
        %1186 = vmatprep.subr.bf16.mxu0 0
        %1187 = vmatpush1.bf16.msra.mxu0 %v526
        %1188 = vmatprep.subr.bf16.mxu0 0
        %1189 = vmatpush1.bf16.msra.mxu0 0
        %1190 = vmatprep.subr.bf16.mxu0 0
        %1191 = vmatpush1.bf16.msra.mxu0 0
        %1192 = vmatprep.subr.bf16.mxu0 0
        %1193 = vmatpush1.bf16.msra.mxu0 0
        %1194 = vmatprep.subr.bf16.mxu0 0
        %1195 = vmatpush1.bf16.msra.mxu0 0
        %1196 = vmatprep.subr.bf16.mxu0 0
        %1197 = vmatpush1.bf16.msra.mxu0 0
        %1198 = vmatprep.subr.bf16.mxu0 0
        %1199 = vmatpush1.bf16.msra.mxu0 0
        %1200 = vmatprep.subr.bf16.mxu0 0
        %1201 = vmatpush1.bf16.msra.mxu0 0
        %1202 = vmatprep.subr.bf16.mxu0 0
        %1203 = vmatpush1.bf16.msra.mxu0 0
        %1204 = vmatprep.mubr.bf16.mxu0 0
        %1205 = vmatmul.mubr.bf16.gmra.mrb[0].mxu0 %v1130
        %v1206 = vpop.f32.mrb[0].mxu0
        %v1207 = vadd.f32 %v419, %v1206
        %v1208 = vpop.f32.mrb[0].mxu0
        %v1209 = vpop.f32.mrb[0].mxu0
        %v1210 = vpop.f32.mrb[0].mxu0
        %1211 = vdwg.mxu0
        %v1212 = vadd.f32 %v1129, %v1166
        %v1213 = vxor.u32 %v1212, 2147483648
        %v1214 = vmul.f32 %v1213, 1.442695
        %v1215 = vpow.pop %v1214
        %v1216 = vadd.f32 %v1215, 1.0
        %v1217 = vrcp.pop %v1216
        %v1218 = vmul.f32 1.0, %v1217
        %v1220 = vrot.slane %v1129, 2
        %v1222 = vadd.f32 %v1220, %v1168
        %v1223 = vxor.u32 %v1222, 2147483648
        %v1224 = vmul.f32 %v1223, 1.442695
        %v1225 = vpow.pop %v1224
        %v1226 = vadd.f32 %v1225, 1.0
        %v1227 = vrcp.pop %v1226
        %v1228 = vmul.f32 1.0, %v1227
        %v1229 = vmul.f32 %v1218, %v1207
        %v1230 = vrot.slane %v1129, 4
        %v1232 = vadd.f32 %v1230, %v1229
        %v1233 = vtanh.pop %v1232
        %v1234 = vsub.f32 1.0, %v1228
        %v1235 = vmul.f32 %v1234, %v1233
        %v1236 = vmul.f32 %v1228, %v1121
        %v1237 = vadd.f32 %v1235, %v1236
        %s1238 = smul.u32 %s1125, 2
        %s1239 = scalar_lea.vmem %s359, %s1238 [#allocation4]
        %1240 = vst [vmem:[%s1239] sm:$0x3] %v1237
        %s1241 = scalar_select %p368, 1, 6
        %s1242 = smul.u32 %s1241, 3
        %s1243 = smul.addr %s1242, 2
        %s1244 = scalar_lea.vmem %s325, %s1243 [#allocation2]
        %v1245 = vld [vmem:[%s1244] sm:$0x3f]
        %v1246 = vpack.c.bf16 %v1237, %v1237
        %1247 = vmatprep.subr.bf16.mxu0 %v504
        %1248 = vmatpush1.bf16.msra.mxu0 %v503
        %1249 = vmatprep.subr.bf16.mxu0 %v507
        %1250 = vmatpush1.bf16.msra.mxu0 %v506
        %1251 = vmatprep.subr.bf16.mxu0 %v510
        %1252 = vmatpush1.bf16.msra.mxu0 %v509
        %1253 = vmatprep.subr.bf16.mxu0 %v513
        %1254 = vmatpush1.bf16.msra.mxu0 %v512
        %1255 = vmatprep.subr.bf16.mxu0 %v516
        %1256 = vmatpush1.bf16.msra.mxu0 %v515
        %1257 = vmatprep.subr.bf16.mxu0 %v519
        %1258 = vmatpush1.bf16.msra.mxu0 %v518
        %1259 = vmatprep.subr.bf16.mxu0 %v522
        %1260 = vmatpush1.bf16.msra.mxu0 %v521
        %1261 = vmatprep.subr.bf16.mxu0 %v525
        %1262 = vmatpush1.bf16.msra.mxu0 %v524
        %1263 = vmatprep.subr.bf16.mxu0 0
        %1264 = vmatpush1.bf16.msra.mxu0 0
        %1265 = vmatprep.subr.bf16.mxu0 0
        %1266 = vmatpush1.bf16.msra.mxu0 0
        %1267 = vmatprep.subr.bf16.mxu0 0
        %1268 = vmatpush1.bf16.msra.mxu0 0
        %1269 = vmatprep.subr.bf16.mxu0 0
        %1270 = vmatpush1.bf16.msra.mxu0 0
        %1271 = vmatprep.subr.bf16.mxu0 0
        %1272 = vmatpush1.bf16.msra.mxu0 0
        %1273 = vmatprep.subr.bf16.mxu0 0
        %1274 = vmatpush1.bf16.msra.mxu0 0
        %1275 = vmatprep.subr.bf16.mxu0 0
        %1276 = vmatpush1.bf16.msra.mxu0 0
        %1277 = vmatprep.subr.bf16.mxu0 0
        %1278 = vmatpush1.bf16.msra.mxu0 0
        %1279 = vmatprep.mubr.bf16.mxu0 0
        %1280 = vmatmul.mubr.bf16.gmra.mrb[0].mxu0 %v1246
        %v1281 = vpop.f32.mrb[0].mxu0
        %v1282 = vadd.f32 %v411, %v1281
        %v1283 = vpop.f32.mrb[0].mxu0
        %v1284 = vadd.f32 %v415, %v1283
        %v1285 = vpop.f32.mrb[0].mxu0
        %v1286 = vpop.f32.mrb[0].mxu0
        %1287 = vdwg.mxu0
        %1288 = vmatprep.subr.bf16.mxu0 0
        %1289 = vmatpush1.bf16.msra.mxu0 %v505
        %1290 = vmatprep.subr.bf16.mxu0 0
        %1291 = vmatpush1.bf16.msra.mxu0 %v508
        %1292 = vmatprep.subr.bf16.mxu0 0
        %1293 = vmatpush1.bf16.msra.mxu0 %v511
        %1294 = vmatprep.subr.bf16.mxu0 0
        %1295 = vmatpush1.bf16.msra.mxu0 %v514
        %1296 = vmatprep.subr.bf16.mxu0 0
        %1297 = vmatpush1.bf16.msra.mxu0 %v517
        %1298 = vmatprep.subr.bf16.mxu0 0
        %1299 = vmatpush1.bf16.msra.mxu0 %v520
        %1300 = vmatprep.subr.bf16.mxu0 0
        %1301 = vmatpush1.bf16.msra.mxu0 %v523
        %1302 = vmatprep.subr.bf16.mxu0 0
        %1303 = vmatpush1.bf16.msra.mxu0 %v526
        %1304 = vmatprep.subr.bf16.mxu0 0
        %1305 = vmatpush1.bf16.msra.mxu0 0
        %1306 = vmatprep.subr.bf16.mxu0 0
        %1307 = vmatpush1.bf16.msra.mxu0 0
        %1308 = vmatprep.subr.bf16.mxu0 0
        %1309 = vmatpush1.bf16.msra.mxu0 0
        %1310 = vmatprep.subr.bf16.mxu0 0
        %1311 = vmatpush1.bf16.msra.mxu0 0
        %1312 = vmatprep.subr.bf16.mxu0 0
        %1313 = vmatpush1.bf16.msra.mxu0 0
        %1314 = vmatprep.subr.bf16.mxu0 0
        %1315 = vmatpush1.bf16.msra.mxu0 0
        %1316 = vmatprep.subr.bf16.mxu0 0
        %1317 = vmatpush1.bf16.msra.mxu0 0
        %1318 = vmatprep.subr.bf16.mxu0 0
        %1319 = vmatpush1.bf16.msra.mxu0 0
        %1320 = vmatprep.mubr.bf16.mxu0 0
        %1321 = vmatmul.mubr.bf16.gmra.mrb[0].mxu0 %v1246
        %v1322 = vpop.f32.mrb[0].mxu0
        %v1323 = vadd.f32 %v419, %v1322
        %v1324 = vpop.f32.mrb[0].mxu0
        %v1325 = vpop.f32.mrb[0].mxu0
        %v1326 = vpop.f32.mrb[0].mxu0
        %1327 = vdwg.mxu0
        %v1328 = vadd.f32 %v1245, %v1282
        %v1329 = vxor.u32 %v1328, 2147483648
        %v1330 = vmul.f32 %v1329, 1.442695
        %v1331 = vpow.pop %v1330
        %v1332 = vadd.f32 %v1331, 1.0
        %v1333 = vrcp.pop %v1332
        %v1334 = vmul.f32 1.0, %v1333
        %v1336 = vrot.slane %v1245, 2
        %v1338 = vadd.f32 %v1336, %v1284
        %v1339 = vxor.u32 %v1338, 2147483648
        %v1340 = vmul.f32 %v1339, 1.442695
        %v1341 = vpow.pop %v1340
        %v1342 = vadd.f32 %v1341, 1.0
        %v1343 = vrcp.pop %v1342
        %v1344 = vmul.f32 1.0, %v1343
        %v1345 = vmul.f32 %v1334, %v1323
        %v1346 = vrot.slane %v1245, 4
        %v1348 = vadd.f32 %v1346, %v1345
        %v1349 = vtanh.pop %v1348
        %v1350 = vsub.f32 1.0, %v1344
        %v1351 = vmul.f32 %v1350, %v1349
        %v1352 = vmul.f32 %v1344, %v1237
        %v1353 = vadd.f32 %v1351, %v1352
        %s1354 = smul.u32 %s1241, 2
        %s1355 = scalar_lea.vmem %s359, %s1354 [#allocation4]
        %1356 = vst [vmem:[%s1355] sm:$0x3] %v1353
        %s1357 = scalar_select %p368, 0, 7
        %s1358 = smul.u32 %s1357, 3
        %s1359 = smul.addr %s1358, 2
        %s1360 = scalar_lea.vmem %s325, %s1359 [#allocation2]
        %v1361 = vld [vmem:[%s1360] sm:$0x3f]
        %v1362 = vpack.c.bf16 %v1353, %v1353
        %1363 = vmatprep.subr.bf16.mxu0 %v504
        %1364 = vmatpush1.bf16.msra.mxu0 %v503
        %1365 = vmatprep.subr.bf16.mxu0 %v507
        %1366 = vmatpush1.bf16.msra.mxu0 %v506
        %1367 = vmatprep.subr.bf16.mxu0 %v510
        %1368 = vmatpush1.bf16.msra.mxu0 %v509
        %1369 = vmatprep.subr.bf16.mxu0 %v513
        %1370 = vmatpush1.bf16.msra.mxu0 %v512
        %1371 = vmatprep.subr.bf16.mxu0 %v516
        %1372 = vmatpush1.bf16.msra.mxu0 %v515
        %1373 = vmatprep.subr.bf16.mxu0 %v519
        %1374 = vmatpush1.bf16.msra.mxu0 %v518
        %1375 = vmatprep.subr.bf16.mxu0 %v522
        %1376 = vmatpush1.bf16.msra.mxu0 %v521
        %1377 = vmatprep.subr.bf16.mxu0 %v525
        %1378 = vmatpush1.bf16.msra.mxu0 %v524
        %1379 = vmatprep.subr.bf16.mxu0 0
        %1380 = vmatpush1.bf16.msra.mxu0 0
        %1381 = vmatprep.subr.bf16.mxu0 0
        %1382 = vmatpush1.bf16.msra.mxu0 0
        %1383 = vmatprep.subr.bf16.mxu0 0
        %1384 = vmatpush1.bf16.msra.mxu0 0
        %1385 = vmatprep.subr.bf16.mxu0 0
        %1386 = vmatpush1.bf16.msra.mxu0 0
        %1387 = vmatprep.subr.bf16.mxu0 0
        %1388 = vmatpush1.bf16.msra.mxu0 0
        %1389 = vmatprep.subr.bf16.mxu0 0
        %1390 = vmatpush1.bf16.msra.mxu0 0
        %1391 = vmatprep.subr.bf16.mxu0 0
        %1392 = vmatpush1.bf16.msra.mxu0 0
        %1393 = vmatprep.subr.bf16.mxu0 0
        %1394 = vmatpush1.bf16.msra.mxu0 0
        %1395 = vmatprep.mubr.bf16.mxu0 0
        %1396 = vmatmul.mubr.bf16.gmra.mrb[0].mxu0 %v1362
        %v1397 = vpop.f32.mrb[0].mxu0
        %v1398 = vadd.f32 %v411, %v1397
        %v1399 = vpop.f32.mrb[0].mxu0
        %v1400 = vadd.f32 %v415, %v1399
        %v1401 = vpop.f32.mrb[0].mxu0
        %v1402 = vpop.f32.mrb[0].mxu0
        %1403 = vdwg.mxu0
        %1404 = vmatprep.subr.bf16.mxu0 0
        %1405 = vmatpush1.bf16.msra.mxu0 %v505
        %1406 = vmatprep.subr.bf16.mxu0 0
        %1407 = vmatpush1.bf16.msra.mxu0 %v508
        %1408 = vmatprep.subr.bf16.mxu0 0
        %1409 = vmatpush1.bf16.msra.mxu0 %v511
        %1410 = vmatprep.subr.bf16.mxu0 0
        %1411 = vmatpush1.bf16.msra.mxu0 %v514
        %1412 = vmatprep.subr.bf16.mxu0 0
        %1413 = vmatpush1.bf16.msra.mxu0 %v517
        %1414 = vmatprep.subr.bf16.mxu0 0
        %1415 = vmatpush1.bf16.msra.mxu0 %v520
        %1416 = vmatprep.subr.bf16.mxu0 0
        %1417 = vmatpush1.bf16.msra.mxu0 %v523
        %1418 = vmatprep.subr.bf16.mxu0 0
        %1419 = vmatpush1.bf16.msra.mxu0 %v526
        %1420 = vmatprep.subr.bf16.mxu0 0
        %1421 = vmatpush1.bf16.msra.mxu0 0
        %1422 = vmatprep.subr.bf16.mxu0 0
        %1423 = vmatpush1.bf16.msra.mxu0 0
        %1424 = vmatprep.subr.bf16.mxu0 0
        %1425 = vmatpush1.bf16.msra.mxu0 0
        %1426 = vmatprep.subr.bf16.mxu0 0
        %1427 = vmatpush1.bf16.msra.mxu0 0
        %1428 = vmatprep.subr.bf16.mxu0 0
        %1429 = vmatpush1.bf16.msra.mxu0 0
        %1430 = vmatprep.subr.bf16.mxu0 0
        %1431 = vmatpush1.bf16.msra.mxu0 0
        %1432 = vmatprep.subr.bf16.mxu0 0
        %1433 = vmatpush1.bf16.msra.mxu0 0
        %1434 = vmatprep.subr.bf16.mxu0 0
        %1435 = vmatpush1.bf16.msra.mxu0 0
        %1436 = vmatprep.mubr.bf16.mxu0 0
        %1437 = vmatmul.mubr.bf16.gmra.mrb[0].mxu0 %v1362
        %v1438 = vpop.f32.mrb[0].mxu0
        %v1439 = vadd.f32 %v419, %v1438
        %v1440 = vpop.f32.mrb[0].mxu0
        %v1441 = vpop.f32.mrb[0].mxu0
        %v1442 = vpop.f32.mrb[0].mxu0
        %1443 = vdwg.mxu0
        %v1444 = vadd.f32 %v1361, %v1398
        %v1445 = vxor.u32 %v1444, 2147483648
        %v1446 = vmul.f32 %v1445, 1.442695
        %v1447 = vpow.pop %v1446
        %v1448 = vadd.f32 %v1447, 1.0
        %v1449 = vrcp.pop %v1448
        %v1450 = vmul.f32 1.0, %v1449
        %v1452 = vrot.slane %v1361, 2
        %v1454 = vadd.f32 %v1452, %v1400
        %v1455 = vxor.u32 %v1454, 2147483648
        %v1456 = vmul.f32 %v1455, 1.442695
        %v1457 = vpow.pop %v1456
        %v1458 = vadd.f32 %v1457, 1.0
        %v1459 = vrcp.pop %v1458
        %v1460 = vmul.f32 1.0, %v1459
        %v1461 = vmul.f32 %v1450, %v1439
        %v1462 = vrot.slane %v1361, 4
        %v1464 = vadd.f32 %v1462, %v1461
        %v1465 = vtanh.pop %v1464
        %v1466 = vsub.f32 1.0, %v1460
        %v1467 = vmul.f32 %v1466, %v1465
        %v1468 = vmul.f32 %v1460, %v1353
        %v1469 = vadd.f32 %v1467, %v1468
        %s1470 = smul.u32 %s1357, 2
        %s1471 = scalar_lea.vmem %s359, %s1470 [#allocation4]
        %1472 = vst [vmem:[%s1471] sm:$0x3] %v1469
        %s1473 = sand.u32 %s100, 1
        %s1474 = sand.u32 %s100, 1
        %s1475 = smul.addr %s1474, 16
        %s1476 = scalar_lea.vmem [#allocation4], %s1475
        // Predicated region
        $region100: #{emodel_bigru_forward.40} parent=90 // pred_check
          %p1477 = pneg %p110
        $region101: #{emodel_bigru_forward.40} parent=90 // pred_check_branch
          %1479 = sbr.rel (%p1477) target = $region103
        $region102: #{emodel_bigru_forward.40} parent=90 // pred_region
          %s1480 = smul.addr %s14, 2
          %s1481 = scalar_lea.vmem %s3, %s1480
          // Predicated region
          $region104: #{emodel_bigru_forward.40} parent=102 // pred_check
            _
          $region105: #{emodel_bigru_forward.40} parent=102 // pred_check_branch
            %1483 = sbr.rel (0) target = $region107
          $region106: #{emodel_bigru_forward.40} parent=102 // pred_region
            // Predicated region
            $region108: #{emodel_bigru_forward.40} parent=106 // pred_check
              _
            $region109: #{emodel_bigru_forward.40} parent=106 // pred_check_branch
              %1485 = sbr.rel target = $region111
            $region110: #{emodel_bigru_forward.40} parent=106 // pred_region
              // Predicated region
              $region123: #{emodel_bigru_forward.40} parent=110 // pred_check
                _
              $region124: #{emodel_bigru_forward.40} parent=110 // pred_check_branch
                %1514 = sbr.rel (0) target = $region126
              $region125: #{emodel_bigru_forward.40} parent=110 // pred_region
                loop: start=0, step=1, limit=1
                $region127: #{emodel_bigru_forward.40} parent=125 // loop_pre_header
                  _
                $region128: #{emodel_bigru_forward.40} parent=125 // loop_header
                  %s1516 = sphi 0, %s1520
                  %p1517 = scmp.ge.s32.totalorder %s1516, 1
                  %s1521 = sphi %s1476, %s1476
                  %s1522 = sphi %s1481, %s1481
                $region129: #{emodel_bigru_forward.40} parent=125 // loop_header_branch
                  %1519 = sbr.rel (%p1517) target = $region133
                $region130: #{emodel_bigru_forward.40} parent=125 // loop_body
                  _
                $region131: #{emodel_bigru_forward.40} parent=125 // loop_footer
                  %s1520 = sadd.s32 1, %s1516
                $region132: #{emodel_bigru_forward.40} parent=125 // loop_footer_branch
                  %1515 = sbr.rel target = $region128
                $region133: #{emodel_bigru_forward.40} parent=125 // loop_exit
                  _
                loop: start=0, step=1, limit=1
                $region134: #{emodel_bigru_forward.40} parent=125 // loop_pre_header
                  _
                $region135: #{emodel_bigru_forward.40} parent=125 // loop_header
                  %s1525 = sphi 0, %s1529
                  %p1526 = scmp.ge.s32.totalorder %s1525, 1
                  %s1530 = sphi %s1476, %s1476
                  %s1531 = sphi %s1481, %s1481
                $region136: #{emodel_bigru_forward.40} parent=125 // loop_header_branch
                  %1528 = sbr.rel (%p1526) target = $region140
                $region137: #{emodel_bigru_forward.40} parent=125 // loop_body
                  %v1532 = vld [vmem:[%s1530] sm:$0x3]
                  %1533 = vst [vmem:[%s1531] sm:$0x3] %v1532
                  %v1534 = vld [vmem:[%s1530 + $0x2] sm:$0x3]
                  %1535 = vst [vmem:[%s1531 + $0x4] sm:$0x3] %v1534
                  %v1536 = vld [vmem:[%s1530 + $0x4] sm:$0x3]
                  %1537 = vst [vmem:[%s1531 + $0x8] sm:$0x3] %v1536
                  %v1538 = vld [vmem:[%s1530 + $0x6] sm:$0x3]
                  %1539 = vst [vmem:[%s1531 + $0xc] sm:$0x3] %v1538
                  %v1540 = vld [vmem:[%s1530 + $0x8] sm:$0x3]
                  %1541 = vst [vmem:[%s1531 + $0x10] sm:$0x3] %v1540
                  %v1542 = vld [vmem:[%s1530 + $0xa] sm:$0x3]
                  %1543 = vst [vmem:[%s1531 + $0x14] sm:$0x3] %v1542
                  %v1544 = vld [vmem:[%s1530 + $0xc] sm:$0x3]
                  %1545 = vst [vmem:[%s1531 + $0x18] sm:$0x3] %v1544
                  %v1546 = vld [vmem:[%s1530 + $0xe] sm:$0x3]
                  %1547 = vst [vmem:[%s1531 + $0x1c] sm:$0x3] %v1546
                $region138: #{emodel_bigru_forward.40} parent=125 // loop_footer
                  %s1529 = sadd.s32 1, %s1525
                $region139: #{emodel_bigru_forward.40} parent=125 // loop_footer_branch
                  %1524 = sbr.rel target = $region135
                $region140: #{emodel_bigru_forward.40} parent=125 // loop_exit
                  _
              $region126: #{emodel_bigru_forward.40} parent=110 // pred_fallthru
                _
            $region111: #{emodel_bigru_forward.40} parent=106 // pred_fallthru
              _
            // Predicated region
            $region112: #{emodel_bigru_forward.40} parent=106 // pred_check
              _
            $region113: #{emodel_bigru_forward.40} parent=106 // pred_check_branch
              %1487 = sbr.rel (0) target = $region115
            $region114: #{emodel_bigru_forward.40} parent=106 // pred_region
              loop: start=0, step=1, limit=1
              $region116: #{emodel_bigru_forward.40} parent=114 // loop_pre_header
                _
              $region117: #{emodel_bigru_forward.40} parent=114 // loop_header
                %s1490 = sphi 0, %s1494
                %p1491 = scmp.ge.s32.totalorder %s1490, 1
                %s1495 = sphi %s1476, %s1476
                %s1496 = sphi %s1481, %s1481
              $region118: #{emodel_bigru_forward.40} parent=114 // loop_header_branch
                %1493 = sbr.rel (%p1491) target = $region122
              $region119: #{emodel_bigru_forward.40} parent=114 // loop_body
                %v1497 = vld [vmem:[%s1495] sm:$0x3]
                %1498 = vst [vmem:[%s1496] sm:$0x3] %v1497
                %v1499 = vld [vmem:[%s1495 + $0x2] sm:$0x3]
                %1500 = vst [vmem:[%s1496 + $0x4] sm:$0x3] %v1499
                %v1501 = vld [vmem:[%s1495 + $0x4] sm:$0x3]
                %1502 = vst [vmem:[%s1496 + $0x8] sm:$0x3] %v1501
                %v1503 = vld [vmem:[%s1495 + $0x6] sm:$0x3]
                %1504 = vst [vmem:[%s1496 + $0xc] sm:$0x3] %v1503
                %v1505 = vld [vmem:[%s1495 + $0x8] sm:$0x3]
                %1506 = vst [vmem:[%s1496 + $0x10] sm:$0x3] %v1505
                %v1507 = vld [vmem:[%s1495 + $0xa] sm:$0x3]
                %1508 = vst [vmem:[%s1496 + $0x14] sm:$0x3] %v1507
                %v1509 = vld [vmem:[%s1495 + $0xc] sm:$0x3]
                %1510 = vst [vmem:[%s1496 + $0x18] sm:$0x3] %v1509
                %v1511 = vld [vmem:[%s1495 + $0xe] sm:$0x3]
                %1512 = vst [vmem:[%s1496 + $0x1c] sm:$0x3] %v1511
              $region120: #{emodel_bigru_forward.40} parent=114 // loop_footer
                %s1494 = sadd.s32 1, %s1490
              $region121: #{emodel_bigru_forward.40} parent=114 // loop_footer_branch
                %1489 = sbr.rel target = $region117
              $region122: #{emodel_bigru_forward.40} parent=114 // loop_exit
                _
            $region115: #{emodel_bigru_forward.40} parent=106 // pred_fallthru
              _
          $region107: #{emodel_bigru_forward.40} parent=102 // pred_fallthru
            _
          %1548 = vnop
        $region103: #{emodel_bigru_forward.40} parent=90 // pred_fallthru
          _
      $region91: #{emodel_bigru_forward.40} parent=5 // pred_fallthru
        _
      %p1549 = scmp.le.s32.totalorder 2, %s9
      // Predicated region
      $region141: #{emodel_bigru_forward.40} parent=5 // pred_check
        %p1550 = pneg %p1549
      $region142: #{emodel_bigru_forward.40} parent=5 // pred_check_branch
        %1552 = sbr.rel (%p1550) target = $region144
      $region143: #{emodel_bigru_forward.40} parent=5 // pred_region
        %s1553 = ssub.s32 %s9, 2
        // Predicated region
        $region145: #{emodel_bigru_forward.40} parent=143 // pred_check
          %p1554 = pneg %p116
        $region146: #{emodel_bigru_forward.40} parent=143 // pred_check_branch
          %1556 = sbr.rel (%p1554) target = $region148
        $region147: #{emodel_bigru_forward.40} parent=143 // pred_region
          %s1557 = sand.u32 %s101, 1
          %s1558 = sand.u32 %s101, 1
          %s1559 = smul.addr %s1558, 16
          %s1560 = scalar_lea.vmem [#allocation4], %s1559
        $region148: #{emodel_bigru_forward.40} parent=143 // pred_fallthru
          _
      $region144: #{emodel_bigru_forward.40} parent=5 // pred_fallthru
        _
    $region6: #{emodel_bigru_forward.40} parent=1 // loop_footer
      %s13 = sadd.s32 1, %s9
    $region7: #{emodel_bigru_forward.40} parent=1 // loop_footer_branch
      %8 = sbr.rel target = $region3
    $region8: #{emodel_bigru_forward.40} parent=1 // loop_exit
      _

// kernel: emodel_bigru_forward.41
$region0: #{emodel_bigru_forward.41}
  #allocation0 [shape = 'u32[]', space=smem, size = 0x4, offset = 0x4, fixed_abs, tag = 'smem constant byte address 0x4 - core index']
  #allocation1 [shape = 'u32[144,128]{1,0:T(1,128)}', space=vmem, size = 0x12000, scoped, tag = 'internal scratch']
  #allocation2 [shape = 'f32[16,256]{1,0:T(8,128)}', space=vmem, size = 0x4000, scoped, tag = 'scratch operand']
  %s0 = inlined_call_operand.vmem [shape: f32[16,256], index: 0, kind: input, shape index: {}]
  %s1 = inlined_call_operand.vmem [shape: bf16[256,768], index: 1, kind: input, shape index: {}]
  %s2 = inlined_call_operand.vmem [shape: f32[1,768], index: 2, kind: input, shape index: {}]
  %s3 = inlined_call_operand.vmem [shape: f32[16,768], index: 3, kind: output, shape index: {}]
  %s4 = sld [smem:[#allocation0]]
  $region110: #{emodel_bigru_forward.41} parent=0
    _
  %s6 = ssub.s32 1, %s4
  %s7 = scalar_select 0, %s6, %s4
  $region1: #{emodel_bigru_forward.41} parent=0
    #allocation3 [shape = 'u8[262144]{0}', space=vmem, size = 0x40000, scoped, tag = 'input window, operand 1']
    #allocation4 [shape = 'u8[32768]{0}', space=vmem, size = 0x8000, scoped, tag = 'output window, operand 0']
    loop: start=0, step=1, limit=5
    $region2: #{emodel_bigru_forward.41} parent=1 // loop_pre_header
      _
    $region3: #{emodel_bigru_forward.41} parent=1 // loop_header
      %s9 = sphi 0, %s13
      %p10 = scmp.ge.s32.totalorder %s9, 5
      %s16 = sphi 0, %s35
      %s17 = sphi 0, %s31
      %s18 = sphi 0, %s27
      %s19 = sphi 0, %s16
      %s20 = sphi 0, %s17
      %s21 = sphi 0, %s18
      %s22 = sphi 0, %s19
      %s23 = sphi 0, %s20
      %s24 = sphi 0, %s21
      %s40 = sphi 0, %s42
      %s43 = sphi 0, %s40
      %s44 = sphi 0, %s43
      %s60 = sphi 0, %s44
      %s68 = sphi 0, %s70
      %s71 = sphi 0, %s68
      %s72 = sphi 0, %s71
      %s88 = sphi 0, %s72
      %s94 = sphi 0, %s96
      %s97 = sphi 0, %s94
      %s98 = sphi 0, %s97
      %s114 = sphi 0, %s98
      %s122 = sphi 0, %s124
      %s125 = sphi 0, %s122
      %s126 = sphi 0, %s125
      %s142 = sphi 0, %s126
    $region4: #{emodel_bigru_forward.41} parent=1 // loop_header_branch
      %12 = sbr.rel (%p10) target = $region8
    $region5: #{emodel_bigru_forward.41} parent=1 // loop_body
      %s14 = ssub.s32 %s9, 1
      %s15 = ssub.s32 %s9, 2
      %s25 = sadd.s32 1, %s18
      %p26 = scmp.ge.s32.totalorder %s25, 1
      %s27 = scalar_select %p26, 0, %s25
      %s28 = sadd.s32 1, %s17
      %s29 = scalar_select %p26, %s28, %s17
      %p30 = scmp.ge.s32.totalorder %s29, 3
      %s31 = scalar_select %p30, 0, %s29
      %s32 = sadd.s32 1, %s16
      %s33 = scalar_select %p30, %s32, %s16
      %p34 = scmp.ge.s32.totalorder %s33, 1
      %s35 = scalar_select %p34, 0, %s33
      %s36 = ssub.s32 %s16, %s35
      %s37 = ssub.s32 %s18, %s27
      %s38 = sor.u32 %s36, %s37
      %p39 = scmp.eq.s32.totalorder %s38, 0
      %s41 = sadd.s32 %s40, 1
      %s42 = scalar_select %p39, %s40, %s41
      %p45 = pneg %p39
      %p46 = scmp.eq.s32.totalorder %s9, 2
      %p47 = por %p45, %p46
      %p48 = scmp.ne.s32.totalorder %s40, %s43
      %p49 = scmp.eq.s32.totalorder %s9, 0
      %p50 = por %p48, %p49
      %p51 = scmp.ne.s32.totalorder %s40, %s43
      %p52 = scmp.eq.s32.totalorder %s14, 2
      %p53 = por %p51, %p52
      %p54 = scmp.ne.s32.totalorder %s43, %s44
      %p55 = scmp.eq.s32.totalorder %s14, 0
      %p56 = por %p54, %p55
      %p57 = scmp.ne.s32.totalorder %s43, %s44
      %p58 = scmp.eq.s32.totalorder %s15, 2
      %p59 = por %p57, %p58
      %p61 = scmp.ne.s32.totalorder %s44, %s60
      %p62 = scmp.eq.s32.totalorder %s15, 0
      %p63 = por %p61, %p62
      %s64 = ssub.s32 %s18, %s27
      %s65 = ssub.s32 %s17, %s31
      %s66 = sor.u32 %s64, %s65
      %p67 = scmp.eq.s32.totalorder %s66, 0
      %s69 = sadd.s32 %s68, 1
      %s70 = scalar_select %p67, %s68, %s69
      %p73 = pneg %p67
      %p74 = scmp.eq.s32.totalorder %s9, 2
      %p75 = por %p73, %p74
      %p76 = scmp.ne.s32.totalorder %s68, %s71
      %p77 = scmp.eq.s32.totalorder %s9, 0
      %p78 = por %p76, %p77
      %p79 = scmp.ne.s32.totalorder %s68, %s71
      %p80 = scmp.eq.s32.totalorder %s14, 2
      %p81 = por %p79, %p80
      %p82 = scmp.ne.s32.totalorder %s71, %s72
      %p83 = scmp.eq.s32.totalorder %s14, 0
      %p84 = por %p82, %p83
      %p85 = scmp.ne.s32.totalorder %s71, %s72
      %p86 = scmp.eq.s32.totalorder %s15, 2
      %p87 = por %p85, %p86
      %p89 = scmp.ne.s32.totalorder %s72, %s88
      %p90 = scmp.eq.s32.totalorder %s15, 0
      %p91 = por %p89, %p90
      %s92 = ssub.s32 %s17, %s31
      %p93 = scmp.eq.s32.totalorder %s92, 0
      %s95 = sadd.s32 %s94, 1
      %s96 = scalar_select %p93, %s94, %s95
      %p99 = pneg %p93
      %p100 = scmp.eq.s32.totalorder %s9, 2
      %p101 = por %p99, %p100
      %p102 = scmp.ne.s32.totalorder %s94, %s97
      %p103 = scmp.eq.s32.totalorder %s9, 0
      %p104 = por %p102, %p103
      %p105 = scmp.ne.s32.totalorder %s94, %s97
      %p106 = scmp.eq.s32.totalorder %s14, 2
      %p107 = por %p105, %p106
      %p108 = scmp.ne.s32.totalorder %s97, %s98
      %p109 = scmp.eq.s32.totalorder %s14, 0
      %p110 = por %p108, %p109
      %p111 = scmp.ne.s32.totalorder %s97, %s98
      %p112 = scmp.eq.s32.totalorder %s15, 2
      %p113 = por %p111, %p112
      %p115 = scmp.ne.s32.totalorder %s98, %s114
      %p116 = scmp.eq.s32.totalorder %s15, 0
      %p117 = por %p115, %p116
      %s118 = ssub.s32 %s16, %s35
      %s119 = ssub.s32 %s17, %s31
      %s120 = sor.u32 %s118, %s119
      %p121 = scmp.eq.s32.totalorder %s120, 0
      %s123 = sadd.s32 %s122, 1
      %s124 = scalar_select %p121, %s122, %s123
      %p127 = pneg %p121
      %p128 = scmp.eq.s32.totalorder %s9, 2
      %p129 = por %p127, %p128
      %p130 = scmp.ne.s32.totalorder %s122, %s125
      %p131 = scmp.eq.s32.totalorder %s9, 0
      %p132 = por %p130, %p131
      %p133 = scmp.ne.s32.totalorder %s122, %s125
      %p134 = scmp.eq.s32.totalorder %s14, 2
      %p135 = por %p133, %p134
      %p136 = scmp.ne.s32.totalorder %s125, %s126
      %p137 = scmp.eq.s32.totalorder %s14, 0
      %p138 = por %p136, %p137
      %p139 = scmp.ne.s32.totalorder %s125, %s126
      %p140 = scmp.eq.s32.totalorder %s15, 2
      %p141 = por %p139, %p140
      %p143 = scmp.ne.s32.totalorder %s126, %s142
      %p144 = scmp.eq.s32.totalorder %s15, 0
      %p145 = por %p143, %p144
      %p146 = scmp.le.s32.totalorder 1, %s9
      %p147 = scmp.lt.s32.totalorder %s9, 4
      %p148 = pnand %p146, %p147
      %p149 = pneg %p148
      // Predicated region
      $region9: #{emodel_bigru_forward.41} parent=5 // pred_check
        _
      $region10: #{emodel_bigru_forward.41} parent=5 // pred_check_branch
        %151 = sbr.rel (%p148) target = $region12
      $region11: #{emodel_bigru_forward.41} parent=5 // pred_region
        %s152 = ssub.s32 %s9, 1
        // Predicated region
        $region13: #{emodel_bigru_forward.41} parent=11 // pred_check
          %p153 = pneg %p56
        $region14: #{emodel_bigru_forward.41} parent=11 // pred_check_branch
          %155 = sbr.rel (%p153) target = $region16
        $region15: #{emodel_bigru_forward.41} parent=11 // pred_region
          %s156 = smul.u32 2, %s19
          %s157 = smul.u32 2, %s21
          %p158 = scmp.lt.s32.totalorder %s156, 1
          %s159 = scalar_select %p158, %s156, 1
          %p160 = scmp.lt.s32.totalorder %s157, 1
          %s161 = scalar_select %p160, %s157, 1
          %s162 = smul.addr %s159, 2
          %s163 = sadd.s32 %s161, %s162
          %s164 = smul.addr %s163, 8
          %s165 = scalar_lea.vmem %s0, %s164
          %s166 = smul.u32 2, %s19
          %s167 = smul.u32 2, %s21
        $region16: #{emodel_bigru_forward.41} parent=11 // pred_fallthru
          _
      $region12: #{emodel_bigru_forward.41} parent=5 // pred_fallthru
        _
      %p168 = scmp.lt.s32.totalorder %s9, 3
      // Predicated region
      $region17: #{emodel_bigru_forward.41} parent=5 // pred_check
        %p169 = pneg %p168
      $region18: #{emodel_bigru_forward.41} parent=5 // pred_check_branch
        %171 = sbr.rel (%p169) target = $region20
      $region19: #{emodel_bigru_forward.41} parent=5 // pred_region
        // Predicated region
        $region21: #{emodel_bigru_forward.41} parent=19 // pred_check
          %p172 = pneg %p78
        $region22: #{emodel_bigru_forward.41} parent=19 // pred_check_branch
          %174 = sbr.rel (%p172) target = $region24
        $region23: #{emodel_bigru_forward.41} parent=19 // pred_region
          %s175 = sand.u32 %s68, 1
          %s176 = sand.u32 %s68, 1
          %s177 = smul.addr %s176, 256
          %s178 = scalar_lea.vmem [#allocation3], %s177
          %s179 = smul.u32 32, %s18
          %s180 = smul.u32 2, %s17
          %s181 = smul.addr %s179, 6
          %s182 = sadd.s32 %s180, %s181
          %s183 = smul.addr %s182, 4
          %s184 = scalar_lea.vmem %s1, %s183
          // Predicated region
          $region25: #{emodel_bigru_forward.41} parent=23 // pred_check
            _
          $region26: #{emodel_bigru_forward.41} parent=23 // pred_check_branch
            %186 = sbr.rel (0) target = $region28
          $region27: #{emodel_bigru_forward.41} parent=23 // pred_region
            // Predicated region
            $region29: #{emodel_bigru_forward.41} parent=27 // pred_check
              _
            $region30: #{emodel_bigru_forward.41} parent=27 // pred_check_branch
              %188 = sbr.rel (0) target = $region32
            $region31: #{emodel_bigru_forward.41} parent=27 // pred_region
              // Predicated region
              $region44: #{emodel_bigru_forward.41} parent=31 // pred_check
                _
              $region45: #{emodel_bigru_forward.41} parent=31 // pred_check_branch
                %265 = sbr.rel (0) target = $region47
              $region46: #{emodel_bigru_forward.41} parent=31 // pred_region
                loop: start=0, step=1, limit=1
                $region48: #{emodel_bigru_forward.41} parent=46 // loop_pre_header
                  _
                $region49: #{emodel_bigru_forward.41} parent=46 // loop_header
                  %s267 = sphi 0, %s271
                  %p268 = scmp.ge.s32.totalorder %s267, 1
                  %s272 = sphi %s184, %s184
                  %s273 = sphi %s178, %s178
                $region50: #{emodel_bigru_forward.41} parent=46 // loop_header_branch
                  %270 = sbr.rel (%p268) target = $region54
                $region51: #{emodel_bigru_forward.41} parent=46 // loop_body
                  %v274 = vld [vmem:[%s272] sm:$0xff]
                  %275 = vst [vmem:[%s273] sm:$0xff] %v274
                  %v276 = vld [vmem:[%s272 + $0x18] sm:$0xff]
                  %277 = vst [vmem:[%s273 + $0x8] sm:$0xff] %v276
                  %v278 = vld [vmem:[%s272 + $0x30] sm:$0xff]
                  %279 = vst [vmem:[%s273 + $0x10] sm:$0xff] %v278
                  %v280 = vld [vmem:[%s272 + $0x48] sm:$0xff]
                  %281 = vst [vmem:[%s273 + $0x18] sm:$0xff] %v280
                  %v282 = vld [vmem:[%s272 + $0x60] sm:$0xff]
                  %283 = vst [vmem:[%s273 + $0x20] sm:$0xff] %v282
                  %v284 = vld [vmem:[%s272 + $0x78] sm:$0xff]
                  %285 = vst [vmem:[%s273 + $0x28] sm:$0xff] %v284
                  %v286 = vld [vmem:[%s272 + $0x90] sm:$0xff]
                  %287 = vst [vmem:[%s273 + $0x30] sm:$0xff] %v286
                  %v288 = vld [vmem:[%s272 + $0xa8] sm:$0xff]
                  %289 = vst [vmem:[%s273 + $0x38] sm:$0xff] %v288
                  %v290 = vld [vmem:[%s272 + $0xc0] sm:$0xff]
                  %291 = vst [vmem:[%s273 + $0x40] sm:$0xff] %v290
                  %v292 = vld [vmem:[%s272 + $0xd8] sm:$0xff]
                  %293 = vst [vmem:[%s273 + $0x48] sm:$0xff] %v292
                  %v294 = vld [vmem:[%s272 + $0xf0] sm:$0xff]
                  %295 = vst [vmem:[%s273 + $0x50] sm:$0xff] %v294
                  %v296 = vld [vmem:[%s272 + $0x108] sm:$0xff]
                  %297 = vst [vmem:[%s273 + $0x58] sm:$0xff] %v296
                  %v298 = vld [vmem:[%s272 + $0x120] sm:$0xff]
                  %299 = vst [vmem:[%s273 + $0x60] sm:$0xff] %v298
                  %v300 = vld [vmem:[%s272 + $0x138] sm:$0xff]
                  %301 = vst [vmem:[%s273 + $0x68] sm:$0xff] %v300
                  %v302 = vld [vmem:[%s272 + $0x150] sm:$0xff]
                  %303 = vst [vmem:[%s273 + $0x70] sm:$0xff] %v302
                  %v304 = vld [vmem:[%s272 + $0x168] sm:$0xff]
                  %305 = vst [vmem:[%s273 + $0x78] sm:$0xff] %v304
                  %v306 = vld [vmem:[%s272 + $0x180] sm:$0xff]
                  %307 = vst [vmem:[%s273 + $0x80] sm:$0xff] %v306
                  %v308 = vld [vmem:[%s272 + $0x198] sm:$0xff]
                  %309 = vst [vmem:[%s273 + $0x88] sm:$0xff] %v308
                  %v310 = vld [vmem:[%s272 + $0x1b0] sm:$0xff]
                  %311 = vst [vmem:[%s273 + $0x90] sm:$0xff] %v310
                  %v312 = vld [vmem:[%s272 + $0x1c8] sm:$0xff]
                  %313 = vst [vmem:[%s273 + $0x98] sm:$0xff] %v312
                  %v314 = vld [vmem:[%s272 + $0x1e0] sm:$0xff]
                  %315 = vst [vmem:[%s273 + $0xa0] sm:$0xff] %v314
                  %v316 = vld [vmem:[%s272 + $0x1f8] sm:$0xff]
                  %317 = vst [vmem:[%s273 + $0xa8] sm:$0xff] %v316
                  %v318 = vld [vmem:[%s272 + $0x210] sm:$0xff]
                  %319 = vst [vmem:[%s273 + $0xb0] sm:$0xff] %v318
                  %v320 = vld [vmem:[%s272 + $0x228] sm:$0xff]
                  %321 = vst [vmem:[%s273 + $0xb8] sm:$0xff] %v320
                  %v322 = vld [vmem:[%s272 + $0x240] sm:$0xff]
                  %323 = vst [vmem:[%s273 + $0xc0] sm:$0xff] %v322
                  %v324 = vld [vmem:[%s272 + $0x258] sm:$0xff]
                  %325 = vst [vmem:[%s273 + $0xc8] sm:$0xff] %v324
                  %v326 = vld [vmem:[%s272 + $0x270] sm:$0xff]
                  %327 = vst [vmem:[%s273 + $0xd0] sm:$0xff] %v326
                  %v328 = vld [vmem:[%s272 + $0x288] sm:$0xff]
                  %329 = vst [vmem:[%s273 + $0xd8] sm:$0xff] %v328
                  %v330 = vld [vmem:[%s272 + $0x2a0] sm:$0xff]
                  %331 = vst [vmem:[%s273 + $0xe0] sm:$0xff] %v330
                  %v332 = vld [vmem:[%s272 + $0x2b8] sm:$0xff]
                  %333 = vst [vmem:[%s273 + $0xe8] sm:$0xff] %v332
                  %v334 = vld [vmem:[%s272 + $0x2d0] sm:$0xff]
                  %335 = vst [vmem:[%s273 + $0xf0] sm:$0xff] %v334
                  %v336 = vld [vmem:[%s272 + $0x2e8] sm:$0xff]
                  %337 = vst [vmem:[%s273 + $0xf8] sm:$0xff] %v336
                $region52: #{emodel_bigru_forward.41} parent=46 // loop_footer
                  %s271 = sadd.s32 1, %s267
                $region53: #{emodel_bigru_forward.41} parent=46 // loop_footer_branch
                  %266 = sbr.rel target = $region49
                $region54: #{emodel_bigru_forward.41} parent=46 // loop_exit
                  _
              $region47: #{emodel_bigru_forward.41} parent=31 // pred_fallthru
                _
              // Predicated region
              $region55: #{emodel_bigru_forward.41} parent=31 // pred_check
                _
              $region56: #{emodel_bigru_forward.41} parent=31 // pred_check_branch
                %339 = sbr.rel target = $region58
              $region57: #{emodel_bigru_forward.41} parent=31 // pred_region
                _
              $region58: #{emodel_bigru_forward.41} parent=31 // pred_fallthru
                _
            $region32: #{emodel_bigru_forward.41} parent=27 // pred_fallthru
              _
            // Predicated region
            $region33: #{emodel_bigru_forward.41} parent=27 // pred_check
              _
            $region34: #{emodel_bigru_forward.41} parent=27 // pred_check_branch
              %190 = sbr.rel target = $region36
            $region35: #{emodel_bigru_forward.41} parent=27 // pred_region
              loop: start=0, step=1, limit=1
              $region37: #{emodel_bigru_forward.41} parent=35 // loop_pre_header
                _
              $region38: #{emodel_bigru_forward.41} parent=35 // loop_header
                %s193 = sphi 0, %s197
                %p194 = scmp.ge.s32.totalorder %s193, 1
                %s198 = sphi %s184, %s184
                %s199 = sphi %s178, %s178
              $region39: #{emodel_bigru_forward.41} parent=35 // loop_header_branch
                %196 = sbr.rel (%p194) target = $region43
              $region40: #{emodel_bigru_forward.41} parent=35 // loop_body
                %v200 = vld [vmem:[%s198] sm:$0xff]
                %201 = vst [vmem:[%s199] sm:$0xff] %v200
                %v202 = vld [vmem:[%s198 + $0x18] sm:$0xff]
                %203 = vst [vmem:[%s199 + $0x8] sm:$0xff] %v202
                %v204 = vld [vmem:[%s198 + $0x30] sm:$0xff]
                %205 = vst [vmem:[%s199 + $0x10] sm:$0xff] %v204
                %v206 = vld [vmem:[%s198 + $0x48] sm:$0xff]
                %207 = vst [vmem:[%s199 + $0x18] sm:$0xff] %v206
                %v208 = vld [vmem:[%s198 + $0x60] sm:$0xff]
                %209 = vst [vmem:[%s199 + $0x20] sm:$0xff] %v208
                %v210 = vld [vmem:[%s198 + $0x78] sm:$0xff]
                %211 = vst [vmem:[%s199 + $0x28] sm:$0xff] %v210
                %v212 = vld [vmem:[%s198 + $0x90] sm:$0xff]
                %213 = vst [vmem:[%s199 + $0x30] sm:$0xff] %v212
                %v214 = vld [vmem:[%s198 + $0xa8] sm:$0xff]
                %215 = vst [vmem:[%s199 + $0x38] sm:$0xff] %v214
                %v216 = vld [vmem:[%s198 + $0xc0] sm:$0xff]
                %217 = vst [vmem:[%s199 + $0x40] sm:$0xff] %v216
                %v218 = vld [vmem:[%s198 + $0xd8] sm:$0xff]
                %219 = vst [vmem:[%s199 + $0x48] sm:$0xff] %v218
                %v220 = vld [vmem:[%s198 + $0xf0] sm:$0xff]
                %221 = vst [vmem:[%s199 + $0x50] sm:$0xff] %v220
                %v222 = vld [vmem:[%s198 + $0x108] sm:$0xff]
                %223 = vst [vmem:[%s199 + $0x58] sm:$0xff] %v222
                %v224 = vld [vmem:[%s198 + $0x120] sm:$0xff]
                %225 = vst [vmem:[%s199 + $0x60] sm:$0xff] %v224
                %v226 = vld [vmem:[%s198 + $0x138] sm:$0xff]
                %227 = vst [vmem:[%s199 + $0x68] sm:$0xff] %v226
                %v228 = vld [vmem:[%s198 + $0x150] sm:$0xff]
                %229 = vst [vmem:[%s199 + $0x70] sm:$0xff] %v228
                %v230 = vld [vmem:[%s198 + $0x168] sm:$0xff]
                %231 = vst [vmem:[%s199 + $0x78] sm:$0xff] %v230
                %v232 = vld [vmem:[%s198 + $0x180] sm:$0xff]
                %233 = vst [vmem:[%s199 + $0x80] sm:$0xff] %v232
                %v234 = vld [vmem:[%s198 + $0x198] sm:$0xff]
                %235 = vst [vmem:[%s199 + $0x88] sm:$0xff] %v234
                %v236 = vld [vmem:[%s198 + $0x1b0] sm:$0xff]
                %237 = vst [vmem:[%s199 + $0x90] sm:$0xff] %v236
                %v238 = vld [vmem:[%s198 + $0x1c8] sm:$0xff]
                %239 = vst [vmem:[%s199 + $0x98] sm:$0xff] %v238
                %v240 = vld [vmem:[%s198 + $0x1e0] sm:$0xff]
                %241 = vst [vmem:[%s199 + $0xa0] sm:$0xff] %v240
                %v242 = vld [vmem:[%s198 + $0x1f8] sm:$0xff]
                %243 = vst [vmem:[%s199 + $0xa8] sm:$0xff] %v242
                %v244 = vld [vmem:[%s198 + $0x210] sm:$0xff]
                %245 = vst [vmem:[%s199 + $0xb0] sm:$0xff] %v244
                %v246 = vld [vmem:[%s198 + $0x228] sm:$0xff]
                %247 = vst [vmem:[%s199 + $0xb8] sm:$0xff] %v246
                %v248 = vld [vmem:[%s198 + $0x240] sm:$0xff]
                %249 = vst [vmem:[%s199 + $0xc0] sm:$0xff] %v248
                %v250 = vld [vmem:[%s198 + $0x258] sm:$0xff]
                %251 = vst [vmem:[%s199 + $0xc8] sm:$0xff] %v250
                %v252 = vld [vmem:[%s198 + $0x270] sm:$0xff]
                %253 = vst [vmem:[%s199 + $0xd0] sm:$0xff] %v252
                %v254 = vld [vmem:[%s198 + $0x288] sm:$0xff]
                %255 = vst [vmem:[%s199 + $0xd8] sm:$0xff] %v254
                %v256 = vld [vmem:[%s198 + $0x2a0] sm:$0xff]
                %257 = vst [vmem:[%s199 + $0xe0] sm:$0xff] %v256
                %v258 = vld [vmem:[%s198 + $0x2b8] sm:$0xff]
                %259 = vst [vmem:[%s199 + $0xe8] sm:$0xff] %v258
                %v260 = vld [vmem:[%s198 + $0x2d0] sm:$0xff]
                %261 = vst [vmem:[%s199 + $0xf0] sm:$0xff] %v260
                %v262 = vld [vmem:[%s198 + $0x2e8] sm:$0xff]
                %263 = vst [vmem:[%s199 + $0xf8] sm:$0xff] %v262
              $region41: #{emodel_bigru_forward.41} parent=35 // loop_footer
                %s197 = sadd.s32 1, %s193
              $region42: #{emodel_bigru_forward.41} parent=35 // loop_footer_branch
                %192 = sbr.rel target = $region38
              $region43: #{emodel_bigru_forward.41} parent=35 // loop_exit
                _
            $region36: #{emodel_bigru_forward.41} parent=27 // pred_fallthru
              _
          $region28: #{emodel_bigru_forward.41} parent=23 // pred_fallthru
            _
          %340 = vnop
        $region24: #{emodel_bigru_forward.41} parent=19 // pred_fallthru
          _
        // Predicated region
        $region59: #{emodel_bigru_forward.41} parent=19 // pred_check
          %p341 = pneg %p104
        $region60: #{emodel_bigru_forward.41} parent=19 // pred_check_branch
          %343 = sbr.rel (%p341) target = $region62
        $region61: #{emodel_bigru_forward.41} parent=19 // pred_region
          %s344 = smul.u32 2, %s17
          %p345 = scmp.lt.s32.totalorder %s344, 5
          %s346 = scalar_select %p345, %s344, 5
          %s347 = scalar_lea.vmem %s2, %s346
          %s348 = smul.u32 2, %s17
        $region62: #{emodel_bigru_forward.41} parent=19 // pred_fallthru
          _
      $region20: #{emodel_bigru_forward.41} parent=5 // pred_fallthru
        _
      %p349 = scmp.le.s32.totalorder 1, %s9
      %p350 = scmp.lt.s32.totalorder %s9, 4
      %p351 = pnand %p349, %p350
      %p352 = pneg %p351
      // Predicated region
      $region63: #{emodel_bigru_forward.41} parent=5 // pred_check
        _
      $region64: #{emodel_bigru_forward.41} parent=5 // pred_check_branch
        %354 = sbr.rel (%p351) target = $region66
      $region65: #{emodel_bigru_forward.41} parent=5 // pred_region
        %s355 = ssub.s32 %s9, 1
        %s356 = sand.u32 %s71, 1
        %s357 = sand.u32 %s71, 1
        %s358 = smul.addr %s357, 256
        %s359 = scalar_lea.vmem [#allocation3], %s358
        // Predicated region
        $region67: #{emodel_bigru_forward.41} parent=65 // pred_check
          %p360 = pneg %p84
        $region68: #{emodel_bigru_forward.41} parent=65 // pred_check_branch
          %362 = sbr.rel (%p360) target = $region70
        $region69: #{emodel_bigru_forward.41} parent=65 // pred_region
          _
        $region70: #{emodel_bigru_forward.41} parent=65 // pred_fallthru
          _
        %s363 = smul.u32 2, %s19
        %s364 = smul.u32 2, %s21
        %p365 = scmp.lt.s32.totalorder %s363, 1
        %s366 = scalar_select %p365, %s363, 1
        %p367 = scmp.lt.s32.totalorder %s364, 1
        %s368 = scalar_select %p367, %s364, 1
        %s369 = smul.addr %s366, 2
        %s370 = sadd.s32 %s368, %s369
        %s371 = smul.addr %s370, 8
        %s372 = scalar_lea.vmem %s0, %s371
        %p373 = pneg %p56
        %p374 = pneg %p53
        %s375 = sand.u32 %s71, 1
        %s376 = sand.u32 %s71, 1
        %s377 = smul.addr %s376, 256
        %s378 = scalar_lea.vmem [#allocation3], %s377
        %p379 = pneg %p84
        %p380 = pneg %p81
        %s381 = smul.u32 2, %s20
        %p382 = scmp.lt.s32.totalorder %s381, 5
        %s383 = scalar_select %p382, %s381, 5
        %s384 = scalar_lea.vmem %s2, %s383
        %p385 = pneg %p110
        %p386 = pneg %p107
        %p387 = pneg %p138
        %p388 = pneg %p135
        %s389 = sand.u32 %s125, 1
        %s390 = sand.u32 %s125, 1
        %s391 = smul.addr %s390, 32
        %s392 = scalar_lea.vmem [#allocation4], %s391
        %s393 = smul.u32 2, %s19
        %s394 = smul.u32 2, %s21
        %p395 = scmp.lt.s32.totalorder %s393, 1
        %s396 = scalar_select %p395, %s393, 1
        %p397 = scmp.lt.s32.totalorder %s394, 1
        %s398 = scalar_select %p397, %s394, 1
        %s399 = smul.addr %s396, 2
        %s400 = sadd.s32 %s398, %s399
        %s401 = smul.addr %s400, 8
        %s402 = scalar_lea.vmem %s0, %s401
        %s403 = smul.u32 2, %s19
        %s404 = smul.u32 2, %s21
        %s405 = smul.u32 32, %s21
        %s406 = smul.u32 2, %s20
        %s407 = smul.u32 2, %s20
        %p408 = scmp.lt.s32.totalorder %s407, 5
        %s409 = scalar_select %p408, %s407, 5
        %s410 = scalar_lea.vmem %s2, %s409
        %s411 = smul.u32 2, %s20
        %s412 = smul.u32 2, %s19
        %s413 = smul.u32 2, %s20
        %p414 = scmp.eq.s32.totalorder %s21, 0
        // Predicated region
        $region71: #{emodel_bigru_forward.41} parent=65 // pred_check
          %p415 = pneg %p414
        $region72: #{emodel_bigru_forward.41} parent=65 // pred_check_branch
          %417 = sbr.rel (%p415) target = $region74
        $region73: #{emodel_bigru_forward.41} parent=65 // pred_region
          %418 = vst [vmem:[#allocation2] sm:$0xff] 0.0
          %419 = vst [vmem:[#allocation2 + $0x8] sm:$0xff] 0.0
          %420 = vst [vmem:[#allocation2 + $0x10] sm:$0xff] 0.0
          %421 = vst [vmem:[#allocation2 + $0x18] sm:$0xff] 0.0
        $region74: #{emodel_bigru_forward.41} parent=65 // pred_fallthru
          _
        %v422 = vld [vmem:[#allocation2] sm:$0xff]
        %v423 = vld [vmem:[#allocation2 + $0x8] sm:$0xff]
        %v424 = vld [vmem:[#allocation2 + $0x10] sm:$0xff]
        %v425 = vld [vmem:[#allocation2 + $0x18] sm:$0xff]
        %v426 = vld [vmem:[%s402] sm:$0xff]
        %v427 = vld [vmem:[%s402 + $0x8] sm:$0xff]
        %v428 = vld [vmem:[%s402 + $0x10] sm:$0xff]
        %v429 = vld [vmem:[%s402 + $0x18] sm:$0xff]
        %v430 = vpack.c.bf16 %v428, %v426
        %v431 = vpack.c.bf16 %v429, %v427
        %v432 = vld [vmem:[%s359] sm:$0xff]
        %v433 = vld [vmem:[%s359 + $0x8] sm:$0xff]
        %v434 = vld [vmem:[%s359 + $0x10] sm:$0xff]
        %v435 = vld [vmem:[%s359 + $0x18] sm:$0xff]
        %v436 = vld [vmem:[%s359 + $0x20] sm:$0xff]
        %v437 = vld [vmem:[%s359 + $0x28] sm:$0xff]
        %v438 = vld [vmem:[%s359 + $0x30] sm:$0xff]
        %v439 = vld [vmem:[%s359 + $0x38] sm:$0xff]
        %v440 = vld [vmem:[%s359 + $0x40] sm:$0xff]
        %v441 = vld [vmem:[%s359 + $0x48] sm:$0xff]
        %v442 = vld [vmem:[%s359 + $0x50] sm:$0xff]
        %v443 = vld [vmem:[%s359 + $0x58] sm:$0xff]
        %v444 = vld [vmem:[%s359 + $0x60] sm:$0xff]
        %v445 = vld [vmem:[%s359 + $0x68] sm:$0xff]
        %v446 = vld [vmem:[%s359 + $0x70] sm:$0xff]
        %v447 = vld [vmem:[%s359 + $0x78] sm:$0xff]
        %v448 = vld [vmem:[%s359 + $0x80] sm:$0xff]
        %v449 = vld [vmem:[%s359 + $0x88] sm:$0xff]
        %v450 = vld [vmem:[%s359 + $0x90] sm:$0xff]
        %v451 = vld [vmem:[%s359 + $0x98] sm:$0xff]
        %v452 = vld [vmem:[%s359 + $0xa0] sm:$0xff]
        %v453 = vld [vmem:[%s359 + $0xa8] sm:$0xff]
        %v454 = vld [vmem:[%s359 + $0xb0] sm:$0xff]
        %v455 = vld [vmem:[%s359 + $0xb8] sm:$0xff]
        %v456 = vld [vmem:[%s359 + $0xc0] sm:$0xff]
        %v457 = vld [vmem:[%s359 + $0xc8] sm:$0xff]
        %v458 = vld [vmem:[%s359 + $0xd0] sm:$0xff]
        %v459 = vld [vmem:[%s359 + $0xd8] sm:$0xff]
        %v460 = vld [vmem:[%s359 + $0xe0] sm:$0xff]
        %v461 = vld [vmem:[%s359 + $0xe8] sm:$0xff]
        %v462 = vld [vmem:[%s359 + $0xf0] sm:$0xff]
        %v463 = vld [vmem:[%s359 + $0xf8] sm:$0xff]
        %v496 = vunpack.c.l.b16 %v432
        %v497 = vunpack.c.h.b16 %v432
        %v498 = vunpack.c.l.b16 %v433
        %v499 = vunpack.c.h.b16 %v433
        %v500 = vunpack.c.l.b16 %v434
        %v501 = vunpack.c.h.b16 %v434
        %v502 = vunpack.c.l.b16 %v435
        %v503 = vunpack.c.h.b16 %v435
        %v504 = vunpack.c.l.b16 %v436
        %v505 = vunpack.c.h.b16 %v436
        %v506 = vunpack.c.l.b16 %v437
        %v507 = vunpack.c.h.b16 %v437
        %v508 = vunpack.c.l.b16 %v438
        %v509 = vunpack.c.h.b16 %v438
        %v510 = vunpack.c.l.b16 %v439
        %v511 = vunpack.c.h.b16 %v439
        %v512 = vunpack.c.l.b16 %v440
        %v513 = vunpack.c.h.b16 %v440
        %v514 = vunpack.c.l.b16 %v441
        %v515 = vunpack.c.h.b16 %v441
        %v516 = vunpack.c.l.b16 %v442
        %v517 = vunpack.c.h.b16 %v442
        %v518 = vunpack.c.l.b16 %v443
        %v519 = vunpack.c.h.b16 %v443
        %v520 = vunpack.c.l.b16 %v444
        %v521 = vunpack.c.h.b16 %v444
        %v522 = vunpack.c.l.b16 %v445
        %v523 = vunpack.c.h.b16 %v445
        %v524 = vunpack.c.l.b16 %v446
        %v525 = vunpack.c.h.b16 %v446
        %v526 = vunpack.c.l.b16 %v447
        %v527 = vunpack.c.h.b16 %v447
        %v528 = vunpack.c.l.b16 %v448
        %v529 = vunpack.c.h.b16 %v448
        %v530 = vunpack.c.l.b16 %v449
        %v531 = vunpack.c.h.b16 %v449
        %v532 = vunpack.c.l.b16 %v450
        %v533 = vunpack.c.h.b16 %v450
        %v534 = vunpack.c.l.b16 %v451
        %v535 = vunpack.c.h.b16 %v451
        %v536 = vunpack.c.l.b16 %v452
        %v537 = vunpack.c.h.b16 %v452
        %v538 = vunpack.c.l.b16 %v453
        %v539 = vunpack.c.h.b16 %v453
        %v540 = vunpack.c.l.b16 %v454
        %v541 = vunpack.c.h.b16 %v454
        %v542 = vunpack.c.l.b16 %v455
        %v543 = vunpack.c.h.b16 %v455
        %v544 = vunpack.c.l.b16 %v456
        %v545 = vunpack.c.h.b16 %v456
        %v546 = vunpack.c.l.b16 %v457
        %v547 = vunpack.c.h.b16 %v457
        %v548 = vunpack.c.l.b16 %v458
        %v549 = vunpack.c.h.b16 %v458
        %v550 = vunpack.c.l.b16 %v459
        %v551 = vunpack.c.h.b16 %v459
        %v552 = vunpack.c.l.b16 %v460
        %v553 = vunpack.c.h.b16 %v460
        %v554 = vunpack.c.l.b16 %v461
        %v555 = vunpack.c.h.b16 %v461
        %v556 = vunpack.c.l.b16 %v462
        %v557 = vunpack.c.h.b16 %v462
        %v558 = vunpack.c.l.b16 %v463
        %v559 = vunpack.c.h.b16 %v463
        %v560 = vpack.c.b16 %v498, %v496
        %v561 = vpack.c.b16 %v499, %v497
        %v562 = vpack.c.b16 %v502, %v500
        %v563 = vpack.c.b16 %v503, %v501
        %v564 = vpack.c.b16 %v506, %v504
        %v565 = vpack.c.b16 %v507, %v505
        %v566 = vpack.c.b16 %v510, %v508
        %v567 = vpack.c.b16 %v511, %v509
        %v568 = vpack.c.b16 %v514, %v512
        %v569 = vpack.c.b16 %v515, %v513
        %v570 = vpack.c.b16 %v518, %v516
        %v571 = vpack.c.b16 %v519, %v517
        %v572 = vpack.c.b16 %v522, %v520
        %v573 = vpack.c.b16 %v523, %v521
        %v574 = vpack.c.b16 %v526, %v524
        %v575 = vpack.c.b16 %v527, %v525
        %v576 = vpack.c.b16 %v530, %v528
        %v577 = vpack.c.b16 %v531, %v529
        %v578 = vpack.c.b16 %v534, %v532
        %v579 = vpack.c.b16 %v535, %v533
        %v580 = vpack.c.b16 %v538, %v536
        %v581 = vpack.c.b16 %v539, %v537
        %v582 = vpack.c.b16 %v542, %v540
        %v583 = vpack.c.b16 %v543, %v541
        %v584 = vpack.c.b16 %v546, %v544
        %v585 = vpack.c.b16 %v547, %v545
        %v586 = vpack.c.b16 %v550, %v548
        %v587 = vpack.c.b16 %v551, %v549
        %v588 = vpack.c.b16 %v554, %v552
        %v589 = vpack.c.b16 %v555, %v553
        %v590 = vpack.c.b16 %v558, %v556
        %v591 = vpack.c.b16 %v559, %v557
        %624 = vmatprep.subr.bf16.mxu0 %v561
        %625 = vmatpush1.bf16.msra.mxu0 %v560
        %626 = vmatprep.subr.bf16.mxu0 %v563
        %627 = vmatpush1.bf16.msra.mxu0 %v562
        %628 = vmatprep.subr.bf16.mxu0 %v565
        %629 = vmatpush1.bf16.msra.mxu0 %v564
        %630 = vmatprep.subr.bf16.mxu0 %v567
        %631 = vmatpush1.bf16.msra.mxu0 %v566
        %632 = vmatprep.subr.bf16.mxu0 %v569
        %633 = vmatpush1.bf16.msra.mxu0 %v568
        %634 = vmatprep.subr.bf16.mxu0 %v571
        %635 = vmatpush1.bf16.msra.mxu0 %v570
        %636 = vmatprep.subr.bf16.mxu0 %v573
        %637 = vmatpush1.bf16.msra.mxu0 %v572
        %638 = vmatprep.subr.bf16.mxu0 %v575
        %639 = vmatpush1.bf16.msra.mxu0 %v574
        %640 = vmatprep.subr.bf16.mxu0 %v577
        %641 = vmatpush1.bf16.msra.mxu0 %v576
        %642 = vmatprep.subr.bf16.mxu0 %v579
        %643 = vmatpush1.bf16.msra.mxu0 %v578
        %644 = vmatprep.subr.bf16.mxu0 %v581
        %645 = vmatpush1.bf16.msra.mxu0 %v580
        %646 = vmatprep.subr.bf16.mxu0 %v583
        %647 = vmatpush1.bf16.msra.mxu0 %v582
        %648 = vmatprep.subr.bf16.mxu0 %v585
        %649 = vmatpush1.bf16.msra.mxu0 %v584
        %650 = vmatprep.subr.bf16.mxu0 %v587
        %651 = vmatpush1.bf16.msra.mxu0 %v586
        %652 = vmatprep.subr.bf16.mxu0 %v589
        %653 = vmatpush1.bf16.msra.mxu0 %v588
        %654 = vmatprep.subr.bf16.mxu0 %v591
        %655 = vmatpush1.bf16.msra.mxu0 %v590
        %656 = vmatprep.mubr.bf16.mxu0 %v431
        %657 = vmatmul.mubr.bf16.gmra.mrb[0].mxu0 %v430
        %v658 = vpop.f32.mrb[0].mxu0
        %v659 = vadd.f32 0.0, %v658
        %v660 = vpop.f32.mrb[0].mxu0
        %v661 = vadd.f32 0.0, %v660
        %v662 = vpop.f32.mrb[0].mxu0
        %v663 = vadd.f32 0.0, %v662
        %v664 = vpop.f32.mrb[0].mxu0
        %v665 = vadd.f32 0.0, %v664
        %666 = vdwg.mxu0
        %v667 = vadd.f32 %v422, %v659
        %v668 = vadd.f32 %v423, %v661
        %v669 = vadd.f32 %v424, %v663
        %v670 = vadd.f32 %v425, %v665
        %671 = vst [vmem:[#allocation2] sm:$0xff] %v667
        %672 = vst [vmem:[#allocation2 + $0x8] sm:$0xff] %v668
        %673 = vst [vmem:[#allocation2 + $0x10] sm:$0xff] %v669
        %674 = vst [vmem:[#allocation2 + $0x18] sm:$0xff] %v670
        // Predicated region
        $region75: #{emodel_bigru_forward.41} parent=65 // pred_check
          %p675 = pneg %p414
        $region76: #{emodel_bigru_forward.41} parent=65 // pred_check_branch
          %677 = sbr.rel (%p675) target = $region78
        $region77: #{emodel_bigru_forward.41} parent=65 // pred_region
          %v678 = vld [vmem:[#allocation2] sm:$0xff]
          %v679 = vld [vmem:[#allocation2 + $0x8] sm:$0xff]
          %v680 = vld [vmem:[#allocation2 + $0x10] sm:$0xff]
          %v681 = vld [vmem:[#allocation2 + $0x18] sm:$0xff]
          %v682 = vld [vmem:[%s410] sm:$0x3]
          %v684 = vlaneseq
          %v685 = vshrl.u32 %v684, 7
          %v686 = vsub.s32 0, %v685
          %v687 = vrot.slane %v682, %v686
          %v688 = vlaneseq
          %v689 = vshrl.u32 %v688, 7
          %v690 = vsub.s32 1, %v689
          %v691 = vrot.slane %v682, %v690
          %v694 = vadd.f32 %v678, %v687
          %v695 = vadd.f32 %v679, %v691
          %v696 = vadd.f32 %v680, %v687
          %v697 = vadd.f32 %v681, %v691
          %698 = vst [vmem:[%s392] sm:$0xff] %v694
          %699 = vst [vmem:[%s392 + $0x8] sm:$0xff] %v695
          %700 = vst [vmem:[%s392 + $0x10] sm:$0xff] %v696
          %701 = vst [vmem:[%s392 + $0x18] sm:$0xff] %v697
        $region78: #{emodel_bigru_forward.41} parent=65 // pred_fallthru
          _
        %s702 = sand.u32 %s125, 1
        %s703 = sand.u32 %s125, 1
        %s704 = smul.addr %s703, 32
        %s705 = scalar_lea.vmem [#allocation4], %s704
        // Predicated region
        $region79: #{emodel_bigru_forward.41} parent=65 // pred_check
          %p706 = pneg %p135
        $region80: #{emodel_bigru_forward.41} parent=65 // pred_check_branch
          %708 = sbr.rel (%p706) target = $region82
        $region81: #{emodel_bigru_forward.41} parent=65 // pred_region
          %s709 = smul.u32 2, %s19
          %s710 = smul.u32 2, %s20
          %s711 = smul.addr %s709, 6
          %s712 = sadd.s32 %s710, %s711
          %s713 = smul.addr %s712, 8
          %s714 = scalar_lea.vmem %s3, %s713
          // Predicated region
          $region83: #{emodel_bigru_forward.41} parent=81 // pred_check
            _
          $region84: #{emodel_bigru_forward.41} parent=81 // pred_check_branch
            %716 = sbr.rel (0) target = $region86
          $region85: #{emodel_bigru_forward.41} parent=81 // pred_region
            // Predicated region
            $region87: #{emodel_bigru_forward.41} parent=85 // pred_check
              _
            $region88: #{emodel_bigru_forward.41} parent=85 // pred_check_branch
              %718 = sbr.rel (0) target = $region90
            $region89: #{emodel_bigru_forward.41} parent=85 // pred_region
              loop: start=0, step=1, limit=1
              $region91: #{emodel_bigru_forward.41} parent=89 // loop_pre_header
                _
              $region92: #{emodel_bigru_forward.41} parent=89 // loop_header
                %s720 = sphi 0, %s724
                %p721 = scmp.ge.s32.totalorder %s720, 1
                %s725 = sphi %s705, %s705
                %s726 = sphi %s714, %s714
              $region93: #{emodel_bigru_forward.41} parent=89 // loop_header_branch
                %723 = sbr.rel (%p721) target = $region97
              $region94: #{emodel_bigru_forward.41} parent=89 // loop_body
                %v727 = vld [vmem:[%s725] sm:$0xff]
                %728 = vst [vmem:[%s726] sm:$0xff] %v727
                %v729 = vld [vmem:[%s725 + $0x8] sm:$0xff]
                %730 = vst [vmem:[%s726 + $0x8] sm:$0xff] %v729
                %v731 = vld [vmem:[%s725 + $0x10] sm:$0xff]
                %732 = vst [vmem:[%s726 + $0x30] sm:$0xff] %v731
                %v733 = vld [vmem:[%s725 + $0x18] sm:$0xff]
                %734 = vst [vmem:[%s726 + $0x38] sm:$0xff] %v733
              $region95: #{emodel_bigru_forward.41} parent=89 // loop_footer
                %s724 = sadd.s32 1, %s720
              $region96: #{emodel_bigru_forward.41} parent=89 // loop_footer_branch
                %719 = sbr.rel target = $region92
              $region97: #{emodel_bigru_forward.41} parent=89 // loop_exit
                _
            $region90: #{emodel_bigru_forward.41} parent=85 // pred_fallthru
              _
            // Predicated region
            $region98: #{emodel_bigru_forward.41} parent=85 // pred_check
              _
            $region99: #{emodel_bigru_forward.41} parent=85 // pred_check_branch
              %736 = sbr.rel target = $region101
            $region100: #{emodel_bigru_forward.41} parent=85 // pred_region
              _
            $region101: #{emodel_bigru_forward.41} parent=85 // pred_fallthru
              _
          $region86: #{emodel_bigru_forward.41} parent=81 // pred_fallthru
            _
          %737 = vnop
        $region82: #{emodel_bigru_forward.41} parent=65 // pred_fallthru
          _
      $region66: #{emodel_bigru_forward.41} parent=5 // pred_fallthru
        _
      %p738 = scmp.le.s32.totalorder 2, %s9
      // Predicated region
      $region102: #{emodel_bigru_forward.41} parent=5 // pred_check
        %p739 = pneg %p738
      $region103: #{emodel_bigru_forward.41} parent=5 // pred_check_branch
        %741 = sbr.rel (%p739) target = $region105
      $region104: #{emodel_bigru_forward.41} parent=5 // pred_region
        %s742 = ssub.s32 %s9, 2
        // Predicated region
        $region106: #{emodel_bigru_forward.41} parent=104 // pred_check
          %p743 = pneg %p141
        $region107: #{emodel_bigru_forward.41} parent=104 // pred_check_branch
          %745 = sbr.rel (%p743) target = $region109
        $region108: #{emodel_bigru_forward.41} parent=104 // pred_region
          %s746 = sand.u32 %s126, 1
          %s747 = sand.u32 %s126, 1
          %s748 = smul.addr %s747, 32
          %s749 = scalar_lea.vmem [#allocation4], %s748
        $region109: #{emodel_bigru_forward.41} parent=104 // pred_fallthru
          _
      $region105: #{emodel_bigru_forward.41} parent=5 // pred_fallthru
        _
    $region6: #{emodel_bigru_forward.41} parent=1 // loop_footer
      %s13 = sadd.s32 1, %s9
    $region7: #{emodel_bigru_forward.41} parent=1 // loop_footer_branch
      %8 = sbr.rel target = $region3
    $region8: #{emodel_bigru_forward.41} parent=1 // loop_exit
      _

// kernel: emodel_bigru_forward.45
$region0: #{emodel_bigru_forward.45}
  #allocation0 [shape = 'u32[]', space=smem, size = 0x4, offset = 0x4, fixed_abs, tag = 'smem constant byte address 0x4 - core index']
  #allocation1 [shape = 'u32[144,128]{1,0:T(1,128)}', space=vmem, size = 0x12000, scoped, tag = 'internal scratch']
  %s0 = inlined_call_operand.vmem [shape: f32[16,256], index: 0, kind: input, shape index: {}]
  %s1 = inlined_call_operand.vmem [shape: f32[16,256], index: 1, kind: input, shape index: {}]
  %s2 = inlined_call_operand.vmem [shape: f32[1,256], index: 2, kind: input, shape index: {}]
  %s3 = inlined_call_operand.vmem [shape: f32[1,256], index: 3, kind: input, shape index: {}]
  %s4 = inlined_call_operand.vmem [shape: f32[16,256], index: 4, kind: output, shape index: {}]
  %s5 = sld [smem:[#allocation0]]
  $region26: #{emodel_bigru_forward.45} parent=0
    _
  %s7 = ssub.s32 1, %s5
  %s8 = scalar_select 0, %s7, %s5
  // Predicated region
  $region2: #{emodel_bigru_forward.45} parent=0 // pred_check
    _
  $region3: #{emodel_bigru_forward.45} parent=0 // pred_check_branch
    %10 = sbr.rel (0) target = $region5
  $region4: #{emodel_bigru_forward.45} parent=0 // pred_region
    _
  $region5: #{emodel_bigru_forward.45} parent=0 // pred_fallthru
    _
  // Predicated region
  $region6: #{emodel_bigru_forward.45} parent=0 // pred_check
    _
  $region7: #{emodel_bigru_forward.45} parent=0 // pred_check_branch
    %12 = sbr.rel (0) target = $region9
  $region8: #{emodel_bigru_forward.45} parent=0 // pred_region
    _
  $region9: #{emodel_bigru_forward.45} parent=0 // pred_fallthru
    _
  // Predicated region
  $region10: #{emodel_bigru_forward.45} parent=0 // pred_check
    _
  $region11: #{emodel_bigru_forward.45} parent=0 // pred_check_branch
    %14 = sbr.rel (0) target = $region13
  $region12: #{emodel_bigru_forward.45} parent=0 // pred_region
    _
  $region13: #{emodel_bigru_forward.45} parent=0 // pred_fallthru
    _
  // Predicated region
  $region14: #{emodel_bigru_forward.45} parent=0 // pred_check
    _
  $region15: #{emodel_bigru_forward.45} parent=0 // pred_check_branch
    %16 = sbr.rel (0) target = $region17
  $region16: #{emodel_bigru_forward.45} parent=0 // pred_region
    _
  $region17: #{emodel_bigru_forward.45} parent=0 // pred_fallthru
    _
  %v17 = vld [vmem:[%s0] sm:$0xff]
  %v18 = vld [vmem:[%s0 + $0x8] sm:$0xff]
  %v19 = vld [vmem:[%s0 + $0x10] sm:$0xff]
  %v20 = vld [vmem:[%s0 + $0x18] sm:$0xff]
  %v21 = vld [vmem:[%s1] sm:$0xff]
  %v22 = vld [vmem:[%s1 + $0x8] sm:$0xff]
  %v23 = vld [vmem:[%s1 + $0x10] sm:$0xff]
  %v24 = vld [vmem:[%s1 + $0x18] sm:$0xff]
  %v25 = vadd.f32 %v17, %v21
  %v26 = vadd.f32 %v18, %v22
  %v27 = vadd.f32 %v19, %v23
  %v28 = vadd.f32 %v20, %v24
  %v29 = vadd.f32 %v25, %v26
  %30 = vadd.xlane.f32.xlu0 %v29
  %v31 = vpop.xlane.xlu0 %30
  %v32 = vadd.f32 %v27, %v28
  %33 = vadd.xlane.f32.xlu0 %v32
  %v34 = vpop.xlane.xlu0 %33
  %v35 = vrcp.pop 256.0
  %v36 = vmul.f32 %v31, %v35
  %v37 = vmul.f32 %v34, %v35
  %v38 = vsub.f32 %v25, %v36
  %v39 = vsub.f32 %v26, %v36
  %v40 = vsub.f32 %v27, %v37
  %v41 = vsub.f32 %v28, %v37
  %v42 = vmul.f32 %v38, %v38
  %v43 = vmul.f32 %v39, %v39
  %v44 = vmul.f32 %v40, %v40
  %v45 = vmul.f32 %v41, %v41
  %v46 = vadd.f32 %v42, %v43
  %47 = vadd.xlane.f32.xlu0 %v46
  %v48 = vpop.xlane.xlu0 %47
  %v49 = vadd.f32 %v44, %v45
  %50 = vadd.xlane.f32.xlu0 %v49
  %v51 = vpop.xlane.xlu0 %50
  %v52 = vmul.f32 %v48, %v35
  %v53 = vmul.f32 %v51, %v35
  %v54 = vadd.f32 %v52, 1e-05
  %v55 = vadd.f32 %v53, 1e-05
  %v56 = vrsqrt.pop %v54
  %v57 = vrsqrt.pop %v55
  %v58 = vmul.f32 %v38, %v56
  %v59 = vmul.f32 %v39, %v56
  %v60 = vmul.f32 %v40, %v57
  %v61 = vmul.f32 %v41, %v57
  %v62 = vld [vmem:[%s2] sm:$0x3]
  %v64 = vlaneseq
  %v65 = vshrl.u32 %v64, 7
  %v66 = vsub.s32 0, %v65
  %v67 = vrot.slane %v62, %v66
  %v68 = vlaneseq
  %v69 = vshrl.u32 %v68, 7
  %v70 = vsub.s32 1, %v69
  %v71 = vrot.slane %v62, %v70
  %v74 = vmul.f32 %v58, %v67
  %v75 = vmul.f32 %v59, %v71
  %v76 = vmul.f32 %v60, %v67
  %v77 = vmul.f32 %v61, %v71
  %v78 = vld [vmem:[%s3] sm:$0x3]
  %v80 = vlaneseq
  %v81 = vshrl.u32 %v80, 7
  %v82 = vsub.s32 0, %v81
  %v83 = vrot.slane %v78, %v82
  %v84 = vlaneseq
  %v85 = vshrl.u32 %v84, 7
  %v86 = vsub.s32 1, %v85
  %v87 = vrot.slane %v78, %v86
  %v90 = vadd.f32 %v74, %v83
  %v91 = vadd.f32 %v75, %v87
  %v92 = vadd.f32 %v76, %v83
  %v93 = vadd.f32 %v77, %v87
  %94 = vst [vmem:[%s4] sm:$0xff] %v90
  %95 = vst [vmem:[%s4 + $0x8] sm:$0xff] %v91
  %96 = vst [vmem:[%s4 + $0x10] sm:$0xff] %v92
  %97 = vst [vmem:[%s4 + $0x18] sm:$0xff] %v93
  // Predicated region
  $region18: #{emodel_bigru_forward.45} parent=0 // pred_check
    _
  $region19: #{emodel_bigru_forward.45} parent=0 // pred_check_branch
    %99 = sbr.rel (0) target = $region21
  $region20: #{emodel_bigru_forward.45} parent=0 // pred_region
    _
  $region21: #{emodel_bigru_forward.45} parent=0 // pred_fallthru
    _
  // Predicated region
  $region22: #{emodel_bigru_forward.45} parent=0 // pred_check
    _
  $region23: #{emodel_bigru_forward.45} parent=0 // pred_check_branch
    %101 = sbr.rel (0) target = $region25
  $region24: #{emodel_bigru_forward.45} parent=0 // pred_region
    _
  $region25: #{emodel_bigru_forward.45} parent=0 // pred_fallthru
    _

// kernel: emodel_bigru_forward.46
$region0: #{emodel_bigru_forward.46}
  #allocation0 [shape = 'u32[]', space=smem, size = 0x4, offset = 0x4, fixed_abs, tag = 'smem constant byte address 0x4 - core index']
  #allocation1 [shape = 'u32[144,128]{1,0:T(1,128)}', space=vmem, size = 0x12000, scoped, tag = 'internal scratch']
  #allocation2 [shape = 'f32[16,256]{1,0:T(8,128)}', space=vmem, size = 0x4000, scoped, tag = 'scratch operand']
  %s0 = inlined_call_operand.vmem [shape: f32[16,256], index: 0, kind: input, shape index: {}]
  %s1 = inlined_call_operand.vmem [shape: bf16[256,2048], index: 1, kind: input, shape index: {}]
  %s2 = inlined_call_operand.vmem [shape: f32[1,2048], index: 2, kind: input, shape index: {}]
  %s3 = inlined_call_operand.vmem [shape: f32[16,2048], index: 3, kind: output, shape index: {}]
  %s4 = sld [smem:[#allocation0]]
  $region110: #{emodel_bigru_forward.46} parent=0
    _
  %s6 = ssub.s32 1, %s4
  %s7 = scalar_select 0, %s6, %s4
  $region1: #{emodel_bigru_forward.46} parent=0
    #allocation3 [shape = 'u8[262144]{0}', space=vmem, size = 0x40000, scoped, tag = 'input window, operand 1']
    #allocation4 [shape = 'u8[32768]{0}', space=vmem, size = 0x8000, scoped, tag = 'output window, operand 0']
    loop: start=0, step=1, limit=10
    $region2: #{emodel_bigru_forward.46} parent=1 // loop_pre_header
      _
    $region3: #{emodel_bigru_forward.46} parent=1 // loop_header
      %s9 = sphi 0, %s13
      %p10 = scmp.ge.s32.totalorder %s9, 10
      %s16 = sphi 0, %s35
      %s17 = sphi 0, %s31
      %s18 = sphi 0, %s27
      %s19 = sphi 0, %s16
      %s20 = sphi 0, %s17
      %s21 = sphi 0, %s18
      %s22 = sphi 0, %s19
      %s23 = sphi 0, %s20
      %s24 = sphi 0, %s21
      %s40 = sphi 0, %s42
      %s43 = sphi 0, %s40
      %s44 = sphi 0, %s43
      %s60 = sphi 0, %s44
      %s68 = sphi 0, %s70
      %s71 = sphi 0, %s68
      %s72 = sphi 0, %s71
      %s88 = sphi 0, %s72
      %s94 = sphi 0, %s96
      %s97 = sphi 0, %s94
      %s98 = sphi 0, %s97
      %s114 = sphi 0, %s98
      %s122 = sphi 0, %s124
      %s125 = sphi 0, %s122
      %s126 = sphi 0, %s125
      %s142 = sphi 0, %s126
    $region4: #{emodel_bigru_forward.46} parent=1 // loop_header_branch
      %12 = sbr.rel (%p10) target = $region8
    $region5: #{emodel_bigru_forward.46} parent=1 // loop_body
      %s14 = ssub.s32 %s9, 1
      %s15 = ssub.s32 %s9, 2
      %s25 = sadd.s32 1, %s18
      %p26 = scmp.ge.s32.totalorder %s25, 1
      %s27 = scalar_select %p26, 0, %s25
      %s28 = sadd.s32 1, %s17
      %s29 = scalar_select %p26, %s28, %s17
      %p30 = scmp.ge.s32.totalorder %s29, 8
      %s31 = scalar_select %p30, 0, %s29
      %s32 = sadd.s32 1, %s16
      %s33 = scalar_select %p30, %s32, %s16
      %p34 = scmp.ge.s32.totalorder %s33, 1
      %s35 = scalar_select %p34, 0, %s33
      %s36 = ssub.s32 %s16, %s35
      %s37 = ssub.s32 %s18, %s27
      %s38 = sor.u32 %s36, %s37
      %p39 = scmp.eq.s32.totalorder %s38, 0
      %s41 = sadd.s32 %s40, 1
      %s42 = scalar_select %p39, %s40, %s41
      %p45 = pneg %p39
      %p46 = scmp.eq.s32.totalorder %s9, 7
      %p47 = por %p45, %p46
      %p48 = scmp.ne.s32.totalorder %s40, %s43
      %p49 = scmp.eq.s32.totalorder %s9, 0
      %p50 = por %p48, %p49
      %p51 = scmp.ne.s32.totalorder %s40, %s43
      %p52 = scmp.eq.s32.totalorder %s14, 7
      %p53 = por %p51, %p52
      %p54 = scmp.ne.s32.totalorder %s43, %s44
      %p55 = scmp.eq.s32.totalorder %s14, 0
      %p56 = por %p54, %p55
      %p57 = scmp.ne.s32.totalorder %s43, %s44
      %p58 = scmp.eq.s32.totalorder %s15, 7
      %p59 = por %p57, %p58
      %p61 = scmp.ne.s32.totalorder %s44, %s60
      %p62 = scmp.eq.s32.totalorder %s15, 0
      %p63 = por %p61, %p62
      %s64 = ssub.s32 %s18, %s27
      %s65 = ssub.s32 %s17, %s31
      %s66 = sor.u32 %s64, %s65
      %p67 = scmp.eq.s32.totalorder %s66, 0
      %s69 = sadd.s32 %s68, 1
      %s70 = scalar_select %p67, %s68, %s69
      %p73 = pneg %p67
      %p74 = scmp.eq.s32.totalorder %s9, 7
      %p75 = por %p73, %p74
      %p76 = scmp.ne.s32.totalorder %s68, %s71
      %p77 = scmp.eq.s32.totalorder %s9, 0
      %p78 = por %p76, %p77
      %p79 = scmp.ne.s32.totalorder %s68, %s71
      %p80 = scmp.eq.s32.totalorder %s14, 7
      %p81 = por %p79, %p80
      %p82 = scmp.ne.s32.totalorder %s71, %s72
      %p83 = scmp.eq.s32.totalorder %s14, 0
      %p84 = por %p82, %p83
      %p85 = scmp.ne.s32.totalorder %s71, %s72
      %p86 = scmp.eq.s32.totalorder %s15, 7
      %p87 = por %p85, %p86
      %p89 = scmp.ne.s32.totalorder %s72, %s88
      %p90 = scmp.eq.s32.totalorder %s15, 0
      %p91 = por %p89, %p90
      %s92 = ssub.s32 %s17, %s31
      %p93 = scmp.eq.s32.totalorder %s92, 0
      %s95 = sadd.s32 %s94, 1
      %s96 = scalar_select %p93, %s94, %s95
      %p99 = pneg %p93
      %p100 = scmp.eq.s32.totalorder %s9, 7
      %p101 = por %p99, %p100
      %p102 = scmp.ne.s32.totalorder %s94, %s97
      %p103 = scmp.eq.s32.totalorder %s9, 0
      %p104 = por %p102, %p103
      %p105 = scmp.ne.s32.totalorder %s94, %s97
      %p106 = scmp.eq.s32.totalorder %s14, 7
      %p107 = por %p105, %p106
      %p108 = scmp.ne.s32.totalorder %s97, %s98
      %p109 = scmp.eq.s32.totalorder %s14, 0
      %p110 = por %p108, %p109
      %p111 = scmp.ne.s32.totalorder %s97, %s98
      %p112 = scmp.eq.s32.totalorder %s15, 7
      %p113 = por %p111, %p112
      %p115 = scmp.ne.s32.totalorder %s98, %s114
      %p116 = scmp.eq.s32.totalorder %s15, 0
      %p117 = por %p115, %p116
      %s118 = ssub.s32 %s16, %s35
      %s119 = ssub.s32 %s17, %s31
      %s120 = sor.u32 %s118, %s119
      %p121 = scmp.eq.s32.totalorder %s120, 0
      %s123 = sadd.s32 %s122, 1
      %s124 = scalar_select %p121, %s122, %s123
      %p127 = pneg %p121
      %p128 = scmp.eq.s32.totalorder %s9, 7
      %p129 = por %p127, %p128
      %p130 = scmp.ne.s32.totalorder %s122, %s125
      %p131 = scmp.eq.s32.totalorder %s9, 0
      %p132 = por %p130, %p131
      %p133 = scmp.ne.s32.totalorder %s122, %s125
      %p134 = scmp.eq.s32.totalorder %s14, 7
      %p135 = por %p133, %p134
      %p136 = scmp.ne.s32.totalorder %s125, %s126
      %p137 = scmp.eq.s32.totalorder %s14, 0
      %p138 = por %p136, %p137
      %p139 = scmp.ne.s32.totalorder %s125, %s126
      %p140 = scmp.eq.s32.totalorder %s15, 7
      %p141 = por %p139, %p140
      %p143 = scmp.ne.s32.totalorder %s126, %s142
      %p144 = scmp.eq.s32.totalorder %s15, 0
      %p145 = por %p143, %p144
      %p146 = scmp.le.s32.totalorder 1, %s9
      %p147 = scmp.lt.s32.totalorder %s9, 9
      %p148 = pnand %p146, %p147
      %p149 = pneg %p148
      // Predicated region
      $region9: #{emodel_bigru_forward.46} parent=5 // pred_check
        _
      $region10: #{emodel_bigru_forward.46} parent=5 // pred_check_branch
        %151 = sbr.rel (%p148) target = $region12
      $region11: #{emodel_bigru_forward.46} parent=5 // pred_region
        %s152 = ssub.s32 %s9, 1
        // Predicated region
        $region13: #{emodel_bigru_forward.46} parent=11 // pred_check
          %p153 = pneg %p56
        $region14: #{emodel_bigru_forward.46} parent=11 // pred_check_branch
          %155 = sbr.rel (%p153) target = $region16
        $region15: #{emodel_bigru_forward.46} parent=11 // pred_region
          %s156 = smul.u32 2, %s19
          %s157 = smul.u32 2, %s21
          %p158 = scmp.lt.s32.totalorder %s156, 1
          %s159 = scalar_select %p158, %s156, 1
          %p160 = scmp.lt.s32.totalorder %s157, 1
          %s161 = scalar_select %p160, %s157, 1
          %s162 = smul.addr %s159, 2
          %s163 = sadd.s32 %s161, %s162
          %s164 = smul.addr %s163, 8
          %s165 = scalar_lea.vmem %s0, %s164
          %s166 = smul.u32 2, %s19
          %s167 = smul.u32 2, %s21
        $region16: #{emodel_bigru_forward.46} parent=11 // pred_fallthru
          _
      $region12: #{emodel_bigru_forward.46} parent=5 // pred_fallthru
        _
      %p168 = scmp.lt.s32.totalorder %s9, 8
      // Predicated region
      $region17: #{emodel_bigru_forward.46} parent=5 // pred_check
        %p169 = pneg %p168
      $region18: #{emodel_bigru_forward.46} parent=5 // pred_check_branch
        %171 = sbr.rel (%p169) target = $region20
      $region19: #{emodel_bigru_forward.46} parent=5 // pred_region
        // Predicated region
        $region21: #{emodel_bigru_forward.46} parent=19 // pred_check
          %p172 = pneg %p78
        $region22: #{emodel_bigru_forward.46} parent=19 // pred_check_branch
          %174 = sbr.rel (%p172) target = $region24
        $region23: #{emodel_bigru_forward.46} parent=19 // pred_region
          %s175 = sand.u32 %s68, 1
          %s176 = sand.u32 %s68, 1
          %s177 = smul.addr %s176, 256
          %s178 = scalar_lea.vmem [#allocation3], %s177
          %s179 = smul.u32 32, %s18
          %s180 = smul.u32 2, %s17
          %s181 = smul.addr %s179, 16
          %s182 = sadd.s32 %s180, %s181
          %s183 = smul.addr %s182, 4
          %s184 = scalar_lea.vmem %s1, %s183
          // Predicated region
          $region25: #{emodel_bigru_forward.46} parent=23 // pred_check
            _
          $region26: #{emodel_bigru_forward.46} parent=23 // pred_check_branch
            %186 = sbr.rel (0) target = $region28
          $region27: #{emodel_bigru_forward.46} parent=23 // pred_region
            // Predicated region
            $region29: #{emodel_bigru_forward.46} parent=27 // pred_check
              _
            $region30: #{emodel_bigru_forward.46} parent=27 // pred_check_branch
              %188 = sbr.rel (0) target = $region32
            $region31: #{emodel_bigru_forward.46} parent=27 // pred_region
              // Predicated region
              $region44: #{emodel_bigru_forward.46} parent=31 // pred_check
                _
              $region45: #{emodel_bigru_forward.46} parent=31 // pred_check_branch
                %265 = sbr.rel (0) target = $region47
              $region46: #{emodel_bigru_forward.46} parent=31 // pred_region
                loop: start=0, step=1, limit=1
                $region48: #{emodel_bigru_forward.46} parent=46 // loop_pre_header
                  _
                $region49: #{emodel_bigru_forward.46} parent=46 // loop_header
                  %s267 = sphi 0, %s271
                  %p268 = scmp.ge.s32.totalorder %s267, 1
                  %s272 = sphi %s184, %s184
                  %s273 = sphi %s178, %s178
                $region50: #{emodel_bigru_forward.46} parent=46 // loop_header_branch
                  %270 = sbr.rel (%p268) target = $region54
                $region51: #{emodel_bigru_forward.46} parent=46 // loop_body
                  %v274 = vld [vmem:[%s272] sm:$0xff]
                  %275 = vst [vmem:[%s273] sm:$0xff] %v274
                  %v276 = vld [vmem:[%s272 + $0x40] sm:$0xff]
                  %277 = vst [vmem:[%s273 + $0x8] sm:$0xff] %v276
                  %v278 = vld [vmem:[%s272 + $0x80] sm:$0xff]
                  %279 = vst [vmem:[%s273 + $0x10] sm:$0xff] %v278
                  %v280 = vld [vmem:[%s272 + $0xc0] sm:$0xff]
                  %281 = vst [vmem:[%s273 + $0x18] sm:$0xff] %v280
                  %v282 = vld [vmem:[%s272 + $0x100] sm:$0xff]
                  %283 = vst [vmem:[%s273 + $0x20] sm:$0xff] %v282
                  %v284 = vld [vmem:[%s272 + $0x140] sm:$0xff]
                  %285 = vst [vmem:[%s273 + $0x28] sm:$0xff] %v284
                  %v286 = vld [vmem:[%s272 + $0x180] sm:$0xff]
                  %287 = vst [vmem:[%s273 + $0x30] sm:$0xff] %v286
                  %v288 = vld [vmem:[%s272 + $0x1c0] sm:$0xff]
                  %289 = vst [vmem:[%s273 + $0x38] sm:$0xff] %v288
                  %v290 = vld [vmem:[%s272 + $0x200] sm:$0xff]
                  %291 = vst [vmem:[%s273 + $0x40] sm:$0xff] %v290
                  %v292 = vld [vmem:[%s272 + $0x240] sm:$0xff]
                  %293 = vst [vmem:[%s273 + $0x48] sm:$0xff] %v292
                  %v294 = vld [vmem:[%s272 + $0x280] sm:$0xff]
                  %295 = vst [vmem:[%s273 + $0x50] sm:$0xff] %v294
                  %v296 = vld [vmem:[%s272 + $0x2c0] sm:$0xff]
                  %297 = vst [vmem:[%s273 + $0x58] sm:$0xff] %v296
                  %v298 = vld [vmem:[%s272 + $0x300] sm:$0xff]
                  %299 = vst [vmem:[%s273 + $0x60] sm:$0xff] %v298
                  %v300 = vld [vmem:[%s272 + $0x340] sm:$0xff]
                  %301 = vst [vmem:[%s273 + $0x68] sm:$0xff] %v300
                  %v302 = vld [vmem:[%s272 + $0x380] sm:$0xff]
                  %303 = vst [vmem:[%s273 + $0x70] sm:$0xff] %v302
                  %v304 = vld [vmem:[%s272 + $0x3c0] sm:$0xff]
                  %305 = vst [vmem:[%s273 + $0x78] sm:$0xff] %v304
                  %v306 = vld [vmem:[%s272 + $0x400] sm:$0xff]
                  %307 = vst [vmem:[%s273 + $0x80] sm:$0xff] %v306
                  %v308 = vld [vmem:[%s272 + $0x440] sm:$0xff]
                  %309 = vst [vmem:[%s273 + $0x88] sm:$0xff] %v308
                  %v310 = vld [vmem:[%s272 + $0x480] sm:$0xff]
                  %311 = vst [vmem:[%s273 + $0x90] sm:$0xff] %v310
                  %v312 = vld [vmem:[%s272 + $0x4c0] sm:$0xff]
                  %313 = vst [vmem:[%s273 + $0x98] sm:$0xff] %v312
                  %v314 = vld [vmem:[%s272 + $0x500] sm:$0xff]
                  %315 = vst [vmem:[%s273 + $0xa0] sm:$0xff] %v314
                  %v316 = vld [vmem:[%s272 + $0x540] sm:$0xff]
                  %317 = vst [vmem:[%s273 + $0xa8] sm:$0xff] %v316
                  %v318 = vld [vmem:[%s272 + $0x580] sm:$0xff]
                  %319 = vst [vmem:[%s273 + $0xb0] sm:$0xff] %v318
                  %v320 = vld [vmem:[%s272 + $0x5c0] sm:$0xff]
                  %321 = vst [vmem:[%s273 + $0xb8] sm:$0xff] %v320
                  %v322 = vld [vmem:[%s272 + $0x600] sm:$0xff]
                  %323 = vst [vmem:[%s273 + $0xc0] sm:$0xff] %v322
                  %v324 = vld [vmem:[%s272 + $0x640] sm:$0xff]
                  %325 = vst [vmem:[%s273 + $0xc8] sm:$0xff] %v324
                  %v326 = vld [vmem:[%s272 + $0x680] sm:$0xff]
                  %327 = vst [vmem:[%s273 + $0xd0] sm:$0xff] %v326
                  %v328 = vld [vmem:[%s272 + $0x6c0] sm:$0xff]
                  %329 = vst [vmem:[%s273 + $0xd8] sm:$0xff] %v328
                  %v330 = vld [vmem:[%s272 + $0x700] sm:$0xff]
                  %331 = vst [vmem:[%s273 + $0xe0] sm:$0xff] %v330
                  %v332 = vld [vmem:[%s272 + $0x740] sm:$0xff]
                  %333 = vst [vmem:[%s273 + $0xe8] sm:$0xff] %v332
                  %v334 = vld [vmem:[%s272 + $0x780] sm:$0xff]
                  %335 = vst [vmem:[%s273 + $0xf0] sm:$0xff] %v334
                  %v336 = vld [vmem:[%s272 + $0x7c0] sm:$0xff]
                  %337 = vst [vmem:[%s273 + $0xf8] sm:$0xff] %v336
                $region52: #{emodel_bigru_forward.46} parent=46 // loop_footer
                  %s271 = sadd.s32 1, %s267
                $region53: #{emodel_bigru_forward.46} parent=46 // loop_footer_branch
                  %266 = sbr.rel target = $region49
                $region54: #{emodel_bigru_forward.46} parent=46 // loop_exit
                  _
              $region47: #{emodel_bigru_forward.46} parent=31 // pred_fallthru
                _
              // Predicated region
              $region55: #{emodel_bigru_forward.46} parent=31 // pred_check
                _
              $region56: #{emodel_bigru_forward.46} parent=31 // pred_check_branch
                %339 = sbr.rel target = $region58
              $region57: #{emodel_bigru_forward.46} parent=31 // pred_region
                _
              $region58: #{emodel_bigru_forward.46} parent=31 // pred_fallthru
                _
            $region32: #{emodel_bigru_forward.46} parent=27 // pred_fallthru
              _
            // Predicated region
            $region33: #{emodel_bigru_forward.46} parent=27 // pred_check
              _
            $region34: #{emodel_bigru_forward.46} parent=27 // pred_check_branch
              %190 = sbr.rel target = $region36
            $region35: #{emodel_bigru_forward.46} parent=27 // pred_region
              loop: start=0, step=1, limit=1
              $region37: #{emodel_bigru_forward.46} parent=35 // loop_pre_header
                _
              $region38: #{emodel_bigru_forward.46} parent=35 // loop_header
                %s193 = sphi 0, %s197
                %p194 = scmp.ge.s32.totalorder %s193, 1
                %s198 = sphi %s184, %s184
                %s199 = sphi %s178, %s178
              $region39: #{emodel_bigru_forward.46} parent=35 // loop_header_branch
                %196 = sbr.rel (%p194) target = $region43
              $region40: #{emodel_bigru_forward.46} parent=35 // loop_body
                %v200 = vld [vmem:[%s198] sm:$0xff]
                %201 = vst [vmem:[%s199] sm:$0xff] %v200
                %v202 = vld [vmem:[%s198 + $0x40] sm:$0xff]
                %203 = vst [vmem:[%s199 + $0x8] sm:$0xff] %v202
                %v204 = vld [vmem:[%s198 + $0x80] sm:$0xff]
                %205 = vst [vmem:[%s199 + $0x10] sm:$0xff] %v204
                %v206 = vld [vmem:[%s198 + $0xc0] sm:$0xff]
                %207 = vst [vmem:[%s199 + $0x18] sm:$0xff] %v206
                %v208 = vld [vmem:[%s198 + $0x100] sm:$0xff]
                %209 = vst [vmem:[%s199 + $0x20] sm:$0xff] %v208
                %v210 = vld [vmem:[%s198 + $0x140] sm:$0xff]
                %211 = vst [vmem:[%s199 + $0x28] sm:$0xff] %v210
                %v212 = vld [vmem:[%s198 + $0x180] sm:$0xff]
                %213 = vst [vmem:[%s199 + $0x30] sm:$0xff] %v212
                %v214 = vld [vmem:[%s198 + $0x1c0] sm:$0xff]
                %215 = vst [vmem:[%s199 + $0x38] sm:$0xff] %v214
                %v216 = vld [vmem:[%s198 + $0x200] sm:$0xff]
                %217 = vst [vmem:[%s199 + $0x40] sm:$0xff] %v216
                %v218 = vld [vmem:[%s198 + $0x240] sm:$0xff]
                %219 = vst [vmem:[%s199 + $0x48] sm:$0xff] %v218
                %v220 = vld [vmem:[%s198 + $0x280] sm:$0xff]
                %221 = vst [vmem:[%s199 + $0x50] sm:$0xff] %v220
                %v222 = vld [vmem:[%s198 + $0x2c0] sm:$0xff]
                %223 = vst [vmem:[%s199 + $0x58] sm:$0xff] %v222
                %v224 = vld [vmem:[%s198 + $0x300] sm:$0xff]
                %225 = vst [vmem:[%s199 + $0x60] sm:$0xff] %v224
                %v226 = vld [vmem:[%s198 + $0x340] sm:$0xff]
                %227 = vst [vmem:[%s199 + $0x68] sm:$0xff] %v226
                %v228 = vld [vmem:[%s198 + $0x380] sm:$0xff]
                %229 = vst [vmem:[%s199 + $0x70] sm:$0xff] %v228
                %v230 = vld [vmem:[%s198 + $0x3c0] sm:$0xff]
                %231 = vst [vmem:[%s199 + $0x78] sm:$0xff] %v230
                %v232 = vld [vmem:[%s198 + $0x400] sm:$0xff]
                %233 = vst [vmem:[%s199 + $0x80] sm:$0xff] %v232
                %v234 = vld [vmem:[%s198 + $0x440] sm:$0xff]
                %235 = vst [vmem:[%s199 + $0x88] sm:$0xff] %v234
                %v236 = vld [vmem:[%s198 + $0x480] sm:$0xff]
                %237 = vst [vmem:[%s199 + $0x90] sm:$0xff] %v236
                %v238 = vld [vmem:[%s198 + $0x4c0] sm:$0xff]
                %239 = vst [vmem:[%s199 + $0x98] sm:$0xff] %v238
                %v240 = vld [vmem:[%s198 + $0x500] sm:$0xff]
                %241 = vst [vmem:[%s199 + $0xa0] sm:$0xff] %v240
                %v242 = vld [vmem:[%s198 + $0x540] sm:$0xff]
                %243 = vst [vmem:[%s199 + $0xa8] sm:$0xff] %v242
                %v244 = vld [vmem:[%s198 + $0x580] sm:$0xff]
                %245 = vst [vmem:[%s199 + $0xb0] sm:$0xff] %v244
                %v246 = vld [vmem:[%s198 + $0x5c0] sm:$0xff]
                %247 = vst [vmem:[%s199 + $0xb8] sm:$0xff] %v246
                %v248 = vld [vmem:[%s198 + $0x600] sm:$0xff]
                %249 = vst [vmem:[%s199 + $0xc0] sm:$0xff] %v248
                %v250 = vld [vmem:[%s198 + $0x640] sm:$0xff]
                %251 = vst [vmem:[%s199 + $0xc8] sm:$0xff] %v250
                %v252 = vld [vmem:[%s198 + $0x680] sm:$0xff]
                %253 = vst [vmem:[%s199 + $0xd0] sm:$0xff] %v252
                %v254 = vld [vmem:[%s198 + $0x6c0] sm:$0xff]
                %255 = vst [vmem:[%s199 + $0xd8] sm:$0xff] %v254
                %v256 = vld [vmem:[%s198 + $0x700] sm:$0xff]
                %257 = vst [vmem:[%s199 + $0xe0] sm:$0xff] %v256
                %v258 = vld [vmem:[%s198 + $0x740] sm:$0xff]
                %259 = vst [vmem:[%s199 + $0xe8] sm:$0xff] %v258
                %v260 = vld [vmem:[%s198 + $0x780] sm:$0xff]
                %261 = vst [vmem:[%s199 + $0xf0] sm:$0xff] %v260
                %v262 = vld [vmem:[%s198 + $0x7c0] sm:$0xff]
                %263 = vst [vmem:[%s199 + $0xf8] sm:$0xff] %v262
              $region41: #{emodel_bigru_forward.46} parent=35 // loop_footer
                %s197 = sadd.s32 1, %s193
              $region42: #{emodel_bigru_forward.46} parent=35 // loop_footer_branch
                %192 = sbr.rel target = $region38
              $region43: #{emodel_bigru_forward.46} parent=35 // loop_exit
                _
            $region36: #{emodel_bigru_forward.46} parent=27 // pred_fallthru
              _
          $region28: #{emodel_bigru_forward.46} parent=23 // pred_fallthru
            _
          %340 = vnop
        $region24: #{emodel_bigru_forward.46} parent=19 // pred_fallthru
          _
        // Predicated region
        $region59: #{emodel_bigru_forward.46} parent=19 // pred_check
          %p341 = pneg %p104
        $region60: #{emodel_bigru_forward.46} parent=19 // pred_check_branch
          %343 = sbr.rel (%p341) target = $region62
        $region61: #{emodel_bigru_forward.46} parent=19 // pred_region
          %s344 = smul.u32 2, %s17
          %p345 = scmp.lt.s32.totalorder %s344, 15
          %s346 = scalar_select %p345, %s344, 15
          %s347 = scalar_lea.vmem %s2, %s346
          %s348 = smul.u32 2, %s17
        $region62: #{emodel_bigru_forward.46} parent=19 // pred_fallthru
          _
      $region20: #{emodel_bigru_forward.46} parent=5 // pred_fallthru
        _
      %p349 = scmp.le.s32.totalorder 1, %s9
      %p350 = scmp.lt.s32.totalorder %s9, 9
      %p351 = pnand %p349, %p350
      %p352 = pneg %p351
      // Predicated region
      $region63: #{emodel_bigru_forward.46} parent=5 // pred_check
        _
      $region64: #{emodel_bigru_forward.46} parent=5 // pred_check_branch
        %354 = sbr.rel (%p351) target = $region66
      $region65: #{emodel_bigru_forward.46} parent=5 // pred_region
        %s355 = ssub.s32 %s9, 1
        %s356 = sand.u32 %s71, 1
        %s357 = sand.u32 %s71, 1
        %s358 = smul.addr %s357, 256
        %s359 = scalar_lea.vmem [#allocation3], %s358
        // Predicated region
        $region67: #{emodel_bigru_forward.46} parent=65 // pred_check
          %p360 = pneg %p84
        $region68: #{emodel_bigru_forward.46} parent=65 // pred_check_branch
          %362 = sbr.rel (%p360) target = $region70
        $region69: #{emodel_bigru_forward.46} parent=65 // pred_region
          _
        $region70: #{emodel_bigru_forward.46} parent=65 // pred_fallthru
          _
        %s363 = smul.u32 2, %s19
        %s364 = smul.u32 2, %s21
        %p365 = scmp.lt.s32.totalorder %s363, 1
        %s366 = scalar_select %p365, %s363, 1
        %p367 = scmp.lt.s32.totalorder %s364, 1
        %s368 = scalar_select %p367, %s364, 1
        %s369 = smul.addr %s366, 2
        %s370 = sadd.s32 %s368, %s369
        %s371 = smul.addr %s370, 8
        %s372 = scalar_lea.vmem %s0, %s371
        %p373 = pneg %p56
        %p374 = pneg %p53
        %s375 = sand.u32 %s71, 1
        %s376 = sand.u32 %s71, 1
        %s377 = smul.addr %s376, 256
        %s378 = scalar_lea.vmem [#allocation3], %s377
        %p379 = pneg %p84
        %p380 = pneg %p81
        %s381 = smul.u32 2, %s20
        %p382 = scmp.lt.s32.totalorder %s381, 15
        %s383 = scalar_select %p382, %s381, 15
        %s384 = scalar_lea.vmem %s2, %s383
        %p385 = pneg %p110
        %p386 = pneg %p107
        %p387 = pneg %p138
        %p388 = pneg %p135
        %s389 = sand.u32 %s125, 1
        %s390 = sand.u32 %s125, 1
        %s391 = smul.addr %s390, 32
        %s392 = scalar_lea.vmem [#allocation4], %s391
        %s393 = smul.u32 2, %s19
        %s394 = smul.u32 2, %s21
        %p395 = scmp.lt.s32.totalorder %s393, 1
        %s396 = scalar_select %p395, %s393, 1
        %p397 = scmp.lt.s32.totalorder %s394, 1
        %s398 = scalar_select %p397, %s394, 1
        %s399 = smul.addr %s396, 2
        %s400 = sadd.s32 %s398, %s399
        %s401 = smul.addr %s400, 8
        %s402 = scalar_lea.vmem %s0, %s401
        %s403 = smul.u32 2, %s19
        %s404 = smul.u32 2, %s21
        %s405 = smul.u32 32, %s21
        %s406 = smul.u32 2, %s20
        %s407 = smul.u32 2, %s20
        %p408 = scmp.lt.s32.totalorder %s407, 15
        %s409 = scalar_select %p408, %s407, 15
        %s410 = scalar_lea.vmem %s2, %s409
        %s411 = smul.u32 2, %s20
        %s412 = smul.u32 2, %s19
        %s413 = smul.u32 2, %s20
        %p414 = scmp.eq.s32.totalorder %s21, 0
        // Predicated region
        $region71: #{emodel_bigru_forward.46} parent=65 // pred_check
          %p415 = pneg %p414
        $region72: #{emodel_bigru_forward.46} parent=65 // pred_check_branch
          %417 = sbr.rel (%p415) target = $region74
        $region73: #{emodel_bigru_forward.46} parent=65 // pred_region
          %418 = vst [vmem:[#allocation2] sm:$0xff] 0.0
          %419 = vst [vmem:[#allocation2 + $0x8] sm:$0xff] 0.0
          %420 = vst [vmem:[#allocation2 + $0x10] sm:$0xff] 0.0
          %421 = vst [vmem:[#allocation2 + $0x18] sm:$0xff] 0.0
        $region74: #{emodel_bigru_forward.46} parent=65 // pred_fallthru
          _
        %v422 = vld [vmem:[#allocation2] sm:$0xff]
        %v423 = vld [vmem:[#allocation2 + $0x8] sm:$0xff]
        %v424 = vld [vmem:[#allocation2 + $0x10] sm:$0xff]
        %v425 = vld [vmem:[#allocation2 + $0x18] sm:$0xff]
        %v426 = vld [vmem:[%s402] sm:$0xff]
        %v427 = vld [vmem:[%s402 + $0x8] sm:$0xff]
        %v428 = vld [vmem:[%s402 + $0x10] sm:$0xff]
        %v429 = vld [vmem:[%s402 + $0x18] sm:$0xff]
        %v430 = vpack.c.bf16 %v428, %v426
        %v431 = vpack.c.bf16 %v429, %v427
        %v432 = vld [vmem:[%s359] sm:$0xff]
        %v433 = vld [vmem:[%s359 + $0x8] sm:$0xff]
        %v434 = vld [vmem:[%s359 + $0x10] sm:$0xff]
        %v435 = vld [vmem:[%s359 + $0x18] sm:$0xff]
        %v436 = vld [vmem:[%s359 + $0x20] sm:$0xff]
        %v437 = vld [vmem:[%s359 + $0x28] sm:$0xff]
        %v438 = vld [vmem:[%s359 + $0x30] sm:$0xff]
        %v439 = vld [vmem:[%s359 + $0x38] sm:$0xff]
        %v440 = vld [vmem:[%s359 + $0x40] sm:$0xff]
        %v441 = vld [vmem:[%s359 + $0x48] sm:$0xff]
        %v442 = vld [vmem:[%s359 + $0x50] sm:$0xff]
        %v443 = vld [vmem:[%s359 + $0x58] sm:$0xff]
        %v444 = vld [vmem:[%s359 + $0x60] sm:$0xff]
        %v445 = vld [vmem:[%s359 + $0x68] sm:$0xff]
        %v446 = vld [vmem:[%s359 + $0x70] sm:$0xff]
        %v447 = vld [vmem:[%s359 + $0x78] sm:$0xff]
        %v448 = vld [vmem:[%s359 + $0x80] sm:$0xff]
        %v449 = vld [vmem:[%s359 + $0x88] sm:$0xff]
        %v450 = vld [vmem:[%s359 + $0x90] sm:$0xff]
        %v451 = vld [vmem:[%s359 + $0x98] sm:$0xff]
        %v452 = vld [vmem:[%s359 + $0xa0] sm:$0xff]
        %v453 = vld [vmem:[%s359 + $0xa8] sm:$0xff]
        %v454 = vld [vmem:[%s359 + $0xb0] sm:$0xff]
        %v455 = vld [vmem:[%s359 + $0xb8] sm:$0xff]
        %v456 = vld [vmem:[%s359 + $0xc0] sm:$0xff]
        %v457 = vld [vmem:[%s359 + $0xc8] sm:$0xff]
        %v458 = vld [vmem:[%s359 + $0xd0] sm:$0xff]
        %v459 = vld [vmem:[%s359 + $0xd8] sm:$0xff]
        %v460 = vld [vmem:[%s359 + $0xe0] sm:$0xff]
        %v461 = vld [vmem:[%s359 + $0xe8] sm:$0xff]
        %v462 = vld [vmem:[%s359 + $0xf0] sm:$0xff]
        %v463 = vld [vmem:[%s359 + $0xf8] sm:$0xff]
        %v496 = vunpack.c.l.b16 %v432
        %v497 = vunpack.c.h.b16 %v432
        %v498 = vunpack.c.l.b16 %v433
        %v499 = vunpack.c.h.b16 %v433
        %v500 = vunpack.c.l.b16 %v434
        %v501 = vunpack.c.h.b16 %v434
        %v502 = vunpack.c.l.b16 %v435
        %v503 = vunpack.c.h.b16 %v435
        %v504 = vunpack.c.l.b16 %v436
        %v505 = vunpack.c.h.b16 %v436
        %v506 = vunpack.c.l.b16 %v437
        %v507 = vunpack.c.h.b16 %v437
        %v508 = vunpack.c.l.b16 %v438
        %v509 = vunpack.c.h.b16 %v438
        %v510 = vunpack.c.l.b16 %v439
        %v511 = vunpack.c.h.b16 %v439
        %v512 = vunpack.c.l.b16 %v440
        %v513 = vunpack.c.h.b16 %v440
        %v514 = vunpack.c.l.b16 %v441
        %v515 = vunpack.c.h.b16 %v441
        %v516 = vunpack.c.l.b16 %v442
        %v517 = vunpack.c.h.b16 %v442
        %v518 = vunpack.c.l.b16 %v443
        %v519 = vunpack.c.h.b16 %v443
        %v520 = vunpack.c.l.b16 %v444
        %v521 = vunpack.c.h.b16 %v444
        %v522 = vunpack.c.l.b16 %v445
        %v523 = vunpack.c.h.b16 %v445
        %v524 = vunpack.c.l.b16 %v446
        %v525 = vunpack.c.h.b16 %v446
        %v526 = vunpack.c.l.b16 %v447
        %v527 = vunpack.c.h.b16 %v447
        %v528 = vunpack.c.l.b16 %v448
        %v529 = vunpack.c.h.b16 %v448
        %v530 = vunpack.c.l.b16 %v449
        %v531 = vunpack.c.h.b16 %v449
        %v532 = vunpack.c.l.b16 %v450
        %v533 = vunpack.c.h.b16 %v450
        %v534 = vunpack.c.l.b16 %v451
        %v535 = vunpack.c.h.b16 %v451
        %v536 = vunpack.c.l.b16 %v452
        %v537 = vunpack.c.h.b16 %v452
        %v538 = vunpack.c.l.b16 %v453
        %v539 = vunpack.c.h.b16 %v453
        %v540 = vunpack.c.l.b16 %v454
        %v541 = vunpack.c.h.b16 %v454
        %v542 = vunpack.c.l.b16 %v455
        %v543 = vunpack.c.h.b16 %v455
        %v544 = vunpack.c.l.b16 %v456
        %v545 = vunpack.c.h.b16 %v456
        %v546 = vunpack.c.l.b16 %v457
        %v547 = vunpack.c.h.b16 %v457
        %v548 = vunpack.c.l.b16 %v458
        %v549 = vunpack.c.h.b16 %v458
        %v550 = vunpack.c.l.b16 %v459
        %v551 = vunpack.c.h.b16 %v459
        %v552 = vunpack.c.l.b16 %v460
        %v553 = vunpack.c.h.b16 %v460
        %v554 = vunpack.c.l.b16 %v461
        %v555 = vunpack.c.h.b16 %v461
        %v556 = vunpack.c.l.b16 %v462
        %v557 = vunpack.c.h.b16 %v462
        %v558 = vunpack.c.l.b16 %v463
        %v559 = vunpack.c.h.b16 %v463
        %v560 = vpack.c.b16 %v498, %v496
        %v561 = vpack.c.b16 %v499, %v497
        %v562 = vpack.c.b16 %v502, %v500
        %v563 = vpack.c.b16 %v503, %v501
        %v564 = vpack.c.b16 %v506, %v504
        %v565 = vpack.c.b16 %v507, %v505
        %v566 = vpack.c.b16 %v510, %v508
        %v567 = vpack.c.b16 %v511, %v509
        %v568 = vpack.c.b16 %v514, %v512
        %v569 = vpack.c.b16 %v515, %v513
        %v570 = vpack.c.b16 %v518, %v516
        %v571 = vpack.c.b16 %v519, %v517
        %v572 = vpack.c.b16 %v522, %v520
        %v573 = vpack.c.b16 %v523, %v521
        %v574 = vpack.c.b16 %v526, %v524
        %v575 = vpack.c.b16 %v527, %v525
        %v576 = vpack.c.b16 %v530, %v528
        %v577 = vpack.c.b16 %v531, %v529
        %v578 = vpack.c.b16 %v534, %v532
        %v579 = vpack.c.b16 %v535, %v533
        %v580 = vpack.c.b16 %v538, %v536
        %v581 = vpack.c.b16 %v539, %v537
        %v582 = vpack.c.b16 %v542, %v540
        %v583 = vpack.c.b16 %v543, %v541
        %v584 = vpack.c.b16 %v546, %v544
        %v585 = vpack.c.b16 %v547, %v545
        %v586 = vpack.c.b16 %v550, %v548
        %v587 = vpack.c.b16 %v551, %v549
        %v588 = vpack.c.b16 %v554, %v552
        %v589 = vpack.c.b16 %v555, %v553
        %v590 = vpack.c.b16 %v558, %v556
        %v591 = vpack.c.b16 %v559, %v557
        %624 = vmatprep.subr.bf16.mxu0 %v561
        %625 = vmatpush1.bf16.msra.mxu0 %v560
        %626 = vmatprep.subr.bf16.mxu0 %v563
        %627 = vmatpush1.bf16.msra.mxu0 %v562
        %628 = vmatprep.subr.bf16.mxu0 %v565
        %629 = vmatpush1.bf16.msra.mxu0 %v564
        %630 = vmatprep.subr.bf16.mxu0 %v567
        %631 = vmatpush1.bf16.msra.mxu0 %v566
        %632 = vmatprep.subr.bf16.mxu0 %v569
        %633 = vmatpush1.bf16.msra.mxu0 %v568
        %634 = vmatprep.subr.bf16.mxu0 %v571
        %635 = vmatpush1.bf16.msra.mxu0 %v570
        %636 = vmatprep.subr.bf16.mxu0 %v573
        %637 = vmatpush1.bf16.msra.mxu0 %v572
        %638 = vmatprep.subr.bf16.mxu0 %v575
        %639 = vmatpush1.bf16.msra.mxu0 %v574
        %640 = vmatprep.subr.bf16.mxu0 %v577
        %641 = vmatpush1.bf16.msra.mxu0 %v576
        %642 = vmatprep.subr.bf16.mxu0 %v579
        %643 = vmatpush1.bf16.msra.mxu0 %v578
        %644 = vmatprep.subr.bf16.mxu0 %v581
        %645 = vmatpush1.bf16.msra.mxu0 %v580
        %646 = vmatprep.subr.bf16.mxu0 %v583
        %647 = vmatpush1.bf16.msra.mxu0 %v582
        %648 = vmatprep.subr.bf16.mxu0 %v585
        %649 = vmatpush1.bf16.msra.mxu0 %v584
        %650 = vmatprep.subr.bf16.mxu0 %v587
        %651 = vmatpush1.bf16.msra.mxu0 %v586
        %652 = vmatprep.subr.bf16.mxu0 %v589
        %653 = vmatpush1.bf16.msra.mxu0 %v588
        %654 = vmatprep.subr.bf16.mxu0 %v591
        %655 = vmatpush1.bf16.msra.mxu0 %v590
        %656 = vmatprep.mubr.bf16.mxu0 %v431
        %657 = vmatmul.mubr.bf16.gmra.mrb[0].mxu0 %v430
        %v658 = vpop.f32.mrb[0].mxu0
        %v659 = vadd.f32 0.0, %v658
        %v660 = vpop.f32.mrb[0].mxu0
        %v661 = vadd.f32 0.0, %v660
        %v662 = vpop.f32.mrb[0].mxu0
        %v663 = vadd.f32 0.0, %v662
        %v664 = vpop.f32.mrb[0].mxu0
        %v665 = vadd.f32 0.0, %v664
        %666 = vdwg.mxu0
        %v667 = vadd.f32 %v422, %v659
        %v668 = vadd.f32 %v423, %v661
        %v669 = vadd.f32 %v424, %v663
        %v670 = vadd.f32 %v425, %v665
        %671 = vst [vmem:[#allocation2] sm:$0xff] %v667
        %672 = vst [vmem:[#allocation2 + $0x8] sm:$0xff] %v668
        %673 = vst [vmem:[#allocation2 + $0x10] sm:$0xff] %v669
        %674 = vst [vmem:[#allocation2 + $0x18] sm:$0xff] %v670
        // Predicated region
        $region75: #{emodel_bigru_forward.46} parent=65 // pred_check
          %p675 = pneg %p414
        $region76: #{emodel_bigru_forward.46} parent=65 // pred_check_branch
          %677 = sbr.rel (%p675) target = $region78
        $region77: #{emodel_bigru_forward.46} parent=65 // pred_region
          %v678 = vld [vmem:[#allocation2] sm:$0xff]
          %v679 = vld [vmem:[#allocation2 + $0x8] sm:$0xff]
          %v680 = vld [vmem:[#allocation2 + $0x10] sm:$0xff]
          %v681 = vld [vmem:[#allocation2 + $0x18] sm:$0xff]
          %v682 = vld [vmem:[%s410] sm:$0x3]
          %v684 = vlaneseq
          %v685 = vshrl.u32 %v684, 7
          %v686 = vsub.s32 0, %v685
          %v687 = vrot.slane %v682, %v686
          %v688 = vlaneseq
          %v689 = vshrl.u32 %v688, 7
          %v690 = vsub.s32 1, %v689
          %v691 = vrot.slane %v682, %v690
          %v694 = vadd.f32 %v678, %v687
          %v695 = vadd.f32 %v679, %v691
          %v696 = vadd.f32 %v680, %v687
          %v697 = vadd.f32 %v681, %v691
          %v698 = vmax.f32 %v694, 0.0
          %v699 = vmax.f32 %v695, 0.0
          %v700 = vmax.f32 %v696, 0.0
          %v701 = vmax.f32 %v697, 0.0
          %702 = vst [vmem:[%s392] sm:$0xff] %v698
          %703 = vst [vmem:[%s392 + $0x8] sm:$0xff] %v699
          %704 = vst [vmem:[%s392 + $0x10] sm:$0xff] %v700
          %705 = vst [vmem:[%s392 + $0x18] sm:$0xff] %v701
        $region78: #{emodel_bigru_forward.46} parent=65 // pred_fallthru
          _
        %s706 = sand.u32 %s125, 1
        %s707 = sand.u32 %s125, 1
        %s708 = smul.addr %s707, 32
        %s709 = scalar_lea.vmem [#allocation4], %s708
        // Predicated region
        $region79: #{emodel_bigru_forward.46} parent=65 // pred_check
          %p710 = pneg %p135
        $region80: #{emodel_bigru_forward.46} parent=65 // pred_check_branch
          %712 = sbr.rel (%p710) target = $region82
        $region81: #{emodel_bigru_forward.46} parent=65 // pred_region
          %s713 = smul.u32 2, %s19
          %s714 = smul.u32 2, %s20
          %s715 = smul.addr %s713, 16
          %s716 = sadd.s32 %s714, %s715
          %s717 = smul.addr %s716, 8
          %s718 = scalar_lea.vmem %s3, %s717
          // Predicated region
          $region83: #{emodel_bigru_forward.46} parent=81 // pred_check
            _
          $region84: #{emodel_bigru_forward.46} parent=81 // pred_check_branch
            %720 = sbr.rel (0) target = $region86
          $region85: #{emodel_bigru_forward.46} parent=81 // pred_region
            // Predicated region
            $region87: #{emodel_bigru_forward.46} parent=85 // pred_check
              _
            $region88: #{emodel_bigru_forward.46} parent=85 // pred_check_branch
              %722 = sbr.rel (0) target = $region90
            $region89: #{emodel_bigru_forward.46} parent=85 // pred_region
              loop: start=0, step=1, limit=1
              $region91: #{emodel_bigru_forward.46} parent=89 // loop_pre_header
                _
              $region92: #{emodel_bigru_forward.46} parent=89 // loop_header
                %s724 = sphi 0, %s728
                %p725 = scmp.ge.s32.totalorder %s724, 1
                %s729 = sphi %s709, %s709
                %s730 = sphi %s718, %s718
              $region93: #{emodel_bigru_forward.46} parent=89 // loop_header_branch
                %727 = sbr.rel (%p725) target = $region97
              $region94: #{emodel_bigru_forward.46} parent=89 // loop_body
                %v731 = vld [vmem:[%s729] sm:$0xff]
                %732 = vst [vmem:[%s730] sm:$0xff] %v731
                %v733 = vld [vmem:[%s729 + $0x8] sm:$0xff]
                %734 = vst [vmem:[%s730 + $0x8] sm:$0xff] %v733
                %v735 = vld [vmem:[%s729 + $0x10] sm:$0xff]
                %736 = vst [vmem:[%s730 + $0x80] sm:$0xff] %v735
                %v737 = vld [vmem:[%s729 + $0x18] sm:$0xff]
                %738 = vst [vmem:[%s730 + $0x88] sm:$0xff] %v737
              $region95: #{emodel_bigru_forward.46} parent=89 // loop_footer
                %s728 = sadd.s32 1, %s724
              $region96: #{emodel_bigru_forward.46} parent=89 // loop_footer_branch
                %723 = sbr.rel target = $region92
              $region97: #{emodel_bigru_forward.46} parent=89 // loop_exit
                _
            $region90: #{emodel_bigru_forward.46} parent=85 // pred_fallthru
              _
            // Predicated region
            $region98: #{emodel_bigru_forward.46} parent=85 // pred_check
              _
            $region99: #{emodel_bigru_forward.46} parent=85 // pred_check_branch
              %740 = sbr.rel target = $region101
            $region100: #{emodel_bigru_forward.46} parent=85 // pred_region
              _
            $region101: #{emodel_bigru_forward.46} parent=85 // pred_fallthru
              _
          $region86: #{emodel_bigru_forward.46} parent=81 // pred_fallthru
            _
          %741 = vnop
        $region82: #{emodel_bigru_forward.46} parent=65 // pred_fallthru
          _
      $region66: #{emodel_bigru_forward.46} parent=5 // pred_fallthru
        _
      %p742 = scmp.le.s32.totalorder 2, %s9
      // Predicated region
      $region102: #{emodel_bigru_forward.46} parent=5 // pred_check
        %p743 = pneg %p742
      $region103: #{emodel_bigru_forward.46} parent=5 // pred_check_branch
        %745 = sbr.rel (%p743) target = $region105
      $region104: #{emodel_bigru_forward.46} parent=5 // pred_region
        %s746 = ssub.s32 %s9, 2
        // Predicated region
        $region106: #{emodel_bigru_forward.46} parent=104 // pred_check
          %p747 = pneg %p141
        $region107: #{emodel_bigru_forward.46} parent=104 // pred_check_branch
          %749 = sbr.rel (%p747) target = $region109
        $region108: #{emodel_bigru_forward.46} parent=104 // pred_region
          %s750 = sand.u32 %s126, 1
          %s751 = sand.u32 %s126, 1
          %s752 = smul.addr %s751, 32
          %s753 = scalar_lea.vmem [#allocation4], %s752
        $region109: #{emodel_bigru_forward.46} parent=104 // pred_fallthru
          _
      $region105: #{emodel_bigru_forward.46} parent=5 // pred_fallthru
        _
    $region6: #{emodel_bigru_forward.46} parent=1 // loop_footer
      %s13 = sadd.s32 1, %s9
    $region7: #{emodel_bigru_forward.46} parent=1 // loop_footer_branch
      %8 = sbr.rel target = $region3
    $region8: #{emodel_bigru_forward.46} parent=1 // loop_exit
      _

// kernel: emodel_bigru_forward.44
$region0: #{emodel_bigru_forward.44}
  #allocation0 [shape = 'u32[]', space=smem, size = 0x4, offset = 0x4, fixed_abs, tag = 'smem constant byte address 0x4 - core index']
  #allocation1 [shape = 'u32[144,128]{1,0:T(1,128)}', space=vmem, size = 0x12000, scoped, tag = 'internal scratch']
  %s0 = inlined_call_operand.vmem [shape: f32[2,8,256], index: 0, kind: input, shape index: {}]
  %s1 = inlined_call_operand.vmem [shape: f32[2,8,256], index: 1, kind: input, shape index: {}]
  %s2 = inlined_call_operand.vmem [shape: f32[2,8,256], index: 2, kind: input, shape index: {}]
  %s3 = inlined_call_operand.vmem [shape: bf16[256,256], index: 3, kind: input, shape index: {}]
  %s4 = inlined_call_operand.vmem [shape: f32[1,256], index: 4, kind: input, shape index: {}]
  %s5 = inlined_call_operand.vmem [shape: f32[2,8,256], index: 5, kind: output, shape index: {}]
  %s6 = sld [smem:[#allocation0]]
  $region53: #{emodel_bigru_forward.44} parent=0
    _
  %s8 = ssub.s32 1, %s6
  %s9 = scalar_select 0, %s8, %s6
  loop: start=0, step=1, limit=4
  $region2: #{emodel_bigru_forward.44} parent=0 // loop_pre_header
    _
  $region3: #{emodel_bigru_forward.44} parent=0 // loop_header
    %s11 = sphi 0, %s15
    %p12 = scmp.ge.s32.totalorder %s11, 4
    %s21 = sphi 0, %s23
    %s24 = sphi 0, %s21
    %s25 = sphi 0, %s24
    %s41 = sphi 0, %s25
    %s47 = sphi 0, %s49
    %s50 = sphi 0, %s47
    %s51 = sphi 0, %s50
    %s67 = sphi 0, %s51
    %s73 = sphi 0, %s75
    %s76 = sphi 0, %s73
    %s77 = sphi 0, %s76
    %s93 = sphi 0, %s77
    %s97 = sphi 0, %s97
    %s99 = sphi 0, %s97
    %s100 = sphi 0, %s99
    %s114 = sphi 0, %s100
    %s118 = sphi 0, %s118
    %s120 = sphi 0, %s118
    %s121 = sphi 0, %s120
    %s135 = sphi 0, %s121
    %s141 = sphi 0, %s143
    %s144 = sphi 0, %s141
    %s145 = sphi 0, %s144
    %s161 = sphi 0, %s145
  $region4: #{emodel_bigru_forward.44} parent=0 // loop_header_branch
    %14 = sbr.rel (%p12) target = $region8
  $region5: #{emodel_bigru_forward.44} parent=0 // loop_body
    %s16 = ssub.s32 %s11, 1
    %s17 = ssub.s32 %s11, 2
    %s18 = sadd.s32 %s11, 1
    %s19 = ssub.s32 %s11, %s18
    %p20 = scmp.eq.s32.totalorder %s19, 0
    %s22 = sadd.s32 %s21, 1
    %s23 = scalar_select %p20, %s21, %s22
    %p26 = pneg %p20
    %p27 = scmp.eq.s32.totalorder %s11, 1
    %p28 = por %p26, %p27
    %p29 = scmp.ne.s32.totalorder %s21, %s24
    %p30 = scmp.eq.s32.totalorder %s11, 0
    %p31 = por %p29, %p30
    %p32 = scmp.ne.s32.totalorder %s21, %s24
    %p33 = scmp.eq.s32.totalorder %s16, 1
    %p34 = por %p32, %p33
    %p35 = scmp.ne.s32.totalorder %s24, %s25
    %p36 = scmp.eq.s32.totalorder %s16, 0
    %p37 = por %p35, %p36
    %p38 = scmp.ne.s32.totalorder %s24, %s25
    %p39 = scmp.eq.s32.totalorder %s17, 1
    %p40 = por %p38, %p39
    %p42 = scmp.ne.s32.totalorder %s25, %s41
    %p43 = scmp.eq.s32.totalorder %s17, 0
    %p44 = por %p42, %p43
    %s45 = ssub.s32 %s11, %s18
    %p46 = scmp.eq.s32.totalorder %s45, 0
    %s48 = sadd.s32 %s47, 1
    %s49 = scalar_select %p46, %s47, %s48
    %p52 = pneg %p46
    %p53 = scmp.eq.s32.totalorder %s11, 1
    %p54 = por %p52, %p53
    %p55 = scmp.ne.s32.totalorder %s47, %s50
    %p56 = scmp.eq.s32.totalorder %s11, 0
    %p57 = por %p55, %p56
    %p58 = scmp.ne.s32.totalorder %s47, %s50
    %p59 = scmp.eq.s32.totalorder %s16, 1
    %p60 = por %p58, %p59
    %p61 = scmp.ne.s32.totalorder %s50, %s51
    %p62 = scmp.eq.s32.totalorder %s16, 0
    %p63 = por %p61, %p62
    %p64 = scmp.ne.s32.totalorder %s50, %s51
    %p65 = scmp.eq.s32.totalorder %s17, 1
    %p66 = por %p64, %p65
    %p68 = scmp.ne.s32.totalorder %s51, %s67
    %p69 = scmp.eq.s32.totalorder %s17, 0
    %p70 = por %p68, %p69
    %s71 = ssub.s32 %s11, %s18
    %p72 = scmp.eq.s32.totalorder %s71, 0
    %s74 = sadd.s32 %s73, 1
    %s75 = scalar_select %p72, %s73, %s74
    %p78 = pneg %p72
    %p79 = scmp.eq.s32.totalorder %s11, 1
    %p80 = por %p78, %p79
    %p81 = scmp.ne.s32.totalorder %s73, %s76
    %p82 = scmp.eq.s32.totalorder %s11, 0
    %p83 = por %p81, %p82
    %p84 = scmp.ne.s32.totalorder %s73, %s76
    %p85 = scmp.eq.s32.totalorder %s16, 1
    %p86 = por %p84, %p85
    %p87 = scmp.ne.s32.totalorder %s76, %s77
    %p88 = scmp.eq.s32.totalorder %s16, 0
    %p89 = por %p87, %p88
    %p90 = scmp.ne.s32.totalorder %s76, %s77
    %p91 = scmp.eq.s32.totalorder %s17, 1
    %p92 = por %p90, %p91
    %p94 = scmp.ne.s32.totalorder %s77, %s93
    %p95 = scmp.eq.s32.totalorder %s17, 0
    %p96 = por %p94, %p95
    %s98 = sadd.s32 %s97, 1
    %p101 = scmp.eq.s32.totalorder %s11, 1
    %p102 = scmp.ne.s32.totalorder %s97, %s99
    %p103 = scmp.eq.s32.totalorder %s11, 0
    %p104 = por %p102, %p103
    %p105 = scmp.ne.s32.totalorder %s97, %s99
    %p106 = scmp.eq.s32.totalorder %s16, 1
    %p107 = por %p105, %p106
    %p108 = scmp.ne.s32.totalorder %s99, %s100
    %p109 = scmp.eq.s32.totalorder %s16, 0
    %p110 = por %p108, %p109
    %p111 = scmp.ne.s32.totalorder %s99, %s100
    %p112 = scmp.eq.s32.totalorder %s17, 1
    %p113 = por %p111, %p112
    %p115 = scmp.ne.s32.totalorder %s100, %s114
    %p116 = scmp.eq.s32.totalorder %s17, 0
    %p117 = por %p115, %p116
    %s119 = sadd.s32 %s118, 1
    %p122 = scmp.eq.s32.totalorder %s11, 1
    %p123 = scmp.ne.s32.totalorder %s118, %s120
    %p124 = scmp.eq.s32.totalorder %s11, 0
    %p125 = por %p123, %p124
    %p126 = scmp.ne.s32.totalorder %s118, %s120
    %p127 = scmp.eq.s32.totalorder %s16, 1
    %p128 = por %p126, %p127
    %p129 = scmp.ne.s32.totalorder %s120, %s121
    %p130 = scmp.eq.s32.totalorder %s16, 0
    %p131 = por %p129, %p130
    %p132 = scmp.ne.s32.totalorder %s120, %s121
    %p133 = scmp.eq.s32.totalorder %s17, 1
    %p134 = por %p132, %p133
    %p136 = scmp.ne.s32.totalorder %s121, %s135
    %p137 = scmp.eq.s32.totalorder %s17, 0
    %p138 = por %p136, %p137
    %s139 = ssub.s32 %s11, %s18
    %p140 = scmp.eq.s32.totalorder %s139, 0
    %s142 = sadd.s32 %s141, 1
    %s143 = scalar_select %p140, %s141, %s142
    %p146 = pneg %p140
    %p147 = scmp.eq.s32.totalorder %s11, 1
    %p148 = por %p146, %p147
    %p149 = scmp.ne.s32.totalorder %s141, %s144
    %p150 = scmp.eq.s32.totalorder %s11, 0
    %p151 = por %p149, %p150
    %p152 = scmp.ne.s32.totalorder %s141, %s144
    %p153 = scmp.eq.s32.totalorder %s16, 1
    %p154 = por %p152, %p153
    %p155 = scmp.ne.s32.totalorder %s144, %s145
    %p156 = scmp.eq.s32.totalorder %s16, 0
    %p157 = por %p155, %p156
    %p158 = scmp.ne.s32.totalorder %s144, %s145
    %p159 = scmp.eq.s32.totalorder %s17, 1
    %p160 = por %p158, %p159
    %p162 = scmp.ne.s32.totalorder %s145, %s161
    %p163 = scmp.eq.s32.totalorder %s17, 0
    %p164 = por %p162, %p163
    %p165 = scmp.le.s32.totalorder 1, %s11
    %p166 = scmp.lt.s32.totalorder %s11, 3
    %p167 = pnand %p165, %p166
    %p168 = pneg %p167
    // Predicated region
    $region9: #{emodel_bigru_forward.44} parent=5 // pred_check
      _
    $region10: #{emodel_bigru_forward.44} parent=5 // pred_check_branch
      %170 = sbr.rel (%p167) target = $region12
    $region11: #{emodel_bigru_forward.44} parent=5 // pred_region
      %s171 = ssub.s32 %s11, 1
      // Predicated region
      $region13: #{emodel_bigru_forward.44} parent=11 // pred_check
        %p172 = pneg %p110
      $region14: #{emodel_bigru_forward.44} parent=11 // pred_check_branch
        %174 = sbr.rel (%p172) target = $region16
      $region15: #{emodel_bigru_forward.44} parent=11 // pred_region
        _
      $region16: #{emodel_bigru_forward.44} parent=11 // pred_fallthru
        _
      // Predicated region
      $region17: #{emodel_bigru_forward.44} parent=11 // pred_check
        %p175 = pneg %p131
      $region18: #{emodel_bigru_forward.44} parent=11 // pred_check_branch
        %177 = sbr.rel (%p175) target = $region20
      $region19: #{emodel_bigru_forward.44} parent=11 // pred_region
        _
      $region20: #{emodel_bigru_forward.44} parent=11 // pred_fallthru
        _
    $region12: #{emodel_bigru_forward.44} parent=5 // pred_fallthru
      _
    %p178 = scmp.lt.s32.totalorder %s11, 2
    // Predicated region
    $region21: #{emodel_bigru_forward.44} parent=5 // pred_check
      %p179 = pneg %p178
    $region22: #{emodel_bigru_forward.44} parent=5 // pred_check_branch
      %181 = sbr.rel (%p179) target = $region24
    $region23: #{emodel_bigru_forward.44} parent=5 // pred_region
      // Predicated region
      $region25: #{emodel_bigru_forward.44} parent=23 // pred_check
        %p182 = pneg %p31
      $region26: #{emodel_bigru_forward.44} parent=23 // pred_check_branch
        %184 = sbr.rel (%p182) target = $region28
      $region27: #{emodel_bigru_forward.44} parent=23 // pred_region
        %p185 = scmp.lt.s32.totalorder %s11, 1
        %s186 = scalar_select %p185, %s11, 1
        %s187 = smul.addr %s186, 2
        %s188 = smul.addr %s187, 8
        %s189 = scalar_lea.vmem %s0, %s188
      $region28: #{emodel_bigru_forward.44} parent=23 // pred_fallthru
        _
      // Predicated region
      $region29: #{emodel_bigru_forward.44} parent=23 // pred_check
        %p190 = pneg %p57
      $region30: #{emodel_bigru_forward.44} parent=23 // pred_check_branch
        %192 = sbr.rel (%p190) target = $region32
      $region31: #{emodel_bigru_forward.44} parent=23 // pred_region
        %p193 = scmp.lt.s32.totalorder %s11, 1
        %s194 = scalar_select %p193, %s11, 1
        %s195 = smul.addr %s194, 2
        %s196 = smul.addr %s195, 8
        %s197 = scalar_lea.vmem %s1, %s196
      $region32: #{emodel_bigru_forward.44} parent=23 // pred_fallthru
        _
      // Predicated region
      $region33: #{emodel_bigru_forward.44} parent=23 // pred_check
        %p198 = pneg %p83
      $region34: #{emodel_bigru_forward.44} parent=23 // pred_check_branch
        %200 = sbr.rel (%p198) target = $region36
      $region35: #{emodel_bigru_forward.44} parent=23 // pred_region
        %p201 = scmp.lt.s32.totalorder %s11, 1
        %s202 = scalar_select %p201, %s11, 1
        %s203 = smul.addr %s202, 2
        %s204 = smul.addr %s203, 8
        %s205 = scalar_lea.vmem %s2, %s204
      $region36: #{emodel_bigru_forward.44} parent=23 // pred_fallthru
        _
    $region24: #{emodel_bigru_forward.44} parent=5 // pred_fallthru
      _
    %p206 = scmp.le.s32.totalorder 1, %s11
    %p207 = scmp.lt.s32.totalorder %s11, 3
    %p208 = pnand %p206, %p207
    %p209 = pneg %p208
    // Predicated region
    $region37: #{emodel_bigru_forward.44} parent=5 // pred_check
      _
    $region38: #{emodel_bigru_forward.44} parent=5 // pred_check_branch
      %211 = sbr.rel (%p208) target = $region40
    $region39: #{emodel_bigru_forward.44} parent=5 // pred_region
      %s212 = ssub.s32 %s11, 1
      %p213 = scmp.lt.s32.totalorder %s16, 1
      %s214 = scalar_select %p213, %s16, 1
      %s215 = smul.addr %s214, 2
      %s216 = smul.addr %s215, 8
      %s217 = scalar_lea.vmem %s0, %s216
      %p218 = pneg %p37
      %p219 = pneg %p34
      %p220 = scmp.lt.s32.totalorder %s16, 1
      %s221 = scalar_select %p220, %s16, 1
      %s222 = smul.addr %s221, 2
      %s223 = smul.addr %s222, 8
      %s224 = scalar_lea.vmem %s1, %s223
      %p225 = pneg %p63
      %p226 = pneg %p60
      %p227 = scmp.lt.s32.totalorder %s16, 1
      %s228 = scalar_select %p227, %s16, 1
      %s229 = smul.addr %s228, 2
      %s230 = smul.addr %s229, 8
      %s231 = scalar_lea.vmem %s2, %s230
      %p232 = pneg %p89
      %p233 = pneg %p86
      %p234 = pneg %p110
      %p235 = pneg %p107
      %p236 = pneg %p131
      %p237 = pneg %p128
      %p238 = pneg %p157
      %p239 = pneg %p154
      %p240 = scmp.lt.s32.totalorder %s16, 1
      %s241 = scalar_select %p240, %s16, 1
      %s242 = smul.addr %s241, 2
      %s243 = smul.addr %s242, 8
      %s244 = scalar_lea.vmem %s5, %s243
      %p245 = scmp.lt.s32.totalorder %s16, 1
      %s246 = scalar_select %p245, %s16, 1
      %s247 = smul.addr %s246, 2
      %s248 = smul.addr %s247, 8
      %s249 = scalar_lea.vmem %s0, %s248
      %p250 = scmp.lt.s32.totalorder %s16, 1
      %s251 = scalar_select %p250, %s16, 1
      %s252 = smul.addr %s251, 2
      %s253 = smul.addr %s252, 8
      %s254 = scalar_lea.vmem %s1, %s253
      %p255 = scmp.lt.s32.totalorder %s16, 1
      %s256 = scalar_select %p255, %s16, 1
      %s257 = smul.addr %s256, 2
      %s258 = smul.addr %s257, 8
      %s259 = scalar_lea.vmem %s2, %s258
      %p260 = scmp.lt.s32.totalorder %s16, 1
      %s261 = scalar_select %p260, %s16, 1
      %s262 = smul.addr %s261, 2
      %s263 = smul.addr %s262, 8
      %s264 = scalar_lea.vmem %s5, %s263
      %v266 = vld [vmem:[%s249] sm:$0xff]
      %v267 = vld [vmem:[%s249 + $0x8] sm:$0xff]
      %v268 = vpack.c.bf16 %v266, %v266
      %v269 = vpack.c.bf16 %v267, %v267
      %v270 = vld [vmem:[%s254] sm:$0xff]
      %v271 = vld [vmem:[%s254 + $0x8] sm:$0xff]
      %v272 = vpack.c.bf16 %v270, %v270
      %v273 = vpack.c.bf16 %v271, %v271
      %v274 = vld [vmem:[%s259] sm:$0xff]
      %v275 = vld [vmem:[%s259 + $0x8] sm:$0xff]
      %v276 = vpack.c.bf16 %v274, %v274
      %v277 = vpack.c.bf16 %v275, %v275
      %vm278 = vcmask 261120
      %v280 = vsel %vm278, %v268, 0
      %v283 = vsel %vm278, %v272, 0
      %285 = vmatprep.subr.bf16.mxu0 0
      %286 = vmatpush1.bf16.xpose.msra.mxu0 %v283
      %287 = vmatprep.subr.bf16.mxu0 0
      %288 = vmatpush1.bf16.xpose.msra.mxu0 0
      %289 = vmatprep.subr.bf16.mxu0 0
      %290 = vmatpush1.bf16.xpose.msra.mxu0 0
      %291 = vmatprep.subr.bf16.mxu0 0
      %292 = vmatpush1.bf16.xpose.msra.mxu0 0
      %293 = vmatprep.subr.bf16.mxu0 0
      %294 = vmatpush1.bf16.xpose.msra.mxu0 0
      %295 = vmatprep.subr.bf16.mxu0 0
      %296 = vmatpush1.bf16.xpose.msra.mxu0 0
      %297 = vmatprep.subr.bf16.mxu0 0
      %298 = vmatpush1.bf16.xpose.msra.mxu0 0
      %299 = vmatprep.subr.bf16.mxu0 0
      %300 = vmatpush1.bf16.xpose.msra.mxu0 0
      %301 = vmatprep.subr.bf16.mxu0 0
      %302 = vmatpush1.bf16.xpose.msra.mxu0 0
      %303 = vmatprep.subr.bf16.mxu0 0
      %304 = vmatpush1.bf16.xpose.msra.mxu0 0
      %305 = vmatprep.subr.bf16.mxu0 0
      %306 = vmatpush1.bf16.xpose.msra.mxu0 0
      %307 = vmatprep.subr.bf16.mxu0 0
      %308 = vmatpush1.bf16.xpose.msra.mxu0 0
      %309 = vmatprep.subr.bf16.mxu0 0
      %310 = vmatpush1.bf16.xpose.msra.mxu0 0
      %311 = vmatprep.subr.bf16.mxu0 0
      %312 = vmatpush1.bf16.xpose.msra.mxu0 0
      %313 = vmatprep.subr.bf16.mxu0 0
      %314 = vmatpush1.bf16.xpose.msra.mxu0 0
      %315 = vmatprep.subr.bf16.mxu0 0
      %316 = vmatpush1.bf16.xpose.msra.mxu0 0
      %317 = vmatprep.mubr.bf16.mxu0 0
      %318 = vmatmul.mubr.bf16.gmra.mrb[0].mxu0 %v280
      %v319 = vpop.f32.mrb[0].mxu0
      %v320 = vadd.f32 0.0, %v319
      %v321 = vpop.f32.mrb[0].mxu0
      %v322 = vpop.f32.mrb[0].mxu0
      %v323 = vpop.f32.mrb[0].mxu0
      %324 = vdwg.mxu0
      %v325 = vmul.f32 %v320, 0.17677669
      %vm326 = vcmask 64512
      %v327 = vsel %vm326, %v325, -inf
      %328 = vmax.xlane.f32.xlu0 %v327
      %v329 = vpop.xlane.xlu0 %328
      %v330 = vsub.f32 %v325, %v329
      %v331 = vmul.f32 %v330, 1.442695
      %v332 = vpow.pop %v331
      %v333 = vsel %vm326, %v332, 0.0
      %334 = vadd.xlane.f32.xlu0 %v333
      %v335 = vpop.xlane.xlu0 %334
      %v336 = vrcp.pop %v335
      %v337 = vmul.f32 %v332, %v336
      %v338 = vpack.c.bf16 %v337, %v337
      %v340 = vsel %vm326, %v338, 0
      %vm342 = vcmask 1043456
      %v344 = vsel %vm342, %v276, 0
      %346 = vmatprep.subr.bf16.mxu0 0
      %347 = vmatpush1.bf16.msra.mxu0 %v344
      %348 = vmatprep.subr.bf16.mxu0 0
      %349 = vmatpush1.bf16.msra.mxu0 0
      %350 = vmatprep.subr.bf16.mxu0 0
      %351 = vmatpush1.bf16.msra.mxu0 0
      %352 = vmatprep.subr.bf16.mxu0 0
      %353 = vmatpush1.bf16.msra.mxu0 0
      %354 = vmatprep.subr.bf16.mxu0 0
      %355 = vmatpush1.bf16.msra.mxu0 0
      %356 = vmatprep.subr.bf16.mxu0 0
      %357 = vmatpush1.bf16.msra.mxu0 0
      %358 = vmatprep.subr.bf16.mxu0 0
      %359 = vmatpush1.bf16.msra.mxu0 0
      %360 = vmatprep.subr.bf16.mxu0 0
      %361 = vmatpush1.bf16.msra.mxu0 0
      %362 = vmatprep.subr.bf16.mxu0 0
      %363 = vmatpush1.bf16.msra.mxu0 0
      %364 = vmatprep.subr.bf16.mxu0 0
      %365 = vmatpush1.bf16.msra.mxu0 0
      %366 = vmatprep.subr.bf16.mxu0 0
      %367 = vmatpush1.bf16.msra.mxu0 0
      %368 = vmatprep.subr.bf16.mxu0 0
      %369 = vmatpush1.bf16.msra.mxu0 0
      %370 = vmatprep.subr.bf16.mxu0 0
      %371 = vmatpush1.bf16.msra.mxu0 0
      %372 = vmatprep.subr.bf16.mxu0 0
      %373 = vmatpush1.bf16.msra.mxu0 0
      %374 = vmatprep.subr.bf16.mxu0 0
      %375 = vmatpush1.bf16.msra.mxu0 0
      %376 = vmatprep.subr.bf16.mxu0 0
      %377 = vmatpush1.bf16.msra.mxu0 0
      %378 = vmatprep.mubr.bf16.mxu0 0
      %379 = vmatmul.mubr.bf16.gmra.mrb[0].mxu0 %v340
      %v380 = vpop.f32.mrb[0].mxu0
      %v381 = vadd.f32 0.0, %v380
      %v382 = vpop.f32.mrb[0].mxu0
      %v383 = vpop.f32.mrb[0].mxu0
      %v384 = vpop.f32.mrb[0].mxu0
      %385 = vdwg.mxu0
      %387 = vrot.lane.b32.xlu0 %v268, 96
      %v388 = vpop.permute.xlu0 %387
      %390 = vrot.lane.b32.xlu0 %v272, 96
      %v391 = vpop.permute.xlu0 %390
      %v393 = vsel %vm278, %v388, 0
      %v396 = vsel %vm278, %v391, 0
      %398 = vmatprep.subr.bf16.mxu0 0
      %399 = vmatpush1.bf16.xpose.msra.mxu0 %v396
      %400 = vmatprep.subr.bf16.mxu0 0
      %401 = vmatpush1.bf16.xpose.msra.mxu0 0
      %402 = vmatprep.subr.bf16.mxu0 0
      %403 = vmatpush1.bf16.xpose.msra.mxu0 0
      %404 = vmatprep.subr.bf16.mxu0 0
      %405 = vmatpush1.bf16.xpose.msra.mxu0 0
      %406 = vmatprep.subr.bf16.mxu0 0
      %407 = vmatpush1.bf16.xpose.msra.mxu0 0
      %408 = vmatprep.subr.bf16.mxu0 0
      %409 = vmatpush1.bf16.xpose.msra.mxu0 0
      %410 = vmatprep.subr.bf16.mxu0 0
      %411 = vmatpush1.bf16.xpose.msra.mxu0 0
      %412 = vmatprep.subr.bf16.mxu0 0
      %413 = vmatpush1.bf16.xpose.msra.mxu0 0
      %414 = vmatprep.subr.bf16.mxu0 0
      %415 = vmatpush1.bf16.xpose.msra.mxu0 0
      %416 = vmatprep.subr.bf16.mxu0 0
      %417 = vmatpush1.bf16.xpose.msra.mxu0 0
      %418 = vmatprep.subr.bf16.mxu0 0
      %419 = vmatpush1.bf16.xpose.msra.mxu0 0
      %420 = vmatprep.subr.bf16.mxu0 0
      %421 = vmatpush1.bf16.xpose.msra.mxu0 0
      %422 = vmatprep.subr.bf16.mxu0 0
      %423 = vmatpush1.bf16.xpose.msra.mxu0 0
      %424 = vmatprep.subr.bf16.mxu0 0
      %425 = vmatpush1.bf16.xpose.msra.mxu0 0
      %426 = vmatprep.subr.bf16.mxu0 0
      %427 = vmatpush1.bf16.xpose.msra.mxu0 0
      %428 = vmatprep.subr.bf16.mxu0 0
      %429 = vmatpush1.bf16.xpose.msra.mxu0 0
      %430 = vmatprep.mubr.bf16.mxu0 0
      %431 = vmatmul.mubr.bf16.gmra.mrb[0].mxu0 %v393
      %v432 = vpop.f32.mrb[0].mxu0
      %v433 = vadd.f32 0.0, %v432
      %v434 = vpop.f32.mrb[0].mxu0
      %v435 = vpop.f32.mrb[0].mxu0
      %v436 = vpop.f32.mrb[0].mxu0
      %437 = vdwg.mxu0
      %v438 = vmul.f32 %v433, 0.17677669
      %v439 = vsel %vm326, %v438, -inf
      %440 = vmax.xlane.f32.xlu0 %v439
      %v441 = vpop.xlane.xlu0 %440
      %v442 = vsub.f32 %v438, %v441
      %v443 = vmul.f32 %v442, 1.442695
      %v444 = vpow.pop %v443
      %v445 = vsel %vm326, %v444, 0.0
      %446 = vadd.xlane.f32.xlu0 %v445
      %v447 = vpop.xlane.xlu0 %446
      %v448 = vrcp.pop %v447
      %v449 = vmul.f32 %v444, %v448
      %v450 = vpack.c.bf16 %v449, %v449
      %452 = vrot.lane.b32.xlu0 %v276, 96
      %v453 = vpop.permute.xlu0 %452
      %v455 = vsel %vm326, %v450, 0
      %v458 = vsel %vm342, %v453, 0
      %460 = vmatprep.subr.bf16.mxu0 0
      %461 = vmatpush1.bf16.msra.mxu0 %v458
      %462 = vmatprep.subr.bf16.mxu0 0
      %463 = vmatpush1.bf16.msra.mxu0 0
      %464 = vmatprep.subr.bf16.mxu0 0
      %465 = vmatpush1.bf16.msra.mxu0 0
      %466 = vmatprep.subr.bf16.mxu0 0
      %467 = vmatpush1.bf16.msra.mxu0 0
      %468 = vmatprep.subr.bf16.mxu0 0
      %469 = vmatpush1.bf16.msra.mxu0 0
      %470 = vmatprep.subr.bf16.mxu0 0
      %471 = vmatpush1.bf16.msra.mxu0 0
      %472 = vmatprep.subr.bf16.mxu0 0
      %473 = vmatpush1.bf16.msra.mxu0 0
      %474 = vmatprep.subr.bf16.mxu0 0
      %475 = vmatpush1.bf16.msra.mxu0 0
      %476 = vmatprep.subr.bf16.mxu0 0
      %477 = vmatpush1.bf16.msra.mxu0 0
      %478 = vmatprep.subr.bf16.mxu0 0
      %479 = vmatpush1.bf16.msra.mxu0 0
      %480 = vmatprep.subr.bf16.mxu0 0
      %481 = vmatpush1.bf16.msra.mxu0 0
      %482 = vmatprep.subr.bf16.mxu0 0
      %483 = vmatpush1.bf16.msra.mxu0 0
      %484 = vmatprep.subr.bf16.mxu0 0
      %485 = vmatpush1.bf16.msra.mxu0 0
      %486 = vmatprep.subr.bf16.mxu0 0
      %487 = vmatpush1.bf16.msra.mxu0 0
      %488 = vmatprep.subr.bf16.mxu0 0
      %489 = vmatpush1.bf16.msra.mxu0 0
      %490 = vmatprep.subr.bf16.mxu0 0
      %491 = vmatpush1.bf16.msra.mxu0 0
      %492 = vmatprep.mubr.bf16.mxu0 0
      %493 = vmatmul.mubr.bf16.gmra.mrb[0].mxu0 %v455
      %v494 = vpop.f32.mrb[0].mxu0
      %v495 = vadd.f32 0.0, %v494
      %v496 = vpop.f32.mrb[0].mxu0
      %v497 = vpop.f32.mrb[0].mxu0
      %v498 = vpop.f32.mrb[0].mxu0
      %499 = vdwg.mxu0
      %500 = vrot.lane.b32.xlu0 %v268, 64
      %v501 = vpop.permute.xlu0 %500
      %502 = vrot.lane.b32.xlu0 %v272, 64
      %v503 = vpop.permute.xlu0 %502
      %v505 = vsel %vm278, %v501, 0
      %v508 = vsel %vm278, %v503, 0
      %510 = vmatprep.subr.bf16.mxu0 0
      %511 = vmatpush1.bf16.xpose.msra.mxu0 %v508
      %512 = vmatprep.subr.bf16.mxu0 0
      %513 = vmatpush1.bf16.xpose.msra.mxu0 0
      %514 = vmatprep.subr.bf16.mxu0 0
      %515 = vmatpush1.bf16.xpose.msra.mxu0 0
      %516 = vmatprep.subr.bf16.mxu0 0
      %517 = vmatpush1.bf16.xpose.msra.mxu0 0
      %518 = vmatprep.subr.bf16.mxu0 0
      %519 = vmatpush1.bf16.xpose.msra.mxu0 0
      %520 = vmatprep.subr.bf16.mxu0 0
      %521 = vmatpush1.bf16.xpose.msra.mxu0 0
      %522 = vmatprep.subr.bf16.mxu0 0
      %523 = vmatpush1.bf16.xpose.msra.mxu0 0
      %524 = vmatprep.subr.bf16.mxu0 0
      %525 = vmatpush1.bf16.xpose.msra.mxu0 0
      %526 = vmatprep.subr.bf16.mxu0 0
      %527 = vmatpush1.bf16.xpose.msra.mxu0 0
      %528 = vmatprep.subr.bf16.mxu0 0
      %529 = vmatpush1.bf16.xpose.msra.mxu0 0
      %530 = vmatprep.subr.bf16.mxu0 0
      %531 = vmatpush1.bf16.xpose.msra.mxu0 0
      %532 = vmatprep.subr.bf16.mxu0 0
      %533 = vmatpush1.bf16.xpose.msra.mxu0 0
      %534 = vmatprep.subr.bf16.mxu0 0
      %535 = vmatpush1.bf16.xpose.msra.mxu0 0
      %536 = vmatprep.subr.bf16.mxu0 0
      %537 = vmatpush1.bf16.xpose.msra.mxu0 0
      %538 = vmatprep.subr.bf16.mxu0 0
      %539 = vmatpush1.bf16.xpose.msra.mxu0 0
      %540 = vmatprep.subr.bf16.mxu0 0
      %541 = vmatpush1.bf16.xpose.msra.mxu0 0
      %542 = vmatprep.mubr.bf16.mxu0 0
      %543 = vmatmul.mubr.bf16.gmra.mrb[0].mxu0 %v505
      %v544 = vpop.f32.mrb[0].mxu0
      %v545 = vadd.f32 0.0, %v544
      %v546 = vpop.f32.mrb[0].mxu0
      %v547 = vpop.f32.mrb[0].mxu0
      %v548 = vpop.f32.mrb[0].mxu0
      %549 = vdwg.mxu0
      %v550 = vmul.f32 %v545, 0.17677669
      %v551 = vsel %vm326, %v550, -inf
      %552 = vmax.xlane.f32.xlu0 %v551
      %v553 = vpop.xlane.xlu0 %552
      %v554 = vsub.f32 %v550, %v553
      %v555 = vmul.f32 %v554, 1.442695
      %v556 = vpow.pop %v555
      %v557 = vsel %vm326, %v556, 0.0
      %558 = vadd.xlane.f32.xlu0 %v557
      %v559 = vpop.xlane.xlu0 %558
      %v560 = vrcp.pop %v559
      %v561 = vmul.f32 %v556, %v560
      %v562 = vpack.c.bf16 %v561, %v561
      %563 = vrot.lane.b32.xlu0 %v276, 64
      %v564 = vpop.permute.xlu0 %563
      %v566 = vsel %vm326, %v562, 0
      %v569 = vsel %vm342, %v564, 0
      %571 = vmatprep.subr.bf16.mxu0 0
      %572 = vmatpush1.bf16.msra.mxu0 %v569
      %573 = vmatprep.subr.bf16.mxu0 0
      %574 = vmatpush1.bf16.msra.mxu0 0
      %575 = vmatprep.subr.bf16.mxu0 0
      %576 = vmatpush1.bf16.msra.mxu0 0
      %577 = vmatprep.subr.bf16.mxu0 0
      %578 = vmatpush1.bf16.msra.mxu0 0
      %579 = vmatprep.subr.bf16.mxu0 0
      %580 = vmatpush1.bf16.msra.mxu0 0
      %581 = vmatprep.subr.bf16.mxu0 0
      %582 = vmatpush1.bf16.msra.mxu0 0
      %583 = vmatprep.subr.bf16.mxu0 0
      %584 = vmatpush1.bf16.msra.mxu0 0
      %585 = vmatprep.subr.bf16.mxu0 0
      %586 = vmatpush1.bf16.msra.mxu0 0
      %587 = vmatprep.subr.bf16.mxu0 0
      %588 = vmatpush1.bf16.msra.mxu0 0
      %589 = vmatprep.subr.bf16.mxu0 0
      %590 = vmatpush1.bf16.msra.mxu0 0
      %591 = vmatprep.subr.bf16.mxu0 0
      %592 = vmatpush1.bf16.msra.mxu0 0
      %593 = vmatprep.subr.bf16.mxu0 0
      %594 = vmatpush1.bf16.msra.mxu0 0
      %595 = vmatprep.subr.bf16.mxu0 0
      %596 = vmatpush1.bf16.msra.mxu0 0
      %597 = vmatprep.subr.bf16.mxu0 0
      %598 = vmatpush1.bf16.msra.mxu0 0
      %599 = vmatprep.subr.bf16.mxu0 0
      %600 = vmatpush1.bf16.msra.mxu0 0
      %601 = vmatprep.subr.bf16.mxu0 0
      %602 = vmatpush1.bf16.msra.mxu0 0
      %603 = vmatprep.mubr.bf16.mxu0 0
      %604 = vmatmul.mubr.bf16.gmra.mrb[0].mxu0 %v566
      %v605 = vpop.f32.mrb[0].mxu0
      %v606 = vadd.f32 0.0, %v605
      %v607 = vpop.f32.mrb[0].mxu0
      %v608 = vpop.f32.mrb[0].mxu0
      %v609 = vpop.f32.mrb[0].mxu0
      %610 = vdwg.mxu0
      %611 = vrot.lane.b32.xlu0 %v268, 32
      %v612 = vpop.permute.xlu0 %611
      %613 = vrot.lane.b32.xlu0 %v272, 32
      %v614 = vpop.permute.xlu0 %613
      %v616 = vsel %vm278, %v612, 0
      %v619 = vsel %vm278, %v614, 0
      %621 = vmatprep.subr.bf16.mxu0 0
      %622 = vmatpush1.bf16.xpose.msra.mxu0 %v619
      %623 = vmatprep.subr.bf16.mxu0 0
      %624 = vmatpush1.bf16.xpose.msra.mxu0 0
      %625 = vmatprep.subr.bf16.mxu0 0
      %626 = vmatpush1.bf16.xpose.msra.mxu0 0
      %627 = vmatprep.subr.bf16.mxu0 0
      %628 = vmatpush1.bf16.xpose.msra.mxu0 0
      %629 = vmatprep.subr.bf16.mxu0 0
      %630 = vmatpush1.bf16.xpose.msra.mxu0 0
      %631 = vmatprep.subr.bf16.mxu0 0
      %632 = vmatpush1.bf16.xpose.msra.mxu0 0
      %633 = vmatprep.subr.bf16.mxu0 0
      %634 = vmatpush1.bf16.xpose.msra.mxu0 0
      %635 = vmatprep.subr.bf16.mxu0 0
      %636 = vmatpush1.bf16.xpose.msra.mxu0 0
      %637 = vmatprep.subr.bf16.mxu0 0
      %638 = vmatpush1.bf16.xpose.msra.mxu0 0
      %639 = vmatprep.subr.bf16.mxu0 0
      %640 = vmatpush1.bf16.xpose.msra.mxu0 0
      %641 = vmatprep.subr.bf16.mxu0 0
      %642 = vmatpush1.bf16.xpose.msra.mxu0 0
      %643 = vmatprep.subr.bf16.mxu0 0
      %644 = vmatpush1.bf16.xpose.msra.mxu0 0
      %645 = vmatprep.subr.bf16.mxu0 0
      %646 = vmatpush1.bf16.xpose.msra.mxu0 0
      %647 = vmatprep.subr.bf16.mxu0 0
      %648 = vmatpush1.bf16.xpose.msra.mxu0 0
      %649 = vmatprep.subr.bf16.mxu0 0
      %650 = vmatpush1.bf16.xpose.msra.mxu0 0
      %651 = vmatprep.subr.bf16.mxu0 0
      %652 = vmatpush1.bf16.xpose.msra.mxu0 0
      %653 = vmatprep.mubr.bf16.mxu0 0
      %654 = vmatmul.mubr.bf16.gmra.mrb[0].mxu0 %v616
      %v655 = vpop.f32.mrb[0].mxu0
      %v656 = vadd.f32 0.0, %v655
      %v657 = vpop.f32.mrb[0].mxu0
      %v658 = vpop.f32.mrb[0].mxu0
      %v659 = vpop.f32.mrb[0].mxu0
      %660 = vdwg.mxu0
      %v661 = vmul.f32 %v656, 0.17677669
      %v662 = vsel %vm326, %v661, -inf
      %663 = vmax.xlane.f32.xlu0 %v662
      %v664 = vpop.xlane.xlu0 %663
      %v665 = vsub.f32 %v661, %v664
      %v666 = vmul.f32 %v665, 1.442695
      %v667 = vpow.pop %v666
      %v668 = vsel %vm326, %v667, 0.0
      %669 = vadd.xlane.f32.xlu0 %v668
      %v670 = vpop.xlane.xlu0 %669
      %v671 = vrcp.pop %v670
      %v672 = vmul.f32 %v667, %v671
      %v673 = vpack.c.bf16 %v672, %v672
      %674 = vrot.lane.b32.xlu0 %v276, 32
      %v675 = vpop.permute.xlu0 %674
      %v677 = vsel %vm326, %v673, 0
      %v680 = vsel %vm342, %v675, 0
      %682 = vmatprep.subr.bf16.mxu0 0
      %683 = vmatpush1.bf16.msra.mxu0 %v680
      %684 = vmatprep.subr.bf16.mxu0 0
      %685 = vmatpush1.bf16.msra.mxu0 0
      %686 = vmatprep.subr.bf16.mxu0 0
      %687 = vmatpush1.bf16.msra.mxu0 0
      %688 = vmatprep.subr.bf16.mxu0 0
      %689 = vmatpush1.bf16.msra.mxu0 0
      %690 = vmatprep.subr.bf16.mxu0 0
      %691 = vmatpush1.bf16.msra.mxu0 0
      %692 = vmatprep.subr.bf16.mxu0 0
      %693 = vmatpush1.bf16.msra.mxu0 0
      %694 = vmatprep.subr.bf16.mxu0 0
      %695 = vmatpush1.bf16.msra.mxu0 0
      %696 = vmatprep.subr.bf16.mxu0 0
      %697 = vmatpush1.bf16.msra.mxu0 0
      %698 = vmatprep.subr.bf16.mxu0 0
      %699 = vmatpush1.bf16.msra.mxu0 0
      %700 = vmatprep.subr.bf16.mxu0 0
      %701 = vmatpush1.bf16.msra.mxu0 0
      %702 = vmatprep.subr.bf16.mxu0 0
      %703 = vmatpush1.bf16.msra.mxu0 0
      %704 = vmatprep.subr.bf16.mxu0 0
      %705 = vmatpush1.bf16.msra.mxu0 0
      %706 = vmatprep.subr.bf16.mxu0 0
      %707 = vmatpush1.bf16.msra.mxu0 0
      %708 = vmatprep.subr.bf16.mxu0 0
      %709 = vmatpush1.bf16.msra.mxu0 0
      %710 = vmatprep.subr.bf16.mxu0 0
      %711 = vmatpush1.bf16.msra.mxu0 0
      %712 = vmatprep.subr.bf16.mxu0 0
      %713 = vmatpush1.bf16.msra.mxu0 0
      %714 = vmatprep.mubr.bf16.mxu0 0
      %715 = vmatmul.mubr.bf16.gmra.mrb[0].mxu0 %v677
      %v716 = vpop.f32.mrb[0].mxu0
      %v717 = vadd.f32 0.0, %v716
      %v718 = vpop.f32.mrb[0].mxu0
      %v719 = vpop.f32.mrb[0].mxu0
      %v720 = vpop.f32.mrb[0].mxu0
      %721 = vdwg.mxu0
      %v723 = vsel %vm278, %v269, 0
      %v726 = vsel %vm278, %v273, 0
      %728 = vmatprep.subr.bf16.mxu0 0
      %729 = vmatpush1.bf16.xpose.msra.mxu0 %v726
      %730 = vmatprep.subr.bf16.mxu0 0
      %731 = vmatpush1.bf16.xpose.msra.mxu0 0
      %732 = vmatprep.subr.bf16.mxu0 0
      %733 = vmatpush1.bf16.xpose.msra.mxu0 0
      %734 = vmatprep.subr.bf16.mxu0 0
      %735 = vmatpush1.bf16.xpose.msra.mxu0 0
      %736 = vmatprep.subr.bf16.mxu0 0
      %737 = vmatpush1.bf16.xpose.msra.mxu0 0
      %738 = vmatprep.subr.bf16.mxu0 0
      %739 = vmatpush1.bf16.xpose.msra.mxu0 0
      %740 = vmatprep.subr.bf16.mxu0 0
      %741 = vmatpush1.bf16.xpose.msra.mxu0 0
      %742 = vmatprep.subr.bf16.mxu0 0
      %743 = vmatpush1.bf16.xpose.msra.mxu0 0
      %744 = vmatprep.subr.bf16.mxu0 0
      %745 = vmatpush1.bf16.xpose.msra.mxu0 0
      %746 = vmatprep.subr.bf16.mxu0 0
      %747 = vmatpush1.bf16.xpose.msra.mxu0 0
      %748 = vmatprep.subr.bf16.mxu0 0
      %749 = vmatpush1.bf16.xpose.msra.mxu0 0
      %750 = vmatprep.subr.bf16.mxu0 0
      %751 = vmatpush1.bf16.xpose.msra.mxu0 0
      %752 = vmatprep.subr.bf16.mxu0 0
      %753 = vmatpush1.bf16.xpose.msra.mxu0 0
      %754 = vmatprep.subr.bf16.mxu0 0
      %755 = vmatpush1.bf16.xpose.msra.mxu0 0
      %756 = vmatprep.subr.bf16.mxu0 0
      %757 = vmatpush1.bf16.xpose.msra.mxu0 0
      %758 = vmatprep.subr.bf16.mxu0 0
      %759 = vmatpush1.bf16.xpose.msra.mxu0 0
      %760 = vmatprep.mubr.bf16.mxu0 0
      %761 = vmatmul.mubr.bf16.gmra.mrb[0].mxu0 %v723
      %v762 = vpop.f32.mrb[0].mxu0
      %v763 = vadd.f32 0.0, %v762
      %v764 = vpop.f32.mrb[0].mxu0
      %v765 = vpop.f32.mrb[0].mxu0
      %v766 = vpop.f32.mrb[0].mxu0
      %767 = vdwg.mxu0
      %v768 = vmul.f32 %v763, 0.17677669
      %v769 = vsel %vm326, %v768, -inf
      %770 = vmax.xlane.f32.xlu0 %v769
      %v771 = vpop.xlane.xlu0 %770
      %v772 = vsub.f32 %v768, %v771
      %v773 = vmul.f32 %v772, 1.442695
      %v774 = vpow.pop %v773
      %v775 = vsel %vm326, %v774, 0.0
      %776 = vadd.xlane.f32.xlu0 %v775
      %v777 = vpop.xlane.xlu0 %776
      %v778 = vrcp.pop %v777
      %v779 = vmul.f32 %v774, %v778
      %v780 = vpack.c.bf16 %v779, %v779
      %v782 = vsel %vm326, %v780, 0
      %v785 = vsel %vm342, %v277, 0
      %787 = vmatprep.subr.bf16.mxu0 0
      %788 = vmatpush1.bf16.msra.mxu0 %v785
      %789 = vmatprep.subr.bf16.mxu0 0
      %790 = vmatpush1.bf16.msra.mxu0 0
      %791 = vmatprep.subr.bf16.mxu0 0
      %792 = vmatpush1.bf16.msra.mxu0 0
      %793 = vmatprep.subr.bf16.mxu0 0
      %794 = vmatpush1.bf16.msra.mxu0 0
      %795 = vmatprep.subr.bf16.mxu0 0
      %796 = vmatpush1.bf16.msra.mxu0 0
      %797 = vmatprep.subr.bf16.mxu0 0
      %798 = vmatpush1.bf16.msra.mxu0 0
      %799 = vmatprep.subr.bf16.mxu0 0
      %800 = vmatpush1.bf16.msra.mxu0 0
      %801 = vmatprep.subr.bf16.mxu0 0
      %802 = vmatpush1.bf16.msra.mxu0 0
      %803 = vmatprep.subr.bf16.mxu0 0
      %804 = vmatpush1.bf16.msra.mxu0 0
      %805 = vmatprep.subr.bf16.mxu0 0
      %806 = vmatpush1.bf16.msra.mxu0 0
      %807 = vmatprep.subr.bf16.mxu0 0
      %808 = vmatpush1.bf16.msra.mxu0 0
      %809 = vmatprep.subr.bf16.mxu0 0
      %810 = vmatpush1.bf16.msra.mxu0 0
      %811 = vmatprep.subr.bf16.mxu0 0
      %812 = vmatpush1.bf16.msra.mxu0 0
      %813 = vmatprep.subr.bf16.mxu0 0
      %814 = vmatpush1.bf16.msra.mxu0 0
      %815 = vmatprep.subr.bf16.mxu0 0
      %816 = vmatpush1.bf16.msra.mxu0 0
      %817 = vmatprep.subr.bf16.mxu0 0
      %818 = vmatpush1.bf16.msra.mxu0 0
      %819 = vmatprep.mubr.bf16.mxu0 0
      %820 = vmatmul.mubr.bf16.gmra.mrb[0].mxu0 %v782
      %v821 = vpop.f32.mrb[0].mxu0
      %v822 = vadd.f32 0.0, %v821
      %v823 = vpop.f32.mrb[0].mxu0
      %v824 = vpop.f32.mrb[0].mxu0
      %v825 = vpop.f32.mrb[0].mxu0
      %826 = vdwg.mxu0
      %828 = vrot.lane.b32.xlu0 %v269, 96
      %v829 = vpop.permute.xlu0 %828
      %831 = vrot.lane.b32.xlu0 %v273, 96
      %v832 = vpop.permute.xlu0 %831
      %v834 = vsel %vm278, %v829, 0
      %v837 = vsel %vm278, %v832, 0
      %839 = vmatprep.subr.bf16.mxu0 0
      %840 = vmatpush1.bf16.xpose.msra.mxu0 %v837
      %841 = vmatprep.subr.bf16.mxu0 0
      %842 = vmatpush1.bf16.xpose.msra.mxu0 0
      %843 = vmatprep.subr.bf16.mxu0 0
      %844 = vmatpush1.bf16.xpose.msra.mxu0 0
      %845 = vmatprep.subr.bf16.mxu0 0
      %846 = vmatpush1.bf16.xpose.msra.mxu0 0
      %847 = vmatprep.subr.bf16.mxu0 0
      %848 = vmatpush1.bf16.xpose.msra.mxu0 0
      %849 = vmatprep.subr.bf16.mxu0 0
      %850 = vmatpush1.bf16.xpose.msra.mxu0 0
      %851 = vmatprep.subr.bf16.mxu0 0
      %852 = vmatpush1.bf16.xpose.msra.mxu0 0
      %853 = vmatprep.subr.bf16.mxu0 0
      %854 = vmatpush1.bf16.xpose.msra.mxu0 0
      %855 = vmatprep.subr.bf16.mxu0 0
      %856 = vmatpush1.bf16.xpose.msra.mxu0 0
      %857 = vmatprep.subr.bf16.mxu0 0
      %858 = vmatpush1.bf16.xpose.msra.mxu0 0
      %859 = vmatprep.subr.bf16.mxu0 0
      %860 = vmatpush1.bf16.xpose.msra.mxu0 0
      %861 = vmatprep.subr.bf16.mxu0 0
      %862 = vmatpush1.bf16.xpose.msra.mxu0 0
      %863 = vmatprep.subr.bf16.mxu0 0
      %864 = vmatpush1.bf16.xpose.msra.mxu0 0
      %865 = vmatprep.subr.bf16.mxu0 0
      %866 = vmatpush1.bf16.xpose.msra.mxu0 0
      %867 = vmatprep.subr.bf16.mxu0 0
      %868 = vmatpush1.bf16.xpose.msra.mxu0 0
      %869 = vmatprep.subr.bf16.mxu0 0
      %870 = vmatpush1.bf16.xpose.msra.mxu0 0
      %871 = vmatprep.mubr.bf16.mxu0 0
      %872 = vmatmul.mubr.bf16.gmra.mrb[0].mxu0 %v834
      %v873 = vpop.f32.mrb[0].mxu0
      %v874 = vadd.f32 0.0, %v873
      %v875 = vpop.f32.mrb[0].mxu0
      %v876 = vpop.f32.mrb[0].mxu0
      %v877 = vpop.f32.mrb[0].mxu0
      %878 = vdwg.mxu0
      %v879 = vmul.f32 %v874, 0.17677669
      %v880 = vsel %vm326, %v879, -inf
      %881 = vmax.xlane.f32.xlu0 %v880
      %v882 = vpop.xlane.xlu0 %881
      %v883 = vsub.f32 %v879, %v882
      %v884 = vmul.f32 %v883, 1.442695
      %v885 = vpow.pop %v884
      %v886 = vsel %vm326, %v885, 0.0
      %887 = vadd.xlane.f32.xlu0 %v886
      %v888 = vpop.xlane.xlu0 %887
      %v889 = vrcp.pop %v888
      %v890 = vmul.f32 %v885, %v889
      %v891 = vpack.c.bf16 %v890, %v890
      %893 = vrot.lane.b32.xlu0 %v277, 96
      %v894 = vpop.permute.xlu0 %893
      %v896 = vsel %vm326, %v891, 0
      %v899 = vsel %vm342, %v894, 0
      %901 = vmatprep.subr.bf16.mxu0 0
      %902 = vmatpush1.bf16.msra.mxu0 %v899
      %903 = vmatprep.subr.bf16.mxu0 0
      %904 = vmatpush1.bf16.msra.mxu0 0
      %905 = vmatprep.subr.bf16.mxu0 0
      %906 = vmatpush1.bf16.msra.mxu0 0
      %907 = vmatprep.subr.bf16.mxu0 0
      %908 = vmatpush1.bf16.msra.mxu0 0
      %909 = vmatprep.subr.bf16.mxu0 0
      %910 = vmatpush1.bf16.msra.mxu0 0
      %911 = vmatprep.subr.bf16.mxu0 0
      %912 = vmatpush1.bf16.msra.mxu0 0
      %913 = vmatprep.subr.bf16.mxu0 0
      %914 = vmatpush1.bf16.msra.mxu0 0
      %915 = vmatprep.subr.bf16.mxu0 0
      %916 = vmatpush1.bf16.msra.mxu0 0
      %917 = vmatprep.subr.bf16.mxu0 0
      %918 = vmatpush1.bf16.msra.mxu0 0
      %919 = vmatprep.subr.bf16.mxu0 0
      %920 = vmatpush1.bf16.msra.mxu0 0
      %921 = vmatprep.subr.bf16.mxu0 0
      %922 = vmatpush1.bf16.msra.mxu0 0
      %923 = vmatprep.subr.bf16.mxu0 0
      %924 = vmatpush1.bf16.msra.mxu0 0
      %925 = vmatprep.subr.bf16.mxu0 0
      %926 = vmatpush1.bf16.msra.mxu0 0
      %927 = vmatprep.subr.bf16.mxu0 0
      %928 = vmatpush1.bf16.msra.mxu0 0
      %929 = vmatprep.subr.bf16.mxu0 0
      %930 = vmatpush1.bf16.msra.mxu0 0
      %931 = vmatprep.subr.bf16.mxu0 0
      %932 = vmatpush1.bf16.msra.mxu0 0
      %933 = vmatprep.mubr.bf16.mxu0 0
      %934 = vmatmul.mubr.bf16.gmra.mrb[0].mxu0 %v896
      %v935 = vpop.f32.mrb[0].mxu0
      %v936 = vadd.f32 0.0, %v935
      %v937 = vpop.f32.mrb[0].mxu0
      %v938 = vpop.f32.mrb[0].mxu0
      %v939 = vpop.f32.mrb[0].mxu0
      %940 = vdwg.mxu0
      %941 = vrot.lane.b32.xlu0 %v269, 64
      %v942 = vpop.permute.xlu0 %941
      %943 = vrot.lane.b32.xlu0 %v273, 64
      %v944 = vpop.permute.xlu0 %943
      %v946 = vsel %vm278, %v942, 0
      %v949 = vsel %vm278, %v944, 0
      %951 = vmatprep.subr.bf16.mxu0 0
      %952 = vmatpush1.bf16.xpose.msra.mxu0 %v949
      %953 = vmatprep.subr.bf16.mxu0 0
      %954 = vmatpush1.bf16.xpose.msra.mxu0 0
      %955 = vmatprep.subr.bf16.mxu0 0
      %956 = vmatpush1.bf16.xpose.msra.mxu0 0
      %957 = vmatprep.subr.bf16.mxu0 0
      %958 = vmatpush1.bf16.xpose.msra.mxu0 0
      %959 = vmatprep.subr.bf16.mxu0 0
      %960 = vmatpush1.bf16.xpose.msra.mxu0 0
      %961 = vmatprep.subr.bf16.mxu0 0
      %962 = vmatpush1.bf16.xpose.msra.mxu0 0
      %963 = vmatprep.subr.bf16.mxu0 0
      %964 = vmatpush1.bf16.xpose.msra.mxu0 0
      %965 = vmatprep.subr.bf16.mxu0 0
      %966 = vmatpush1.bf16.xpose.msra.mxu0 0
      %967 = vmatprep.subr.bf16.mxu0 0
      %968 = vmatpush1.bf16.xpose.msra.mxu0 0
      %969 = vmatprep.subr.bf16.mxu0 0
      %970 = vmatpush1.bf16.xpose.msra.mxu0 0
      %971 = vmatprep.subr.bf16.mxu0 0
      %972 = vmatpush1.bf16.xpose.msra.mxu0 0
      %973 = vmatprep.subr.bf16.mxu0 0
      %974 = vmatpush1.bf16.xpose.msra.mxu0 0
      %975 = vmatprep.subr.bf16.mxu0 0
      %976 = vmatpush1.bf16.xpose.msra.mxu0 0
      %977 = vmatprep.subr.bf16.mxu0 0
      %978 = vmatpush1.bf16.xpose.msra.mxu0 0
      %979 = vmatprep.subr.bf16.mxu0 0
      %980 = vmatpush1.bf16.xpose.msra.mxu0 0
      %981 = vmatprep.subr.bf16.mxu0 0
      %982 = vmatpush1.bf16.xpose.msra.mxu0 0
      %983 = vmatprep.mubr.bf16.mxu0 0
      %984 = vmatmul.mubr.bf16.gmra.mrb[0].mxu0 %v946
      %v985 = vpop.f32.mrb[0].mxu0
      %v986 = vadd.f32 0.0, %v985
      %v987 = vpop.f32.mrb[0].mxu0
      %v988 = vpop.f32.mrb[0].mxu0
      %v989 = vpop.f32.mrb[0].mxu0
      %990 = vdwg.mxu0
      %v991 = vmul.f32 %v986, 0.17677669
      %v992 = vsel %vm326, %v991, -inf
      %993 = vmax.xlane.f32.xlu0 %v992
      %v994 = vpop.xlane.xlu0 %993
      %v995 = vsub.f32 %v991, %v994
      %v996 = vmul.f32 %v995, 1.442695
      %v997 = vpow.pop %v996
      %v998 = vsel %vm326, %v997, 0.0
      %999 = vadd.xlane.f32.xlu0 %v998
      %v1000 = vpop.xlane.xlu0 %999
      %v1001 = vrcp.pop %v1000
      %v1002 = vmul.f32 %v997, %v1001
      %v1003 = vpack.c.bf16 %v1002, %v1002
      %1004 = vrot.lane.b32.xlu0 %v277, 64
      %v1005 = vpop.permute.xlu0 %1004
      %v1007 = vsel %vm326, %v1003, 0
      %v1010 = vsel %vm342, %v1005, 0
      %1012 = vmatprep.subr.bf16.mxu0 0
      %1013 = vmatpush1.bf16.msra.mxu0 %v1010
      %1014 = vmatprep.subr.bf16.mxu0 0
      %1015 = vmatpush1.bf16.msra.mxu0 0
      %1016 = vmatprep.subr.bf16.mxu0 0
      %1017 = vmatpush1.bf16.msra.mxu0 0
      %1018 = vmatprep.subr.bf16.mxu0 0
      %1019 = vmatpush1.bf16.msra.mxu0 0
      %1020 = vmatprep.subr.bf16.mxu0 0
      %1021 = vmatpush1.bf16.msra.mxu0 0
      %1022 = vmatprep.subr.bf16.mxu0 0
      %1023 = vmatpush1.bf16.msra.mxu0 0
      %1024 = vmatprep.subr.bf16.mxu0 0
      %1025 = vmatpush1.bf16.msra.mxu0 0
      %1026 = vmatprep.subr.bf16.mxu0 0
      %1027 = vmatpush1.bf16.msra.mxu0 0
      %1028 = vmatprep.subr.bf16.mxu0 0
      %1029 = vmatpush1.bf16.msra.mxu0 0
      %1030 = vmatprep.subr.bf16.mxu0 0
      %1031 = vmatpush1.bf16.msra.mxu0 0
      %1032 = vmatprep.subr.bf16.mxu0 0
      %1033 = vmatpush1.bf16.msra.mxu0 0
      %1034 = vmatprep.subr.bf16.mxu0 0
      %1035 = vmatpush1.bf16.msra.mxu0 0
      %1036 = vmatprep.subr.bf16.mxu0 0
      %1037 = vmatpush1.bf16.msra.mxu0 0
      %1038 = vmatprep.subr.bf16.mxu0 0
      %1039 = vmatpush1.bf16.msra.mxu0 0
      %1040 = vmatprep.subr.bf16.mxu0 0
      %1041 = vmatpush1.bf16.msra.mxu0 0
      %1042 = vmatprep.subr.bf16.mxu0 0
      %1043 = vmatpush1.bf16.msra.mxu0 0
      %1044 = vmatprep.mubr.bf16.mxu0 0
      %1045 = vmatmul.mubr.bf16.gmra.mrb[0].mxu0 %v1007
      %v1046 = vpop.f32.mrb[0].mxu0
      %v1047 = vadd.f32 0.0, %v1046
      %v1048 = vpop.f32.mrb[0].mxu0
      %v1049 = vpop.f32.mrb[0].mxu0
      %v1050 = vpop.f32.mrb[0].mxu0
      %1051 = vdwg.mxu0
      %1052 = vrot.lane.b32.xlu0 %v269, 32
      %v1053 = vpop.permute.xlu0 %1052
      %1054 = vrot.lane.b32.xlu0 %v273, 32
      %v1055 = vpop.permute.xlu0 %1054
      %v1057 = vsel %vm278, %v1053, 0
      %v1060 = vsel %vm278, %v1055, 0
      %1062 = vmatprep.subr.bf16.mxu0 0
      %1063 = vmatpush1.bf16.xpose.msra.mxu0 %v1060
      %1064 = vmatprep.subr.bf16.mxu0 0
      %1065 = vmatpush1.bf16.xpose.msra.mxu0 0
      %1066 = vmatprep.subr.bf16.mxu0 0
      %1067 = vmatpush1.bf16.xpose.msra.mxu0 0
      %1068 = vmatprep.subr.bf16.mxu0 0
      %1069 = vmatpush1.bf16.xpose.msra.mxu0 0
      %1070 = vmatprep.subr.bf16.mxu0 0
      %1071 = vmatpush1.bf16.xpose.msra.mxu0 0
      %1072 = vmatprep.subr.bf16.mxu0 0
      %1073 = vmatpush1.bf16.xpose.msra.mxu0 0
      %1074 = vmatprep.subr.bf16.mxu0 0
      %1075 = vmatpush1.bf16.xpose.msra.mxu0 0
      %1076 = vmatprep.subr.bf16.mxu0 0
      %1077 = vmatpush1.bf16.xpose.msra.mxu0 0
      %1078 = vmatprep.subr.bf16.mxu0 0
      %1079 = vmatpush1.bf16.xpose.msra.mxu0 0
      %1080 = vmatprep.subr.bf16.mxu0 0
      %1081 = vmatpush1.bf16.xpose.msra.mxu0 0
      %1082 = vmatprep.subr.bf16.mxu0 0
      %1083 = vmatpush1.bf16.xpose.msra.mxu0 0
      %1084 = vmatprep.subr.bf16.mxu0 0
      %1085 = vmatpush1.bf16.xpose.msra.mxu0 0
      %1086 = vmatprep.subr.bf16.mxu0 0
      %1087 = vmatpush1.bf16.xpose.msra.mxu0 0
      %1088 = vmatprep.subr.bf16.mxu0 0
      %1089 = vmatpush1.bf16.xpose.msra.mxu0 0
      %1090 = vmatprep.subr.bf16.mxu0 0
      %1091 = vmatpush1.bf16.xpose.msra.mxu0 0
      %1092 = vmatprep.subr.bf16.mxu0 0
      %1093 = vmatpush1.bf16.xpose.msra.mxu0 0
      %1094 = vmatprep.mubr.bf16.mxu0 0
      %1095 = vmatmul.mubr.bf16.gmra.mrb[0].mxu0 %v1057
      %v1096 = vpop.f32.mrb[0].mxu0
      %v1097 = vadd.f32 0.0, %v1096
      %v1098 = vpop.f32.mrb[0].mxu0
      %v1099 = vpop.f32.mrb[0].mxu0
      %v1100 = vpop.f32.mrb[0].mxu0
      %1101 = vdwg.mxu0
      %v1102 = vmul.f32 %v1097, 0.17677669
      %v1103 = vsel %vm326, %v1102, -inf
      %1104 = vmax.xlane.f32.xlu0 %v1103
      %v1105 = vpop.xlane.xlu0 %1104
      %v1106 = vsub.f32 %v1102, %v1105
      %v1107 = vmul.f32 %v1106, 1.442695
      %v1108 = vpow.pop %v1107
      %v1109 = vsel %vm326, %v1108, 0.0
      %1110 = vadd.xlane.f32.xlu0 %v1109
      %v1111 = vpop.xlane.xlu0 %1110
      %v1112 = vrcp.pop %v1111
      %v1113 = vmul.f32 %v1108, %v1112
      %v1114 = vpack.c.bf16 %v1113, %v1113
      %1115 = vrot.lane.b32.xlu0 %v277, 32
      %v1116 = vpop.permute.xlu0 %1115
      %v1118 = vsel %vm326, %v1114, 0
      %v1121 = vsel %vm342, %v1116, 0
      %1123 = vmatprep.subr.bf16.mxu0 0
      %1124 = vmatpush1.bf16.msra.mxu0 %v1121
      %1125 = vmatprep.subr.bf16.mxu0 0
      %1126 = vmatpush1.bf16.msra.mxu0 0
      %1127 = vmatprep.subr.bf16.mxu0 0
      %1128 = vmatpush1.bf16.msra.mxu0 0
      %1129 = vmatprep.subr.bf16.mxu0 0
      %1130 = vmatpush1.bf16.msra.mxu0 0
      %1131 = vmatprep.subr.bf16.mxu0 0
      %1132 = vmatpush1.bf16.msra.mxu0 0
      %1133 = vmatprep.subr.bf16.mxu0 0
      %1134 = vmatpush1.bf16.msra.mxu0 0
      %1135 = vmatprep.subr.bf16.mxu0 0
      %1136 = vmatpush1.bf16.msra.mxu0 0
      %1137 = vmatprep.subr.bf16.mxu0 0
      %1138 = vmatpush1.bf16.msra.mxu0 0
      %1139 = vmatprep.subr.bf16.mxu0 0
      %1140 = vmatpush1.bf16.msra.mxu0 0
      %1141 = vmatprep.subr.bf16.mxu0 0
      %1142 = vmatpush1.bf16.msra.mxu0 0
      %1143 = vmatprep.subr.bf16.mxu0 0
      %1144 = vmatpush1.bf16.msra.mxu0 0
      %1145 = vmatprep.subr.bf16.mxu0 0
      %1146 = vmatpush1.bf16.msra.mxu0 0
      %1147 = vmatprep.subr.bf16.mxu0 0
      %1148 = vmatpush1.bf16.msra.mxu0 0
      %1149 = vmatprep.subr.bf16.mxu0 0
      %1150 = vmatpush1.bf16.msra.mxu0 0
      %1151 = vmatprep.subr.bf16.mxu0 0
      %1152 = vmatpush1.bf16.msra.mxu0 0
      %1153 = vmatprep.subr.bf16.mxu0 0
      %1154 = vmatpush1.bf16.msra.mxu0 0
      %1155 = vmatprep.mubr.bf16.mxu0 0
      %1156 = vmatmul.mubr.bf16.gmra.mrb[0].mxu0 %v1118
      %v1157 = vpop.f32.mrb[0].mxu0
      %v1158 = vadd.f32 0.0, %v1157
      %v1159 = vpop.f32.mrb[0].mxu0
      %v1160 = vpop.f32.mrb[0].mxu0
      %v1161 = vpop.f32.mrb[0].mxu0
      %1162 = vdwg.mxu0
      %1164 = vrot.lane.b32.xlu0 %v495, 32
      %v1165 = vpop.permute.xlu0 %1164
      %1168 = vrot.lane.b32.xlu0 %v606, 64
      %v1169 = vpop.permute.xlu0 %1168
      %1172 = vrot.lane.b32.xlu0 %v717, 96
      %v1173 = vpop.permute.xlu0 %1172
      %1176 = vrot.lane.b32.xlu0 %v936, 32
      %v1177 = vpop.permute.xlu0 %1176
      %1180 = vrot.lane.b32.xlu0 %v1047, 64
      %v1181 = vpop.permute.xlu0 %1180
      %1184 = vrot.lane.b32.xlu0 %v1158, 96
      %v1185 = vpop.permute.xlu0 %1184
      %v1187 = vsel %vm278, %v381, %v1165
      %vm1188 = vcmask 523264
      %v1189 = vsel %vm1188, %v1187, %v1169
      %vm1190 = vcmask 785408
      %v1191 = vsel %vm1190, %v1189, %v1173
      %v1192 = vsel %vm278, %v822, %v1177
      %v1193 = vsel %vm1188, %v1192, %v1181
      %v1194 = vsel %vm1190, %v1193, %v1185
      %v1195 = vpack.c.bf16 %v1191, %v1191
      %v1196 = vpack.c.bf16 %v1194, %v1194
      %v1197 = vld [vmem:[%s3] sm:$0xff]
      %v1198 = vld [vmem:[%s3 + $0x8] sm:$0xff]
      %v1199 = vld [vmem:[%s3 + $0x10] sm:$0xff]
      %v1200 = vld [vmem:[%s3 + $0x18] sm:$0xff]
      %v1201 = vld [vmem:[%s3 + $0x20] sm:$0xff]
      %v1202 = vld [vmem:[%s3 + $0x28] sm:$0xff]
      %v1203 = vld [vmem:[%s3 + $0x30] sm:$0xff]
      %v1204 = vld [vmem:[%s3 + $0x38] sm:$0xff]
      %v1205 = vld [vmem:[%s3 + $0x40] sm:$0xff]
      %v1206 = vld [vmem:[%s3 + $0x48] sm:$0xff]
      %v1207 = vld [vmem:[%s3 + $0x50] sm:$0xff]
      %v1208 = vld [vmem:[%s3 + $0x58] sm:$0xff]
      %v1209 = vld [vmem:[%s3 + $0x60] sm:$0xff]
      %v1210 = vld [vmem:[%s3 + $0x68] sm:$0xff]
      %v1211 = vld [vmem:[%s3 + $0x70] sm:$0xff]
      %v1212 = vld [vmem:[%s3 + $0x78] sm:$0xff]
      %v1213 = vld [vmem:[%s3 + $0x80] sm:$0xff]
      %v1214 = vld [vmem:[%s3 + $0x88] sm:$0xff]
      %v1215 = vld [vmem:[%s3 + $0x90] sm:$0xff]
      %v1216 = vld [vmem:[%s3 + $0x98] sm:$0xff]
      %v1217 = vld [vmem:[%s3 + $0xa0] sm:$0xff]
      %v1218 = vld [vmem:[%s3 + $0xa8] sm:$0xff]
      %v1219 = vld [vmem:[%s3 + $0xb0] sm:$0xff]
      %v1220 = vld [vmem:[%s3 + $0xb8] sm:$0xff]
      %v1221 = vld [vmem:[%s3 + $0xc0] sm:$0xff]
      %v1222 = vld [vmem:[%s3 + $0xc8] sm:$0xff]
      %v1223 = vld [vmem:[%s3 + $0xd0] sm:$0xff]
      %v1224 = vld [vmem:[%s3 + $0xd8] sm:$0xff]
      %v1225 = vld [vmem:[%s3 + $0xe0] sm:$0xff]
      %v1226 = vld [vmem:[%s3 + $0xe8] sm:$0xff]
      %v1227 = vld [vmem:[%s3 + $0xf0] sm:$0xff]
      %v1228 = vld [vmem:[%s3 + $0xf8] sm:$0xff]
      %v1229 = vld [vmem:[%s4] sm:$0x3]
      %v1231 = vlaneseq
      %v1232 = vshrl.u32 %v1231, 7
      %v1233 = vsub.s32 0, %v1232
      %v1234 = vrot.slane %v1229, %v1233
      %v1235 = vlaneseq
      %v1236 = vshrl.u32 %v1235, 7
      %v1237 = vsub.s32 1, %v1236
      %v1238 = vrot.slane %v1229, %v1237
      %v1273 = vunpack.c.l.b16 %v1197
      %v1274 = vunpack.c.h.b16 %v1197
      %v1275 = vunpack.c.l.b16 %v1198
      %v1276 = vunpack.c.h.b16 %v1198
      %v1277 = vunpack.c.l.b16 %v1199
      %v1278 = vunpack.c.h.b16 %v1199
      %v1279 = vunpack.c.l.b16 %v1200
      %v1280 = vunpack.c.h.b16 %v1200
      %v1281 = vunpack.c.l.b16 %v1201
      %v1282 = vunpack.c.h.b16 %v1201
      %v1283 = vunpack.c.l.b16 %v1202
      %v1284 = vunpack.c.h.b16 %v1202
      %v1285 = vunpack.c.l.b16 %v1203
      %v1286 = vunpack.c.h.b16 %v1203
      %v1287 = vunpack.c.l.b16 %v1204
      %v1288 = vunpack.c.h.b16 %v1204
      %v1289 = vunpack.c.l.b16 %v1205
      %v1290 = vunpack.c.h.b16 %v1205
      %v1291 = vunpack.c.l.b16 %v1206
      %v1292 = vunpack.c.h.b16 %v1206
      %v1293 = vunpack.c.l.b16 %v1207
      %v1294 = vunpack.c.h.b16 %v1207
      %v1295 = vunpack.c.l.b16 %v1208
      %v1296 = vunpack.c.h.b16 %v1208
      %v1297 = vunpack.c.l.b16 %v1209
      %v1298 = vunpack.c.h.b16 %v1209
      %v1299 = vunpack.c.l.b16 %v1210
      %v1300 = vunpack.c.h.b16 %v1210
      %v1301 = vunpack.c.l.b16 %v1211
      %v1302 = vunpack.c.h.b16 %v1211
      %v1303 = vunpack.c.l.b16 %v1212
      %v1304 = vunpack.c.h.b16 %v1212
      %v1305 = vunpack.c.l.b16 %v1213
      %v1306 = vunpack.c.h.b16 %v1213
      %v1307 = vunpack.c.l.b16 %v1214
      %v1308 = vunpack.c.h.b16 %v1214
      %v1309 = vunpack.c.l.b16 %v1215
      %v1310 = vunpack.c.h.b16 %v1215
      %v1311 = vunpack.c.l.b16 %v1216
      %v1312 = vunpack.c.h.b16 %v1216
      %v1313 = vunpack.c.l.b16 %v1217
      %v1314 = vunpack.c.h.b16 %v1217
      %v1315 = vunpack.c.l.b16 %v1218
      %v1316 = vunpack.c.h.b16 %v1218
      %v1317 = vunpack.c.l.b16 %v1219
      %v1318 = vunpack.c.h.b16 %v1219
      %v1319 = vunpack.c.l.b16 %v1220
      %v1320 = vunpack.c.h.b16 %v1220
      %v1321 = vunpack.c.l.b16 %v1221
      %v1322 = vunpack.c.h.b16 %v1221
      %v1323 = vunpack.c.l.b16 %v1222
      %v1324 = vunpack.c.h.b16 %v1222
      %v1325 = vunpack.c.l.b16 %v1223
      %v1326 = vunpack.c.h.b16 %v1223
      %v1327 = vunpack.c.l.b16 %v1224
      %v1328 = vunpack.c.h.b16 %v1224
      %v1329 = vunpack.c.l.b16 %v1225
      %v1330 = vunpack.c.h.b16 %v1225
      %v1331 = vunpack.c.l.b16 %v1226
      %v1332 = vunpack.c.h.b16 %v1226
      %v1333 = vunpack.c.l.b16 %v1227
      %v1334 = vunpack.c.h.b16 %v1227
      %v1335 = vunpack.c.l.b16 %v1228
      %v1336 = vunpack.c.h.b16 %v1228
      %v1337 = vpack.c.b16 %v1275, %v1273
      %v1338 = vpack.c.b16 %v1276, %v1274
      %v1339 = vpack.c.b16 %v1279, %v1277
      %v1340 = vpack.c.b16 %v1280, %v1278
      %v1341 = vpack.c.b16 %v1283, %v1281
      %v1342 = vpack.c.b16 %v1284, %v1282
      %v1343 = vpack.c.b16 %v1287, %v1285
      %v1344 = vpack.c.b16 %v1288, %v1286
      %v1345 = vpack.c.b16 %v1291, %v1289
      %v1346 = vpack.c.b16 %v1292, %v1290
      %v1347 = vpack.c.b16 %v1295, %v1293
      %v1348 = vpack.c.b16 %v1296, %v1294
      %v1349 = vpack.c.b16 %v1299, %v1297
      %v1350 = vpack.c.b16 %v1300, %v1298
      %v1351 = vpack.c.b16 %v1303, %v1301
      %v1352 = vpack.c.b16 %v1304, %v1302
      %v1353 = vpack.c.b16 %v1307, %v1305
      %v1354 = vpack.c.b16 %v1308, %v1306
      %v1355 = vpack.c.b16 %v1311, %v1309
      %v1356 = vpack.c.b16 %v1312, %v1310
      %v1357 = vpack.c.b16 %v1315, %v1313
      %v1358 = vpack.c.b16 %v1316, %v1314
      %v1359 = vpack.c.b16 %v1319, %v1317
      %v1360 = vpack.c.b16 %v1320, %v1318
      %v1361 = vpack.c.b16 %v1323, %v1321
      %v1362 = vpack.c.b16 %v1324, %v1322
      %v1363 = vpack.c.b16 %v1327, %v1325
      %v1364 = vpack.c.b16 %v1328, %v1326
      %v1365 = vpack.c.b16 %v1331, %v1329
      %v1366 = vpack.c.b16 %v1332, %v1330
      %v1367 = vpack.c.b16 %v1335, %v1333
      %v1368 = vpack.c.b16 %v1336, %v1334
      %1401 = vmatprep.subr.bf16.mxu0 %v1338
      %1402 = vmatpush1.bf16.msra.mxu0 %v1337
      %1403 = vmatprep.subr.bf16.mxu0 %v1340
      %1404 = vmatpush1.bf16.msra.mxu0 %v1339
      %1405 = vmatprep.subr.bf16.mxu0 %v1342
      %1406 = vmatpush1.bf16.msra.mxu0 %v1341
      %1407 = vmatprep.subr.bf16.mxu0 %v1344
      %1408 = vmatpush1.bf16.msra.mxu0 %v1343
      %1409 = vmatprep.subr.bf16.mxu0 %v1346
      %1410 = vmatpush1.bf16.msra.mxu0 %v1345
      %1411 = vmatprep.subr.bf16.mxu0 %v1348
      %1412 = vmatpush1.bf16.msra.mxu0 %v1347
      %1413 = vmatprep.subr.bf16.mxu0 %v1350
      %1414 = vmatpush1.bf16.msra.mxu0 %v1349
      %1415 = vmatprep.subr.bf16.mxu0 %v1352
      %1416 = vmatpush1.bf16.msra.mxu0 %v1351
      %1417 = vmatprep.subr.bf16.mxu0 %v1354
      %1418 = vmatpush1.bf16.msra.mxu0 %v1353
      %1419 = vmatprep.subr.bf16.mxu0 %v1356
      %1420 = vmatpush1.bf16.msra.mxu0 %v1355
      %1421 = vmatprep.subr.bf16.mxu0 %v1358
      %1422 = vmatpush1.bf16.msra.mxu0 %v1357
      %1423 = vmatprep.subr.bf16.mxu0 %v1360
      %1424 = vmatpush1.bf16.msra.mxu0 %v1359
      %1425 = vmatprep.subr.bf16.mxu0 %v1362
      %1426 = vmatpush1.bf16.msra.mxu0 %v1361
      %1427 = vmatprep.subr.bf16.mxu0 %v1364
      %1428 = vmatpush1.bf16.msra.mxu0 %v1363
      %1429 = vmatprep.subr.bf16.mxu0 %v1366
      %1430 = vmatpush1.bf16.msra.mxu0 %v1365
      %1431 = vmatprep.subr.bf16.mxu0 %v1368
      %1432 = vmatpush1.bf16.msra.mxu0 %v1367
      %1433 = vmatprep.mubr.bf16.mxu0 %v1196
      %1434 = vmatmul.mubr.bf16.gmra.mrb[0].mxu0 %v1195
      %v1435 = vpop.f32.mrb[0].mxu0
      %v1436 = vadd.f32 %v1234, %v1435
      %v1437 = vpop.f32.mrb[0].mxu0
      %v1438 = vadd.f32 %v1238, %v1437
      %v1439 = vpop.f32.mrb[0].mxu0
      %v1440 = vpop.f32.mrb[0].mxu0
      %1441 = vdwg.mxu0
      %1442 = vst [vmem:[%s264] sm:$0xff] %v1436
      %1443 = vst [vmem:[%s264 + $0x8] sm:$0xff] %v1438
      %p1444 = scmp.lt.s32.totalorder %s16, 1
      %s1445 = scalar_select %p1444, %s16, 1
      %s1446 = smul.addr %s1445, 2
      %s1447 = smul.addr %s1446, 8
      %s1448 = scalar_lea.vmem %s5, %s1447
      // Predicated region
      $region41: #{emodel_bigru_forward.44} parent=39 // pred_check
        %p1449 = pneg %p154
      $region42: #{emodel_bigru_forward.44} parent=39 // pred_check_branch
        %1451 = sbr.rel (%p1449) target = $region44
      $region43: #{emodel_bigru_forward.44} parent=39 // pred_region
        _
      $region44: #{emodel_bigru_forward.44} parent=39 // pred_fallthru
        _
    $region40: #{emodel_bigru_forward.44} parent=5 // pred_fallthru
      _
    %p1452 = scmp.le.s32.totalorder 2, %s11
    // Predicated region
    $region45: #{emodel_bigru_forward.44} parent=5 // pred_check
      %p1453 = pneg %p1452
    $region46: #{emodel_bigru_forward.44} parent=5 // pred_check_branch
      %1455 = sbr.rel (%p1453) target = $region48
    $region47: #{emodel_bigru_forward.44} parent=5 // pred_region
      %s1456 = ssub.s32 %s11, 2
      // Predicated region
      $region49: #{emodel_bigru_forward.44} parent=47 // pred_check
        %p1457 = pneg %p160
      $region50: #{emodel_bigru_forward.44} parent=47 // pred_check_branch
        %1459 = sbr.rel (%p1457) target = $region52
      $region51: #{emodel_bigru_forward.44} parent=47 // pred_region
        %p1460 = scmp.lt.s32.totalorder %s17, 1
        %s1461 = scalar_select %p1460, %s17, 1
        %s1462 = smul.addr %s1461, 2
        %s1463 = smul.addr %s1462, 8
        %s1464 = scalar_lea.vmem %s5, %s1463
      $region52: #{emodel_bigru_forward.44} parent=47 // pred_fallthru
        _
    $region48: #{emodel_bigru_forward.44} parent=5 // pred_fallthru
      _
  $region6: #{emodel_bigru_forward.44} parent=0 // loop_footer
    %s15 = sadd.s32 1, %s11
  $region7: #{emodel_bigru_forward.44} parent=0 // loop_footer_branch
    %10 = sbr.rel target = $region3
  $region8: #{emodel_bigru_forward.44} parent=0 // loop_exit
    _

// kernel: emodel_bigru_forward.47
$region0: #{emodel_bigru_forward.47}
  #allocation0 [shape = 'u32[]', space=smem, size = 0x4, offset = 0x4, fixed_abs, tag = 'smem constant byte address 0x4 - core index']
  #allocation1 [shape = 'u32[144,128]{1,0:T(1,128)}', space=vmem, size = 0x12000, scoped, tag = 'internal scratch']
  #allocation2 [shape = 'f32[16,256]{1,0:T(8,128)}', space=vmem, size = 0x4000, scoped, tag = 'scratch operand']
  %s0 = inlined_call_operand.vmem [shape: f32[16,2048], index: 0, kind: input, shape index: {}]
  %s1 = inlined_call_operand.vmem [shape: bf16[2048,256], index: 1, kind: input, shape index: {}]
  %s2 = inlined_call_operand.vmem [shape: f32[1,256], index: 2, kind: input, shape index: {}]
  %s3 = inlined_call_operand.vmem [shape: f32[16,256], index: 3, kind: output, shape index: {}]
  %s4 = sld [smem:[#allocation0]]
  $region76: #{emodel_bigru_forward.47} parent=0
    _
  %s6 = ssub.s32 1, %s4
  %s7 = scalar_select 0, %s6, %s4
  $region1: #{emodel_bigru_forward.47} parent=0
    #allocation3 [shape = 'u8[65536]{0}', space=vmem, size = 0x10000, scoped, tag = 'input window, operand 0']
    loop: start=0, step=1, limit=6
    $region2: #{emodel_bigru_forward.47} parent=1 // loop_pre_header
      _
    $region3: #{emodel_bigru_forward.47} parent=1 // loop_header
      %s9 = sphi 0, %s13
      %p10 = scmp.ge.s32.totalorder %s9, 6
      %s16 = sphi 0, %s35
      %s17 = sphi 0, %s31
      %s18 = sphi 0, %s27
      %s19 = sphi 0, %s16
      %s20 = sphi 0, %s17
      %s21 = sphi 0, %s18
      %s22 = sphi 0, %s19
      %s23 = sphi 0, %s20
      %s24 = sphi 0, %s21
      %s40 = sphi 0, %s42
      %s43 = sphi 0, %s40
      %s44 = sphi 0, %s43
      %s60 = sphi 0, %s44
      %s68 = sphi 0, %s70
      %s71 = sphi 0, %s68
      %s72 = sphi 0, %s71
      %s88 = sphi 0, %s72
      %s94 = sphi 0, %s96
      %s97 = sphi 0, %s94
      %s98 = sphi 0, %s97
      %s114 = sphi 0, %s98
      %s122 = sphi 0, %s124
      %s125 = sphi 0, %s122
      %s126 = sphi 0, %s125
      %s142 = sphi 0, %s126
    $region4: #{emodel_bigru_forward.47} parent=1 // loop_header_branch
      %12 = sbr.rel (%p10) target = $region8
    $region5: #{emodel_bigru_forward.47} parent=1 // loop_body
      %s14 = ssub.s32 %s9, 1
      %s15 = ssub.s32 %s9, 2
      %s25 = sadd.s32 1, %s18
      %p26 = scmp.ge.s32.totalorder %s25, 4
      %s27 = scalar_select %p26, 0, %s25
      %s28 = sadd.s32 1, %s17
      %s29 = scalar_select %p26, %s28, %s17
      %p30 = scmp.ge.s32.totalorder %s29, 1
      %s31 = scalar_select %p30, 0, %s29
      %s32 = sadd.s32 1, %s16
      %s33 = scalar_select %p30, %s32, %s16
      %p34 = scmp.ge.s32.totalorder %s33, 1
      %s35 = scalar_select %p34, 0, %s33
      %s36 = ssub.s32 %s16, %s35
      %s37 = ssub.s32 %s18, %s27
      %s38 = sor.u32 %s36, %s37
      %p39 = scmp.eq.s32.totalorder %s38, 0
      %s41 = sadd.s32 %s40, 1
      %s42 = scalar_select %p39, %s40, %s41
      %p45 = pneg %p39
      %p46 = scmp.eq.s32.totalorder %s9, 3
      %p47 = por %p45, %p46
      %p48 = scmp.ne.s32.totalorder %s40, %s43
      %p49 = scmp.eq.s32.totalorder %s9, 0
      %p50 = por %p48, %p49
      %p51 = scmp.ne.s32.totalorder %s40, %s43
      %p52 = scmp.eq.s32.totalorder %s14, 3
      %p53 = por %p51, %p52
      %p54 = scmp.ne.s32.totalorder %s43, %s44
      %p55 = scmp.eq.s32.totalorder %s14, 0
      %p56 = por %p54, %p55
      %p57 = scmp.ne.s32.totalorder %s43, %s44
      %p58 = scmp.eq.s32.totalorder %s15, 3
      %p59 = por %p57, %p58
      %p61 = scmp.ne.s32.totalorder %s44, %s60
      %p62 = scmp.eq.s32.totalorder %s15, 0
      %p63 = por %p61, %p62
      %s64 = ssub.s32 %s18, %s27
      %s65 = ssub.s32 %s17, %s31
      %s66 = sor.u32 %s64, %s65
      %p67 = scmp.eq.s32.totalorder %s66, 0
      %s69 = sadd.s32 %s68, 1
      %s70 = scalar_select %p67, %s68, %s69
      %p73 = pneg %p67
      %p74 = scmp.eq.s32.totalorder %s9, 3
      %p75 = por %p73, %p74
      %p76 = scmp.ne.s32.totalorder %s68, %s71
      %p77 = scmp.eq.s32.totalorder %s9, 0
      %p78 = por %p76, %p77
      %p79 = scmp.ne.s32.totalorder %s68, %s71
      %p80 = scmp.eq.s32.totalorder %s14, 3
      %p81 = por %p79, %p80
      %p82 = scmp.ne.s32.totalorder %s71, %s72
      %p83 = scmp.eq.s32.totalorder %s14, 0
      %p84 = por %p82, %p83
      %p85 = scmp.ne.s32.totalorder %s71, %s72
      %p86 = scmp.eq.s32.totalorder %s15, 3
      %p87 = por %p85, %p86
      %p89 = scmp.ne.s32.totalorder %s72, %s88
      %p90 = scmp.eq.s32.totalorder %s15, 0
      %p91 = por %p89, %p90
      %s92 = ssub.s32 %s17, %s31
      %p93 = scmp.eq.s32.totalorder %s92, 0
      %s95 = sadd.s32 %s94, 1
      %s96 = scalar_select %p93, %s94, %s95
      %p99 = pneg %p93
      %p100 = scmp.eq.s32.totalorder %s9, 3
      %p101 = por %p99, %p100
      %p102 = scmp.ne.s32.totalorder %s94, %s97
      %p103 = scmp.eq.s32.totalorder %s9, 0
      %p104 = por %p102, %p103
      %p105 = scmp.ne.s32.totalorder %s94, %s97
      %p106 = scmp.eq.s32.totalorder %s14, 3
      %p107 = por %p105, %p106
      %p108 = scmp.ne.s32.totalorder %s97, %s98
      %p109 = scmp.eq.s32.totalorder %s14, 0
      %p110 = por %p108, %p109
      %p111 = scmp.ne.s32.totalorder %s97, %s98
      %p112 = scmp.eq.s32.totalorder %s15, 3
      %p113 = por %p111, %p112
      %p115 = scmp.ne.s32.totalorder %s98, %s114
      %p116 = scmp.eq.s32.totalorder %s15, 0
      %p117 = por %p115, %p116
      %s118 = ssub.s32 %s16, %s35
      %s119 = ssub.s32 %s17, %s31
      %s120 = sor.u32 %s118, %s119
      %p121 = scmp.eq.s32.totalorder %s120, 0
      %s123 = sadd.s32 %s122, 1
      %s124 = scalar_select %p121, %s122, %s123
      %p127 = pneg %p121
      %p128 = scmp.eq.s32.totalorder %s9, 3
      %p129 = por %p127, %p128
      %p130 = scmp.ne.s32.totalorder %s122, %s125
      %p131 = scmp.eq.s32.totalorder %s9, 0
      %p132 = por %p130, %p131
      %p133 = scmp.ne.s32.totalorder %s122, %s125
      %p134 = scmp.eq.s32.totalorder %s14, 3
      %p135 = por %p133, %p134
      %p136 = scmp.ne.s32.totalorder %s125, %s126
      %p137 = scmp.eq.s32.totalorder %s14, 0
      %p138 = por %p136, %p137
      %p139 = scmp.ne.s32.totalorder %s125, %s126
      %p140 = scmp.eq.s32.totalorder %s15, 3
      %p141 = por %p139, %p140
      %p143 = scmp.ne.s32.totalorder %s126, %s142
      %p144 = scmp.eq.s32.totalorder %s15, 0
      %p145 = por %p143, %p144
      %p146 = scmp.le.s32.totalorder 1, %s9
      %p147 = scmp.lt.s32.totalorder %s9, 5
      %p148 = pnand %p146, %p147
      %p149 = pneg %p148
      // Predicated region
      $region9: #{emodel_bigru_forward.47} parent=5 // pred_check
        _
      $region10: #{emodel_bigru_forward.47} parent=5 // pred_check_branch
        %151 = sbr.rel (%p148) target = $region12
      $region11: #{emodel_bigru_forward.47} parent=5 // pred_region
        %s152 = ssub.s32 %s9, 1
        // Predicated region
        $region13: #{emodel_bigru_forward.47} parent=11 // pred_check
          %p153 = pneg %p110
        $region14: #{emodel_bigru_forward.47} parent=11 // pred_check_branch
          %155 = sbr.rel (%p153) target = $region16
        $region15: #{emodel_bigru_forward.47} parent=11 // pred_region
          %s156 = smul.u32 2, %s20
          %p157 = scmp.lt.s32.totalorder %s156, 1
          %s158 = scalar_select %p157, %s156, 1
          %s159 = scalar_lea.vmem %s2, %s158
          %s160 = smul.u32 2, %s20
        $region16: #{emodel_bigru_forward.47} parent=11 // pred_fallthru
          _
      $region12: #{emodel_bigru_forward.47} parent=5 // pred_fallthru
        _
      %p161 = scmp.lt.s32.totalorder %s9, 4
      // Predicated region
      $region17: #{emodel_bigru_forward.47} parent=5 // pred_check
        %p162 = pneg %p161
      $region18: #{emodel_bigru_forward.47} parent=5 // pred_check_branch
        %164 = sbr.rel (%p162) target = $region20
      $region19: #{emodel_bigru_forward.47} parent=5 // pred_region
        // Predicated region
        $region21: #{emodel_bigru_forward.47} parent=19 // pred_check
          %p165 = pneg %p50
        $region22: #{emodel_bigru_forward.47} parent=19 // pred_check_branch
          %167 = sbr.rel (%p165) target = $region24
        $region23: #{emodel_bigru_forward.47} parent=19 // pred_region
          %s168 = sand.u32 %s40, 1
          %s169 = sand.u32 %s40, 1
          %s170 = smul.addr %s169, 64
          %s171 = scalar_lea.vmem [#allocation3], %s170
          %s172 = smul.u32 2, %s16
          %s173 = smul.u32 4, %s18
          %s174 = smul.addr %s172, 16
          %s175 = sadd.s32 %s173, %s174
          %s176 = smul.addr %s175, 8
          %s177 = scalar_lea.vmem %s0, %s176
          // Predicated region
          $region25: #{emodel_bigru_forward.47} parent=23 // pred_check
            _
          $region26: #{emodel_bigru_forward.47} parent=23 // pred_check_branch
            %179 = sbr.rel (0) target = $region28
          $region27: #{emodel_bigru_forward.47} parent=23 // pred_region
            // Predicated region
            $region29: #{emodel_bigru_forward.47} parent=27 // pred_check
              _
            $region30: #{emodel_bigru_forward.47} parent=27 // pred_check_branch
              %181 = sbr.rel (0) target = $region32
            $region31: #{emodel_bigru_forward.47} parent=27 // pred_region
              loop: start=0, step=1, limit=1
              $region33: #{emodel_bigru_forward.47} parent=31 // loop_pre_header
                _
              $region34: #{emodel_bigru_forward.47} parent=31 // loop_header
                %s183 = sphi 0, %s187
                %p184 = scmp.ge.s32.totalorder %s183, 1
                %s188 = sphi %s177, %s177
                %s189 = sphi %s171, %s171
              $region35: #{emodel_bigru_forward.47} parent=31 // loop_header_branch
                %186 = sbr.rel (%p184) target = $region39
              $region36: #{emodel_bigru_forward.47} parent=31 // loop_body
                %v190 = vld [vmem:[%s188] sm:$0xff]
                %191 = vst [vmem:[%s189] sm:$0xff] %v190
                %v192 = vld [vmem:[%s188 + $0x8] sm:$0xff]
                %193 = vst [vmem:[%s189 + $0x8] sm:$0xff] %v192
                %v194 = vld [vmem:[%s188 + $0x10] sm:$0xff]
                %195 = vst [vmem:[%s189 + $0x10] sm:$0xff] %v194
                %v196 = vld [vmem:[%s188 + $0x18] sm:$0xff]
                %197 = vst [vmem:[%s189 + $0x18] sm:$0xff] %v196
                %v198 = vld [vmem:[%s188 + $0x80] sm:$0xff]
                %199 = vst [vmem:[%s189 + $0x20] sm:$0xff] %v198
                %v200 = vld [vmem:[%s188 + $0x88] sm:$0xff]
                %201 = vst [vmem:[%s189 + $0x28] sm:$0xff] %v200
                %v202 = vld [vmem:[%s188 + $0x90] sm:$0xff]
                %203 = vst [vmem:[%s189 + $0x30] sm:$0xff] %v202
                %v204 = vld [vmem:[%s188 + $0x98] sm:$0xff]
                %205 = vst [vmem:[%s189 + $0x38] sm:$0xff] %v204
              $region37: #{emodel_bigru_forward.47} parent=31 // loop_footer
                %s187 = sadd.s32 1, %s183
              $region38: #{emodel_bigru_forward.47} parent=31 // loop_footer_branch
                %182 = sbr.rel target = $region34
              $region39: #{emodel_bigru_forward.47} parent=31 // loop_exit
                _
            $region32: #{emodel_bigru_forward.47} parent=27 // pred_fallthru
              _
            // Predicated region
            $region40: #{emodel_bigru_forward.47} parent=27 // pred_check
              _
            $region41: #{emodel_bigru_forward.47} parent=27 // pred_check_branch
              %207 = sbr.rel target = $region43
            $region42: #{emodel_bigru_forward.47} parent=27 // pred_region
              _
            $region43: #{emodel_bigru_forward.47} parent=27 // pred_fallthru
              _
          $region28: #{emodel_bigru_forward.47} parent=23 // pred_fallthru
            _
          %208 = vnop
        $region24: #{emodel_bigru_forward.47} parent=19 // pred_fallthru
          _
        // Predicated region
        $region44: #{emodel_bigru_forward.47} parent=19 // pred_check
          %p209 = pneg %p78
        $region45: #{emodel_bigru_forward.47} parent=19 // pred_check_branch
          %211 = sbr.rel (%p209) target = $region47
        $region46: #{emodel_bigru_forward.47} parent=19 // pred_region
          %s212 = smul.u32 64, %s18
          %s213 = smul.u32 2, %s17
          %p214 = scmp.lt.s32.totalorder %s212, 255
          %s215 = scalar_select %p214, %s212, 255
          %p216 = scmp.lt.s32.totalorder %s213, 1
          %s217 = scalar_select %p216, %s213, 1
          %s218 = smul.addr %s215, 2
          %s219 = sadd.s32 %s217, %s218
          %s220 = smul.addr %s219, 4
          %s221 = scalar_lea.vmem %s1, %s220
          %s222 = smul.u32 64, %s18
          %s223 = smul.u32 2, %s17
        $region47: #{emodel_bigru_forward.47} parent=19 // pred_fallthru
          _
      $region20: #{emodel_bigru_forward.47} parent=5 // pred_fallthru
        _
      %p224 = scmp.le.s32.totalorder 1, %s9
      %p225 = scmp.lt.s32.totalorder %s9, 5
      %p226 = pnand %p224, %p225
      %p227 = pneg %p226
      // Predicated region
      $region48: #{emodel_bigru_forward.47} parent=5 // pred_check
        _
      $region49: #{emodel_bigru_forward.47} parent=5 // pred_check_branch
        %229 = sbr.rel (%p226) target = $region51
      $region50: #{emodel_bigru_forward.47} parent=5 // pred_region
        %s230 = ssub.s32 %s9, 1
        %s231 = sand.u32 %s43, 1
        %s232 = sand.u32 %s43, 1
        %s233 = smul.addr %s232, 64
        %s234 = scalar_lea.vmem [#allocation3], %s233
        // Predicated region
        $region52: #{emodel_bigru_forward.47} parent=50 // pred_check
          %p235 = pneg %p56
        $region53: #{emodel_bigru_forward.47} parent=50 // pred_check_branch
          %237 = sbr.rel (%p235) target = $region55
        $region54: #{emodel_bigru_forward.47} parent=50 // pred_region
          _
        $region55: #{emodel_bigru_forward.47} parent=50 // pred_fallthru
          _
        %s238 = sand.u32 %s43, 1
        %s239 = sand.u32 %s43, 1
        %s240 = smul.addr %s239, 64
        %s241 = scalar_lea.vmem [#allocation3], %s240
        %p242 = pneg %p56
        %p243 = pneg %p53
        %s244 = smul.u32 64, %s21
        %s245 = smul.u32 2, %s20
        %p246 = scmp.lt.s32.totalorder %s244, 255
        %s247 = scalar_select %p246, %s244, 255
        %p248 = scmp.lt.s32.totalorder %s245, 1
        %s249 = scalar_select %p248, %s245, 1
        %s250 = smul.addr %s247, 2
        %s251 = sadd.s32 %s249, %s250
        %s252 = smul.addr %s251, 4
        %s253 = scalar_lea.vmem %s1, %s252
        %p254 = pneg %p84
        %p255 = pneg %p81
        %s256 = smul.u32 2, %s20
        %p257 = scmp.lt.s32.totalorder %s256, 1
        %s258 = scalar_select %p257, %s256, 1
        %s259 = scalar_lea.vmem %s2, %s258
        %p260 = pneg %p110
        %p261 = pneg %p107
        %p262 = pneg %p138
        %p263 = pneg %p135
        %s264 = smul.u32 2, %s19
        %s265 = smul.u32 2, %s20
        %p266 = scmp.lt.s32.totalorder %s264, 1
        %s267 = scalar_select %p266, %s264, 1
        %p268 = scmp.lt.s32.totalorder %s265, 1
        %s269 = scalar_select %p268, %s265, 1
        %s270 = smul.addr %s267, 2
        %s271 = sadd.s32 %s269, %s270
        %s272 = smul.addr %s271, 8
        %s273 = scalar_lea.vmem %s3, %s272
        %s274 = smul.u32 2, %s19
        %s275 = smul.u32 4, %s21
        %s276 = smul.u32 64, %s21
        %s277 = smul.u32 2, %s20
        %p278 = scmp.lt.s32.totalorder %s276, 255
        %s279 = scalar_select %p278, %s276, 255
        %p280 = scmp.lt.s32.totalorder %s277, 1
        %s281 = scalar_select %p280, %s277, 1
        %s282 = smul.addr %s279, 2
        %s283 = sadd.s32 %s281, %s282
        %s284 = smul.addr %s283, 4
        %s285 = scalar_lea.vmem %s1, %s284
        %s286 = smul.u32 64, %s21
        %s287 = smul.u32 2, %s20
        %s288 = smul.u32 2, %s20
        %p289 = scmp.lt.s32.totalorder %s288, 1
        %s290 = scalar_select %p289, %s288, 1
        %s291 = scalar_lea.vmem %s2, %s290
        %s292 = smul.u32 2, %s20
        %s293 = smul.u32 2, %s19
        %s294 = smul.u32 2, %s20
        %p295 = scmp.lt.s32.totalorder %s293, 1
        %s296 = scalar_select %p295, %s293, 1
        %p297 = scmp.lt.s32.totalorder %s294, 1
        %s298 = scalar_select %p297, %s294, 1
        %s299 = smul.addr %s296, 2
        %s300 = sadd.s32 %s298, %s299
        %s301 = smul.addr %s300, 8
        %s302 = scalar_lea.vmem %s3, %s301
        %s303 = smul.u32 2, %s19
        %s304 = smul.u32 2, %s20
        %p305 = scmp.eq.s32.totalorder %s21, 0
        // Predicated region
        $region56: #{emodel_bigru_forward.47} parent=50 // pred_check
          %p306 = pneg %p305
        $region57: #{emodel_bigru_forward.47} parent=50 // pred_check_branch
          %308 = sbr.rel (%p306) target = $region59
        $region58: #{emodel_bigru_forward.47} parent=50 // pred_region
          %309 = vst [vmem:[#allocation2] sm:$0xff] 0.0
          %310 = vst [vmem:[#allocation2 + $0x8] sm:$0xff] 0.0
          %311 = vst [vmem:[#allocation2 + $0x10] sm:$0xff] 0.0
          %312 = vst [vmem:[#allocation2 + $0x18] sm:$0xff] 0.0
        $region59: #{emodel_bigru_forward.47} parent=50 // pred_fallthru
          _
        %v313 = vld [vmem:[#allocation2] sm:$0xff]
        %v314 = vld [vmem:[#allocation2 + $0x8] sm:$0xff]
        %v315 = vld [vmem:[#allocation2 + $0x10] sm:$0xff]
        %v316 = vld [vmem:[#allocation2 + $0x18] sm:$0xff]
        %v317 = vld [vmem:[%s234] sm:$0xff]
        %v318 = vld [vmem:[%s234 + $0x8] sm:$0xff]
        %v319 = vld [vmem:[%s234 + $0x10] sm:$0xff]
        %v320 = vld [vmem:[%s234 + $0x18] sm:$0xff]
        %v321 = vld [vmem:[%s234 + $0x20] sm:$0xff]
        %v322 = vld [vmem:[%s234 + $0x28] sm:$0xff]
        %v323 = vld [vmem:[%s234 + $0x30] sm:$0xff]
        %v324 = vld [vmem:[%s234 + $0x38] sm:$0xff]
        %v325 = vpack.c.bf16 %v321, %v317
        %v326 = vpack.c.bf16 %v322, %v318
        %v327 = vpack.c.bf16 %v323, %v319
        %v328 = vpack.c.bf16 %v324, %v320
        %v329 = vld [vmem:[%s285] sm:$0xff]
        %v330 = vld [vmem:[%s285 + $0x8] sm:$0xff]
        %v331 = vld [vmem:[%s285 + $0x10] sm:$0xff]
        %v332 = vld [vmem:[%s285 + $0x18] sm:$0xff]
        %v333 = vld [vmem:[%s285 + $0x20] sm:$0xff]
        %v334 = vld [vmem:[%s285 + $0x28] sm:$0xff]
        %v335 = vld [vmem:[%s285 + $0x30] sm:$0xff]
        %v336 = vld [vmem:[%s285 + $0x38] sm:$0xff]
        %v337 = vld [vmem:[%s285 + $0x40] sm:$0xff]
        %v338 = vld [vmem:[%s285 + $0x48] sm:$0xff]
        %v339 = vld [vmem:[%s285 + $0x50] sm:$0xff]
        %v340 = vld [vmem:[%s285 + $0x58] sm:$0xff]
        %v341 = vld [vmem:[%s285 + $0x60] sm:$0xff]
        %v342 = vld [vmem:[%s285 + $0x68] sm:$0xff]
        %v343 = vld [vmem:[%s285 + $0x70] sm:$0xff]
        %v344 = vld [vmem:[%s285 + $0x78] sm:$0xff]
        %v345 = vld [vmem:[%s285 + $0x80] sm:$0xff]
        %v346 = vld [vmem:[%s285 + $0x88] sm:$0xff]
        %v347 = vld [vmem:[%s285 + $0x90] sm:$0xff]
        %v348 = vld [vmem:[%s285 + $0x98] sm:$0xff]
        %v349 = vld [vmem:[%s285 + $0xa0] sm:$0xff]
        %v350 = vld [vmem:[%s285 + $0xa8] sm:$0xff]
        %v351 = vld [vmem:[%s285 + $0xb0] sm:$0xff]
        %v352 = vld [vmem:[%s285 + $0xb8] sm:$0xff]
        %v353 = vld [vmem:[%s285 + $0xc0] sm:$0xff]
        %v354 = vld [vmem:[%s285 + $0xc8] sm:$0xff]
        %v355 = vld [vmem:[%s285 + $0xd0] sm:$0xff]
        %v356 = vld [vmem:[%s285 + $0xd8] sm:$0xff]
        %v357 = vld [vmem:[%s285 + $0xe0] sm:$0xff]
        %v358 = vld [vmem:[%s285 + $0xe8] sm:$0xff]
        %v359 = vld [vmem:[%s285 + $0xf0] sm:$0xff]
        %v360 = vld [vmem:[%s285 + $0xf8] sm:$0xff]
        %v361 = vld [vmem:[%s285 + $0x100] sm:$0xff]
        %v362 = vld [vmem:[%s285 + $0x108] sm:$0xff]
        %v363 = vld [vmem:[%s285 + $0x110] sm:$0xff]
        %v364 = vld [vmem:[%s285 + $0x118] sm:$0xff]
        %v365 = vld [vmem:[%s285 + $0x120] sm:$0xff]
        %v366 = vld [vmem:[%s285 + $0x128] sm:$0xff]
        %v367 = vld [vmem:[%s285 + $0x130] sm:$0xff]
        %v368 = vld [vmem:[%s285 + $0x138] sm:$0xff]
        %v369 = vld [vmem:[%s285 + $0x140] sm:$0xff]
        %v370 = vld [vmem:[%s285 + $0x148] sm:$0xff]
        %v371 = vld [vmem:[%s285 + $0x150] sm:$0xff]
        %v372 = vld [vmem:[%s285 + $0x158] sm:$0xff]
        %v373 = vld [vmem:[%s285 + $0x160] sm:$0xff]
        %v374 = vld [vmem:[%s285 + $0x168] sm:$0xff]
        %v375 = vld [vmem:[%s285 + $0x170] sm:$0xff]
        %v376 = vld [vmem:[%s285 + $0x178] sm:$0xff]
        %v377 = vld [vmem:[%s285 + $0x180] sm:$0xff]
        %v378 = vld [vmem:[%s285 + $0x188] sm:$0xff]
        %v379 = vld [vmem:[%s285 + $0x190] sm:$0xff]
        %v380 = vld [vmem:[%s285 + $0x198] sm:$0xff]
        %v381 = vld [vmem:[%s285 + $0x1a0] sm:$0xff]
        %v382 = vld [vmem:[%s285 + $0x1a8] sm:$0xff]
        %v383 = vld [vmem:[%s285 + $0x1b0] sm:$0xff]
        %v384 = vld [vmem:[%s285 + $0x1b8] sm:$0xff]
        %v385 = vld [vmem:[%s285 + $0x1c0] sm:$0xff]
        %v386 = vld [vmem:[%s285 + $0x1c8] sm:$0xff]
        %v387 = vld [vmem:[%s285 + $0x1d0] sm:$0xff]
        %v388 = vld [vmem:[%s285 + $0x1d8] sm:$0xff]
        %v389 = vld [vmem:[%s285 + $0x1e0] sm:$0xff]
        %v390 = vld [vmem:[%s285 + $0x1e8] sm:$0xff]
        %v391 = vld [vmem:[%s285 + $0x1f0] sm:$0xff]
        %v392 = vld [vmem:[%s285 + $0x1f8] sm:$0xff]
        %v457 = vunpack.c.l.b16 %v329
        %v458 = vunpack.c.h.b16 %v329
        %v459 = vunpack.c.l.b16 %v330
        %v460 = vunpack.c.h.b16 %v330
        %v461 = vunpack.c.l.b16 %v331
        %v462 = vunpack.c.h.b16 %v331
        %v463 = vunpack.c.l.b16 %v332
        %v464 = vunpack.c.h.b16 %v332
        %v465 = vunpack.c.l.b16 %v333
        %v466 = vunpack.c.h.b16 %v333
        %v467 = vunpack.c.l.b16 %v334
        %v468 = vunpack.c.h.b16 %v334
        %v469 = vunpack.c.l.b16 %v335
        %v470 = vunpack.c.h.b16 %v335
        %v471 = vunpack.c.l.b16 %v336
        %v472 = vunpack.c.h.b16 %v336
        %v473 = vunpack.c.l.b16 %v337
        %v474 = vunpack.c.h.b16 %v337
        %v475 = vunpack.c.l.b16 %v338
        %v476 = vunpack.c.h.b16 %v338
        %v477 = vunpack.c.l.b16 %v339
        %v478 = vunpack.c.h.b16 %v339
        %v479 = vunpack.c.l.b16 %v340
        %v480 = vunpack.c.h.b16 %v340
        %v481 = vunpack.c.l.b16 %v341
        %v482 = vunpack.c.h.b16 %v341
        %v483 = vunpack.c.l.b16 %v342
        %v484 = vunpack.c.h.b16 %v342
        %v485 = vunpack.c.l.b16 %v343
        %v486 = vunpack.c.h.b16 %v343
        %v487 = vunpack.c.l.b16 %v344
        %v488 = vunpack.c.h.b16 %v344
        %v489 = vunpack.c.l.b16 %v345
        %v490 = vunpack.c.h.b16 %v345
        %v491 = vunpack.c.l.b16 %v346
        %v492 = vunpack.c.h.b16 %v346
        %v493 = vunpack.c.l.b16 %v347
        %v494 = vunpack.c.h.b16 %v347
        %v495 = vunpack.c.l.b16 %v348
        %v496 = vunpack.c.h.b16 %v348
        %v497 = vunpack.c.l.b16 %v349
        %v498 = vunpack.c.h.b16 %v349
        %v499 = vunpack.c.l.b16 %v350
        %v500 = vunpack.c.h.b16 %v350
        %v501 = vunpack.c.l.b16 %v351
        %v502 = vunpack.c.h.b16 %v351
        %v503 = vunpack.c.l.b16 %v352
        %v504 = vunpack.c.h.b16 %v352
        %v505 = vunpack.c.l.b16 %v353
        %v506 = vunpack.c.h.b16 %v353
        %v507 = vunpack.c.l.b16 %v354
        %v508 = vunpack.c.h.b16 %v354
        %v509 = vunpack.c.l.b16 %v355
        %v510 = vunpack.c.h.b16 %v355
        %v511 = vunpack.c.l.b16 %v356
        %v512 = vunpack.c.h.b16 %v356
        %v513 = vunpack.c.l.b16 %v357
        %v514 = vunpack.c.h.b16 %v357
        %v515 = vunpack.c.l.b16 %v358
        %v516 = vunpack.c.h.b16 %v358
        %v517 = vunpack.c.l.b16 %v359
        %v518 = vunpack.c.h.b16 %v359
        %v519 = vunpack.c.l.b16 %v360
        %v520 = vunpack.c.h.b16 %v360
        %v521 = vunpack.c.l.b16 %v361
        %v522 = vunpack.c.h.b16 %v361
        %v523 = vunpack.c.l.b16 %v362
        %v524 = vunpack.c.h.b16 %v362
        %v525 = vunpack.c.l.b16 %v363
        %v526 = vunpack.c.h.b16 %v363
        %v527 = vunpack.c.l.b16 %v364
        %v528 = vunpack.c.h.b16 %v364
        %v529 = vunpack.c.l.b16 %v365
        %v530 = vunpack.c.h.b16 %v365
        %v531 = vunpack.c.l.b16 %v366
        %v532 = vunpack.c.h.b16 %v366
        %v533 = vunpack.c.l.b16 %v367
        %v534 = vunpack.c.h.b16 %v367
        %v535 = vunpack.c.l.b16 %v368
        %v536 = vunpack.c.h.b16 %v368
        %v537 = vunpack.c.l.b16 %v369
        %v538 = vunpack.c.h.b16 %v369
        %v539 = vunpack.c.l.b16 %v370
        %v540 = vunpack.c.h.b16 %v370
        %v541 = vunpack.c.l.b16 %v371
        %v542 = vunpack.c.h.b16 %v371
        %v543 = vunpack.c.l.b16 %v372
        %v544 = vunpack.c.h.b16 %v372
        %v545 = vunpack.c.l.b16 %v373
        %v546 = vunpack.c.h.b16 %v373
        %v547 = vunpack.c.l.b16 %v374
        %v548 = vunpack.c.h.b16 %v374
        %v549 = vunpack.c.l.b16 %v375
        %v550 = vunpack.c.h.b16 %v375
        %v551 = vunpack.c.l.b16 %v376
        %v552 = vunpack.c.h.b16 %v376
        %v553 = vunpack.c.l.b16 %v377
        %v554 = vunpack.c.h.b16 %v377
        %v555 = vunpack.c.l.b16 %v378
        %v556 = vunpack.c.h.b16 %v378
        %v557 = vunpack.c.l.b16 %v379
        %v558 = vunpack.c.h.b16 %v379
        %v559 = vunpack.c.l.b16 %v380
        %v560 = vunpack.c.h.b16 %v380
        %v561 = vunpack.c.l.b16 %v381
        %v562 = vunpack.c.h.b16 %v381
        %v563 = vunpack.c.l.b16 %v382
        %v564 = vunpack.c.h.b16 %v382
        %v565 = vunpack.c.l.b16 %v383
        %v566 = vunpack.c.h.b16 %v383
        %v567 = vunpack.c.l.b16 %v384
        %v568 = vunpack.c.h.b16 %v384
        %v569 = vunpack.c.l.b16 %v385
        %v570 = vunpack.c.h.b16 %v385
        %v571 = vunpack.c.l.b16 %v386
        %v572 = vunpack.c.h.b16 %v386
        %v573 = vunpack.c.l.b16 %v387
        %v574 = vunpack.c.h.b16 %v387
        %v575 = vunpack.c.l.b16 %v388
        %v576 = vunpack.c.h.b16 %v388
        %v577 = vunpack.c.l.b16 %v389
        %v578 = vunpack.c.h.b16 %v389
        %v579 = vunpack.c.l.b16 %v390
        %v580 = vunpack.c.h.b16 %v390
        %v581 = vunpack.c.l.b16 %v391
        %v582 = vunpack.c.h.b16 %v391
        %v583 = vunpack.c.l.b16 %v392
        %v584 = vunpack.c.h.b16 %v392
        %v585 = vpack.c.b16 %v459, %v457
        %v586 = vpack.c.b16 %v460, %v458
        %v587 = vpack.c.b16 %v463, %v461
        %v588 = vpack.c.b16 %v464, %v462
        %v589 = vpack.c.b16 %v467, %v465
        %v590 = vpack.c.b16 %v468, %v466
        %v591 = vpack.c.b16 %v471, %v469
        %v592 = vpack.c.b16 %v472, %v470
        %v593 = vpack.c.b16 %v475, %v473
        %v594 = vpack.c.b16 %v476, %v474
        %v595 = vpack.c.b16 %v479, %v477
        %v596 = vpack.c.b16 %v480, %v478
        %v597 = vpack.c.b16 %v483, %v481
        %v598 = vpack.c.b16 %v484, %v482
        %v599 = vpack.c.b16 %v487, %v485
        %v600 = vpack.c.b16 %v488, %v486
        %v601 = vpack.c.b16 %v491, %v489
        %v602 = vpack.c.b16 %v492, %v490
        %v603 = vpack.c.b16 %v495, %v493
        %v604 = vpack.c.b16 %v496, %v494
        %v605 = vpack.c.b16 %v499, %v497
        %v606 = vpack.c.b16 %v500, %v498
        %v607 = vpack.c.b16 %v503, %v501
        %v608 = vpack.c.b16 %v504, %v502
        %v609 = vpack.c.b16 %v507, %v505
        %v610 = vpack.c.b16 %v508, %v506
        %v611 = vpack.c.b16 %v511, %v509
        %v612 = vpack.c.b16 %v512, %v510
        %v613 = vpack.c.b16 %v515, %v513
        %v614 = vpack.c.b16 %v516, %v514
        %v615 = vpack.c.b16 %v519, %v517
        %v616 = vpack.c.b16 %v520, %v518
        %v617 = vpack.c.b16 %v523, %v521
        %v618 = vpack.c.b16 %v524, %v522
        %v619 = vpack.c.b16 %v527, %v525
        %v620 = vpack.c.b16 %v528, %v526
        %v621 = vpack.c.b16 %v531, %v529
        %v622 = vpack.c.b16 %v532, %v530
        %v623 = vpack.c.b16 %v535, %v533
        %v624 = vpack.c.b16 %v536, %v534
        %v625 = vpack.c.b16 %v539, %v537
        %v626 = vpack.c.b16 %v540, %v538
        %v627 = vpack.c.b16 %v543, %v541
        %v628 = vpack.c.b16 %v544, %v542
        %v629 = vpack.c.b16 %v547, %v545
        %v630 = vpack.c.b16 %v548, %v546
        %v631 = vpack.c.b16 %v551, %v549
        %v632 = vpack.c.b16 %v552, %v550
        %v633 = vpack.c.b16 %v555, %v553
        %v634 = vpack.c.b16 %v556, %v554
        %v635 = vpack.c.b16 %v559, %v557
        %v636 = vpack.c.b16 %v560, %v558
        %v637 = vpack.c.b16 %v563, %v561
        %v638 = vpack.c.b16 %v564, %v562
        %v639 = vpack.c.b16 %v567, %v565
        %v640 = vpack.c.b16 %v568, %v566
        %v641 = vpack.c.b16 %v571, %v569
        %v642 = vpack.c.b16 %v572, %v570
        %v643 = vpack.c.b16 %v575, %v573
        %v644 = vpack.c.b16 %v576, %v574
        %v645 = vpack.c.b16 %v579, %v577
        %v646 = vpack.c.b16 %v580, %v578
        %v647 = vpack.c.b16 %v583, %v581
        %v648 = vpack.c.b16 %v584, %v582
        %713 = vmatprep.subr.bf16.mxu0 %v586
        %714 = vmatpush1.bf16.msra.mxu0 %v585
        %715 = vmatprep.subr.bf16.mxu0 %v588
        %716 = vmatpush1.bf16.msra.mxu0 %v587
        %717 = vmatprep.subr.bf16.mxu0 %v590
        %718 = vmatpush1.bf16.msra.mxu0 %v589
        %719 = vmatprep.subr.bf16.mxu0 %v592
        %720 = vmatpush1.bf16.msra.mxu0 %v591
        %721 = vmatprep.subr.bf16.mxu0 %v594
        %722 = vmatpush1.bf16.msra.mxu0 %v593
        %723 = vmatprep.subr.bf16.mxu0 %v596
        %724 = vmatpush1.bf16.msra.mxu0 %v595
        %725 = vmatprep.subr.bf16.mxu0 %v598
        %726 = vmatpush1.bf16.msra.mxu0 %v597
        %727 = vmatprep.subr.bf16.mxu0 %v600
        %728 = vmatpush1.bf16.msra.mxu0 %v599
        %729 = vmatprep.subr.bf16.mxu0 %v602
        %730 = vmatpush1.bf16.msra.mxu0 %v601
        %731 = vmatprep.subr.bf16.mxu0 %v604
        %732 = vmatpush1.bf16.msra.mxu0 %v603
        %733 = vmatprep.subr.bf16.mxu0 %v606
        %734 = vmatpush1.bf16.msra.mxu0 %v605
        %735 = vmatprep.subr.bf16.mxu0 %v608
        %736 = vmatpush1.bf16.msra.mxu0 %v607
        %737 = vmatprep.subr.bf16.mxu0 %v610
        %738 = vmatpush1.bf16.msra.mxu0 %v609
        %739 = vmatprep.subr.bf16.mxu0 %v612
        %740 = vmatpush1.bf16.msra.mxu0 %v611
        %741 = vmatprep.subr.bf16.mxu0 %v614
        %742 = vmatpush1.bf16.msra.mxu0 %v613
        %743 = vmatprep.subr.bf16.mxu0 %v616
        %744 = vmatpush1.bf16.msra.mxu0 %v615
        %745 = vmatprep.mubr.bf16.mxu0 %v326
        %746 = vmatmul.mubr.bf16.gmra.mrb[0].mxu0 %v325
        %v747 = vpop.f32.mrb[0].mxu0
        %v748 = vadd.f32 0.0, %v747
        %v749 = vpop.f32.mrb[0].mxu0
        %v750 = vadd.f32 0.0, %v749
        %v751 = vpop.f32.mrb[0].mxu0
        %v752 = vadd.f32 0.0, %v751
        %v753 = vpop.f32.mrb[0].mxu0
        %v754 = vadd.f32 0.0, %v753
        %755 = vdwg.mxu0
        %756 = vmatprep.subr.bf16.mxu0 %v618
        %757 = vmatpush1.bf16.msra.mxu0 %v617
        %758 = vmatprep.subr.bf16.mxu0 %v620
        %759 = vmatpush1.bf16.msra.mxu0 %v619
        %760 = vmatprep.subr.bf16.mxu0 %v622
        %761 = vmatpush1.bf16.msra.mxu0 %v621
        %762 = vmatprep.subr.bf16.mxu0 %v624
        %763 = vmatpush1.bf16.msra.mxu0 %v623
        %764 = vmatprep.subr.bf16.mxu0 %v626
        %765 = vmatpush1.bf16.msra.mxu0 %v625
        %766 = vmatprep.subr.bf16.mxu0 %v628
        %767 = vmatpush1.bf16.msra.mxu0 %v627
        %768 = vmatprep.subr.bf16.mxu0 %v630
        %769 = vmatpush1.bf16.msra.mxu0 %v629
        %770 = vmatprep.subr.bf16.mxu0 %v632
        %771 = vmatpush1.bf16.msra.mxu0 %v631
        %772 = vmatprep.subr.bf16.mxu0 %v634
        %773 = vmatpush1.bf16.msra.mxu0 %v633
        %774 = vmatprep.subr.bf16.mxu0 %v636
        %775 = vmatpush1.bf16.msra.mxu0 %v635
        %776 = vmatprep.subr.bf16.mxu0 %v638
        %777 = vmatpush1.bf16.msra.mxu0 %v637
        %778 = vmatprep.subr.bf16.mxu0 %v640
        %779 = vmatpush1.bf16.msra.mxu0 %v639
        %780 = vmatprep.subr.bf16.mxu0 %v642
        %781 = vmatpush1.bf16.msra.mxu0 %v641
        %782 = vmatprep.subr.bf16.mxu0 %v644
        %783 = vmatpush1.bf16.msra.mxu0 %v643
        %784 = vmatprep.subr.bf16.mxu0 %v646
        %785 = vmatpush1.bf16.msra.mxu0 %v645
        %786 = vmatprep.subr.bf16.mxu0 %v648
        %787 = vmatpush1.bf16.msra.mxu0 %v647
        %788 = vmatprep.mubr.bf16.mxu0 %v328
        %789 = vmatmul.mubr.bf16.gmra.mrb[0].mxu0 %v327
        %v790 = vpop.f32.mrb[0].mxu0
        %v791 = vadd.f32 %v748, %v790
        %v792 = vpop.f32.mrb[0].mxu0
        %v793 = vadd.f32 %v750, %v792
        %v794 = vpop.f32.mrb[0].mxu0
        %v795 = vadd.f32 %v752, %v794
        %v796 = vpop.f32.mrb[0].mxu0
        %v797 = vadd.f32 %v754, %v796
        %798 = vdwg.mxu0
        %v799 = vadd.f32 %v313, %v791
        %v800 = vadd.f32 %v314, %v793
        %v801 = vadd.f32 %v315, %v795
        %v802 = vadd.f32 %v316, %v797
        %803 = vst [vmem:[#allocation2] sm:$0xff] %v799
        %804 = vst [vmem:[#allocation2 + $0x8] sm:$0xff] %v800
        %805 = vst [vmem:[#allocation2 + $0x10] sm:$0xff] %v801
        %806 = vst [vmem:[#allocation2 + $0x18] sm:$0xff] %v802
        %p807 = scmp.eq.s32.totalorder %s21, 3
        // Predicated region
        $region60: #{emodel_bigru_forward.47} parent=50 // pred_check
          %p808 = pneg %p807
        $region61: #{emodel_bigru_forward.47} parent=50 // pred_check_branch
          %810 = sbr.rel (%p808) target = $region63
        $region62: #{emodel_bigru_forward.47} parent=50 // pred_region
          %v811 = vld [vmem:[#allocation2] sm:$0xff]
          %v812 = vld [vmem:[#allocation2 + $0x8] sm:$0xff]
          %v813 = vld [vmem:[#allocation2 + $0x10] sm:$0xff]
          %v814 = vld [vmem:[#allocation2 + $0x18] sm:$0xff]
          %v815 = vld [vmem:[%s291] sm:$0x3]
          %v817 = vlaneseq
          %v818 = vshrl.u32 %v817, 7
          %v819 = vsub.s32 0, %v818
          %v820 = vrot.slane %v815, %v819
          %v821 = vlaneseq
          %v822 = vshrl.u32 %v821, 7
          %v823 = vsub.s32 1, %v822
          %v824 = vrot.slane %v815, %v823
          %v827 = vadd.f32 %v811, %v820
          %v828 = vadd.f32 %v812, %v824
          %v829 = vadd.f32 %v813, %v820
          %v830 = vadd.f32 %v814, %v824
          %831 = vst [vmem:[%s302] sm:$0xff] %v827
          %832 = vst [vmem:[%s302 + $0x8] sm:$0xff] %v828
          %833 = vst [vmem:[%s302 + $0x10] sm:$0xff] %v829
          %834 = vst [vmem:[%s302 + $0x18] sm:$0xff] %v830
        $region63: #{emodel_bigru_forward.47} parent=50 // pred_fallthru
          _
        %s835 = smul.u32 2, %s19
        %s836 = smul.u32 2, %s20
        %p837 = scmp.lt.s32.totalorder %s835, 1
        %s838 = scalar_select %p837, %s835, 1
        %p839 = scmp.lt.s32.totalorder %s836, 1
        %s840 = scalar_select %p839, %s836, 1
        %s841 = smul.addr %s838, 2
        %s842 = sadd.s32 %s840, %s841
        %s843 = smul.addr %s842, 8
        %s844 = scalar_lea.vmem %s3, %s843
        // Predicated region
        $region64: #{emodel_bigru_forward.47} parent=50 // pred_check
          %p845 = pneg %p135
        $region65: #{emodel_bigru_forward.47} parent=50 // pred_check_branch
          %847 = sbr.rel (%p845) target = $region67
        $region66: #{emodel_bigru_forward.47} parent=50 // pred_region
          %s848 = smul.u32 2, %s19
          %s849 = smul.u32 2, %s20
        $region67: #{emodel_bigru_forward.47} parent=50 // pred_fallthru
          _
        // Predicated region
        $region68: #{emodel_bigru_forward.47} parent=50 // pred_check
          %p850 = pneg %p135
        $region69: #{emodel_bigru_forward.47} parent=50 // pred_check_branch
          %852 = sbr.rel (%p850) target = $region71
        $region70: #{emodel_bigru_forward.47} parent=50 // pred_region
          %s853 = smul.u32 2, %s19
          %s854 = smul.u32 2, %s20
          %p855 = scmp.lt.s32.totalorder %s853, 1
          %s856 = scalar_select %p855, %s853, 1
          %p857 = scmp.lt.s32.totalorder %s854, 1
          %s858 = scalar_select %p857, %s854, 1
          %s859 = smul.addr %s856, 2
          %s860 = sadd.s32 %s858, %s859
          %s861 = smul.addr %s860, 8
          %s862 = scalar_lea.vmem %s3, %s861
        $region71: #{emodel_bigru_forward.47} parent=50 // pred_fallthru
          _
      $region51: #{emodel_bigru_forward.47} parent=5 // pred_fallthru
        _
      %p863 = scmp.le.s32.totalorder 2, %s9
      // Predicated region
      $region72: #{emodel_bigru_forward.47} parent=5 // pred_check
        %p864 = pneg %p863
      $region73: #{emodel_bigru_forward.47} parent=5 // pred_check_branch
        %866 = sbr.rel (%p864) target = $region75
      $region74: #{emodel_bigru_forward.47} parent=5 // pred_region
        %s867 = ssub.s32 %s9, 2
      $region75: #{emodel_bigru_forward.47} parent=5 // pred_fallthru
        _
    $region6: #{emodel_bigru_forward.47} parent=1 // loop_footer
      %s13 = sadd.s32 1, %s9
    $region7: #{emodel_bigru_forward.47} parent=1 // loop_footer_branch
      %8 = sbr.rel target = $region3
    $region8: #{emodel_bigru_forward.47} parent=1 // loop_exit
      _

// kernel: emodel_bigru_forward.59
$region0: #{emodel_bigru_forward.59}
  #allocation0 [shape = 'u32[]', space=smem, size = 0x4, offset = 0x4, fixed_abs, tag = 'smem constant byte address 0x4 - core index']
  #allocation1 [shape = 'u32[144,128]{1,0:T(1,128)}', space=vmem, size = 0x12000, scoped, tag = 'internal scratch']
  #allocation2 [shape = 'f32[16,256]{1,0:T(8,128)}', space=vmem, size = 0x4000, scoped, tag = 'scratch operand']
  %s0 = inlined_call_operand.vmem [shape: f32[16,256], index: 0, kind: input, shape index: {}]
  %s1 = inlined_call_operand.vmem [shape: bf16[256,512], index: 1, kind: input, shape index: {}]
  %s2 = inlined_call_operand.vmem [shape: f32[1,512], index: 2, kind: input, shape index: {}]
  %s3 = inlined_call_operand.vmem [shape: f32[16,512], index: 3, kind: output, shape index: {}]
  %s4 = sld [smem:[#allocation0]]
  $region110: #{emodel_bigru_forward.59} parent=0
    _
  %s6 = ssub.s32 1, %s4
  %s7 = scalar_select 0, %s6, %s4
  $region1: #{emodel_bigru_forward.59} parent=0
    #allocation3 [shape = 'u8[262144]{0}', space=vmem, size = 0x40000, scoped, tag = 'input window, operand 1']
    #allocation4 [shape = 'u8[32768]{0}', space=vmem, size = 0x8000, scoped, tag = 'output window, operand 0']
    loop: start=0, step=1, limit=4
    $region2: #{emodel_bigru_forward.59} parent=1 // loop_pre_header
      _
    $region3: #{emodel_bigru_forward.59} parent=1 // loop_header
      %s9 = sphi 0, %s13
      %p10 = scmp.ge.s32.totalorder %s9, 4
      %s16 = sphi 0, %s35
      %s17 = sphi 0, %s31
      %s18 = sphi 0, %s27
      %s19 = sphi 0, %s16
      %s20 = sphi 0, %s17
      %s21 = sphi 0, %s18
      %s22 = sphi 0, %s19
      %s23 = sphi 0, %s20
      %s24 = sphi 0, %s21
      %s40 = sphi 0, %s42
      %s43 = sphi 0, %s40
      %s44 = sphi 0, %s43
      %s60 = sphi 0, %s44
      %s68 = sphi 0, %s70
      %s71 = sphi 0, %s68
      %s72 = sphi 0, %s71
      %s88 = sphi 0, %s72
      %s94 = sphi 0, %s96
      %s97 = sphi 0, %s94
      %s98 = sphi 0, %s97
      %s114 = sphi 0, %s98
      %s122 = sphi 0, %s124
      %s125 = sphi 0, %s122
      %s126 = sphi 0, %s125
      %s142 = sphi 0, %s126
    $region4: #{emodel_bigru_forward.59} parent=1 // loop_header_branch
      %12 = sbr.rel (%p10) target = $region8
    $region5: #{emodel_bigru_forward.59} parent=1 // loop_body
      %s14 = ssub.s32 %s9, 1
      %s15 = ssub.s32 %s9, 2
      %s25 = sadd.s32 1, %s18
      %p26 = scmp.ge.s32.totalorder %s25, 1
      %s27 = scalar_select %p26, 0, %s25
      %s28 = sadd.s32 1, %s17
      %s29 = scalar_select %p26, %s28, %s17
      %p30 = scmp.ge.s32.totalorder %s29, 2
      %s31 = scalar_select %p30, 0, %s29
      %s32 = sadd.s32 1, %s16
      %s33 = scalar_select %p30, %s32, %s16
      %p34 = scmp.ge.s32.totalorder %s33, 1
      %s35 = scalar_select %p34, 0, %s33
      %s36 = ssub.s32 %s16, %s35
      %s37 = ssub.s32 %s18, %s27
      %s38 = sor.u32 %s36, %s37
      %p39 = scmp.eq.s32.totalorder %s38, 0
      %s41 = sadd.s32 %s40, 1
      %s42 = scalar_select %p39, %s40, %s41
      %p45 = pneg %p39
      %p46 = scmp.eq.s32.totalorder %s9, 1
      %p47 = por %p45, %p46
      %p48 = scmp.ne.s32.totalorder %s40, %s43
      %p49 = scmp.eq.s32.totalorder %s9, 0
      %p50 = por %p48, %p49
      %p51 = scmp.ne.s32.totalorder %s40, %s43
      %p52 = scmp.eq.s32.totalorder %s14, 1
      %p53 = por %p51, %p52
      %p54 = scmp.ne.s32.totalorder %s43, %s44
      %p55 = scmp.eq.s32.totalorder %s14, 0
      %p56 = por %p54, %p55
      %p57 = scmp.ne.s32.totalorder %s43, %s44
      %p58 = scmp.eq.s32.totalorder %s15, 1
      %p59 = por %p57, %p58
      %p61 = scmp.ne.s32.totalorder %s44, %s60
      %p62 = scmp.eq.s32.totalorder %s15, 0
      %p63 = por %p61, %p62
      %s64 = ssub.s32 %s18, %s27
      %s65 = ssub.s32 %s17, %s31
      %s66 = sor.u32 %s64, %s65
      %p67 = scmp.eq.s32.totalorder %s66, 0
      %s69 = sadd.s32 %s68, 1
      %s70 = scalar_select %p67, %s68, %s69
      %p73 = pneg %p67
      %p74 = scmp.eq.s32.totalorder %s9, 1
      %p75 = por %p73, %p74
      %p76 = scmp.ne.s32.totalorder %s68, %s71
      %p77 = scmp.eq.s32.totalorder %s9, 0
      %p78 = por %p76, %p77
      %p79 = scmp.ne.s32.totalorder %s68, %s71
      %p80 = scmp.eq.s32.totalorder %s14, 1
      %p81 = por %p79, %p80
      %p82 = scmp.ne.s32.totalorder %s71, %s72
      %p83 = scmp.eq.s32.totalorder %s14, 0
      %p84 = por %p82, %p83
      %p85 = scmp.ne.s32.totalorder %s71, %s72
      %p86 = scmp.eq.s32.totalorder %s15, 1
      %p87 = por %p85, %p86
      %p89 = scmp.ne.s32.totalorder %s72, %s88
      %p90 = scmp.eq.s32.totalorder %s15, 0
      %p91 = por %p89, %p90
      %s92 = ssub.s32 %s17, %s31
      %p93 = scmp.eq.s32.totalorder %s92, 0
      %s95 = sadd.s32 %s94, 1
      %s96 = scalar_select %p93, %s94, %s95
      %p99 = pneg %p93
      %p100 = scmp.eq.s32.totalorder %s9, 1
      %p101 = por %p99, %p100
      %p102 = scmp.ne.s32.totalorder %s94, %s97
      %p103 = scmp.eq.s32.totalorder %s9, 0
      %p104 = por %p102, %p103
      %p105 = scmp.ne.s32.totalorder %s94, %s97
      %p106 = scmp.eq.s32.totalorder %s14, 1
      %p107 = por %p105, %p106
      %p108 = scmp.ne.s32.totalorder %s97, %s98
      %p109 = scmp.eq.s32.totalorder %s14, 0
      %p110 = por %p108, %p109
      %p111 = scmp.ne.s32.totalorder %s97, %s98
      %p112 = scmp.eq.s32.totalorder %s15, 1
      %p113 = por %p111, %p112
      %p115 = scmp.ne.s32.totalorder %s98, %s114
      %p116 = scmp.eq.s32.totalorder %s15, 0
      %p117 = por %p115, %p116
      %s118 = ssub.s32 %s16, %s35
      %s119 = ssub.s32 %s17, %s31
      %s120 = sor.u32 %s118, %s119
      %p121 = scmp.eq.s32.totalorder %s120, 0
      %s123 = sadd.s32 %s122, 1
      %s124 = scalar_select %p121, %s122, %s123
      %p127 = pneg %p121
      %p128 = scmp.eq.s32.totalorder %s9, 1
      %p129 = por %p127, %p128
      %p130 = scmp.ne.s32.totalorder %s122, %s125
      %p131 = scmp.eq.s32.totalorder %s9, 0
      %p132 = por %p130, %p131
      %p133 = scmp.ne.s32.totalorder %s122, %s125
      %p134 = scmp.eq.s32.totalorder %s14, 1
      %p135 = por %p133, %p134
      %p136 = scmp.ne.s32.totalorder %s125, %s126
      %p137 = scmp.eq.s32.totalorder %s14, 0
      %p138 = por %p136, %p137
      %p139 = scmp.ne.s32.totalorder %s125, %s126
      %p140 = scmp.eq.s32.totalorder %s15, 1
      %p141 = por %p139, %p140
      %p143 = scmp.ne.s32.totalorder %s126, %s142
      %p144 = scmp.eq.s32.totalorder %s15, 0
      %p145 = por %p143, %p144
      %p146 = scmp.le.s32.totalorder 1, %s9
      %p147 = scmp.lt.s32.totalorder %s9, 3
      %p148 = pnand %p146, %p147
      %p149 = pneg %p148
      // Predicated region
      $region9: #{emodel_bigru_forward.59} parent=5 // pred_check
        _
      $region10: #{emodel_bigru_forward.59} parent=5 // pred_check_branch
        %151 = sbr.rel (%p148) target = $region12
      $region11: #{emodel_bigru_forward.59} parent=5 // pred_region
        %s152 = ssub.s32 %s9, 1
        // Predicated region
        $region13: #{emodel_bigru_forward.59} parent=11 // pred_check
          %p153 = pneg %p56
        $region14: #{emodel_bigru_forward.59} parent=11 // pred_check_branch
          %155 = sbr.rel (%p153) target = $region16
        $region15: #{emodel_bigru_forward.59} parent=11 // pred_region
          %s156 = smul.u32 2, %s19
          %s157 = smul.u32 2, %s21
          %p158 = scmp.lt.s32.totalorder %s156, 1
          %s159 = scalar_select %p158, %s156, 1
          %p160 = scmp.lt.s32.totalorder %s157, 1
          %s161 = scalar_select %p160, %s157, 1
          %s162 = smul.addr %s159, 2
          %s163 = sadd.s32 %s161, %s162
          %s164 = smul.addr %s163, 8
          %s165 = scalar_lea.vmem %s0, %s164
          %s166 = smul.u32 2, %s19
          %s167 = smul.u32 2, %s21
        $region16: #{emodel_bigru_forward.59} parent=11 // pred_fallthru
          _
      $region12: #{emodel_bigru_forward.59} parent=5 // pred_fallthru
        _
      %p168 = scmp.lt.s32.totalorder %s9, 2
      // Predicated region
      $region17: #{emodel_bigru_forward.59} parent=5 // pred_check
        %p169 = pneg %p168
      $region18: #{emodel_bigru_forward.59} parent=5 // pred_check_branch
        %171 = sbr.rel (%p169) target = $region20
      $region19: #{emodel_bigru_forward.59} parent=5 // pred_region
        // Predicated region
        $region21: #{emodel_bigru_forward.59} parent=19 // pred_check
          %p172 = pneg %p78
        $region22: #{emodel_bigru_forward.59} parent=19 // pred_check_branch
          %174 = sbr.rel (%p172) target = $region24
        $region23: #{emodel_bigru_forward.59} parent=19 // pred_region
          %s175 = sand.u32 %s68, 1
          %s176 = sand.u32 %s68, 1
          %s177 = smul.addr %s176, 256
          %s178 = scalar_lea.vmem [#allocation3], %s177
          %s179 = smul.u32 32, %s18
          %s180 = smul.u32 2, %s17
          %s181 = smul.addr %s179, 4
          %s182 = sadd.s32 %s180, %s181
          %s183 = smul.addr %s182, 4
          %s184 = scalar_lea.vmem %s1, %s183
          // Predicated region
          $region25: #{emodel_bigru_forward.59} parent=23 // pred_check
            _
          $region26: #{emodel_bigru_forward.59} parent=23 // pred_check_branch
            %186 = sbr.rel (0) target = $region28
          $region27: #{emodel_bigru_forward.59} parent=23 // pred_region
            // Predicated region
            $region29: #{emodel_bigru_forward.59} parent=27 // pred_check
              _
            $region30: #{emodel_bigru_forward.59} parent=27 // pred_check_branch
              %188 = sbr.rel (0) target = $region32
            $region31: #{emodel_bigru_forward.59} parent=27 // pred_region
              // Predicated region
              $region44: #{emodel_bigru_forward.59} parent=31 // pred_check
                _
              $region45: #{emodel_bigru_forward.59} parent=31 // pred_check_branch
                %265 = sbr.rel (0) target = $region47
              $region46: #{emodel_bigru_forward.59} parent=31 // pred_region
                loop: start=0, step=1, limit=1
                $region48: #{emodel_bigru_forward.59} parent=46 // loop_pre_header
                  _
                $region49: #{emodel_bigru_forward.59} parent=46 // loop_header
                  %s267 = sphi 0, %s271
                  %p268 = scmp.ge.s32.totalorder %s267, 1
                  %s272 = sphi %s184, %s184
                  %s273 = sphi %s178, %s178
                $region50: #{emodel_bigru_forward.59} parent=46 // loop_header_branch
                  %270 = sbr.rel (%p268) target = $region54
                $region51: #{emodel_bigru_forward.59} parent=46 // loop_body
                  %v274 = vld [vmem:[%s272] sm:$0xff]
                  %275 = vst [vmem:[%s273] sm:$0xff] %v274
                  %v276 = vld [vmem:[%s272 + $0x10] sm:$0xff]
                  %277 = vst [vmem:[%s273 + $0x8] sm:$0xff] %v276
                  %v278 = vld [vmem:[%s272 + $0x20] sm:$0xff]
                  %279 = vst [vmem:[%s273 + $0x10] sm:$0xff] %v278
                  %v280 = vld [vmem:[%s272 + $0x30] sm:$0xff]
                  %281 = vst [vmem:[%s273 + $0x18] sm:$0xff] %v280
                  %v282 = vld [vmem:[%s272 + $0x40] sm:$0xff]
                  %283 = vst [vmem:[%s273 + $0x20] sm:$0xff] %v282
                  %v284 = vld [vmem:[%s272 + $0x50] sm:$0xff]
                  %285 = vst [vmem:[%s273 + $0x28] sm:$0xff] %v284
                  %v286 = vld [vmem:[%s272 + $0x60] sm:$0xff]
                  %287 = vst [vmem:[%s273 + $0x30] sm:$0xff] %v286
                  %v288 = vld [vmem:[%s272 + $0x70] sm:$0xff]
                  %289 = vst [vmem:[%s273 + $0x38] sm:$0xff] %v288
                  %v290 = vld [vmem:[%s272 + $0x80] sm:$0xff]
                  %291 = vst [vmem:[%s273 + $0x40] sm:$0xff] %v290
                  %v292 = vld [vmem:[%s272 + $0x90] sm:$0xff]
                  %293 = vst [vmem:[%s273 + $0x48] sm:$0xff] %v292
                  %v294 = vld [vmem:[%s272 + $0xa0] sm:$0xff]
                  %295 = vst [vmem:[%s273 + $0x50] sm:$0xff] %v294
                  %v296 = vld [vmem:[%s272 + $0xb0] sm:$0xff]
                  %297 = vst [vmem:[%s273 + $0x58] sm:$0xff] %v296
                  %v298 = vld [vmem:[%s272 + $0xc0] sm:$0xff]
                  %299 = vst [vmem:[%s273 + $0x60] sm:$0xff] %v298
                  %v300 = vld [vmem:[%s272 + $0xd0] sm:$0xff]
                  %301 = vst [vmem:[%s273 + $0x68] sm:$0xff] %v300
                  %v302 = vld [vmem:[%s272 + $0xe0] sm:$0xff]
                  %303 = vst [vmem:[%s273 + $0x70] sm:$0xff] %v302
                  %v304 = vld [vmem:[%s272 + $0xf0] sm:$0xff]
                  %305 = vst [vmem:[%s273 + $0x78] sm:$0xff] %v304
                  %v306 = vld [vmem:[%s272 + $0x100] sm:$0xff]
                  %307 = vst [vmem:[%s273 + $0x80] sm:$0xff] %v306
                  %v308 = vld [vmem:[%s272 + $0x110] sm:$0xff]
                  %309 = vst [vmem:[%s273 + $0x88] sm:$0xff] %v308
                  %v310 = vld [vmem:[%s272 + $0x120] sm:$0xff]
                  %311 = vst [vmem:[%s273 + $0x90] sm:$0xff] %v310
                  %v312 = vld [vmem:[%s272 + $0x130] sm:$0xff]
                  %313 = vst [vmem:[%s273 + $0x98] sm:$0xff] %v312
                  %v314 = vld [vmem:[%s272 + $0x140] sm:$0xff]
                  %315 = vst [vmem:[%s273 + $0xa0] sm:$0xff] %v314
                  %v316 = vld [vmem:[%s272 + $0x150] sm:$0xff]
                  %317 = vst [vmem:[%s273 + $0xa8] sm:$0xff] %v316
                  %v318 = vld [vmem:[%s272 + $0x160] sm:$0xff]
                  %319 = vst [vmem:[%s273 + $0xb0] sm:$0xff] %v318
                  %v320 = vld [vmem:[%s272 + $0x170] sm:$0xff]
                  %321 = vst [vmem:[%s273 + $0xb8] sm:$0xff] %v320
                  %v322 = vld [vmem:[%s272 + $0x180] sm:$0xff]
                  %323 = vst [vmem:[%s273 + $0xc0] sm:$0xff] %v322
                  %v324 = vld [vmem:[%s272 + $0x190] sm:$0xff]
                  %325 = vst [vmem:[%s273 + $0xc8] sm:$0xff] %v324
                  %v326 = vld [vmem:[%s272 + $0x1a0] sm:$0xff]
                  %327 = vst [vmem:[%s273 + $0xd0] sm:$0xff] %v326
                  %v328 = vld [vmem:[%s272 + $0x1b0] sm:$0xff]
                  %329 = vst [vmem:[%s273 + $0xd8] sm:$0xff] %v328
                  %v330 = vld [vmem:[%s272 + $0x1c0] sm:$0xff]
                  %331 = vst [vmem:[%s273 + $0xe0] sm:$0xff] %v330
                  %v332 = vld [vmem:[%s272 + $0x1d0] sm:$0xff]
                  %333 = vst [vmem:[%s273 + $0xe8] sm:$0xff] %v332
                  %v334 = vld [vmem:[%s272 + $0x1e0] sm:$0xff]
                  %335 = vst [vmem:[%s273 + $0xf0] sm:$0xff] %v334
                  %v336 = vld [vmem:[%s272 + $0x1f0] sm:$0xff]
                  %337 = vst [vmem:[%s273 + $0xf8] sm:$0xff] %v336
                $region52: #{emodel_bigru_forward.59} parent=46 // loop_footer
                  %s271 = sadd.s32 1, %s267
                $region53: #{emodel_bigru_forward.59} parent=46 // loop_footer_branch
                  %266 = sbr.rel target = $region49
                $region54: #{emodel_bigru_forward.59} parent=46 // loop_exit
                  _
              $region47: #{emodel_bigru_forward.59} parent=31 // pred_fallthru
                _
              // Predicated region
              $region55: #{emodel_bigru_forward.59} parent=31 // pred_check
                _
              $region56: #{emodel_bigru_forward.59} parent=31 // pred_check_branch
                %339 = sbr.rel target = $region58
              $region57: #{emodel_bigru_forward.59} parent=31 // pred_region
                _
              $region58: #{emodel_bigru_forward.59} parent=31 // pred_fallthru
                _
            $region32: #{emodel_bigru_forward.59} parent=27 // pred_fallthru
              _
            // Predicated region
            $region33: #{emodel_bigru_forward.59} parent=27 // pred_check
              _
            $region34: #{emodel_bigru_forward.59} parent=27 // pred_check_branch
              %190 = sbr.rel target = $region36
            $region35: #{emodel_bigru_forward.59} parent=27 // pred_region
              loop: start=0, step=1, limit=1
              $region37: #{emodel_bigru_forward.59} parent=35 // loop_pre_header
                _
              $region38: #{emodel_bigru_forward.59} parent=35 // loop_header
                %s193 = sphi 0, %s197
                %p194 = scmp.ge.s32.totalorder %s193, 1
                %s198 = sphi %s184, %s184
                %s199 = sphi %s178, %s178
              $region39: #{emodel_bigru_forward.59} parent=35 // loop_header_branch
                %196 = sbr.rel (%p194) target = $region43
              $region40: #{emodel_bigru_forward.59} parent=35 // loop_body
                %v200 = vld [vmem:[%s198] sm:$0xff]
                %201 = vst [vmem:[%s199] sm:$0xff] %v200
                %v202 = vld [vmem:[%s198 + $0x10] sm:$0xff]
                %203 = vst [vmem:[%s199 + $0x8] sm:$0xff] %v202
                %v204 = vld [vmem:[%s198 + $0x20] sm:$0xff]
                %205 = vst [vmem:[%s199 + $0x10] sm:$0xff] %v204
                %v206 = vld [vmem:[%s198 + $0x30] sm:$0xff]
                %207 = vst [vmem:[%s199 + $0x18] sm:$0xff] %v206
                %v208 = vld [vmem:[%s198 + $0x40] sm:$0xff]
                %209 = vst [vmem:[%s199 + $0x20] sm:$0xff] %v208
                %v210 = vld [vmem:[%s198 + $0x50] sm:$0xff]
                %211 = vst [vmem:[%s199 + $0x28] sm:$0xff] %v210
                %v212 = vld [vmem:[%s198 + $0x60] sm:$0xff]
                %213 = vst [vmem:[%s199 + $0x30] sm:$0xff] %v212
                %v214 = vld [vmem:[%s198 + $0x70] sm:$0xff]
                %215 = vst [vmem:[%s199 + $0x38] sm:$0xff] %v214
                %v216 = vld [vmem:[%s198 + $0x80] sm:$0xff]
                %217 = vst [vmem:[%s199 + $0x40] sm:$0xff] %v216
                %v218 = vld [vmem:[%s198 + $0x90] sm:$0xff]
                %219 = vst [vmem:[%s199 + $0x48] sm:$0xff] %v218
                %v220 = vld [vmem:[%s198 + $0xa0] sm:$0xff]
                %221 = vst [vmem:[%s199 + $0x50] sm:$0xff] %v220
                %v222 = vld [vmem:[%s198 + $0xb0] sm:$0xff]
                %223 = vst [vmem:[%s199 + $0x58] sm:$0xff] %v222
                %v224 = vld [vmem:[%s198 + $0xc0] sm:$0xff]
                %225 = vst [vmem:[%s199 + $0x60] sm:$0xff] %v224
                %v226 = vld [vmem:[%s198 + $0xd0] sm:$0xff]
                %227 = vst [vmem:[%s199 + $0x68] sm:$0xff] %v226
                %v228 = vld [vmem:[%s198 + $0xe0] sm:$0xff]
                %229 = vst [vmem:[%s199 + $0x70] sm:$0xff] %v228
                %v230 = vld [vmem:[%s198 + $0xf0] sm:$0xff]
                %231 = vst [vmem:[%s199 + $0x78] sm:$0xff] %v230
                %v232 = vld [vmem:[%s198 + $0x100] sm:$0xff]
                %233 = vst [vmem:[%s199 + $0x80] sm:$0xff] %v232
                %v234 = vld [vmem:[%s198 + $0x110] sm:$0xff]
                %235 = vst [vmem:[%s199 + $0x88] sm:$0xff] %v234
                %v236 = vld [vmem:[%s198 + $0x120] sm:$0xff]
                %237 = vst [vmem:[%s199 + $0x90] sm:$0xff] %v236
                %v238 = vld [vmem:[%s198 + $0x130] sm:$0xff]
                %239 = vst [vmem:[%s199 + $0x98] sm:$0xff] %v238
                %v240 = vld [vmem:[%s198 + $0x140] sm:$0xff]
                %241 = vst [vmem:[%s199 + $0xa0] sm:$0xff] %v240
                %v242 = vld [vmem:[%s198 + $0x150] sm:$0xff]
                %243 = vst [vmem:[%s199 + $0xa8] sm:$0xff] %v242
                %v244 = vld [vmem:[%s198 + $0x160] sm:$0xff]
                %245 = vst [vmem:[%s199 + $0xb0] sm:$0xff] %v244
                %v246 = vld [vmem:[%s198 + $0x170] sm:$0xff]
                %247 = vst [vmem:[%s199 + $0xb8] sm:$0xff] %v246
                %v248 = vld [vmem:[%s198 + $0x180] sm:$0xff]
                %249 = vst [vmem:[%s199 + $0xc0] sm:$0xff] %v248
                %v250 = vld [vmem:[%s198 + $0x190] sm:$0xff]
                %251 = vst [vmem:[%s199 + $0xc8] sm:$0xff] %v250
                %v252 = vld [vmem:[%s198 + $0x1a0] sm:$0xff]
                %253 = vst [vmem:[%s199 + $0xd0] sm:$0xff] %v252
                %v254 = vld [vmem:[%s198 + $0x1b0] sm:$0xff]
                %255 = vst [vmem:[%s199 + $0xd8] sm:$0xff] %v254
                %v256 = vld [vmem:[%s198 + $0x1c0] sm:$0xff]
                %257 = vst [vmem:[%s199 + $0xe0] sm:$0xff] %v256
                %v258 = vld [vmem:[%s198 + $0x1d0] sm:$0xff]
                %259 = vst [vmem:[%s199 + $0xe8] sm:$0xff] %v258
                %v260 = vld [vmem:[%s198 + $0x1e0] sm:$0xff]
                %261 = vst [vmem:[%s199 + $0xf0] sm:$0xff] %v260
                %v262 = vld [vmem:[%s198 + $0x1f0] sm:$0xff]
                %263 = vst [vmem:[%s199 + $0xf8] sm:$0xff] %v262
              $region41: #{emodel_bigru_forward.59} parent=35 // loop_footer
                %s197 = sadd.s32 1, %s193
              $region42: #{emodel_bigru_forward.59} parent=35 // loop_footer_branch
                %192 = sbr.rel target = $region38
              $region43: #{emodel_bigru_forward.59} parent=35 // loop_exit
                _
            $region36: #{emodel_bigru_forward.59} parent=27 // pred_fallthru
              _
          $region28: #{emodel_bigru_forward.59} parent=23 // pred_fallthru
            _
          %340 = vnop
        $region24: #{emodel_bigru_forward.59} parent=19 // pred_fallthru
          _
        // Predicated region
        $region59: #{emodel_bigru_forward.59} parent=19 // pred_check
          %p341 = pneg %p104
        $region60: #{emodel_bigru_forward.59} parent=19 // pred_check_branch
          %343 = sbr.rel (%p341) target = $region62
        $region61: #{emodel_bigru_forward.59} parent=19 // pred_region
          %s344 = smul.u32 2, %s17
          %p345 = scmp.lt.s32.totalorder %s344, 3
          %s346 = scalar_select %p345, %s344, 3
          %s347 = scalar_lea.vmem %s2, %s346
          %s348 = smul.u32 2, %s17
        $region62: #{emodel_bigru_forward.59} parent=19 // pred_fallthru
          _
      $region20: #{emodel_bigru_forward.59} parent=5 // pred_fallthru
        _
      %p349 = scmp.le.s32.totalorder 1, %s9
      %p350 = scmp.lt.s32.totalorder %s9, 3
      %p351 = pnand %p349, %p350
      %p352 = pneg %p351
      // Predicated region
      $region63: #{emodel_bigru_forward.59} parent=5 // pred_check
        _
      $region64: #{emodel_bigru_forward.59} parent=5 // pred_check_branch
        %354 = sbr.rel (%p351) target = $region66
      $region65: #{emodel_bigru_forward.59} parent=5 // pred_region
        %s355 = ssub.s32 %s9, 1
        %s356 = sand.u32 %s71, 1
        %s357 = sand.u32 %s71, 1
        %s358 = smul.addr %s357, 256
        %s359 = scalar_lea.vmem [#allocation3], %s358
        // Predicated region
        $region67: #{emodel_bigru_forward.59} parent=65 // pred_check
          %p360 = pneg %p84
        $region68: #{emodel_bigru_forward.59} parent=65 // pred_check_branch
          %362 = sbr.rel (%p360) target = $region70
        $region69: #{emodel_bigru_forward.59} parent=65 // pred_region
          _
        $region70: #{emodel_bigru_forward.59} parent=65 // pred_fallthru
          _
        %s363 = smul.u32 2, %s19
        %s364 = smul.u32 2, %s21
        %p365 = scmp.lt.s32.totalorder %s363, 1
        %s366 = scalar_select %p365, %s363, 1
        %p367 = scmp.lt.s32.totalorder %s364, 1
        %s368 = scalar_select %p367, %s364, 1
        %s369 = smul.addr %s366, 2
        %s370 = sadd.s32 %s368, %s369
        %s371 = smul.addr %s370, 8
        %s372 = scalar_lea.vmem %s0, %s371
        %p373 = pneg %p56
        %p374 = pneg %p53
        %s375 = sand.u32 %s71, 1
        %s376 = sand.u32 %s71, 1
        %s377 = smul.addr %s376, 256
        %s378 = scalar_lea.vmem [#allocation3], %s377
        %p379 = pneg %p84
        %p380 = pneg %p81
        %s381 = smul.u32 2, %s20
        %p382 = scmp.lt.s32.totalorder %s381, 3
        %s383 = scalar_select %p382, %s381, 3
        %s384 = scalar_lea.vmem %s2, %s383
        %p385 = pneg %p110
        %p386 = pneg %p107
        %p387 = pneg %p138
        %p388 = pneg %p135
        %s389 = sand.u32 %s125, 1
        %s390 = sand.u32 %s125, 1
        %s391 = smul.addr %s390, 32
        %s392 = scalar_lea.vmem [#allocation4], %s391
        %s393 = smul.u32 2, %s19
        %s394 = smul.u32 2, %s21
        %p395 = scmp.lt.s32.totalorder %s393, 1
        %s396 = scalar_select %p395, %s393, 1
        %p397 = scmp.lt.s32.totalorder %s394, 1
        %s398 = scalar_select %p397, %s394, 1
        %s399 = smul.addr %s396, 2
        %s400 = sadd.s32 %s398, %s399
        %s401 = smul.addr %s400, 8
        %s402 = scalar_lea.vmem %s0, %s401
        %s403 = smul.u32 2, %s19
        %s404 = smul.u32 2, %s21
        %s405 = smul.u32 32, %s21
        %s406 = smul.u32 2, %s20
        %s407 = smul.u32 2, %s20
        %p408 = scmp.lt.s32.totalorder %s407, 3
        %s409 = scalar_select %p408, %s407, 3
        %s410 = scalar_lea.vmem %s2, %s409
        %s411 = smul.u32 2, %s20
        %s412 = smul.u32 2, %s19
        %s413 = smul.u32 2, %s20
        %p414 = scmp.eq.s32.totalorder %s21, 0
        // Predicated region
        $region71: #{emodel_bigru_forward.59} parent=65 // pred_check
          %p415 = pneg %p414
        $region72: #{emodel_bigru_forward.59} parent=65 // pred_check_branch
          %417 = sbr.rel (%p415) target = $region74
        $region73: #{emodel_bigru_forward.59} parent=65 // pred_region
          %418 = vst [vmem:[#allocation2] sm:$0xff] 0.0
          %419 = vst [vmem:[#allocation2 + $0x8] sm:$0xff] 0.0
          %420 = vst [vmem:[#allocation2 + $0x10] sm:$0xff] 0.0
          %421 = vst [vmem:[#allocation2 + $0x18] sm:$0xff] 0.0
        $region74: #{emodel_bigru_forward.59} parent=65 // pred_fallthru
          _
        %v422 = vld [vmem:[#allocation2] sm:$0xff]
        %v423 = vld [vmem:[#allocation2 + $0x8] sm:$0xff]
        %v424 = vld [vmem:[#allocation2 + $0x10] sm:$0xff]
        %v425 = vld [vmem:[#allocation2 + $0x18] sm:$0xff]
        %v426 = vld [vmem:[%s402] sm:$0xff]
        %v427 = vld [vmem:[%s402 + $0x8] sm:$0xff]
        %v428 = vld [vmem:[%s402 + $0x10] sm:$0xff]
        %v429 = vld [vmem:[%s402 + $0x18] sm:$0xff]
        %v430 = vpack.c.bf16 %v428, %v426
        %v431 = vpack.c.bf16 %v429, %v427
        %v432 = vld [vmem:[%s359] sm:$0xff]
        %v433 = vld [vmem:[%s359 + $0x8] sm:$0xff]
        %v434 = vld [vmem:[%s359 + $0x10] sm:$0xff]
        %v435 = vld [vmem:[%s359 + $0x18] sm:$0xff]
        %v436 = vld [vmem:[%s359 + $0x20] sm:$0xff]
        %v437 = vld [vmem:[%s359 + $0x28] sm:$0xff]
        %v438 = vld [vmem:[%s359 + $0x30] sm:$0xff]
        %v439 = vld [vmem:[%s359 + $0x38] sm:$0xff]
        %v440 = vld [vmem:[%s359 + $0x40] sm:$0xff]
        %v441 = vld [vmem:[%s359 + $0x48] sm:$0xff]
        %v442 = vld [vmem:[%s359 + $0x50] sm:$0xff]
        %v443 = vld [vmem:[%s359 + $0x58] sm:$0xff]
        %v444 = vld [vmem:[%s359 + $0x60] sm:$0xff]
        %v445 = vld [vmem:[%s359 + $0x68] sm:$0xff]
        %v446 = vld [vmem:[%s359 + $0x70] sm:$0xff]
        %v447 = vld [vmem:[%s359 + $0x78] sm:$0xff]
        %v448 = vld [vmem:[%s359 + $0x80] sm:$0xff]
        %v449 = vld [vmem:[%s359 + $0x88] sm:$0xff]
        %v450 = vld [vmem:[%s359 + $0x90] sm:$0xff]
        %v451 = vld [vmem:[%s359 + $0x98] sm:$0xff]
        %v452 = vld [vmem:[%s359 + $0xa0] sm:$0xff]
        %v453 = vld [vmem:[%s359 + $0xa8] sm:$0xff]
        %v454 = vld [vmem:[%s359 + $0xb0] sm:$0xff]
        %v455 = vld [vmem:[%s359 + $0xb8] sm:$0xff]
        %v456 = vld [vmem:[%s359 + $0xc0] sm:$0xff]
        %v457 = vld [vmem:[%s359 + $0xc8] sm:$0xff]
        %v458 = vld [vmem:[%s359 + $0xd0] sm:$0xff]
        %v459 = vld [vmem:[%s359 + $0xd8] sm:$0xff]
        %v460 = vld [vmem:[%s359 + $0xe0] sm:$0xff]
        %v461 = vld [vmem:[%s359 + $0xe8] sm:$0xff]
        %v462 = vld [vmem:[%s359 + $0xf0] sm:$0xff]
        %v463 = vld [vmem:[%s359 + $0xf8] sm:$0xff]
        %v496 = vunpack.c.l.b16 %v432
        %v497 = vunpack.c.h.b16 %v432
        %v498 = vunpack.c.l.b16 %v433
        %v499 = vunpack.c.h.b16 %v433
        %v500 = vunpack.c.l.b16 %v434
        %v501 = vunpack.c.h.b16 %v434
        %v502 = vunpack.c.l.b16 %v435
        %v503 = vunpack.c.h.b16 %v435
        %v504 = vunpack.c.l.b16 %v436
        %v505 = vunpack.c.h.b16 %v436
        %v506 = vunpack.c.l.b16 %v437
        %v507 = vunpack.c.h.b16 %v437
        %v508 = vunpack.c.l.b16 %v438
        %v509 = vunpack.c.h.b16 %v438
        %v510 = vunpack.c.l.b16 %v439
        %v511 = vunpack.c.h.b16 %v439
        %v512 = vunpack.c.l.b16 %v440
        %v513 = vunpack.c.h.b16 %v440
        %v514 = vunpack.c.l.b16 %v441
        %v515 = vunpack.c.h.b16 %v441
        %v516 = vunpack.c.l.b16 %v442
        %v517 = vunpack.c.h.b16 %v442
        %v518 = vunpack.c.l.b16 %v443
        %v519 = vunpack.c.h.b16 %v443
        %v520 = vunpack.c.l.b16 %v444
        %v521 = vunpack.c.h.b16 %v444
        %v522 = vunpack.c.l.b16 %v445
        %v523 = vunpack.c.h.b16 %v445
        %v524 = vunpack.c.l.b16 %v446
        %v525 = vunpack.c.h.b16 %v446
        %v526 = vunpack.c.l.b16 %v447
        %v527 = vunpack.c.h.b16 %v447
        %v528 = vunpack.c.l.b16 %v448
        %v529 = vunpack.c.h.b16 %v448
        %v530 = vunpack.c.l.b16 %v449
        %v531 = vunpack.c.h.b16 %v449
        %v532 = vunpack.c.l.b16 %v450
        %v533 = vunpack.c.h.b16 %v450
        %v534 = vunpack.c.l.b16 %v451
        %v535 = vunpack.c.h.b16 %v451
        %v536 = vunpack.c.l.b16 %v452
        %v537 = vunpack.c.h.b16 %v452
        %v538 = vunpack.c.l.b16 %v453
        %v539 = vunpack.c.h.b16 %v453
        %v540 = vunpack.c.l.b16 %v454
        %v541 = vunpack.c.h.b16 %v454
        %v542 = vunpack.c.l.b16 %v455
        %v543 = vunpack.c.h.b16 %v455
        %v544 = vunpack.c.l.b16 %v456
        %v545 = vunpack.c.h.b16 %v456
        %v546 = vunpack.c.l.b16 %v457
        %v547 = vunpack.c.h.b16 %v457
        %v548 = vunpack.c.l.b16 %v458
        %v549 = vunpack.c.h.b16 %v458
        %v550 = vunpack.c.l.b16 %v459
        %v551 = vunpack.c.h.b16 %v459
        %v552 = vunpack.c.l.b16 %v460
        %v553 = vunpack.c.h.b16 %v460
        %v554 = vunpack.c.l.b16 %v461
        %v555 = vunpack.c.h.b16 %v461
        %v556 = vunpack.c.l.b16 %v462
        %v557 = vunpack.c.h.b16 %v462
        %v558 = vunpack.c.l.b16 %v463
        %v559 = vunpack.c.h.b16 %v463
        %v560 = vpack.c.b16 %v498, %v496
        %v561 = vpack.c.b16 %v499, %v497
        %v562 = vpack.c.b16 %v502, %v500
        %v563 = vpack.c.b16 %v503, %v501
        %v564 = vpack.c.b16 %v506, %v504
        %v565 = vpack.c.b16 %v507, %v505
        %v566 = vpack.c.b16 %v510, %v508
        %v567 = vpack.c.b16 %v511, %v509
        %v568 = vpack.c.b16 %v514, %v512
        %v569 = vpack.c.b16 %v515, %v513
        %v570 = vpack.c.b16 %v518, %v516
        %v571 = vpack.c.b16 %v519, %v517
        %v572 = vpack.c.b16 %v522, %v520
        %v573 = vpack.c.b16 %v523, %v521
        %v574 = vpack.c.b16 %v526, %v524
        %v575 = vpack.c.b16 %v527, %v525
        %v576 = vpack.c.b16 %v530, %v528
        %v577 = vpack.c.b16 %v531, %v529
        %v578 = vpack.c.b16 %v534, %v532
        %v579 = vpack.c.b16 %v535, %v533
        %v580 = vpack.c.b16 %v538, %v536
        %v581 = vpack.c.b16 %v539, %v537
        %v582 = vpack.c.b16 %v542, %v540
        %v583 = vpack.c.b16 %v543, %v541
        %v584 = vpack.c.b16 %v546, %v544
        %v585 = vpack.c.b16 %v547, %v545
        %v586 = vpack.c.b16 %v550, %v548
        %v587 = vpack.c.b16 %v551, %v549
        %v588 = vpack.c.b16 %v554, %v552
        %v589 = vpack.c.b16 %v555, %v553
        %v590 = vpack.c.b16 %v558, %v556
        %v591 = vpack.c.b16 %v559, %v557
        %624 = vmatprep.subr.bf16.mxu0 %v561
        %625 = vmatpush1.bf16.msra.mxu0 %v560
        %626 = vmatprep.subr.bf16.mxu0 %v563
        %627 = vmatpush1.bf16.msra.mxu0 %v562
        %628 = vmatprep.subr.bf16.mxu0 %v565
        %629 = vmatpush1.bf16.msra.mxu0 %v564
        %630 = vmatprep.subr.bf16.mxu0 %v567
        %631 = vmatpush1.bf16.msra.mxu0 %v566
        %632 = vmatprep.subr.bf16.mxu0 %v569
        %633 = vmatpush1.bf16.msra.mxu0 %v568
        %634 = vmatprep.subr.bf16.mxu0 %v571
        %635 = vmatpush1.bf16.msra.mxu0 %v570
        %636 = vmatprep.subr.bf16.mxu0 %v573
        %637 = vmatpush1.bf16.msra.mxu0 %v572
        %638 = vmatprep.subr.bf16.mxu0 %v575
        %639 = vmatpush1.bf16.msra.mxu0 %v574
        %640 = vmatprep.subr.bf16.mxu0 %v577
        %641 = vmatpush1.bf16.msra.mxu0 %v576
        %642 = vmatprep.subr.bf16.mxu0 %v579
        %643 = vmatpush1.bf16.msra.mxu0 %v578
        %644 = vmatprep.subr.bf16.mxu0 %v581
        %645 = vmatpush1.bf16.msra.mxu0 %v580
        %646 = vmatprep.subr.bf16.mxu0 %v583
        %647 = vmatpush1.bf16.msra.mxu0 %v582
        %648 = vmatprep.subr.bf16.mxu0 %v585
        %649 = vmatpush1.bf16.msra.mxu0 %v584
        %650 = vmatprep.subr.bf16.mxu0 %v587
        %651 = vmatpush1.bf16.msra.mxu0 %v586
        %652 = vmatprep.subr.bf16.mxu0 %v589
        %653 = vmatpush1.bf16.msra.mxu0 %v588
        %654 = vmatprep.subr.bf16.mxu0 %v591
        %655 = vmatpush1.bf16.msra.mxu0 %v590
        %656 = vmatprep.mubr.bf16.mxu0 %v431
        %657 = vmatmul.mubr.bf16.gmra.mrb[0].mxu0 %v430
        %v658 = vpop.f32.mrb[0].mxu0
        %v659 = vadd.f32 0.0, %v658
        %v660 = vpop.f32.mrb[0].mxu0
        %v661 = vadd.f32 0.0, %v660
        %v662 = vpop.f32.mrb[0].mxu0
        %v663 = vadd.f32 0.0, %v662
        %v664 = vpop.f32.mrb[0].mxu0
        %v665 = vadd.f32 0.0, %v664
        %666 = vdwg.mxu0
        %v667 = vadd.f32 %v422, %v659
        %v668 = vadd.f32 %v423, %v661
        %v669 = vadd.f32 %v424, %v663
        %v670 = vadd.f32 %v425, %v665
        %671 = vst [vmem:[#allocation2] sm:$0xff] %v667
        %672 = vst [vmem:[#allocation2 + $0x8] sm:$0xff] %v668
        %673 = vst [vmem:[#allocation2 + $0x10] sm:$0xff] %v669
        %674 = vst [vmem:[#allocation2 + $0x18] sm:$0xff] %v670
        // Predicated region
        $region75: #{emodel_bigru_forward.59} parent=65 // pred_check
          %p675 = pneg %p414
        $region76: #{emodel_bigru_forward.59} parent=65 // pred_check_branch
          %677 = sbr.rel (%p675) target = $region78
        $region77: #{emodel_bigru_forward.59} parent=65 // pred_region
          %v678 = vld [vmem:[#allocation2] sm:$0xff]
          %v679 = vld [vmem:[#allocation2 + $0x8] sm:$0xff]
          %v680 = vld [vmem:[#allocation2 + $0x10] sm:$0xff]
          %v681 = vld [vmem:[#allocation2 + $0x18] sm:$0xff]
          %v682 = vld [vmem:[%s410] sm:$0x3]
          %v684 = vlaneseq
          %v685 = vshrl.u32 %v684, 7
          %v686 = vsub.s32 0, %v685
          %v687 = vrot.slane %v682, %v686
          %v688 = vlaneseq
          %v689 = vshrl.u32 %v688, 7
          %v690 = vsub.s32 1, %v689
          %v691 = vrot.slane %v682, %v690
          %v694 = vadd.f32 %v678, %v687
          %v695 = vadd.f32 %v679, %v691
          %v696 = vadd.f32 %v680, %v687
          %v697 = vadd.f32 %v681, %v691
          %698 = vst [vmem:[%s392] sm:$0xff] %v694
          %699 = vst [vmem:[%s392 + $0x8] sm:$0xff] %v695
          %700 = vst [vmem:[%s392 + $0x10] sm:$0xff] %v696
          %701 = vst [vmem:[%s392 + $0x18] sm:$0xff] %v697
        $region78: #{emodel_bigru_forward.59} parent=65 // pred_fallthru
          _
        %s702 = sand.u32 %s125, 1
        %s703 = sand.u32 %s125, 1
        %s704 = smul.addr %s703, 32
        %s705 = scalar_lea.vmem [#allocation4], %s704
        // Predicated region
        $region79: #{emodel_bigru_forward.59} parent=65 // pred_check
          %p706 = pneg %p135
        $region80: #{emodel_bigru_forward.59} parent=65 // pred_check_branch
          %708 = sbr.rel (%p706) target = $region82
        $region81: #{emodel_bigru_forward.59} parent=65 // pred_region
          %s709 = smul.u32 2, %s19
          %s710 = smul.u32 2, %s20
          %s711 = smul.addr %s709, 4
          %s712 = sadd.s32 %s710, %s711
          %s713 = smul.addr %s712, 8
          %s714 = scalar_lea.vmem %s3, %s713
          // Predicated region
          $region83: #{emodel_bigru_forward.59} parent=81 // pred_check
            _
          $region84: #{emodel_bigru_forward.59} parent=81 // pred_check_branch
            %716 = sbr.rel (0) target = $region86
          $region85: #{emodel_bigru_forward.59} parent=81 // pred_region
            // Predicated region
            $region87: #{emodel_bigru_forward.59} parent=85 // pred_check
              _
            $region88: #{emodel_bigru_forward.59} parent=85 // pred_check_branch
              %718 = sbr.rel (0) target = $region90
            $region89: #{emodel_bigru_forward.59} parent=85 // pred_region
              loop: start=0, step=1, limit=1
              $region91: #{emodel_bigru_forward.59} parent=89 // loop_pre_header
                _
              $region92: #{emodel_bigru_forward.59} parent=89 // loop_header
                %s720 = sphi 0, %s724
                %p721 = scmp.ge.s32.totalorder %s720, 1
                %s725 = sphi %s705, %s705
                %s726 = sphi %s714, %s714
              $region93: #{emodel_bigru_forward.59} parent=89 // loop_header_branch
                %723 = sbr.rel (%p721) target = $region97
              $region94: #{emodel_bigru_forward.59} parent=89 // loop_body
                %v727 = vld [vmem:[%s725] sm:$0xff]
                %728 = vst [vmem:[%s726] sm:$0xff] %v727
                %v729 = vld [vmem:[%s725 + $0x8] sm:$0xff]
                %730 = vst [vmem:[%s726 + $0x8] sm:$0xff] %v729
                %v731 = vld [vmem:[%s725 + $0x10] sm:$0xff]
                %732 = vst [vmem:[%s726 + $0x20] sm:$0xff] %v731
                %v733 = vld [vmem:[%s725 + $0x18] sm:$0xff]
                %734 = vst [vmem:[%s726 + $0x28] sm:$0xff] %v733
              $region95: #{emodel_bigru_forward.59} parent=89 // loop_footer
                %s724 = sadd.s32 1, %s720
              $region96: #{emodel_bigru_forward.59} parent=89 // loop_footer_branch
                %719 = sbr.rel target = $region92
              $region97: #{emodel_bigru_forward.59} parent=89 // loop_exit
                _
            $region90: #{emodel_bigru_forward.59} parent=85 // pred_fallthru
              _
            // Predicated region
            $region98: #{emodel_bigru_forward.59} parent=85 // pred_check
              _
            $region99: #{emodel_bigru_forward.59} parent=85 // pred_check_branch
              %736 = sbr.rel target = $region101
            $region100: #{emodel_bigru_forward.59} parent=85 // pred_region
              _
            $region101: #{emodel_bigru_forward.59} parent=85 // pred_fallthru
              _
          $region86: #{emodel_bigru_forward.59} parent=81 // pred_fallthru
            _
          %737 = vnop
        $region82: #{emodel_bigru_forward.59} parent=65 // pred_fallthru
          _
      $region66: #{emodel_bigru_forward.59} parent=5 // pred_fallthru
        _
      %p738 = scmp.le.s32.totalorder 2, %s9
      // Predicated region
      $region102: #{emodel_bigru_forward.59} parent=5 // pred_check
        %p739 = pneg %p738
      $region103: #{emodel_bigru_forward.59} parent=5 // pred_check_branch
        %741 = sbr.rel (%p739) target = $region105
      $region104: #{emodel_bigru_forward.59} parent=5 // pred_region
        %s742 = ssub.s32 %s9, 2
        // Predicated region
        $region106: #{emodel_bigru_forward.59} parent=104 // pred_check
          %p743 = pneg %p141
        $region107: #{emodel_bigru_forward.59} parent=104 // pred_check_branch
          %745 = sbr.rel (%p743) target = $region109
        $region108: #{emodel_bigru_forward.59} parent=104 // pred_region
          %s746 = sand.u32 %s126, 1
          %s747 = sand.u32 %s126, 1
          %s748 = smul.addr %s747, 32
          %s749 = scalar_lea.vmem [#allocation4], %s748
        $region109: #{emodel_bigru_forward.59} parent=104 // pred_fallthru
          _
      $region105: #{emodel_bigru_forward.59} parent=5 // pred_fallthru
        _
    $region6: #{emodel_bigru_forward.59} parent=1 // loop_footer
      %s13 = sadd.s32 1, %s9
    $region7: #{emodel_bigru_forward.59} parent=1 // loop_footer_branch
      %8 = sbr.rel target = $region3
    $region8: #{emodel_bigru_forward.59} parent=1 // loop_exit
      _

// kernel: emodel_bigru_forward.58
$region0: #{emodel_bigru_forward.58}
  #allocation0 [shape = 'u32[]', space=smem, size = 0x4, offset = 0x4, fixed_abs, tag = 'smem constant byte address 0x4 - core index']
  #allocation1 [shape = 'u32[144,128]{1,0:T(1,128)}', space=vmem, size = 0x12000, scoped, tag = 'internal scratch']
  #allocation2 [shape = 'f32[16,256]{1,0:T(8,128)}', space=vmem, size = 0x4000, scoped, tag = 'scratch operand']
  %s0 = inlined_call_operand.vmem [shape: f32[16,256], index: 0, kind: input, shape index: {}]
  %s1 = inlined_call_operand.vmem [shape: bf16[256,256], index: 1, kind: input, shape index: {}]
  %s2 = inlined_call_operand.vmem [shape: f32[1,256], index: 2, kind: input, shape index: {}]
  %s3 = inlined_call_operand.vmem [shape: f32[16,256], index: 3, kind: output, shape index: {}]
  %s4 = sld [smem:[#allocation0]]
  $region30: #{emodel_bigru_forward.58} parent=0
    _
  %s6 = ssub.s32 1, %s4
  %s7 = scalar_select 0, %s6, %s4
  // Predicated region
  $region2: #{emodel_bigru_forward.58} parent=0 // pred_check
    _
  $region3: #{emodel_bigru_forward.58} parent=0 // pred_check_branch
    %9 = sbr.rel (0) target = $region5
  $region4: #{emodel_bigru_forward.58} parent=0 // pred_region
    _
  $region5: #{emodel_bigru_forward.58} parent=0 // pred_fallthru
    _
  // Predicated region
  $region6: #{emodel_bigru_forward.58} parent=0 // pred_check
    _
  $region7: #{emodel_bigru_forward.58} parent=0 // pred_check_branch
    %11 = sbr.rel (0) target = $region9
  $region8: #{emodel_bigru_forward.58} parent=0 // pred_region
    _
  $region9: #{emodel_bigru_forward.58} parent=0 // pred_fallthru
    _
  // Predicated region
  $region10: #{emodel_bigru_forward.58} parent=0 // pred_check
    _
  $region11: #{emodel_bigru_forward.58} parent=0 // pred_check_branch
    %13 = sbr.rel (0) target = $region13
  $region12: #{emodel_bigru_forward.58} parent=0 // pred_region
    _
  $region13: #{emodel_bigru_forward.58} parent=0 // pred_fallthru
    _
  %p14 = scmp.eq.s32.totalorder 0, 0
  // Predicated region
  $region14: #{emodel_bigru_forward.58} parent=0 // pred_check
    %p15 = pneg %p14
  $region15: #{emodel_bigru_forward.58} parent=0 // pred_check_branch
    %17 = sbr.rel (%p15) target = $region17
  $region16: #{emodel_bigru_forward.58} parent=0 // pred_region
    %18 = vst [vmem:[#allocation2] sm:$0xff] 0.0
    %19 = vst [vmem:[#allocation2 + $0x8] sm:$0xff] 0.0
    %20 = vst [vmem:[#allocation2 + $0x10] sm:$0xff] 0.0
    %21 = vst [vmem:[#allocation2 + $0x18] sm:$0xff] 0.0
  $region17: #{emodel_bigru_forward.58} parent=0 // pred_fallthru
    _
  %v22 = vld [vmem:[#allocation2] sm:$0xff]
  %v23 = vld [vmem:[#allocation2 + $0x8] sm:$0xff]
  %v24 = vld [vmem:[#allocation2 + $0x10] sm:$0xff]
  %v25 = vld [vmem:[#allocation2 + $0x18] sm:$0xff]
  %v26 = vld [vmem:[%s0] sm:$0xff]
  %v27 = vld [vmem:[%s0 + $0x8] sm:$0xff]
  %v28 = vld [vmem:[%s0 + $0x10] sm:$0xff]
  %v29 = vld [vmem:[%s0 + $0x18] sm:$0xff]
  %v30 = vpack.c.bf16 %v28, %v26
  %v31 = vpack.c.bf16 %v29, %v27
  %v32 = vld [vmem:[%s1] sm:$0xff]
  %v33 = vld [vmem:[%s1 + $0x8] sm:$0xff]
  %v34 = vld [vmem:[%s1 + $0x10] sm:$0xff]
  %v35 = vld [vmem:[%s1 + $0x18] sm:$0xff]
  %v36 = vld [vmem:[%s1 + $0x20] sm:$0xff]
  %v37 = vld [vmem:[%s1 + $0x28] sm:$0xff]
  %v38 = vld [vmem:[%s1 + $0x30] sm:$0xff]
  %v39 = vld [vmem:[%s1 + $0x38] sm:$0xff]
  %v40 = vld [vmem:[%s1 + $0x40] sm:$0xff]
  %v41 = vld [vmem:[%s1 + $0x48] sm:$0xff]
  %v42 = vld [vmem:[%s1 + $0x50] sm:$0xff]
  %v43 = vld [vmem:[%s1 + $0x58] sm:$0xff]
  %v44 = vld [vmem:[%s1 + $0x60] sm:$0xff]
  %v45 = vld [vmem:[%s1 + $0x68] sm:$0xff]
  %v46 = vld [vmem:[%s1 + $0x70] sm:$0xff]
  %v47 = vld [vmem:[%s1 + $0x78] sm:$0xff]
  %v48 = vld [vmem:[%s1 + $0x80] sm:$0xff]
  %v49 = vld [vmem:[%s1 + $0x88] sm:$0xff]
  %v50 = vld [vmem:[%s1 + $0x90] sm:$0xff]
  %v51 = vld [vmem:[%s1 + $0x98] sm:$0xff]
  %v52 = vld [vmem:[%s1 + $0xa0] sm:$0xff]
  %v53 = vld [vmem:[%s1 + $0xa8] sm:$0xff]
  %v54 = vld [vmem:[%s1 + $0xb0] sm:$0xff]
  %v55 = vld [vmem:[%s1 + $0xb8] sm:$0xff]
  %v56 = vld [vmem:[%s1 + $0xc0] sm:$0xff]
  %v57 = vld [vmem:[%s1 + $0xc8] sm:$0xff]
  %v58 = vld [vmem:[%s1 + $0xd0] sm:$0xff]
  %v59 = vld [vmem:[%s1 + $0xd8] sm:$0xff]
  %v60 = vld [vmem:[%s1 + $0xe0] sm:$0xff]
  %v61 = vld [vmem:[%s1 + $0xe8] sm:$0xff]
  %v62 = vld [vmem:[%s1 + $0xf0] sm:$0xff]
  %v63 = vld [vmem:[%s1 + $0xf8] sm:$0xff]
  %v96 = vunpack.c.l.b16 %v32
  %v97 = vunpack.c.h.b16 %v32
  %v98 = vunpack.c.l.b16 %v33
  %v99 = vunpack.c.h.b16 %v33
  %v100 = vunpack.c.l.b16 %v34
  %v101 = vunpack.c.h.b16 %v34
  %v102 = vunpack.c.l.b16 %v35
  %v103 = vunpack.c.h.b16 %v35
  %v104 = vunpack.c.l.b16 %v36
  %v105 = vunpack.c.h.b16 %v36
  %v106 = vunpack.c.l.b16 %v37
  %v107 = vunpack.c.h.b16 %v37
  %v108 = vunpack.c.l.b16 %v38
  %v109 = vunpack.c.h.b16 %v38
  %v110 = vunpack.c.l.b16 %v39
  %v111 = vunpack.c.h.b16 %v39
  %v112 = vunpack.c.l.b16 %v40
  %v113 = vunpack.c.h.b16 %v40
  %v114 = vunpack.c.l.b16 %v41
  %v115 = vunpack.c.h.b16 %v41
  %v116 = vunpack.c.l.b16 %v42
  %v117 = vunpack.c.h.b16 %v42
  %v118 = vunpack.c.l.b16 %v43
  %v119 = vunpack.c.h.b16 %v43
  %v120 = vunpack.c.l.b16 %v44
  %v121 = vunpack.c.h.b16 %v44
  %v122 = vunpack.c.l.b16 %v45
  %v123 = vunpack.c.h.b16 %v45
  %v124 = vunpack.c.l.b16 %v46
  %v125 = vunpack.c.h.b16 %v46
  %v126 = vunpack.c.l.b16 %v47
  %v127 = vunpack.c.h.b16 %v47
  %v128 = vunpack.c.l.b16 %v48
  %v129 = vunpack.c.h.b16 %v48
  %v130 = vunpack.c.l.b16 %v49
  %v131 = vunpack.c.h.b16 %v49
  %v132 = vunpack.c.l.b16 %v50
  %v133 = vunpack.c.h.b16 %v50
  %v134 = vunpack.c.l.b16 %v51
  %v135 = vunpack.c.h.b16 %v51
  %v136 = vunpack.c.l.b16 %v52
  %v137 = vunpack.c.h.b16 %v52
  %v138 = vunpack.c.l.b16 %v53
  %v139 = vunpack.c.h.b16 %v53
  %v140 = vunpack.c.l.b16 %v54
  %v141 = vunpack.c.h.b16 %v54
  %v142 = vunpack.c.l.b16 %v55
  %v143 = vunpack.c.h.b16 %v55
  %v144 = vunpack.c.l.b16 %v56
  %v145 = vunpack.c.h.b16 %v56
  %v146 = vunpack.c.l.b16 %v57
  %v147 = vunpack.c.h.b16 %v57
  %v148 = vunpack.c.l.b16 %v58
  %v149 = vunpack.c.h.b16 %v58
  %v150 = vunpack.c.l.b16 %v59
  %v151 = vunpack.c.h.b16 %v59
  %v152 = vunpack.c.l.b16 %v60
  %v153 = vunpack.c.h.b16 %v60
  %v154 = vunpack.c.l.b16 %v61
  %v155 = vunpack.c.h.b16 %v61
  %v156 = vunpack.c.l.b16 %v62
  %v157 = vunpack.c.h.b16 %v62
  %v158 = vunpack.c.l.b16 %v63
  %v159 = vunpack.c.h.b16 %v63
  %v160 = vpack.c.b16 %v98, %v96
  %v161 = vpack.c.b16 %v99, %v97
  %v162 = vpack.c.b16 %v102, %v100
  %v163 = vpack.c.b16 %v103, %v101
  %v164 = vpack.c.b16 %v106, %v104
  %v165 = vpack.c.b16 %v107, %v105
  %v166 = vpack.c.b16 %v110, %v108
  %v167 = vpack.c.b16 %v111, %v109
  %v168 = vpack.c.b16 %v114, %v112
  %v169 = vpack.c.b16 %v115, %v113
  %v170 = vpack.c.b16 %v118, %v116
  %v171 = vpack.c.b16 %v119, %v117
  %v172 = vpack.c.b16 %v122, %v120
  %v173 = vpack.c.b16 %v123, %v121
  %v174 = vpack.c.b16 %v126, %v124
  %v175 = vpack.c.b16 %v127, %v125
  %v176 = vpack.c.b16 %v130, %v128
  %v177 = vpack.c.b16 %v131, %v129
  %v178 = vpack.c.b16 %v134, %v132
  %v179 = vpack.c.b16 %v135, %v133
  %v180 = vpack.c.b16 %v138, %v136
  %v181 = vpack.c.b16 %v139, %v137
  %v182 = vpack.c.b16 %v142, %v140
  %v183 = vpack.c.b16 %v143, %v141
  %v184 = vpack.c.b16 %v146, %v144
  %v185 = vpack.c.b16 %v147, %v145
  %v186 = vpack.c.b16 %v150, %v148
  %v187 = vpack.c.b16 %v151, %v149
  %v188 = vpack.c.b16 %v154, %v152
  %v189 = vpack.c.b16 %v155, %v153
  %v190 = vpack.c.b16 %v158, %v156
  %v191 = vpack.c.b16 %v159, %v157
  %224 = vmatprep.subr.bf16.mxu0 %v161
  %225 = vmatpush1.bf16.msra.mxu0 %v160
  %226 = vmatprep.subr.bf16.mxu0 %v163
  %227 = vmatpush1.bf16.msra.mxu0 %v162
  %228 = vmatprep.subr.bf16.mxu0 %v165
  %229 = vmatpush1.bf16.msra.mxu0 %v164
  %230 = vmatprep.subr.bf16.mxu0 %v167
  %231 = vmatpush1.bf16.msra.mxu0 %v166
  %232 = vmatprep.subr.bf16.mxu0 %v169
  %233 = vmatpush1.bf16.msra.mxu0 %v168
  %234 = vmatprep.subr.bf16.mxu0 %v171
  %235 = vmatpush1.bf16.msra.mxu0 %v170
  %236 = vmatprep.subr.bf16.mxu0 %v173
  %237 = vmatpush1.bf16.msra.mxu0 %v172
  %238 = vmatprep.subr.bf16.mxu0 %v175
  %239 = vmatpush1.bf16.msra.mxu0 %v174
  %240 = vmatprep.subr.bf16.mxu0 %v177
  %241 = vmatpush1.bf16.msra.mxu0 %v176
  %242 = vmatprep.subr.bf16.mxu0 %v179
  %243 = vmatpush1.bf16.msra.mxu0 %v178
  %244 = vmatprep.subr.bf16.mxu0 %v181
  %245 = vmatpush1.bf16.msra.mxu0 %v180
  %246 = vmatprep.subr.bf16.mxu0 %v183
  %247 = vmatpush1.bf16.msra.mxu0 %v182
  %248 = vmatprep.subr.bf16.mxu0 %v185
  %249 = vmatpush1.bf16.msra.mxu0 %v184
  %250 = vmatprep.subr.bf16.mxu0 %v187
  %251 = vmatpush1.bf16.msra.mxu0 %v186
  %252 = vmatprep.subr.bf16.mxu0 %v189
  %253 = vmatpush1.bf16.msra.mxu0 %v188
  %254 = vmatprep.subr.bf16.mxu0 %v191
  %255 = vmatpush1.bf16.msra.mxu0 %v190
  %256 = vmatprep.mubr.bf16.mxu0 %v31
  %257 = vmatmul.mubr.bf16.gmra.mrb[0].mxu0 %v30
  %v258 = vpop.f32.mrb[0].mxu0
  %v259 = vadd.f32 0.0, %v258
  %v260 = vpop.f32.mrb[0].mxu0
  %v261 = vadd.f32 0.0, %v260
  %v262 = vpop.f32.mrb[0].mxu0
  %v263 = vadd.f32 0.0, %v262
  %v264 = vpop.f32.mrb[0].mxu0
  %v265 = vadd.f32 0.0, %v264
  %266 = vdwg.mxu0
  %v267 = vadd.f32 %v22, %v259
  %v268 = vadd.f32 %v23, %v261
  %v269 = vadd.f32 %v24, %v263
  %v270 = vadd.f32 %v25, %v265
  %271 = vst [vmem:[#allocation2] sm:$0xff] %v267
  %272 = vst [vmem:[#allocation2 + $0x8] sm:$0xff] %v268
  %273 = vst [vmem:[#allocation2 + $0x10] sm:$0xff] %v269
  %274 = vst [vmem:[#allocation2 + $0x18] sm:$0xff] %v270
  // Predicated region
  $region18: #{emodel_bigru_forward.58} parent=0 // pred_check
    %p275 = pneg %p14
  $region19: #{emodel_bigru_forward.58} parent=0 // pred_check_branch
    %277 = sbr.rel (%p275) target = $region21
  $region20: #{emodel_bigru_forward.58} parent=0 // pred_region
    %v278 = vld [vmem:[#allocation2] sm:$0xff]
    %v279 = vld [vmem:[#allocation2 + $0x8] sm:$0xff]
    %v280 = vld [vmem:[#allocation2 + $0x10] sm:$0xff]
    %v281 = vld [vmem:[#allocation2 + $0x18] sm:$0xff]
    %v282 = vld [vmem:[%s2] sm:$0x3]
    %v284 = vlaneseq
    %v285 = vshrl.u32 %v284, 7
    %v286 = vsub.s32 0, %v285
    %v287 = vrot.slane %v282, %v286
    %v288 = vlaneseq
    %v289 = vshrl.u32 %v288, 7
    %v290 = vsub.s32 1, %v289
    %v291 = vrot.slane %v282, %v290
    %v294 = vadd.f32 %v278, %v287
    %v295 = vadd.f32 %v279, %v291
    %v296 = vadd.f32 %v280, %v287
    %v297 = vadd.f32 %v281, %v291
    %298 = vst [vmem:[%s3] sm:$0xff] %v294
    %299 = vst [vmem:[%s3 + $0x8] sm:$0xff] %v295
    %300 = vst [vmem:[%s3 + $0x10] sm:$0xff] %v296
    %301 = vst [vmem:[%s3 + $0x18] sm:$0xff] %v297
  $region21: #{emodel_bigru_forward.58} parent=0 // pred_fallthru
    _
  // Predicated region
  $region22: #{emodel_bigru_forward.58} parent=0 // pred_check
    _
  $region23: #{emodel_bigru_forward.58} parent=0 // pred_check_branch
    %303 = sbr.rel (0) target = $region25
  $region24: #{emodel_bigru_forward.58} parent=0 // pred_region
    _
  $region25: #{emodel_bigru_forward.58} parent=0 // pred_fallthru
    _
  // Predicated region
  $region26: #{emodel_bigru_forward.58} parent=0 // pred_check
    _
  $region27: #{emodel_bigru_forward.58} parent=0 // pred_check_branch
    %305 = sbr.rel (0) target = $region29
  $region28: #{emodel_bigru_forward.58} parent=0 // pred_region
    _
  $region29: #{emodel_bigru_forward.58} parent=0 // pred_fallthru
    _

// kernel: emodel_bigru_forward.75
$region0: #{emodel_bigru_forward.75}
  #allocation0 [shape = 'u32[]', space=smem, size = 0x4, offset = 0x4, fixed_abs, tag = 'smem constant byte address 0x4 - core index']
  #allocation1 [shape = 'u32[144,128]{1,0:T(1,128)}', space=vmem, size = 0x12000, scoped, tag = 'internal scratch']
  %s0 = inlined_call_operand.vmem [shape: f32[2,8,256], index: 0, kind: input, shape index: {}]
  %s1 = inlined_call_operand.vmem [shape: bf16[256,256], index: 1, kind: input, shape index: {}]
  %s2 = inlined_call_operand.vmem [shape: f32[1,256], index: 2, kind: input, shape index: {}]
  %s3 = inlined_call_operand.vmem [shape: f32[1,256], index: 3, kind: input, shape index: {}]
  %s4 = inlined_call_operand.vmem [shape: f32[2,1,256], index: 4, kind: output, shape index: {}]
  %s5 = sld [smem:[#allocation0]]
  $region49: #{emodel_bigru_forward.75} parent=0
    _
  %s7 = ssub.s32 1, %s5
  %s8 = scalar_select 0, %s7, %s5
  loop: start=0, step=1, limit=4
  $region2: #{emodel_bigru_forward.75} parent=0 // loop_pre_header
    _
  $region3: #{emodel_bigru_forward.75} parent=0 // loop_header
    %s10 = sphi 0, %s14
    %p11 = scmp.ge.s32.totalorder %s10, 4
    %s20 = sphi 0, %s22
    %s23 = sphi 0, %s20
    %s24 = sphi 0, %s23
    %s40 = sphi 0, %s24
    %s44 = sphi 0, %s44
    %s46 = sphi 0, %s44
    %s47 = sphi 0, %s46
    %s61 = sphi 0, %s47
    %s65 = sphi 0, %s65
    %s67 = sphi 0, %s65
    %s68 = sphi 0, %s67
    %s82 = sphi 0, %s68
    %s86 = sphi 0, %s86
    %s88 = sphi 0, %s86
    %s89 = sphi 0, %s88
    %s103 = sphi 0, %s89
    %s109 = sphi 0, %s111
    %s112 = sphi 0, %s109
    %s113 = sphi 0, %s112
    %s129 = sphi 0, %s113
  $region4: #{emodel_bigru_forward.75} parent=0 // loop_header_branch
    %13 = sbr.rel (%p11) target = $region8
  $region5: #{emodel_bigru_forward.75} parent=0 // loop_body
    %s15 = ssub.s32 %s10, 1
    %s16 = ssub.s32 %s10, 2
    %s17 = sadd.s32 %s10, 1
    %s18 = ssub.s32 %s10, %s17
    %p19 = scmp.eq.s32.totalorder %s18, 0
    %s21 = sadd.s32 %s20, 1
    %s22 = scalar_select %p19, %s20, %s21
    %p25 = pneg %p19
    %p26 = scmp.eq.s32.totalorder %s10, 1
    %p27 = por %p25, %p26
    %p28 = scmp.ne.s32.totalorder %s20, %s23
    %p29 = scmp.eq.s32.totalorder %s10, 0
    %p30 = por %p28, %p29
    %p31 = scmp.ne.s32.totalorder %s20, %s23
    %p32 = scmp.eq.s32.totalorder %s15, 1
    %p33 = por %p31, %p32
    %p34 = scmp.ne.s32.totalorder %s23, %s24
    %p35 = scmp.eq.s32.totalorder %s15, 0
    %p36 = por %p34, %p35
    %p37 = scmp.ne.s32.totalorder %s23, %s24
    %p38 = scmp.eq.s32.totalorder %s16, 1
    %p39 = por %p37, %p38
    %p41 = scmp.ne.s32.totalorder %s24, %s40
    %p42 = scmp.eq.s32.totalorder %s16, 0
    %p43 = por %p41, %p42
    %s45 = sadd.s32 %s44, 1
    %p48 = scmp.eq.s32.totalorder %s10, 1
    %p49 = scmp.ne.s32.totalorder %s44, %s46
    %p50 = scmp.eq.s32.totalorder %s10, 0
    %p51 = por %p49, %p50
    %p52 = scmp.ne.s32.totalorder %s44, %s46
    %p53 = scmp.eq.s32.totalorder %s15, 1
    %p54 = por %p52, %p53
    %p55 = scmp.ne.s32.totalorder %s46, %s47
    %p56 = scmp.eq.s32.totalorder %s15, 0
    %p57 = por %p55, %p56
    %p58 = scmp.ne.s32.totalorder %s46, %s47
    %p59 = scmp.eq.s32.totalorder %s16, 1
    %p60 = por %p58, %p59
    %p62 = scmp.ne.s32.totalorder %s47, %s61
    %p63 = scmp.eq.s32.totalorder %s16, 0
    %p64 = por %p62, %p63
    %s66 = sadd.s32 %s65, 1
    %p69 = scmp.eq.s32.totalorder %s10, 1
    %p70 = scmp.ne.s32.totalorder %s65, %s67
    %p71 = scmp.eq.s32.totalorder %s10, 0
    %p72 = por %p70, %p71
    %p73 = scmp.ne.s32.totalorder %s65, %s67
    %p74 = scmp.eq.s32.totalorder %s15, 1
    %p75 = por %p73, %p74
    %p76 = scmp.ne.s32.totalorder %s67, %s68
    %p77 = scmp.eq.s32.totalorder %s15, 0
    %p78 = por %p76, %p77
    %p79 = scmp.ne.s32.totalorder %s67, %s68
    %p80 = scmp.eq.s32.totalorder %s16, 1
    %p81 = por %p79, %p80
    %p83 = scmp.ne.s32.totalorder %s68, %s82
    %p84 = scmp.eq.s32.totalorder %s16, 0
    %p85 = por %p83, %p84
    %s87 = sadd.s32 %s86, 1
    %p90 = scmp.eq.s32.totalorder %s10, 1
    %p91 = scmp.ne.s32.totalorder %s86, %s88
    %p92 = scmp.eq.s32.totalorder %s10, 0
    %p93 = por %p91, %p92
    %p94 = scmp.ne.s32.totalorder %s86, %s88
    %p95 = scmp.eq.s32.totalorder %s15, 1
    %p96 = por %p94, %p95
    %p97 = scmp.ne.s32.totalorder %s88, %s89
    %p98 = scmp.eq.s32.totalorder %s15, 0
    %p99 = por %p97, %p98
    %p100 = scmp.ne.s32.totalorder %s88, %s89
    %p101 = scmp.eq.s32.totalorder %s16, 1
    %p102 = por %p100, %p101
    %p104 = scmp.ne.s32.totalorder %s89, %s103
    %p105 = scmp.eq.s32.totalorder %s16, 0
    %p106 = por %p104, %p105
    %s107 = ssub.s32 %s10, %s17
    %p108 = scmp.eq.s32.totalorder %s107, 0
    %s110 = sadd.s32 %s109, 1
    %s111 = scalar_select %p108, %s109, %s110
    %p114 = pneg %p108
    %p115 = scmp.eq.s32.totalorder %s10, 1
    %p116 = por %p114, %p115
    %p117 = scmp.ne.s32.totalorder %s109, %s112
    %p118 = scmp.eq.s32.totalorder %s10, 0
    %p119 = por %p117, %p118
    %p120 = scmp.ne.s32.totalorder %s109, %s112
    %p121 = scmp.eq.s32.totalorder %s15, 1
    %p122 = por %p120, %p121
    %p123 = scmp.ne.s32.totalorder %s112, %s113
    %p124 = scmp.eq.s32.totalorder %s15, 0
    %p125 = por %p123, %p124
    %p126 = scmp.ne.s32.totalorder %s112, %s113
    %p127 = scmp.eq.s32.totalorder %s16, 1
    %p128 = por %p126, %p127
    %p130 = scmp.ne.s32.totalorder %s113, %s129
    %p131 = scmp.eq.s32.totalorder %s16, 0
    %p132 = por %p130, %p131
    %p133 = scmp.le.s32.totalorder 1, %s10
    %p134 = scmp.lt.s32.totalorder %s10, 3
    %p135 = pnand %p133, %p134
    %p136 = pneg %p135
    // Predicated region
    $region9: #{emodel_bigru_forward.75} parent=5 // pred_check
      _
    $region10: #{emodel_bigru_forward.75} parent=5 // pred_check_branch
      %138 = sbr.rel (%p135) target = $region12
    $region11: #{emodel_bigru_forward.75} parent=5 // pred_region
      %s139 = ssub.s32 %s10, 1
      // Predicated region
      $region13: #{emodel_bigru_forward.75} parent=11 // pred_check
        %p140 = pneg %p57
      $region14: #{emodel_bigru_forward.75} parent=11 // pred_check_branch
        %142 = sbr.rel (%p140) target = $region16
      $region15: #{emodel_bigru_forward.75} parent=11 // pred_region
        _
      $region16: #{emodel_bigru_forward.75} parent=11 // pred_fallthru
        _
      // Predicated region
      $region17: #{emodel_bigru_forward.75} parent=11 // pred_check
        %p143 = pneg %p78
      $region18: #{emodel_bigru_forward.75} parent=11 // pred_check_branch
        %145 = sbr.rel (%p143) target = $region20
      $region19: #{emodel_bigru_forward.75} parent=11 // pred_region
        _
      $region20: #{emodel_bigru_forward.75} parent=11 // pred_fallthru
        _
      // Predicated region
      $region21: #{emodel_bigru_forward.75} parent=11 // pred_check
        %p146 = pneg %p99
      $region22: #{emodel_bigru_forward.75} parent=11 // pred_check_branch
        %148 = sbr.rel (%p146) target = $region24
      $region23: #{emodel_bigru_forward.75} parent=11 // pred_region
        _
      $region24: #{emodel_bigru_forward.75} parent=11 // pred_fallthru
        _
    $region12: #{emodel_bigru_forward.75} parent=5 // pred_fallthru
      _
    %p149 = scmp.lt.s32.totalorder %s10, 2
    // Predicated region
    $region25: #{emodel_bigru_forward.75} parent=5 // pred_check
      %p150 = pneg %p149
    $region26: #{emodel_bigru_forward.75} parent=5 // pred_check_branch
      %152 = sbr.rel (%p150) target = $region28
    $region27: #{emodel_bigru_forward.75} parent=5 // pred_region
      // Predicated region
      $region29: #{emodel_bigru_forward.75} parent=27 // pred_check
        %p153 = pneg %p30
      $region30: #{emodel_bigru_forward.75} parent=27 // pred_check_branch
        %155 = sbr.rel (%p153) target = $region32
      $region31: #{emodel_bigru_forward.75} parent=27 // pred_region
        %p156 = scmp.lt.s32.totalorder %s10, 1
        %s157 = scalar_select %p156, %s10, 1
        %s158 = smul.addr %s157, 2
        %s159 = smul.addr %s158, 8
        %s160 = scalar_lea.vmem %s0, %s159
      $region32: #{emodel_bigru_forward.75} parent=27 // pred_fallthru
        _
    $region28: #{emodel_bigru_forward.75} parent=5 // pred_fallthru
      _
    %p161 = scmp.le.s32.totalorder 1, %s10
    %p162 = scmp.lt.s32.totalorder %s10, 3
    %p163 = pnand %p161, %p162
    %p164 = pneg %p163
    // Predicated region
    $region33: #{emodel_bigru_forward.75} parent=5 // pred_check
      _
    $region34: #{emodel_bigru_forward.75} parent=5 // pred_check_branch
      %166 = sbr.rel (%p163) target = $region36
    $region35: #{emodel_bigru_forward.75} parent=5 // pred_region
      %s167 = ssub.s32 %s10, 1
      %p168 = scmp.lt.s32.totalorder %s15, 1
      %s169 = scalar_select %p168, %s15, 1
      %s170 = smul.addr %s169, 2
      %s171 = smul.addr %s170, 8
      %s172 = scalar_lea.vmem %s0, %s171
      %p173 = pneg %p36
      %p174 = pneg %p33
      %p175 = pneg %p57
      %p176 = pneg %p54
      %p177 = pneg %p78
      %p178 = pneg %p75
      %p179 = pneg %p99
      %p180 = pneg %p96
      %p181 = pneg %p125
      %p182 = pneg %p122
      %p183 = scmp.lt.s32.totalorder %s15, 1
      %s184 = scalar_select %p183, %s15, 1
      %s185 = smul.addr %s184, 2
      %s186 = scalar_lea.vmem %s4, %s185
      %p187 = scmp.lt.s32.totalorder %s15, 1
      %s188 = scalar_select %p187, %s15, 1
      %s189 = smul.addr %s188, 2
      %s190 = smul.addr %s189, 8
      %s191 = scalar_lea.vmem %s0, %s190
      %p192 = scmp.lt.s32.totalorder %s15, 1
      %s193 = scalar_select %p192, %s15, 1
      %s194 = smul.addr %s193, 2
      %s195 = scalar_lea.vmem %s4, %s194
      %v196 = vld [vmem:[%s191] sm:$0xff]
      %v197 = vld [vmem:[%s191 + $0x8] sm:$0xff]
      %v198 = vpack.c.bf16 %v196, %v196
      %v199 = vpack.c.bf16 %v197, %v197
      %v200 = vld [vmem:[%s1] sm:$0xff]
      %v201 = vld [vmem:[%s1 + $0x8] sm:$0xff]
      %v202 = vld [vmem:[%s1 + $0x10] sm:$0xff]
      %v203 = vld [vmem:[%s1 + $0x18] sm:$0xff]
      %v204 = vld [vmem:[%s1 + $0x20] sm:$0xff]
      %v205 = vld [vmem:[%s1 + $0x28] sm:$0xff]
      %v206 = vld [vmem:[%s1 + $0x30] sm:$0xff]
      %v207 = vld [vmem:[%s1 + $0x38] sm:$0xff]
      %v208 = vld [vmem:[%s1 + $0x40] sm:$0xff]
      %v209 = vld [vmem:[%s1 + $0x48] sm:$0xff]
      %v210 = vld [vmem:[%s1 + $0x50] sm:$0xff]
      %v211 = vld [vmem:[%s1 + $0x58] sm:$0xff]
      %v212 = vld [vmem:[%s1 + $0x60] sm:$0xff]
      %v213 = vld [vmem:[%s1 + $0x68] sm:$0xff]
      %v214 = vld [vmem:[%s1 + $0x70] sm:$0xff]
      %v215 = vld [vmem:[%s1 + $0x78] sm:$0xff]
      %v216 = vld [vmem:[%s1 + $0x80] sm:$0xff]
      %v217 = vld [vmem:[%s1 + $0x88] sm:$0xff]
      %v218 = vld [vmem:[%s1 + $0x90] sm:$0xff]
      %v219 = vld [vmem:[%s1 + $0x98] sm:$0xff]
      %v220 = vld [vmem:[%s1 + $0xa0] sm:$0xff]
      %v221 = vld [vmem:[%s1 + $0xa8] sm:$0xff]
      %v222 = vld [vmem:[%s1 + $0xb0] sm:$0xff]
      %v223 = vld [vmem:[%s1 + $0xb8] sm:$0xff]
      %v224 = vld [vmem:[%s1 + $0xc0] sm:$0xff]
      %v225 = vld [vmem:[%s1 + $0xc8] sm:$0xff]
      %v226 = vld [vmem:[%s1 + $0xd0] sm:$0xff]
      %v227 = vld [vmem:[%s1 + $0xd8] sm:$0xff]
      %v228 = vld [vmem:[%s1 + $0xe0] sm:$0xff]
      %v229 = vld [vmem:[%s1 + $0xe8] sm:$0xff]
      %v230 = vld [vmem:[%s1 + $0xf0] sm:$0xff]
      %v231 = vld [vmem:[%s1 + $0xf8] sm:$0xff]
      %v232 = vld [vmem:[%s2] sm:$0x3]
      %v234 = vlaneseq
      %v235 = vshrl.u32 %v234, 7
      %v236 = vsub.s32 0, %v235
      %v237 = vrot.slane %v232, %v236
      %v238 = vlaneseq
      %v239 = vshrl.u32 %v238, 7
      %v240 = vsub.s32 1, %v239
      %v241 = vrot.slane %v232, %v240
      %v276 = vunpack.c.l.b16 %v200
      %v277 = vunpack.c.h.b16 %v200
      %v278 = vunpack.c.l.b16 %v201
      %v279 = vunpack.c.h.b16 %v201
      %v280 = vunpack.c.l.b16 %v202
      %v281 = vunpack.c.h.b16 %v202
      %v282 = vunpack.c.l.b16 %v203
      %v283 = vunpack.c.h.b16 %v203
      %v284 = vunpack.c.l.b16 %v204
      %v285 = vunpack.c.h.b16 %v204
      %v286 = vunpack.c.l.b16 %v205
      %v287 = vunpack.c.h.b16 %v205
      %v288 = vunpack.c.l.b16 %v206
      %v289 = vunpack.c.h.b16 %v206
      %v290 = vunpack.c.l.b16 %v207
      %v291 = vunpack.c.h.b16 %v207
      %v292 = vunpack.c.l.b16 %v208
      %v293 = vunpack.c.h.b16 %v208
      %v294 = vunpack.c.l.b16 %v209
      %v295 = vunpack.c.h.b16 %v209
      %v296 = vunpack.c.l.b16 %v210
      %v297 = vunpack.c.h.b16 %v210
      %v298 = vunpack.c.l.b16 %v211
      %v299 = vunpack.c.h.b16 %v211
      %v300 = vunpack.c.l.b16 %v212
      %v301 = vunpack.c.h.b16 %v212
      %v302 = vunpack.c.l.b16 %v213
      %v303 = vunpack.c.h.b16 %v213
      %v304 = vunpack.c.l.b16 %v214
      %v305 = vunpack.c.h.b16 %v214
      %v306 = vunpack.c.l.b16 %v215
      %v307 = vunpack.c.h.b16 %v215
      %v308 = vunpack.c.l.b16 %v216
      %v309 = vunpack.c.h.b16 %v216
      %v310 = vunpack.c.l.b16 %v217
      %v311 = vunpack.c.h.b16 %v217
      %v312 = vunpack.c.l.b16 %v218
      %v313 = vunpack.c.h.b16 %v218
      %v314 = vunpack.c.l.b16 %v219
      %v315 = vunpack.c.h.b16 %v219
      %v316 = vunpack.c.l.b16 %v220
      %v317 = vunpack.c.h.b16 %v220
      %v318 = vunpack.c.l.b16 %v221
      %v319 = vunpack.c.h.b16 %v221
      %v320 = vunpack.c.l.b16 %v222
      %v321 = vunpack.c.h.b16 %v222
      %v322 = vunpack.c.l.b16 %v223
      %v323 = vunpack.c.h.b16 %v223
      %v324 = vunpack.c.l.b16 %v224
      %v325 = vunpack.c.h.b16 %v224
      %v326 = vunpack.c.l.b16 %v225
      %v327 = vunpack.c.h.b16 %v225
      %v328 = vunpack.c.l.b16 %v226
      %v329 = vunpack.c.h.b16 %v226
      %v330 = vunpack.c.l.b16 %v227
      %v331 = vunpack.c.h.b16 %v227
      %v332 = vunpack.c.l.b16 %v228
      %v333 = vunpack.c.h.b16 %v228
      %v334 = vunpack.c.l.b16 %v229
      %v335 = vunpack.c.h.b16 %v229
      %v336 = vunpack.c.l.b16 %v230
      %v337 = vunpack.c.h.b16 %v230
      %v338 = vunpack.c.l.b16 %v231
      %v339 = vunpack.c.h.b16 %v231
      %v340 = vpack.c.b16 %v278, %v276
      %v341 = vpack.c.b16 %v279, %v277
      %v342 = vpack.c.b16 %v282, %v280
      %v343 = vpack.c.b16 %v283, %v281
      %v344 = vpack.c.b16 %v286, %v284
      %v345 = vpack.c.b16 %v287, %v285
      %v346 = vpack.c.b16 %v290, %v288
      %v347 = vpack.c.b16 %v291, %v289
      %v348 = vpack.c.b16 %v294, %v292
      %v349 = vpack.c.b16 %v295, %v293
      %v350 = vpack.c.b16 %v298, %v296
      %v351 = vpack.c.b16 %v299, %v297
      %v352 = vpack.c.b16 %v302, %v300
      %v353 = vpack.c.b16 %v303, %v301
      %v354 = vpack.c.b16 %v306, %v304
      %v355 = vpack.c.b16 %v307, %v305
      %v356 = vpack.c.b16 %v310, %v308
      %v357 = vpack.c.b16 %v311, %v309
      %v358 = vpack.c.b16 %v314, %v312
      %v359 = vpack.c.b16 %v315, %v313
      %v360 = vpack.c.b16 %v318, %v316
      %v361 = vpack.c.b16 %v319, %v317
      %v362 = vpack.c.b16 %v322, %v320
      %v363 = vpack.c.b16 %v323, %v321
      %v364 = vpack.c.b16 %v326, %v324
      %v365 = vpack.c.b16 %v327, %v325
      %v366 = vpack.c.b16 %v330, %v328
      %v367 = vpack.c.b16 %v331, %v329
      %v368 = vpack.c.b16 %v334, %v332
      %v369 = vpack.c.b16 %v335, %v333
      %v370 = vpack.c.b16 %v338, %v336
      %v371 = vpack.c.b16 %v339, %v337
      %404 = vmatprep.subr.bf16.mxu0 %v341
      %405 = vmatpush1.bf16.msra.mxu0 %v340
      %406 = vmatprep.subr.bf16.mxu0 %v343
      %407 = vmatpush1.bf16.msra.mxu0 %v342
      %408 = vmatprep.subr.bf16.mxu0 %v345
      %409 = vmatpush1.bf16.msra.mxu0 %v344
      %410 = vmatprep.subr.bf16.mxu0 %v347
      %411 = vmatpush1.bf16.msra.mxu0 %v346
      %412 = vmatprep.subr.bf16.mxu0 %v349
      %413 = vmatpush1.bf16.msra.mxu0 %v348
      %414 = vmatprep.subr.bf16.mxu0 %v351
      %415 = vmatpush1.bf16.msra.mxu0 %v350
      %416 = vmatprep.subr.bf16.mxu0 %v353
      %417 = vmatpush1.bf16.msra.mxu0 %v352
      %418 = vmatprep.subr.bf16.mxu0 %v355
      %419 = vmatpush1.bf16.msra.mxu0 %v354
      %420 = vmatprep.subr.bf16.mxu0 %v357
      %421 = vmatpush1.bf16.msra.mxu0 %v356
      %422 = vmatprep.subr.bf16.mxu0 %v359
      %423 = vmatpush1.bf16.msra.mxu0 %v358
      %424 = vmatprep.subr.bf16.mxu0 %v361
      %425 = vmatpush1.bf16.msra.mxu0 %v360
      %426 = vmatprep.subr.bf16.mxu0 %v363
      %427 = vmatpush1.bf16.msra.mxu0 %v362
      %428 = vmatprep.subr.bf16.mxu0 %v365
      %429 = vmatpush1.bf16.msra.mxu0 %v364
      %430 = vmatprep.subr.bf16.mxu0 %v367
      %431 = vmatpush1.bf16.msra.mxu0 %v366
      %432 = vmatprep.subr.bf16.mxu0 %v369
      %433 = vmatpush1.bf16.msra.mxu0 %v368
      %434 = vmatprep.subr.bf16.mxu0 %v371
      %435 = vmatpush1.bf16.msra.mxu0 %v370
      %436 = vmatprep.mubr.bf16.mxu0 %v199
      %437 = vmatmul.mubr.bf16.gmra.mrb[0].mxu0 %v198
      %v438 = vpop.f32.mrb[0].mxu0
      %v439 = vadd.f32 %v237, %v438
      %v440 = vpop.f32.mrb[0].mxu0
      %v441 = vadd.f32 %v241, %v440
      %v442 = vpop.f32.mrb[0].mxu0
      %v443 = vpop.f32.mrb[0].mxu0
      %444 = vdwg.mxu0
      %v445 = vtanh.pop %v439
      %v446 = vtanh.pop %v441
      %v447 = vld [vmem:[%s3] sm:$0x3]
      %v449 = vlaneseq
      %v450 = vshrl.u32 %v449, 7
      %v451 = vsub.s32 0, %v450
      %v452 = vrot.slane %v447, %v451
      %v453 = vlaneseq
      %v454 = vshrl.u32 %v453, 7
      %v455 = vsub.s32 1, %v454
      %v456 = vrot.slane %v447, %v455
      %v459 = vmul.f32 %v445, %v452
      %v460 = vmul.f32 %v446, %v456
      %v461 = vadd.f32 %v459, %v460
      %462 = vadd.xlane.f32.xlu0 %v461
      %v463 = vpop.xlane.xlu0 %462
      %v464 = vrot.slane %v463, 4
      %v465 = vmax.f32 %v463, %v464
      %v466 = vrot.slane %v465, 2
      %v467 = vmax.f32 %v465, %v466
      %v468 = vrot.slane %v467, 1
      %v469 = vmax.f32 %v467, %v468
      %v470 = vsub.f32 %v463, %v469
      %v471 = vmul.f32 %v470, 1.442695
      %v472 = vpow.pop %v471
      %v473 = vrot.slane %v472, 4
      %v474 = vadd.f32 %v472, %v473
      %v475 = vrot.slane %v474, 2
      %v476 = vadd.f32 %v474, %v475
      %v477 = vrot.slane %v476, 1
      %v478 = vadd.f32 %v476, %v477
      %v479 = vrcp.pop %v478
      %v480 = vmul.f32 %v472, %v479
      %v481 = vmul.f32 %v196, %v480
      %v482 = vmul.f32 %v197, %v480
      %v483 = vrot.slane %v481, 4
      %v484 = vadd.f32 %v481, %v483
      %v485 = vrot.slane %v484, 2
      %v486 = vadd.f32 %v484, %v485
      %v487 = vrot.slane %v486, 1
      %v488 = vadd.f32 %v486, %v487
      %v489 = vrot.slane %v482, 4
      %v490 = vadd.f32 %v482, %v489
      %v491 = vrot.slane %v490, 2
      %v492 = vadd.f32 %v490, %v491
      %v493 = vrot.slane %v492, 1
      %v494 = vadd.f32 %v492, %v493
      %v497 = vcombine.low %v488, %v494
      %v499 = vunpack.c.l.s4 1966171168
      %v500 = vunpack.c.0.s8 %v499
      %v501 = vlaneseq
      %v502 = vshrl.u32 %v501, 7
      %v503 = vsub.s32 %v500, %v502
      %v504 = vrot.slane %v497, %v503
      %v506 = vunpack.c.l.s4 1966171168
      %v507 = vunpack.c.0.s8 %v506
      %v508 = vlaneseq
      %v509 = vshrl.u32 %v508, 7
      %v510 = vsub.s32 %v507, %v509
      %v511 = vrot.slane %v504, %v510
      %v513 = vlaneseq
      %vm514 = vcmp.ge.s32.totalorder %v513, 0
      %vm515 = vcmp.lt.s32.totalorder %v513, 256
      %vm516 = vmand %vm514, %vm515
      %517 = vst.msk [vmem:[%s195] sm:$0x3] %vm516, %v511
      %p518 = scmp.lt.s32.totalorder %s15, 1
      %s519 = scalar_select %p518, %s15, 1
      %s520 = smul.addr %s519, 2
      %s521 = scalar_lea.vmem %s4, %s520
      // Predicated region
      $region37: #{emodel_bigru_forward.75} parent=35 // pred_check
        %p522 = pneg %p122
      $region38: #{emodel_bigru_forward.75} parent=35 // pred_check_branch
        %524 = sbr.rel (%p522) target = $region40
      $region39: #{emodel_bigru_forward.75} parent=35 // pred_region
        _
      $region40: #{emodel_bigru_forward.75} parent=35 // pred_fallthru
        _
    $region36: #{emodel_bigru_forward.75} parent=5 // pred_fallthru
      _
    %p525 = scmp.le.s32.totalorder 2, %s10
    // Predicated region
    $region41: #{emodel_bigru_forward.75} parent=5 // pred_check
      %p526 = pneg %p525
    $region42: #{emodel_bigru_forward.75} parent=5 // pred_check_branch
      %528 = sbr.rel (%p526) target = $region44
    $region43: #{emodel_bigru_forward.75} parent=5 // pred_region
      %s529 = ssub.s32 %s10, 2
      // Predicated region
      $region45: #{emodel_bigru_forward.75} parent=43 // pred_check
        %p530 = pneg %p128
      $region46: #{emodel_bigru_forward.75} parent=43 // pred_check_branch
        %532 = sbr.rel (%p530) target = $region48
      $region47: #{emodel_bigru_forward.75} parent=43 // pred_region
        %p533 = scmp.lt.s32.totalorder %s16, 1
        %s534 = scalar_select %p533, %s16, 1
        %s535 = smul.addr %s534, 2
        %s536 = scalar_lea.vmem %s4, %s535
      $region48: #{emodel_bigru_forward.75} parent=43 // pred_fallthru
        _
    $region44: #{emodel_bigru_forward.75} parent=5 // pred_fallthru
      _
  $region6: #{emodel_bigru_forward.75} parent=0 // loop_footer
    %s14 = sadd.s32 1, %s10
  $region7: #{emodel_bigru_forward.75} parent=0 // loop_footer_branch
    %9 = sbr.rel target = $region3
  $region8: #{emodel_bigru_forward.75} parent=0 // loop_exit
    _

// kernel: emodel_bigru_forward.76
$region0: #{emodel_bigru_forward.76}
  #allocation0 [shape = 'u32[]', space=smem, size = 0x4, offset = 0x4, fixed_abs, tag = 'smem constant byte address 0x4 - core index']
  #allocation1 [shape = 'u32[144,128]{1,0:T(1,128)}', space=vmem, size = 0x12000, scoped, tag = 'internal scratch']
  #allocation2 [shape = 'f32[8,128]{1,0:T(8,128)}', space=vmem, size = 0x1000, scoped, tag = 'scratch operand']
  %s0 = inlined_call_operand.vmem [shape: f32[8,256], index: 0, kind: input, shape index: {}]
  %s1 = inlined_call_operand.vmem [shape: bf16[256,128], index: 1, kind: input, shape index: {}]
  %s2 = inlined_call_operand.vmem [shape: f32[1,128], index: 2, kind: input, shape index: {}]
  %s3 = inlined_call_operand.vmem [shape: f32[8,128], index: 3, kind: output, shape index: {}]
  %s4 = sld [smem:[#allocation0]]
  $region30: #{emodel_bigru_forward.76} parent=0
    _
  %s6 = ssub.s32 1, %s4
  %s7 = scalar_select 0, %s6, %s4
  // Predicated region
  $region2: #{emodel_bigru_forward.76} parent=0 // pred_check
    _
  $region3: #{emodel_bigru_forward.76} parent=0 // pred_check_branch
    %9 = sbr.rel (0) target = $region5
  $region4: #{emodel_bigru_forward.76} parent=0 // pred_region
    _
  $region5: #{emodel_bigru_forward.76} parent=0 // pred_fallthru
    _
  // Predicated region
  $region6: #{emodel_bigru_forward.76} parent=0 // pred_check
    _
  $region7: #{emodel_bigru_forward.76} parent=0 // pred_check_branch
    %11 = sbr.rel (0) target = $region9
  $region8: #{emodel_bigru_forward.76} parent=0 // pred_region
    _
  $region9: #{emodel_bigru_forward.76} parent=0 // pred_fallthru
    _
  // Predicated region
  $region10: #{emodel_bigru_forward.76} parent=0 // pred_check
    _
  $region11: #{emodel_bigru_forward.76} parent=0 // pred_check_branch
    %13 = sbr.rel (0) target = $region13
  $region12: #{emodel_bigru_forward.76} parent=0 // pred_region
    _
  $region13: #{emodel_bigru_forward.76} parent=0 // pred_fallthru
    _
  %p15 = scmp.eq.s32.totalorder 0, 0
  // Predicated region
  $region14: #{emodel_bigru_forward.76} parent=0 // pred_check
    %p16 = pneg %p15
  $region15: #{emodel_bigru_forward.76} parent=0 // pred_check_branch
    %18 = sbr.rel (%p16) target = $region17
  $region16: #{emodel_bigru_forward.76} parent=0 // pred_region
    %19 = vst [vmem:[#allocation2] sm:$0xff] 0.0
  $region17: #{emodel_bigru_forward.76} parent=0 // pred_fallthru
    _
  %v20 = vld [vmem:[#allocation2] sm:$0xff]
  %v21 = vld [vmem:[%s0] sm:$0xff]
  %v22 = vld [vmem:[%s0 + $0x8] sm:$0xff]
  %v23 = vpack.c.bf16 %v21, %v21
  %v24 = vpack.c.bf16 %v22, %v22
  %v25 = vld [vmem:[%s1] sm:$0xf]
  %v26 = vld [vmem:[%s1 + $0x4] sm:$0xf]
  %v27 = vld [vmem:[%s1 + $0x8] sm:$0xf]
  %v28 = vld [vmem:[%s1 + $0xc] sm:$0xf]
  %v29 = vld [vmem:[%s1 + $0x10] sm:$0xf]
  %v30 = vld [vmem:[%s1 + $0x14] sm:$0xf]
  %v31 = vld [vmem:[%s1 + $0x18] sm:$0xf]
  %v32 = vld [vmem:[%s1 + $0x1c] sm:$0xf]
  %v33 = vld [vmem:[%s1 + $0x20] sm:$0xf]
  %v34 = vld [vmem:[%s1 + $0x24] sm:$0xf]
  %v35 = vld [vmem:[%s1 + $0x28] sm:$0xf]
  %v36 = vld [vmem:[%s1 + $0x2c] sm:$0xf]
  %v37 = vld [vmem:[%s1 + $0x30] sm:$0xf]
  %v38 = vld [vmem:[%s1 + $0x34] sm:$0xf]
  %v39 = vld [vmem:[%s1 + $0x38] sm:$0xf]
  %v40 = vld [vmem:[%s1 + $0x3c] sm:$0xf]
  %v41 = vld [vmem:[%s1 + $0x40] sm:$0xf]
  %v42 = vld [vmem:[%s1 + $0x44] sm:$0xf]
  %v43 = vld [vmem:[%s1 + $0x48] sm:$0xf]
  %v44 = vld [vmem:[%s1 + $0x4c] sm:$0xf]
  %v45 = vld [vmem:[%s1 + $0x50] sm:$0xf]
  %v46 = vld [vmem:[%s1 + $0x54] sm:$0xf]
  %v47 = vld [vmem:[%s1 + $0x58] sm:$0xf]
  %v48 = vld [vmem:[%s1 + $0x5c] sm:$0xf]
  %v49 = vld [vmem:[%s1 + $0x60] sm:$0xf]
  %v50 = vld [vmem:[%s1 + $0x64] sm:$0xf]
  %v51 = vld [vmem:[%s1 + $0x68] sm:$0xf]
  %v52 = vld [vmem:[%s1 + $0x6c] sm:$0xf]
  %v53 = vld [vmem:[%s1 + $0x70] sm:$0xf]
  %v54 = vld [vmem:[%s1 + $0x74] sm:$0xf]
  %v55 = vld [vmem:[%s1 + $0x78] sm:$0xf]
  %v56 = vld [vmem:[%s1 + $0x7c] sm:$0xf]
  %v89 = vunpack.c.l.b16 %v25
  %v90 = vunpack.c.l.b16 %v26
  %v91 = vunpack.c.l.b16 %v27
  %v92 = vunpack.c.l.b16 %v28
  %v93 = vunpack.c.l.b16 %v29
  %v94 = vunpack.c.l.b16 %v30
  %v95 = vunpack.c.l.b16 %v31
  %v96 = vunpack.c.l.b16 %v32
  %v97 = vunpack.c.l.b16 %v33
  %v98 = vunpack.c.l.b16 %v34
  %v99 = vunpack.c.l.b16 %v35
  %v100 = vunpack.c.l.b16 %v36
  %v101 = vunpack.c.l.b16 %v37
  %v102 = vunpack.c.l.b16 %v38
  %v103 = vunpack.c.l.b16 %v39
  %v104 = vunpack.c.l.b16 %v40
  %v105 = vunpack.c.l.b16 %v41
  %v106 = vunpack.c.l.b16 %v42
  %v107 = vunpack.c.l.b16 %v43
  %v108 = vunpack.c.l.b16 %v44
  %v109 = vunpack.c.l.b16 %v45
  %v110 = vunpack.c.l.b16 %v46
  %v111 = vunpack.c.l.b16 %v47
  %v112 = vunpack.c.l.b16 %v48
  %v113 = vunpack.c.l.b16 %v49
  %v114 = vunpack.c.l.b16 %v50
  %v115 = vunpack.c.l.b16 %v51
  %v116 = vunpack.c.l.b16 %v52
  %v117 = vunpack.c.l.b16 %v53
  %v118 = vunpack.c.l.b16 %v54
  %v119 = vunpack.c.l.b16 %v55
  %v120 = vunpack.c.l.b16 %v56
  %v121 = vpack.c.b16 %v90, %v89
  %v122 = vpack.c.b16 %v92, %v91
  %v123 = vpack.c.b16 %v94, %v93
  %v124 = vpack.c.b16 %v96, %v95
  %v125 = vpack.c.b16 %v98, %v97
  %v126 = vpack.c.b16 %v100, %v99
  %v127 = vpack.c.b16 %v102, %v101
  %v128 = vpack.c.b16 %v104, %v103
  %v129 = vpack.c.b16 %v106, %v105
  %v130 = vpack.c.b16 %v108, %v107
  %v131 = vpack.c.b16 %v110, %v109
  %v132 = vpack.c.b16 %v112, %v111
  %v133 = vpack.c.b16 %v114, %v113
  %v134 = vpack.c.b16 %v116, %v115
  %v135 = vpack.c.b16 %v118, %v117
  %v136 = vpack.c.b16 %v120, %v119
  %153 = vmatprep.subr.bf16.mxu0 0
  %154 = vmatpush1.bf16.msra.mxu0 %v121
  %155 = vmatprep.subr.bf16.mxu0 0
  %156 = vmatpush1.bf16.msra.mxu0 %v122
  %157 = vmatprep.subr.bf16.mxu0 0
  %158 = vmatpush1.bf16.msra.mxu0 %v123
  %159 = vmatprep.subr.bf16.mxu0 0
  %160 = vmatpush1.bf16.msra.mxu0 %v124
  %161 = vmatprep.subr.bf16.mxu0 0
  %162 = vmatpush1.bf16.msra.mxu0 %v125
  %163 = vmatprep.subr.bf16.mxu0 0
  %164 = vmatpush1.bf16.msra.mxu0 %v126
  %165 = vmatprep.subr.bf16.mxu0 0
  %166 = vmatpush1.bf16.msra.mxu0 %v127
  %167 = vmatprep.subr.bf16.mxu0 0
  %168 = vmatpush1.bf16.msra.mxu0 %v128
  %169 = vmatprep.subr.bf16.mxu0 0
  %170 = vmatpush1.bf16.msra.mxu0 %v129
  %171 = vmatprep.subr.bf16.mxu0 0
  %172 = vmatpush1.bf16.msra.mxu0 %v130
  %173 = vmatprep.subr.bf16.mxu0 0
  %174 = vmatpush1.bf16.msra.mxu0 %v131
  %175 = vmatprep.subr.bf16.mxu0 0
  %176 = vmatpush1.bf16.msra.mxu0 %v132
  %177 = vmatprep.subr.bf16.mxu0 0
  %178 = vmatpush1.bf16.msra.mxu0 %v133
  %179 = vmatprep.subr.bf16.mxu0 0
  %180 = vmatpush1.bf16.msra.mxu0 %v134
  %181 = vmatprep.subr.bf16.mxu0 0
  %182 = vmatpush1.bf16.msra.mxu0 %v135
  %183 = vmatprep.subr.bf16.mxu0 0
  %184 = vmatpush1.bf16.msra.mxu0 %v136
  %185 = vmatprep.mubr.bf16.mxu0 %v24
  %186 = vmatmul.mubr.bf16.gmra.mrb[0].mxu0 %v23
  %v187 = vpop.f32.mrb[0].mxu0
  %v188 = vadd.f32 0.0, %v187
  %v189 = vpop.f32.mrb[0].mxu0
  %v190 = vpop.f32.mrb[0].mxu0
  %v191 = vpop.f32.mrb[0].mxu0
  %192 = vdwg.mxu0
  %v193 = vadd.f32 %v20, %v188
  %194 = vst [vmem:[#allocation2] sm:$0xff] %v193
  // Predicated region
  $region18: #{emodel_bigru_forward.76} parent=0 // pred_check
    %p195 = pneg %p15
  $region19: #{emodel_bigru_forward.76} parent=0 // pred_check_branch
    %197 = sbr.rel (%p195) target = $region21
  $region20: #{emodel_bigru_forward.76} parent=0 // pred_region
    %v198 = vld [vmem:[#allocation2] sm:$0xff]
    %v199 = vld [vmem:[%s2] sm:$0x1]
    %v201 = vlaneseq
    %v202 = vshrl.u32 %v201, 7
    %v203 = vsub.s32 0, %v202
    %v204 = vrot.slane %v199, %v203
    %v206 = vadd.f32 %v198, %v204
    %v207 = vmax.f32 %v206, 0.0
    %208 = vst [vmem:[%s3] sm:$0xff] %v207
  $region21: #{emodel_bigru_forward.76} parent=0 // pred_fallthru
    _
  // Predicated region
  $region22: #{emodel_bigru_forward.76} parent=0 // pred_check
    _
  $region23: #{emodel_bigru_forward.76} parent=0 // pred_check_branch
    %210 = sbr.rel (0) target = $region25
  $region24: #{emodel_bigru_forward.76} parent=0 // pred_region
    _
  $region25: #{emodel_bigru_forward.76} parent=0 // pred_fallthru
    _
  // Predicated region
  $region26: #{emodel_bigru_forward.76} parent=0 // pred_check
    _
  $region27: #{emodel_bigru_forward.76} parent=0 // pred_check_branch
    %212 = sbr.rel (0) target = $region29
  $region28: #{emodel_bigru_forward.76} parent=0 // pred_region
    _
  $region29: #{emodel_bigru_forward.76} parent=0 // pred_fallthru
    _

// kernel: emodel_bigru_forward.77
$region0: #{emodel_bigru_forward.77}
  #allocation0 [shape = 'u32[]', space=smem, size = 0x4, offset = 0x4, fixed_abs, tag = 'smem constant byte address 0x4 - core index']
  #allocation1 [shape = 'u32[144,128]{1,0:T(1,128)}', space=vmem, size = 0x12000, scoped, tag = 'internal scratch']
  #allocation2 [shape = 'f32[8,128]{1,0:T(8,128)}', space=vmem, size = 0x1000, scoped, tag = 'scratch operand']
  %s0 = inlined_call_operand.vmem [shape: f32[8,128], index: 0, kind: input, shape index: {}]
  %s1 = inlined_call_operand.vmem [shape: bf16[128,128], index: 1, kind: input, shape index: {}]
  %s2 = inlined_call_operand.vmem [shape: f32[1,128], index: 2, kind: input, shape index: {}]
  %s3 = inlined_call_operand.vmem [shape: f32[8,128], index: 3, kind: output, shape index: {}]
  %s4 = sld [smem:[#allocation0]]
  $region30: #{emodel_bigru_forward.77} parent=0
    _
  %s6 = ssub.s32 1, %s4
  %s7 = scalar_select 0, %s6, %s4
  // Predicated region
  $region2: #{emodel_bigru_forward.77} parent=0 // pred_check
    _
  $region3: #{emodel_bigru_forward.77} parent=0 // pred_check_branch
    %9 = sbr.rel (0) target = $region5
  $region4: #{emodel_bigru_forward.77} parent=0 // pred_region
    _
  $region5: #{emodel_bigru_forward.77} parent=0 // pred_fallthru
    _
  // Predicated region
  $region6: #{emodel_bigru_forward.77} parent=0 // pred_check
    _
  $region7: #{emodel_bigru_forward.77} parent=0 // pred_check_branch
    %11 = sbr.rel (0) target = $region9
  $region8: #{emodel_bigru_forward.77} parent=0 // pred_region
    _
  $region9: #{emodel_bigru_forward.77} parent=0 // pred_fallthru
    _
  // Predicated region
  $region10: #{emodel_bigru_forward.77} parent=0 // pred_check
    _
  $region11: #{emodel_bigru_forward.77} parent=0 // pred_check_branch
    %13 = sbr.rel (0) target = $region13
  $region12: #{emodel_bigru_forward.77} parent=0 // pred_region
    _
  $region13: #{emodel_bigru_forward.77} parent=0 // pred_fallthru
    _
  %p15 = scmp.eq.s32.totalorder 0, 0
  // Predicated region
  $region14: #{emodel_bigru_forward.77} parent=0 // pred_check
    %p16 = pneg %p15
  $region15: #{emodel_bigru_forward.77} parent=0 // pred_check_branch
    %18 = sbr.rel (%p16) target = $region17
  $region16: #{emodel_bigru_forward.77} parent=0 // pred_region
    %19 = vst [vmem:[#allocation2] sm:$0xff] 0.0
  $region17: #{emodel_bigru_forward.77} parent=0 // pred_fallthru
    _
  %v20 = vld [vmem:[#allocation2] sm:$0xff]
  %v21 = vld [vmem:[%s0] sm:$0xff]
  %v22 = vpack.c.bf16 %v21, %v21
  %v23 = vld [vmem:[%s1] sm:$0xf]
  %v24 = vld [vmem:[%s1 + $0x4] sm:$0xf]
  %v25 = vld [vmem:[%s1 + $0x8] sm:$0xf]
  %v26 = vld [vmem:[%s1 + $0xc] sm:$0xf]
  %v27 = vld [vmem:[%s1 + $0x10] sm:$0xf]
  %v28 = vld [vmem:[%s1 + $0x14] sm:$0xf]
  %v29 = vld [vmem:[%s1 + $0x18] sm:$0xf]
  %v30 = vld [vmem:[%s1 + $0x1c] sm:$0xf]
  %v31 = vld [vmem:[%s1 + $0x20] sm:$0xf]
  %v32 = vld [vmem:[%s1 + $0x24] sm:$0xf]
  %v33 = vld [vmem:[%s1 + $0x28] sm:$0xf]
  %v34 = vld [vmem:[%s1 + $0x2c] sm:$0xf]
  %v35 = vld [vmem:[%s1 + $0x30] sm:$0xf]
  %v36 = vld [vmem:[%s1 + $0x34] sm:$0xf]
  %v37 = vld [vmem:[%s1 + $0x38] sm:$0xf]
  %v38 = vld [vmem:[%s1 + $0x3c] sm:$0xf]
  %v55 = vunpack.c.l.b16 %v23
  %v56 = vunpack.c.l.b16 %v24
  %v57 = vunpack.c.l.b16 %v25
  %v58 = vunpack.c.l.b16 %v26
  %v59 = vunpack.c.l.b16 %v27
  %v60 = vunpack.c.l.b16 %v28
  %v61 = vunpack.c.l.b16 %v29
  %v62 = vunpack.c.l.b16 %v30
  %v63 = vunpack.c.l.b16 %v31
  %v64 = vunpack.c.l.b16 %v32
  %v65 = vunpack.c.l.b16 %v33
  %v66 = vunpack.c.l.b16 %v34
  %v67 = vunpack.c.l.b16 %v35
  %v68 = vunpack.c.l.b16 %v36
  %v69 = vunpack.c.l.b16 %v37
  %v70 = vunpack.c.l.b16 %v38
  %v71 = vpack.c.b16 %v56, %v55
  %v72 = vpack.c.b16 %v58, %v57
  %v73 = vpack.c.b16 %v60, %v59
  %v74 = vpack.c.b16 %v62, %v61
  %v75 = vpack.c.b16 %v64, %v63
  %v76 = vpack.c.b16 %v66, %v65
  %v77 = vpack.c.b16 %v68, %v67
  %v78 = vpack.c.b16 %v70, %v69
  %87 = vmatprep.subr.bf16.mxu0 0
  %88 = vmatpush1.bf16.msra.mxu0 %v71
  %89 = vmatprep.subr.bf16.mxu0 0
  %90 = vmatpush1.bf16.msra.mxu0 %v72
  %91 = vmatprep.subr.bf16.mxu0 0
  %92 = vmatpush1.bf16.msra.mxu0 %v73
  %93 = vmatprep.subr.bf16.mxu0 0
  %94 = vmatpush1.bf16.msra.mxu0 %v74
  %95 = vmatprep.subr.bf16.mxu0 0
  %96 = vmatpush1.bf16.msra.mxu0 %v75
  %97 = vmatprep.subr.bf16.mxu0 0
  %98 = vmatpush1.bf16.msra.mxu0 %v76
  %99 = vmatprep.subr.bf16.mxu0 0
  %100 = vmatpush1.bf16.msra.mxu0 %v77
  %101 = vmatprep.subr.bf16.mxu0 0
  %102 = vmatpush1.bf16.msra.mxu0 %v78
  %103 = vmatprep.subr.bf16.mxu0 0
  %104 = vmatpush1.bf16.msra.mxu0 0
  %105 = vmatprep.subr.bf16.mxu0 0
  %106 = vmatpush1.bf16.msra.mxu0 0
  %107 = vmatprep.subr.bf16.mxu0 0
  %108 = vmatpush1.bf16.msra.mxu0 0
  %109 = vmatprep.subr.bf16.mxu0 0
  %110 = vmatpush1.bf16.msra.mxu0 0
  %111 = vmatprep.subr.bf16.mxu0 0
  %112 = vmatpush1.bf16.msra.mxu0 0
  %113 = vmatprep.subr.bf16.mxu0 0
  %114 = vmatpush1.bf16.msra.mxu0 0
  %115 = vmatprep.subr.bf16.mxu0 0
  %116 = vmatpush1.bf16.msra.mxu0 0
  %117 = vmatprep.subr.bf16.mxu0 0
  %118 = vmatpush1.bf16.msra.mxu0 0
  %119 = vmatprep.mubr.bf16.mxu0 0
  %120 = vmatmul.mubr.bf16.gmra.mrb[0].mxu0 %v22
  %v121 = vpop.f32.mrb[0].mxu0
  %v122 = vadd.f32 0.0, %v121
  %v123 = vpop.f32.mrb[0].mxu0
  %v124 = vpop.f32.mrb[0].mxu0
  %v125 = vpop.f32.mrb[0].mxu0
  %126 = vdwg.mxu0
  %v127 = vadd.f32 %v20, %v122
  %128 = vst [vmem:[#allocation2] sm:$0xff] %v127
  // Predicated region
  $region18: #{emodel_bigru_forward.77} parent=0 // pred_check
    %p129 = pneg %p15
  $region19: #{emodel_bigru_forward.77} parent=0 // pred_check_branch
    %131 = sbr.rel (%p129) target = $region21
  $region20: #{emodel_bigru_forward.77} parent=0 // pred_region
    %v132 = vld [vmem:[#allocation2] sm:$0xff]
    %v133 = vld [vmem:[%s2] sm:$0x1]
    %v135 = vlaneseq
    %v136 = vshrl.u32 %v135, 7
    %v137 = vsub.s32 0, %v136
    %v138 = vrot.slane %v133, %v137
    %v140 = vadd.f32 %v132, %v138
    %141 = vst [vmem:[%s3] sm:$0xff] %v140
  $region21: #{emodel_bigru_forward.77} parent=0 // pred_fallthru
    _
  // Predicated region
  $region22: #{emodel_bigru_forward.77} parent=0 // pred_check
    _
  $region23: #{emodel_bigru_forward.77} parent=0 // pred_check_branch
    %143 = sbr.rel (0) target = $region25
  $region24: #{emodel_bigru_forward.77} parent=0 // pred_region
    _
  $region25: #{emodel_bigru_forward.77} parent=0 // pred_fallthru
    _
  // Predicated region
  $region26: #{emodel_bigru_forward.77} parent=0 // pred_check
    _
  $region27: #{emodel_bigru_forward.77} parent=0 // pred_check_branch
    %145 = sbr.rel (0) target = $region29
  $region28: #{emodel_bigru_forward.77} parent=0 // pred_region
    _
  $region29: #{emodel_bigru_forward.77} parent=0 // pred_fallthru
    _

</llo_original>
